<compile_context>
chip_gen: v7x
topology: tpu7x:2x2x1
jax: 0.10.0
libtpu: 0.0.40
codegen_flags: <defaults>
</compile_context>

<pallas_src>
import jax
import jax.numpy as jnp
from jax.experimental import pallas as pl
from jax.experimental.pallas import tpu as pltpu


_NEG_BIG = -1e30                 # finite "-inf" sentinel; softmax math stays f32
_VMEM_LIMIT = 48 * 1024 * 1024   # > v5e's 16 MiB scoped default, < v7x 64 MiB physical


def _round_up(n, m):
    return ((n + m - 1) // m) * m


def _pick_tile(n_pad, pref, min_blocks=1):
    """Largest multiple of 128 <= pref dividing n_pad, preferring >= min_blocks blocks."""
    best = 128
    t = 128
    lim = min(pref, n_pad)
    while t <= lim:
        if n_pad % t == 0 and (n_pad // t) >= min_blocks:
            best = t
        t += 128
    return best


# ---------------------------------------------------------------------------
# Kernel 1: fused-head projection + attention logits
#   feat = x @ W_all                          (bm, H*D)
#   [er | el] = feat_f32 @ block_diag(attn)   (bm, 2H)
# ---------------------------------------------------------------------------
def _make_fc_kernel(mxu_dtype, H):
    def kernel(x_ref, w_ref, arl_ref, feat_ref, er_ref, el_ref):
        acc = jnp.dot(x_ref[...].astype(mxu_dtype), w_ref[...].astype(mxu_dtype),
                      preferred_element_type=jnp.float32)          # (bm, HD) f32
        feat_ref[...] = acc.astype(feat_ref.dtype)
        scores = jnp.dot(acc.astype(mxu_dtype), arl_ref[...].astype(mxu_dtype),
                         preferred_element_type=jnp.float32)        # (bm, 2H)
        er_ref[...] = scores[:, :H]
        el_ref[...] = scores[:, H:]
    return kernel


# ---------------------------------------------------------------------------
# Kernel 2: masked edge softmax + aggregation (all heads), online softmax
# over source-node tiles (flash-attention style), lane-dense state updates.
# ---------------------------------------------------------------------------
def _make_attn_kernel(H, D, negative_slope, apply_elu, mxu_dtype, approx_recip):
    def kernel(nnz_ref, feat_ref, er_ref, elt_ref, adj_ref, out_ref,
               m_scr, l_scr, acc_scr):
        i = pl.program_id(0)
        j = pl.program_id(1)
        n_sb = pl.num_programs(1)

        @pl.when(j == 0)
        def _init():
            m_scr[...] = jnp.full(m_scr.shape, _NEG_BIG, jnp.float32)
            l_scr[...] = jnp.zeros(l_scr.shape, jnp.float32)
            acc_scr[...] = jnp.zeros(acc_scr.shape, jnp.float32)

        # Skip compute on all-zero adjacency tiles (exactly equivalent:
        # p == 0 everywhere and corr == 1 for such a tile).
        @pl.when(nnz_ref[i * n_sb + j] > 0)
        def _compute():
            mask = adj_ref[...] != 0                     # int8 tile -> bool, no f32 unpack
            feat_s = feat_ref[...]                       # (Ts, HD) mxu_dtype
            er_all = er_ref[...]                         # (Td, H)  dst logits (one load)
            el_all = elt_ref[...]                        # (H, Ts)  src logits (row form)
            m_prev = m_scr[...]                          # (Td, HD) per-head max bcast over D

            td = er_all.shape[0]
            m_parts, l_parts, pv_parts = [], [], []
            for h in range(H):                           # static unroll, H small
                er_h = er_all[:, h:h + 1]                # (Td, 1)
                el_h = el_all[h:h + 1, :]                # (1, Ts)
                e = er_h + el_h                          # (Td, Ts)
                e = jnp.maximum(e, negative_slope * e)   # leaky relu (slope < 1)
                e = jnp.where(mask, e, _NEG_BIG)
                m_prev_h = m_prev[:, h * D:h * D + 1]    # (Td, 1)
                m_new_h = jnp.maximum(m_prev_h, jnp.max(e, axis=-1, keepdims=True))
                # do-not-remove: rows with no edges in this src block would get p = 1
                p = jnp.where(mask, jnp.exp(e - m_new_h), 0.0)       # (Td, Ts)
                l_h = jnp.sum(p, axis=-1, keepdims=True)             # (Td, 1)
                pv_h = jnp.dot(p.astype(mxu_dtype), feat_s[:, h * D:(h + 1) * D],
                               preferred_element_type=jnp.float32)   # (Td, D)
                m_parts.append(jnp.broadcast_to(m_new_h, (td, D)))
                l_parts.append(jnp.broadcast_to(l_h, (td, D)))
                pv_parts.append(pv_h)

            # single lane-dense (Td, HD) updates -- no per-head partial stores
            m_new = jnp.concatenate(m_parts, axis=-1) if H > 1 else m_parts[0]
            l_new = jnp.concatenate(l_parts, axis=-1) if H > 1 else l_parts[0]
            pv = jnp.concatenate(pv_parts, axis=-1) if H > 1 else pv_parts[0]
            corr = jnp.exp(m_prev - m_new)               # in [0, 1], finite
            l_scr[...] = corr * l_scr[...] + l_new
            acc_scr[...] = corr * acc_scr[...] + pv
            m_scr[...] = m_new

        @pl.when(j == pl.num_programs(1) - 1)
        def _finalize():
            l = l_scr[...]
            l_safe = jnp.where(l > 0, l, 1.0)            # zero in-degree guard
            r = acc_scr[...] * pl.reciprocal(l_safe, approx=approx_recip)
            if apply_elu:
                r = jnp.where(r > 0, r, jnp.exp(r) - 1.0)
            out_ref[...] = r.astype(out_ref.dtype)       # one lane-dense store

    return kernel


# ---------------------------------------------------------------------------
# One GATConv layer (all heads fused).  x is (Np, F_in); returns (Np, H*D).
# ---------------------------------------------------------------------------
def gat_conv(x, W, attn_l, attn_r, adj_i8, block_nnz, *, td, ts, negative_slope,
             apply_elu, mxu_dtype, out_dtype):
    Np, F_in = x.shape
    H, _, D = W.shape
    HD = H * D
    feat_bytes = jnp.dtype(mxu_dtype).itemsize

    # fused-head weight: W_all[:, h*D:(h+1)*D] = W[h]
    W_all = jnp.transpose(W, (1, 0, 2)).reshape(F_in, HD)
    # block-diagonal attention selectors (HD, 2H): col h <- attn_r[h], col H+h <- attn_l[h]
    eye = jnp.eye(H, dtype=jnp.float32)
    ar_mat = jnp.einsum("hd,hk->hdk", attn_r.reshape(H, D), eye).reshape(HD, H)
    al_mat = jnp.einsum("hd,hk->hdk", attn_l.reshape(H, D), eye).reshape(HD, H)
    arl = jnp.concatenate([ar_mat, al_mat], axis=1)                  # (HD, 2H)

    # --- 1) projection + attention logits (one lane-dense MXU matmul) ------
    bm = _pick_tile(Np, 256, min_blocks=2)
    # TODO(synk): for very large F_in (Cora 1433 / Reddit 602) add a K grid
    # axis with an f32 VMEM accumulator instead of the resident (F_in, HD) W.
    feat, er, el = pl.pallas_call(
        _make_fc_kernel(mxu_dtype, H),
        out_shape=(jax.ShapeDtypeStruct((Np, HD), mxu_dtype),
                   jax.ShapeDtypeStruct((Np, H), jnp.float32),
                   jax.ShapeDtypeStruct((Np, H), jnp.float32)),
        grid=(Np // bm,),
        in_specs=[
            pl.BlockSpec((bm, F_in), lambda i: (i, 0)),
            pl.BlockSpec((F_in, HD), lambda i: (0, 0)),
            pl.BlockSpec((HD, 2 * H), lambda i: (0, 0)),
        ],
        out_specs=(
            pl.BlockSpec((bm, HD), lambda i: (i, 0)),
            pl.BlockSpec((bm, H), lambda i: (i, 0)),
            pl.BlockSpec((bm, H), lambda i: (i, 0)),
        ),
        compiler_params=pltpu.CompilerParams(
            dimension_semantics=("parallel",),
            vmem_limit_bytes=_VMEM_LIMIT),
        cost_estimate=pl.CostEstimate(
            flops=2 * Np * F_in * HD + 4 * Np * HD * H,
            transcendentals=0,
            bytes_accessed=(Np * F_in + F_in * HD) * 4
                           + Np * HD * feat_bytes + Np * H * 8),
    )(x, W_all, arl)
    elt = el.T                                   # (H, Np), tiny XLA transpose

    # --- 2) tiled masked edge softmax + aggregation (online softmax) -------
    n_db, n_sb = Np // td, Np // ts
    kernel = _make_attn_kernel(H, D, float(negative_slope), bool(apply_elu),
                               mxu_dtype,
                               approx_recip=(mxu_dtype == jnp.bfloat16))
    out = pl.pallas_call(
        kernel,
        out_shape=jax.ShapeDtypeStruct((Np, HD), out_dtype),
        grid_spec=pltpu.PrefetchScalarGridSpec(
            num_scalar_prefetch=1,
            grid=(n_db, n_sb),                                        # (dst, src)
            in_specs=[
                pl.BlockSpec((ts, HD), lambda i, j, nnz: (j, 0)),     # feat (src rows)
                pl.BlockSpec((td, H), lambda i, j, nnz: (i, 0)),      # er (dst rows)
                pl.BlockSpec((H, ts), lambda i, j, nnz: (0, j)),      # el^T (src cols)
                pl.BlockSpec((td, ts), lambda i, j, nnz: (i, j)),     # adj int8 tile
            ],
            out_specs=pl.BlockSpec((td, HD), lambda i, j, nnz: (i, 0)),
            scratch_shapes=[
                pltpu.VMEM((td, HD), jnp.float32),    # running max (per head, bcast D)
                pltpu.VMEM((td, HD), jnp.float32),    # running denom
                pltpu.VMEM((td, HD), jnp.float32),    # running acc
            ]),
        compiler_params=pltpu.CompilerParams(
            dimension_semantics=("parallel", "arbitrary"),
            vmem_limit_bytes=_VMEM_LIMIT),
        cost_estimate=pl.CostEstimate(
            flops=2 * Np * Np * HD + 8 * Np * Np * H,
            transcendentals=Np * Np * H,
            bytes_accessed=Np * Np + n_db * Np * HD * feat_bytes
                           + Np * HD * jnp.dtype(out_dtype).itemsize + Np * H * 8),
    )(block_nnz, feat, er, elt, adj_i8)
    return out                                   # (Np, H*D), head-flattened


# ---------------------------------------------------------------------------
# Full GAT forward (mirrors GAT.forward)
# ---------------------------------------------------------------------------
def gat_forward(layers, adj_i8, inputs, *, negative_slope=0.2,
                mxu_dtype=jnp.bfloat16, td_pref=256, ts_pref=512):
    N = inputs.shape[0]
    Np = _round_up(N, 128)
    # dst tile kept to >=2 blocks (v7x megacore sharding); src tile large to
    # amortize per-grid-step overhead and feat re-streaming.
    td = _pick_tile(Np, td_pref, min_blocks=2)
    ts = _pick_tile(Np, ts_pref, min_blocks=1)

    pad = Np - N
    adj_p = jnp.pad(adj_i8, ((0, pad), (0, pad))) if pad else adj_i8
    h = jnp.pad(inputs, ((0, pad), (0, 0))) if pad else inputs

    # per-(dst-block, src-block) edge counts -> compute skip of empty tiles
    n_db, n_sb = Np // td, Np // ts
    block_nnz = (adj_p.astype(jnp.int32)
                 .reshape(n_db, td, n_sb, ts).sum(axis=(1, 3)).reshape(-1))

    # hidden layers: ELU; emit mxu_dtype (bf16) to halve HBM writeback + next read
    for layer in layers[:-1]:
        h = gat_conv(h, layer["W"], layer["attn_l"], layer["attn_r"], adj_p,
                     block_nnz, td=td, ts=ts, negative_slope=negative_slope,
                     apply_elu=True, mxu_dtype=mxu_dtype, out_dtype=mxu_dtype)
    # output layer: no activation, f32, mean over heads
    layer = layers[-1]
    out = gat_conv(h, layer["W"], layer["attn_l"], layer["attn_r"], adj_p,
                   block_nnz, td=td, ts=ts, negative_slope=negative_slope,
                   apply_elu=False, mxu_dtype=mxu_dtype, out_dtype=jnp.float32)
    H, _, C = layer["W"].shape
    return out[:N].reshape(N, H, C).mean(axis=1)                      # (N, C)


# ---------------------------------------------------------------------------
# Pure-JAX reference (same math, no Pallas)
# ---------------------------------------------------------------------------
def _gat_conv_ref(x, W, al, ar, adj_mask, slope, apply_elu):
    hp = jax.lax.Precision.HIGHEST
    feat = jnp.einsum("nf,hfd->hnd", x, W, precision=hp)
    el = jnp.sum(feat * al, axis=-1)                    # (H, N) src
    er = jnp.sum(feat * ar, axis=-1)                    # (H, N) dst
    e = er[:, :, None] + el[:, None, :]                 # (H, dst, src)
    e = jnp.where(e >= 0, e, slope * e)
    mask = adj_mask[None, :, :]
    e = jnp.where(mask, e, _NEG_BIG)
    m = jnp.max(e, axis=-1, keepdims=True)
    p = jnp.where(mask, jnp.exp(e - m), 0.0)
    denom = jnp.sum(p, axis=-1, keepdims=True)
    alpha = p / jnp.maximum(denom, 1e-30)
    rst = jnp.einsum("hij,hjd->hid", alpha, feat, precision=hp)
    if apply_elu:
        rst = jnp.where(rst > 0, rst, jnp.exp(rst) - 1.0)
    return rst                                          # (H, N, D)


def gat_forward_ref(layers, adj_mask, inputs, negative_slope=0.2):
    h = inputs
    for layer in layers[:-1]:
        out = _gat_conv_ref(h, layer["W"], layer["attn_l"], layer["attn_r"],
                            adj_mask, negative_slope, True)
        Hh, N, D = out.shape
        h = jnp.transpose(out, (1, 0, 2)).reshape(N, Hh * D)
    layer = layers[-1]
    out = _gat_conv_ref(h, layer["W"], layer["attn_l"], layer["attn_r"],
                        adj_mask, negative_slope, False)
    return jnp.mean(jnp.transpose(out, (1, 0, 2)), axis=1)


# ---------------------------------------------------------------------------
# Deterministic parameter construction (module __init__ shapes)
# ---------------------------------------------------------------------------
def init_gat_params(key, num_layers, in_dim, num_hidden, num_classes, heads):
    layers = []
    dims_in = [in_dim] + [num_hidden * heads[l] for l in range(num_layers)]
    dims_out = [num_hidden] * num_layers + [num_classes]
    for l in range(num_layers + 1):
        f_in, d, h = dims_in[l], dims_out[l], heads[l]
        key, k1, k2, k3 = jax.random.split(key, 4)
        scale = (2.0 / (f_in + d)) ** 0.5
        layers.append({
            "W": scale * jax.random.normal(k1, (h, f_in, d), jnp.float32),
            "attn_l": 0.1 * jax.random.normal(k2, (h, 1, d), jnp.float32),
            "attn_r": 0.1 * jax.random.normal(k3, (h, 1, d), jnp.float32),
        })
    return layers


if __name__ == "__main__":
    key = jax.random.PRNGKey(0)

    # small config: 2 hidden GAT layers + output layer
    N = 256
    in_dim = 64
    num_hidden = 32
    num_classes = 8
    num_layers = 2
    heads = [4, 4, 1]          # H*D = 128 for hidden layers -> lane-dense
    negative_slope = 0.2

    key, kx, ka, kp = jax.random.split(key, 4)
    x = jax.random.normal(kx, (N, in_dim), jnp.float32)

    # random graph + self loops so every node has in-degree >= 1
    adj_f = (jax.random.uniform(ka, (N, N)) < 0.05).astype(jnp.float32)
    adj_f = jnp.maximum(adj_f, jnp.eye(N, dtype=jnp.float32))
    adj_i8 = adj_f.astype(jnp.int8)     # 4x less HBM/VMEM than f32
    adj_mask = adj_f > 0

    layers = init_gat_params(kp, num_layers, in_dim, num_hidden,
                             num_classes, heads)

    fwd = jax.jit(gat_forward, static_argnames=("negative_slope", "mxu_dtype"))

    ref = jax.block_until_ready(gat_forward_ref(layers, adj_mask, x,
                                                negative_slope))

    # f32 MXU path
    out_f32 = jax.block_until_ready(
        fwd(layers, adj_i8, x, negative_slope=negative_slope,
            mxu_dtype=jnp.float32))
    assert out_f32.shape == (N, num_classes), out_f32.shape
    assert jnp.allclose(out_f32, ref, atol=2e-2, rtol=2e-2), \
        float(jnp.max(jnp.abs(out_f32 - ref)))

    # bf16 MXU path (default perf config) -- looser check (bf16 mantissa)
    out_bf16 = jax.block_until_ready(
        fwd(layers, adj_i8, x, negative_slope=negative_slope,
            mxu_dtype=jnp.bfloat16))
    assert out_bf16.shape == (N, num_classes), out_bf16.shape
    assert jnp.allclose(out_bf16, ref, atol=1.5e-1, rtol=1.5e-1), \
        float(jnp.max(jnp.abs(out_bf16 - ref)))

    print("KERNEL_OK")
</pallas_src>

<mosaic_0001>
module attributes {stable_mosaic.version = 11 : i64} {
  func.func @kernel(%arg0: i32, %arg1: memref<128x64xf32, #tpu.memory_space<vmem>>, %arg2: memref<64x128xf32, #tpu.memory_space<vmem>>, %arg3: memref<128x8xf32, #tpu.memory_space<vmem>>, %arg4: memref<128x128xf32, #tpu.memory_space<vmem>>, %arg5: memref<128x4xf32, #tpu.memory_space<vmem>>, %arg6: memref<128x4xf32, #tpu.memory_space<vmem>>) attributes {dimension_semantics = [#tpu.dimension_semantics<parallel>], iteration_bounds = array<i64: 2>, scalar_prefetch = 0 : i64, scratch_operands = 0 : i64, tpu.core_type = #tpu.core_type<tc>, window_params = [{transform_indices = @transform_0, window_bounds = array<i64: 128, 64>}, {pipeline_mode = #tpu.pipeline_mode<synchronous>, transform_indices = @transform_1, window_bounds = array<i64: 64, 128>}, {pipeline_mode = #tpu.pipeline_mode<synchronous>, transform_indices = @transform_2, window_bounds = array<i64: 128, 8>}, {transform_indices = @transform_3, window_bounds = array<i64: 128, 128>}, {transform_indices = @transform_4, window_bounds = array<i64: 128, 4>}, {transform_indices = @transform_5, window_bounds = array<i64: 128, 4>}]} {
    %c0 = arith.constant 0 : index
    %c0_0 = arith.constant 0 : index
    %0 = vector.load %arg1[%c0, %c0_0] : memref<128x64xf32, #tpu.memory_space<vmem>>, vector<128x64xf32>
    %c0_1 = arith.constant 0 : index
    %c0_2 = arith.constant 0 : index
    %1 = vector.load %arg2[%c0_1, %c0_2] : memref<64x128xf32, #tpu.memory_space<vmem>>, vector<64x128xf32>
    %cst = arith.constant dense<0.000000e+00> : vector<128x128xf32>
    %2 = tpu.matmul %0, %1, %cst {dimension_numbers = #tpu.dot_dimension_numbers<[1], [0], [0], [1], [0, 0, 1, 1], [], []>} : vector<128x64xf32>, vector<64x128xf32>, vector<128x128xf32> -> vector<128x128xf32>
    %c0_3 = arith.constant 0 : index
    %c0_4 = arith.constant 0 : index
    %3 = vector.load %arg4[%c0_3, %c0_4] : memref<128x128xf32, #tpu.memory_space<vmem>>, vector<128x128xf32>
    tpu.vector_store %arg4[%c0_3, %c0_4], %2 {strides = array<i32>} : memref<128x128xf32, #tpu.memory_space<vmem>>, vector<128x128xf32>,
    %c0_5 = arith.constant 0 : index
    %c0_6 = arith.constant 0 : index
    %4 = vector.load %arg3[%c0_5, %c0_6] : memref<128x8xf32, #tpu.memory_space<vmem>>, vector<128x8xf32>
    %cst_7 = arith.constant dense<0.000000e+00> : vector<128x8xf32>
    %5 = tpu.matmul %2, %4, %cst_7 {dimension_numbers = #tpu.dot_dimension_numbers<[1], [0], [0], [1], [0, 0, 1, 1], [], []>} : vector<128x128xf32>, vector<128x8xf32>, vector<128x8xf32> -> vector<128x8xf32>
    %6 = vector.extract_strided_slice %5 {offsets = [0, 0], sizes = [128, 4], strides = [1, 1]} : vector<128x8xf32> to vector<128x4xf32>
    %c0_8 = arith.constant 0 : index
    %c0_9 = arith.constant 0 : index
    %7 = vector.load %arg5[%c0_8, %c0_9] : memref<128x4xf32, #tpu.memory_space<vmem>>, vector<128x4xf32>
    tpu.vector_store %arg5[%c0_8, %c0_9], %6 {strides = array<i32>} : memref<128x4xf32, #tpu.memory_space<vmem>>, vector<128x4xf32>,
    %8 = vector.extract_strided_slice %5 {offsets = [0, 4], sizes = [128, 4], strides = [1, 1]} : vector<128x8xf32> to vector<128x4xf32>
    %c0_10 = arith.constant 0 : index
    %c0_11 = arith.constant 0 : index
    %9 = vector.load %arg6[%c0_10, %c0_11] : memref<128x4xf32, #tpu.memory_space<vmem>>, vector<128x4xf32>
    tpu.vector_store %arg6[%c0_10, %c0_11], %8 {strides = array<i32>} : memref<128x4xf32, #tpu.memory_space<vmem>>, vector<128x4xf32>,
    return
  }
  func.func @transform_0(%arg0: i32) -> (i32, i32) {
    %c0_i32 = arith.constant 0 : i32
    %c0_i32_0 = arith.constant 0 : i32
    return %arg0, %c0_i32 : i32, i32
  }
  func.func @transform_1(%arg0: i32) -> (i32, i32) {
    %c0_i32 = arith.constant 0 : i32
    %c0_i32_0 = arith.constant 0 : i32
    %c0_i32_1 = arith.constant 0 : i32
    return %c0_i32, %c0_i32_0 : i32, i32
  }
  func.func @transform_2(%arg0: i32) -> (i32, i32) {
    %c0_i32 = arith.constant 0 : i32
    %c0_i32_0 = arith.constant 0 : i32
    %c0_i32_1 = arith.constant 0 : i32
    return %c0_i32, %c0_i32_0 : i32, i32
  }
  func.func @transform_3(%arg0: i32) -> (i32, i32) {
    %c0_i32 = arith.constant 0 : i32
    %c0_i32_0 = arith.constant 0 : i32
    return %arg0, %c0_i32 : i32, i32
  }
  func.func @transform_4(%arg0: i32) -> (i32, i32) {
    %c0_i32 = arith.constant 0 : i32
    %c0_i32_0 = arith.constant 0 : i32
    return %arg0, %c0_i32 : i32, i32
  }
  func.func @transform_5(%arg0: i32) -> (i32, i32) {
    %c0_i32 = arith.constant 0 : i32
    %c0_i32_0 = arith.constant 0 : i32
    return %arg0, %c0_i32 : i32, i32
  }
}

module attributes {stable_mosaic.version = 11 : i64} {
  func.func @kernel(%arg0: i32, %arg1: i32, %arg2: memref<2xi32, #tpu.memory_space<smem>>, %arg3: memref<256x128xf32, #tpu.memory_space<vmem>>, %arg4: memref<128x4xf32, #tpu.memory_space<vmem>>, %arg5: memref<4x256xf32, #tpu.memory_space<vmem>>, %arg6: memref<128x256xi8, #tpu.memory_space<vmem>>, %arg7: memref<128x128xf32, #tpu.memory_space<vmem>>, %arg8: memref<128x128xf32, #tpu.memory_space<vmem>>, %arg9: memref<128x128xf32, #tpu.memory_space<vmem>>, %arg10: memref<128x128xf32, #tpu.memory_space<vmem>>) attributes {dimension_semantics = [#tpu.dimension_semantics<parallel>, #tpu.dimension_semantics<arbitrary>], iteration_bounds = array<i64: 2, 1>, scalar_prefetch = 1 : i64, scratch_operands = 3 : i64, tpu.core_type = #tpu.core_type<tc>, window_params = [{transform_indices = @transform_0, window_bounds = array<i64: 256, 128>}, {transform_indices = @transform_1, window_bounds = array<i64: 128, 4>}, {transform_indices = @transform_2, window_bounds = array<i64: 4, 256>}, {transform_indices = @transform_3, window_bounds = array<i64: 128, 256>}, {transform_indices = @transform_4, window_bounds = array<i64: 128, 128>}]} {
    %c0_i32 = arith.constant 0 : i32
    %0 = arith.cmpi eq, %arg1, %c0_i32 : i32
    %1 = arith.extui %0 : i1 to i32
    %c0_i32_0 = arith.constant 0 : i32
    %2 = arith.cmpi ne, %1, %c0_i32_0 : i32
    scf.if %2 {
      %cst = arith.constant -1.000000e+30 : f32
      %13 = vector.broadcast %cst : f32 to vector<128x128xf32>
      %c0 = arith.constant 0 : index
      %c0_5 = arith.constant 0 : index
      %14 = vector.load %arg8[%c0, %c0_5] : memref<128x128xf32, #tpu.memory_space<vmem>>, vector<128x128xf32>
      tpu.vector_store %arg8[%c0, %c0_5], %13 {strides = array<i32>} : memref<128x128xf32, #tpu.memory_space<vmem>>, vector<128x128xf32>,
      %cst_6 = arith.constant 0.000000e+00 : f32
      %15 = vector.broadcast %cst_6 : f32 to vector<128x128xf32>
      %c0_7 = arith.constant 0 : index
      %c0_8 = arith.constant 0 : index
      %16 = vector.load %arg9[%c0_7, %c0_8] : memref<128x128xf32, #tpu.memory_space<vmem>>, vector<128x128xf32>
      tpu.vector_store %arg9[%c0_7, %c0_8], %15 {strides = array<i32>} : memref<128x128xf32, #tpu.memory_space<vmem>>, vector<128x128xf32>,
      %cst_9 = arith.constant 0.000000e+00 : f32
      %17 = vector.broadcast %cst_9 : f32 to vector<128x128xf32>
      %c0_10 = arith.constant 0 : index
      %c0_11 = arith.constant 0 : index
      %18 = vector.load %arg10[%c0_10, %c0_11] : memref<128x128xf32, #tpu.memory_space<vmem>>, vector<128x128xf32>
      tpu.vector_store %arg10[%c0_10, %c0_11], %17 {strides = array<i32>} : memref<128x128xf32, #tpu.memory_space<vmem>>, vector<128x128xf32>,
    } else {
    }
    %c1_i32 = arith.constant 1 : i32
    %3 = arith.muli %arg0, %c1_i32 : i32
    %4 = arith.addi %3, %arg1 : i32
    %5 = arith.index_cast %4 : i32 to index
    %6 = memref.load %arg2[%5] : memref<2xi32, #tpu.memory_space<smem>>
    %c0_i32_1 = arith.constant 0 : i32
    %7 = arith.cmpi sgt, %6, %c0_i32_1 : i32
    %8 = arith.extui %7 : i1 to i32
    %c0_i32_2 = arith.constant 0 : i32
    %9 = arith.cmpi ne, %8, %c0_i32_2 : i32
    scf.if %9 {
      %c0 = arith.constant 0 : index
      %c0_5 = arith.constant 0 : index
      %13 = vector.load %arg6[%c0, %c0_5] : memref<128x256xi8, #tpu.memory_space<vmem>>, vector<128x256xi8>
      %c0_i8 = arith.constant 0 : i8
      %14 = vector.broadcast %c0_i8 : i8 to vector<128x256xi8>
      %15 = arith.cmpi ne, %13, %14 : vector<128x256xi8>
      %c0_6 = arith.constant 0 : index
      %c0_7 = arith.constant 0 : index
      %16 = vector.load %arg3[%c0_6, %c0_7] : memref<256x128xf32, #tpu.memory_space<vmem>>, vector<256x128xf32>
      %c0_8 = arith.constant 0 : index
      %c0_9 = arith.constant 0 : index
      %17 = vector.load %arg4[%c0_8, %c0_9] : memref<128x4xf32, #tpu.memory_space<vmem>>, vector<128x4xf32>
      %c0_10 = arith.constant 0 : index
      %c0_11 = arith.constant 0 : index
      %18 = vector.load %arg5[%c0_10, %c0_11] : memref<4x256xf32, #tpu.memory_space<vmem>>, vector<4x256xf32>
      %c0_12 = arith.constant 0 : index
      %c0_13 = arith.constant 0 : index
      %19 = vector.load %arg8[%c0_12, %c0_13] : memref<128x128xf32, #tpu.memory_space<vmem>>, vector<128x128xf32>
      %20 = vector.extract_strided_slice %17 {offsets = [0, 0], sizes = [128, 1], strides = [1, 1]} : vector<128x4xf32> to vector<128x1xf32>
      %21 = vector.extract_strided_slice %18 {offsets = [0, 0], sizes = [1, 256], strides = [1, 1]} : vector<4x256xf32> to vector<1x256xf32>
      %22 = vector.broadcast %20 : vector<128x1xf32> to vector<128x256xf32>
      %23 = vector.broadcast %21 : vector<1x256xf32> to vector<128x256xf32>
      %24 = arith.addf %22, %23 : vector<128x256xf32>
      %cst = arith.constant 2.000000e-01 : f32
      %25 = vector.broadcast %cst : f32 to vector<128x256xf32>
      %26 = arith.mulf %25, %24 : vector<128x256xf32>
      %27 = arith.maximumf %24, %26 : vector<128x256xf32>
      %cst_14 = arith.constant -1.000000e+30 : f32
      %28 = vector.broadcast %cst_14 : f32 to vector<128x256xf32>
      %29 = arith.select %15, %27, %28 : vector<128x256xi1>, vector<128x256xf32>
      %30 = vector.extract_strided_slice %19 {offsets = [0, 0], sizes = [128, 1], strides = [1, 1]} : vector<128x128xf32> to vector<128x1xf32>
      %cst_15 = arith.constant dense<0xFF800000> : vector<128xf32>
      %31 = vector.multi_reduction <maximumf>, %29, %cst_15 [1] : vector<128x256xf32> to vector<128xf32>
      %32 = vector.shape_cast %31 : vector<128xf32> to vector<128x1xf32>
      %33 = arith.maximumf %30, %32 : vector<128x1xf32>
      %34 = vector.broadcast %33 : vector<128x1xf32> to vector<128x256xf32>
      %35 = arith.subf %29, %34 : vector<128x256xf32>
      %36 = math.exp %35 : vector<128x256xf32>
      %cst_16 = arith.constant 0.000000e+00 : f32
      %37 = vector.broadcast %cst_16 : f32 to vector<128x256xf32>
      %38 = arith.select %15, %36, %37 : vector<128x256xi1>, vector<128x256xf32>
      %cst_17 = arith.constant dense<0.000000e+00> : vector<128xf32>
      %39 = vector.multi_reduction <add>, %38, %cst_17 [1] : vector<128x256xf32> to vector<128xf32>
      %40 = vector.shape_cast %39 : vector<128xf32> to vector<128x1xf32>
      %41 = vector.extract_strided_slice %16 {offsets = [0, 0], sizes = [256, 32], strides = [1, 1]} : vector<256x128xf32> to vector<256x32xf32>
      %cst_18 = arith.constant dense<0.000000e+00> : vector<128x32xf32>
      %42 = tpu.matmul %38, %41, %cst_18 {dimension_numbers = #tpu.dot_dimension_numbers<[1], [0], [0], [1], [0, 0, 1, 1], [], []>} : vector<128x256xf32>, vector<256x32xf32>, vector<128x32xf32> -> vector<128x32xf32>
      %43 = vector.shape_cast %33 : vector<128x1xf32> to vector<128x1xf32>
      %44 = vector.broadcast %43 : vector<128x1xf32> to vector<128x32xf32>
      %45 = vector.shape_cast %40 : vector<128x1xf32> to vector<128x1xf32>
      %46 = vector.broadcast %45 : vector<128x1xf32> to vector<128x32xf32>
      %47 = vector.extract_strided_slice %17 {offsets = [0, 1], sizes = [128, 1], strides = [1, 1]} : vector<128x4xf32> to vector<128x1xf32>
      %48 = vector.extract_strided_slice %18 {offsets = [1, 0], sizes = [1, 256], strides = [1, 1]} : vector<4x256xf32> to vector<1x256xf32>
      %49 = vector.broadcast %47 : vector<128x1xf32> to vector<128x256xf32>
      %50 = vector.broadcast %48 : vector<1x256xf32> to vector<128x256xf32>
      %51 = arith.addf %49, %50 : vector<128x256xf32>
      %cst_19 = arith.constant 2.000000e-01 : f32
      %52 = vector.broadcast %cst_19 : f32 to vector<128x256xf32>
      %53 = arith.mulf %52, %51 : vector<128x256xf32>
      %54 = arith.maximumf %51, %53 : vector<128x256xf32>
      %cst_20 = arith.constant -1.000000e+30 : f32
      %55 = vector.broadcast %cst_20 : f32 to vector<128x256xf32>
      %56 = arith.select %15, %54, %55 : vector<128x256xi1>, vector<128x256xf32>
      %57 = vector.extract_strided_slice %19 {offsets = [0, 32], sizes = [128, 1], strides = [1, 1]} : vector<128x128xf32> to vector<128x1xf32>
      %cst_21 = arith.constant dense<0xFF800000> : vector<128xf32>
      %58 = vector.multi_reduction <maximumf>, %56, %cst_21 [1] : vector<128x256xf32> to vector<128xf32>
      %59 = vector.shape_cast %58 : vector<128xf32> to vector<128x1xf32>
      %60 = arith.maximumf %57, %59 : vector<128x1xf32>
      %61 = vector.broadcast %60 : vector<128x1xf32> to vector<128x256xf32>
      %62 = arith.subf %56, %61 : vector<128x256xf32>
      %63 = math.exp %62 : vector<128x256xf32>
      %cst_22 = arith.constant 0.000000e+00 : f32
      %64 = vector.broadcast %cst_22 : f32 to vector<128x256xf32>
      %65 = arith.select %15, %63, %64 : vector<128x256xi1>, vector<128x256xf32>
      %cst_23 = arith.constant dense<0.000000e+00> : vector<128xf32>
      %66 = vector.multi_reduction <add>, %65, %cst_23 [1] : vector<128x256xf32> to vector<128xf32>
      %67 = vector.shape_cast %66 : vector<128xf32> to vector<128x1xf32>
      %68 = vector.extract_strided_slice %16 {offsets = [0, 32], sizes = [256, 32], strides = [1, 1]} : vector<256x128xf32> to vector<256x32xf32>
      %cst_24 = arith.constant dense<0.000000e+00> : vector<128x32xf32>
      %69 = tpu.matmul %65, %68, %cst_24 {dimension_numbers = #tpu.dot_dimension_numbers<[1], [0], [0], [1], [0, 0, 1, 1], [], []>} : vector<128x256xf32>, vector<256x32xf32>, vector<128x32xf32> -> vector<128x32xf32>
      %70 = vector.shape_cast %60 : vector<128x1xf32> to vector<128x1xf32>
      %71 = vector.broadcast %70 : vector<128x1xf32> to vector<128x32xf32>
      %72 = vector.shape_cast %67 : vector<128x1xf32> to vector<128x1xf32>
      %73 = vector.broadcast %72 : vector<128x1xf32> to vector<128x32xf32>
      %74 = vector.extract_strided_slice %17 {offsets = [0, 2], sizes = [128, 1], strides = [1, 1]} : vector<128x4xf32> to vector<128x1xf32>
      %75 = vector.extract_strided_slice %18 {offsets = [2, 0], sizes = [1, 256], strides = [1, 1]} : vector<4x256xf32> to vector<1x256xf32>
      %76 = vector.broadcast %74 : vector<128x1xf32> to vector<128x256xf32>
      %77 = vector.broadcast %75 : vector<1x256xf32> to vector<128x256xf32>
      %78 = arith.addf %76, %77 : vector<128x256xf32>
      %cst_25 = arith.constant 2.000000e-01 : f32
      %79 = vector.broadcast %cst_25 : f32 to vector<128x256xf32>
      %80 = arith.mulf %79, %78 : vector<128x256xf32>
      %81 = arith.maximumf %78, %80 : vector<128x256xf32>
      %cst_26 = arith.constant -1.000000e+30 : f32
      %82 = vector.broadcast %cst_26 : f32 to vector<128x256xf32>
      %83 = arith.select %15, %81, %82 : vector<128x256xi1>, vector<128x256xf32>
      %84 = vector.extract_strided_slice %19 {offsets = [0, 64], sizes = [128, 1], strides = [1, 1]} : vector<128x128xf32> to vector<128x1xf32>
      %cst_27 = arith.constant dense<0xFF800000> : vector<128xf32>
      %85 = vector.multi_reduction <maximumf>, %83, %cst_27 [1] : vector<128x256xf32> to vector<128xf32>
      %86 = vector.shape_cast %85 : vector<128xf32> to vector<128x1xf32>
      %87 = arith.maximumf %84, %86 : vector<128x1xf32>
      %88 = vector.broadcast %87 : vector<128x1xf32> to vector<128x256xf32>
      %89 = arith.subf %83, %88 : vector<128x256xf32>
      %90 = math.exp %89 : vector<128x256xf32>
      %cst_28 = arith.constant 0.000000e+00 : f32
      %91 = vector.broadcast %cst_28 : f32 to vector<128x256xf32>
      %92 = arith.select %15, %90, %91 : vector<128x256xi1>, vector<128x256xf32>
      %cst_29 = arith.constant dense<0.000000e+00> : vector<128xf32>
      %93 = vector.multi_reduction <add>, %92, %cst_29 [1] : vector<128x256xf32> to vector<128xf32>
      %94 = vector.shape_cast %93 : vector<128xf32> to vector<128x1xf32>
      %95 = vector.extract_strided_slice %16 {offsets = [0, 64], sizes = [256, 32], strides = [1, 1]} : vector<256x128xf32> to vector<256x32xf32>
      %cst_30 = arith.constant dense<0.000000e+00> : vector<128x32xf32>
      %96 = tpu.matmul %92, %95, %cst_30 {dimension_numbers = #tpu.dot_dimension_numbers<[1], [0], [0], [1], [0, 0, 1, 1], [], []>} : vector<128x256xf32>, vector<256x32xf32>, vector<128x32xf32> -> vector<128x32xf32>
      %97 = vector.shape_cast %87 : vector<128x1xf32> to vector<128x1xf32>
      %98 = vector.broadcast %97 : vector<128x1xf32> to vector<128x32xf32>
      %99 = vector.shape_cast %94 : vector<128x1xf32> to vector<128x1xf32>
      %100 = vector.broadcast %99 : vector<128x1xf32> to vector<128x32xf32>
      %101 = vector.extract_strided_slice %17 {offsets = [0, 3], sizes = [128, 1], strides = [1, 1]} : vector<128x4xf32> to vector<128x1xf32>
      %102 = vector.extract_strided_slice %18 {offsets = [3, 0], sizes = [1, 256], strides = [1, 1]} : vector<4x256xf32> to vector<1x256xf32>
      %103 = vector.broadcast %101 : vector<128x1xf32> to vector<128x256xf32>
      %104 = vector.broadcast %102 : vector<1x256xf32> to vector<128x256xf32>
      %105 = arith.addf %103, %104 : vector<128x256xf32>
      %cst_31 = arith.constant 2.000000e-01 : f32
      %106 = vector.broadcast %cst_31 : f32 to vector<128x256xf32>
      %107 = arith.mulf %106, %105 : vector<128x256xf32>
      %108 = arith.maximumf %105, %107 : vector<128x256xf32>
      %cst_32 = arith.constant -1.000000e+30 : f32
      %109 = vector.broadcast %cst_32 : f32 to vector<128x256xf32>
      %110 = arith.select %15, %108, %109 : vector<128x256xi1>, vector<128x256xf32>
      %111 = vector.extract_strided_slice %19 {offsets = [0, 96], sizes = [128, 1], strides = [1, 1]} : vector<128x128xf32> to vector<128x1xf32>
      %cst_33 = arith.constant dense<0xFF800000> : vector<128xf32>
      %112 = vector.multi_reduction <maximumf>, %110, %cst_33 [1] : vector<128x256xf32> to vector<128xf32>
      %113 = vector.shape_cast %112 : vector<128xf32> to vector<128x1xf32>
      %114 = arith.maximumf %111, %113 : vector<128x1xf32>
      %115 = vector.broadcast %114 : vector<128x1xf32> to vector<128x256xf32>
      %116 = arith.subf %110, %115 : vector<128x256xf32>
      %117 = math.exp %116 : vector<128x256xf32>
      %cst_34 = arith.constant 0.000000e+00 : f32
      %118 = vector.broadcast %cst_34 : f32 to vector<128x256xf32>
      %119 = arith.select %15, %117, %118 : vector<128x256xi1>, vector<128x256xf32>
      %cst_35 = arith.constant dense<0.000000e+00> : vector<128xf32>
      %120 = vector.multi_reduction <add>, %119, %cst_35 [1] : vector<128x256xf32> to vector<128xf32>
      %121 = vector.shape_cast %120 : vector<128xf32> to vector<128x1xf32>
      %122 = vector.extract_strided_slice %16 {offsets = [0, 96], sizes = [256, 32], strides = [1, 1]} : vector<256x128xf32> to vector<256x32xf32>
      %cst_36 = arith.constant dense<0.000000e+00> : vector<128x32xf32>
      %123 = tpu.matmul %119, %122, %cst_36 {dimension_numbers = #tpu.dot_dimension_numbers<[1], [0], [0], [1], [0, 0, 1, 1], [], []>} : vector<128x256xf32>, vector<256x32xf32>, vector<128x32xf32> -> vector<128x32xf32>
      %124 = vector.shape_cast %114 : vector<128x1xf32> to vector<128x1xf32>
      %125 = vector.broadcast %124 : vector<128x1xf32> to vector<128x32xf32>
      %126 = vector.shape_cast %121 : vector<128x1xf32> to vector<128x1xf32>
      %127 = vector.broadcast %126 : vector<128x1xf32> to vector<128x32xf32>
      %128 = tpu.concatenate %44, %71, %98, %125 in 1 : vector<128x32xf32>, vector<128x32xf32>, vector<128x32xf32>, vector<128x32xf32> -> vector<128x128xf32>
      %129 = tpu.concatenate %46, %73, %100, %127 in 1 : vector<128x32xf32>, vector<128x32xf32>, vector<128x32xf32>, vector<128x32xf32> -> vector<128x128xf32>
      %130 = tpu.concatenate %42, %69, %96, %123 in 1 : vector<128x32xf32>, vector<128x32xf32>, vector<128x32xf32>, vector<128x32xf32> -> vector<128x128xf32>
      %131 = arith.subf %19, %128 : vector<128x128xf32>
      %132 = math.exp %131 : vector<128x128xf32>
      %c0_37 = arith.constant 0 : index
      %c0_38 = arith.constant 0 : index
      %133 = vector.load %arg9[%c0_37, %c0_38] : memref<128x128xf32, #tpu.memory_space<vmem>>, vector<128x128xf32>
      %134 = arith.mulf %132, %133 : vector<128x128xf32>
      %135 = arith.addf %134, %129 : vector<128x128xf32>
      %c0_39 = arith.constant 0 : index
      %c0_40 = arith.constant 0 : index
      %136 = vector.load %arg9[%c0_39, %c0_40] : memref<128x128xf32, #tpu.memory_space<vmem>>, vector<128x128xf32>
      tpu.vector_store %arg9[%c0_39, %c0_40], %135 {strides = array<i32>} : memref<128x128xf32, #tpu.memory_space<vmem>>, vector<128x128xf32>,
      %c0_41 = arith.constant 0 : index
      %c0_42 = arith.constant 0 : index
      %137 = vector.load %arg10[%c0_41, %c0_42] : memref<128x128xf32, #tpu.memory_space<vmem>>, vector<128x128xf32>
      %138 = arith.mulf %132, %137 : vector<128x128xf32>
      %139 = arith.addf %138, %130 : vector<128x128xf32>
      %c0_43 = arith.constant 0 : index
      %c0_44 = arith.constant 0 : index
      %140 = vector.load %arg10[%c0_43, %c0_44] : memref<128x128xf32, #tpu.memory_space<vmem>>, vector<128x128xf32>
      tpu.vector_store %arg10[%c0_43, %c0_44], %139 {strides = array<i32>} : memref<128x128xf32, #tpu.memory_space<vmem>>, vector<128x128xf32>,
      %c0_45 = arith.constant 0 : index
      %c0_46 = arith.constant 0 : index
      %141 = vector.load %arg8[%c0_45, %c0_46] : memref<128x128xf32, #tpu.memory_space<vmem>>, vector<128x128xf32>
      tpu.vector_store %arg8[%c0_45, %c0_46], %128 {strides = array<i32>} : memref<128x128xf32, #tpu.memory_space<vmem>>, vector<128x128xf32>,
    } else {
    }
    %c0_i32_3 = arith.constant 0 : i32
    %10 = arith.cmpi eq, %arg1, %c0_i32_3 : i32
    %11 = arith.extui %10 : i1 to i32
    %c0_i32_4 = arith.constant 0 : i32
    %12 = arith.cmpi ne, %11, %c0_i32_4 : i32
    scf.if %12 {
      %c0 = arith.constant 0 : index
      %c0_5 = arith.constant 0 : index
      %13 = vector.load %arg9[%c0, %c0_5] : memref<128x128xf32, #tpu.memory_space<vmem>>, vector<128x128xf32>
      %cst = arith.constant 0.000000e+00 : f32
      %14 = vector.broadcast %cst : f32 to vector<128x128xf32>
      %15 = arith.cmpf ogt, %13, %14 : vector<128x128xf32>
      %cst_6 = arith.constant 1.000000e+00 : f32
      %16 = vector.broadcast %cst_6 : f32 to vector<128x128xf32>
      %17 = arith.select %15, %13, %16 : vector<128x128xi1>, vector<128x128xf32>
      %c0_7 = arith.constant 0 : index
      %c0_8 = arith.constant 0 : index
      %18 = vector.load %arg10[%c0_7, %c0_8] : memref<128x128xf32, #tpu.memory_space<vmem>>, vector<128x128xf32>
      %19 = tpu.reciprocal %17 : vector<128x128xf32> -> vector<128x128xf32>
      %20 = arith.mulf %18, %19 : vector<128x128xf32>
      %cst_9 = arith.constant 0.000000e+00 : f32
      %21 = vector.broadcast %cst_9 : f32 to vector<128x128xf32>
      %22 = arith.cmpf ogt, %20, %21 : vector<128x128xf32>
      %23 = math.exp %20 : vector<128x128xf32>
      %cst_10 = arith.constant 1.000000e+00 : f32
      %24 = vector.broadcast %cst_10 : f32 to vector<128x128xf32>
      %25 = arith.subf %23, %24 : vector<128x128xf32>
      %26 = arith.select %22, %20, %25 : vector<128x128xi1>, vector<128x128xf32>
      %c0_11 = arith.constant 0 : index
      %c0_12 = arith.constant 0 : index
      %27 = vector.load %arg7[%c0_11, %c0_12] : memref<128x128xf32, #tpu.memory_space<vmem>>, vector<128x128xf32>
      tpu.vector_store %arg7[%c0_11, %c0_12], %26 {strides = array<i32>} : memref<128x128xf32, #tpu.memory_space<vmem>>, vector<128x128xf32>,
    } else {
    }
    return
  }
  func.func @transform_0(%arg0: i32, %arg1: i32, %arg2: memref<2xi32, #tpu.memory_space<smem>>) -> (i32, i32) {
    %c0_i32 = arith.constant 0 : i32
    %c0_i32_0 = arith.constant 0 : i32
    return %arg1, %c0_i32 : i32, i32
  }
  func.func @transform_1(%arg0: i32, %arg1: i32, %arg2: memref<2xi32, #tpu.memory_space<smem>>) -> (i32, i32) {
    %c0_i32 = arith.constant 0 : i32
    %c0_i32_0 = arith.constant 0 : i32
    return %arg0, %c0_i32 : i32, i32
  }
  func.func @transform_2(%arg0: i32, %arg1: i32, %arg2: memref<2xi32, #tpu.memory_space<smem>>) -> (i32, i32) {
    %c0_i32 = arith.constant 0 : i32
    %c0_i32_0 = arith.constant 0 : i32
    return %c0_i32, %arg1 : i32, i32
  }
  func.func @transform_3(%arg0: i32, %arg1: i32, %arg2: memref<2xi32, #tpu.memory_space<smem>>) -> (i32, i32) {
    %c0_i32 = arith.constant 0 : i32
    return %arg0, %arg1 : i32, i32
  }
  func.func @transform_4(%arg0: i32, %arg1: i32, %arg2: memref<2xi32, #tpu.memory_space<smem>>) -> (i32, i32) {
    %c0_i32 = arith.constant 0 : i32
    %c0_i32_0 = arith.constant 0 : i32
    return %arg0, %c0_i32 : i32, i32
  }
}

module attributes {stable_mosaic.version = 11 : i64} {
  func.func @kernel(%arg0: i32, %arg1: memref<128x128xf32, #tpu.memory_space<vmem>>, %arg2: memref<128x128xf32, #tpu.memory_space<vmem>>, %arg3: memref<128x8xf32, #tpu.memory_space<vmem>>, %arg4: memref<128x128xf32, #tpu.memory_space<vmem>>, %arg5: memref<128x4xf32, #tpu.memory_space<vmem>>, %arg6: memref<128x4xf32, #tpu.memory_space<vmem>>) attributes {dimension_semantics = [#tpu.dimension_semantics<parallel>], iteration_bounds = array<i64: 2>, scalar_prefetch = 0 : i64, scratch_operands = 0 : i64, tpu.core_type = #tpu.core_type<tc>, window_params = [{transform_indices = @transform_0, window_bounds = array<i64: 128, 128>}, {pipeline_mode = #tpu.pipeline_mode<synchronous>, transform_indices = @transform_1, window_bounds = array<i64: 128, 128>}, {pipeline_mode = #tpu.pipeline_mode<synchronous>, transform_indices = @transform_2, window_bounds = array<i64: 128, 8>}, {transform_indices = @transform_3, window_bounds = array<i64: 128, 128>}, {transform_indices = @transform_4, window_bounds = array<i64: 128, 4>}, {transform_indices = @transform_5, window_bounds = array<i64: 128, 4>}]} {
    %c0 = arith.constant 0 : index
    %c0_0 = arith.constant 0 : index
    %0 = vector.load %arg1[%c0, %c0_0] : memref<128x128xf32, #tpu.memory_space<vmem>>, vector<128x128xf32>
    %c0_1 = arith.constant 0 : index
    %c0_2 = arith.constant 0 : index
    %1 = vector.load %arg2[%c0_1, %c0_2] : memref<128x128xf32, #tpu.memory_space<vmem>>, vector<128x128xf32>
    %cst = arith.constant dense<0.000000e+00> : vector<128x128xf32>
    %2 = tpu.matmul %0, %1, %cst {dimension_numbers = #tpu.dot_dimension_numbers<[1], [0], [0], [1], [0, 0, 1, 1], [], []>} : vector<128x128xf32>, vector<128x128xf32>, vector<128x128xf32> -> vector<128x128xf32>
    %c0_3 = arith.constant 0 : index
    %c0_4 = arith.constant 0 : index
    %3 = vector.load %arg4[%c0_3, %c0_4] : memref<128x128xf32, #tpu.memory_space<vmem>>, vector<128x128xf32>
    tpu.vector_store %arg4[%c0_3, %c0_4], %2 {strides = array<i32>} : memref<128x128xf32, #tpu.memory_space<vmem>>, vector<128x128xf32>,
    %c0_5 = arith.constant 0 : index
    %c0_6 = arith.constant 0 : index
    %4 = vector.load %arg3[%c0_5, %c0_6] : memref<128x8xf32, #tpu.memory_space<vmem>>, vector<128x8xf32>
    %cst_7 = arith.constant dense<0.000000e+00> : vector<128x8xf32>
    %5 = tpu.matmul %2, %4, %cst_7 {dimension_numbers = #tpu.dot_dimension_numbers<[1], [0], [0], [1], [0, 0, 1, 1], [], []>} : vector<128x128xf32>, vector<128x8xf32>, vector<128x8xf32> -> vector<128x8xf32>
    %6 = vector.extract_strided_slice %5 {offsets = [0, 0], sizes = [128, 4], strides = [1, 1]} : vector<128x8xf32> to vector<128x4xf32>
    %c0_8 = arith.constant 0 : index
    %c0_9 = arith.constant 0 : index
    %7 = vector.load %arg5[%c0_8, %c0_9] : memref<128x4xf32, #tpu.memory_space<vmem>>, vector<128x4xf32>
    tpu.vector_store %arg5[%c0_8, %c0_9], %6 {strides = array<i32>} : memref<128x4xf32, #tpu.memory_space<vmem>>, vector<128x4xf32>,
    %8 = vector.extract_strided_slice %5 {offsets = [0, 4], sizes = [128, 4], strides = [1, 1]} : vector<128x8xf32> to vector<128x4xf32>
    %c0_10 = arith.constant 0 : index
    %c0_11 = arith.constant 0 : index
    %9 = vector.load %arg6[%c0_10, %c0_11] : memref<128x4xf32, #tpu.memory_space<vmem>>, vector<128x4xf32>
    tpu.vector_store %arg6[%c0_10, %c0_11], %8 {strides = array<i32>} : memref<128x4xf32, #tpu.memory_space<vmem>>, vector<128x4xf32>,
    return
  }
  func.func @transform_0(%arg0: i32) -> (i32, i32) {
    %c0_i32 = arith.constant 0 : i32
    %c0_i32_0 = arith.constant 0 : i32
    return %arg0, %c0_i32 : i32, i32
  }
  func.func @transform_1(%arg0: i32) -> (i32, i32) {
    %c0_i32 = arith.constant 0 : i32
    %c0_i32_0 = arith.constant 0 : i32
    %c0_i32_1 = arith.constant 0 : i32
    return %c0_i32, %c0_i32_0 : i32, i32
  }
  func.func @transform_2(%arg0: i32) -> (i32, i32) {
    %c0_i32 = arith.constant 0 : i32
    %c0_i32_0 = arith.constant 0 : i32
    %c0_i32_1 = arith.constant 0 : i32
    return %c0_i32, %c0_i32_0 : i32, i32
  }
  func.func @transform_3(%arg0: i32) -> (i32, i32) {
    %c0_i32 = arith.constant 0 : i32
    %c0_i32_0 = arith.constant 0 : i32
    return %arg0, %c0_i32 : i32, i32
  }
  func.func @transform_4(%arg0: i32) -> (i32, i32) {
    %c0_i32 = arith.constant 0 : i32
    %c0_i32_0 = arith.constant 0 : i32
    return %arg0, %c0_i32 : i32, i32
  }
  func.func @transform_5(%arg0: i32) -> (i32, i32) {
    %c0_i32 = arith.constant 0 : i32
    %c0_i32_0 = arith.constant 0 : i32
    return %arg0, %c0_i32 : i32, i32
  }
}

module attributes {stable_mosaic.version = 11 : i64} {
  func.func @kernel(%arg0: i32, %arg1: memref<128x128xf32, #tpu.memory_space<vmem>>, %arg2: memref<128x8xf32, #tpu.memory_space<vmem>>, %arg3: memref<8x2xf32, #tpu.memory_space<vmem>>, %arg4: memref<128x8xf32, #tpu.memory_space<vmem>>, %arg5: memref<128x1xf32, #tpu.memory_space<vmem>>, %arg6: memref<128x1xf32, #tpu.memory_space<vmem>>) attributes {dimension_semantics = [#tpu.dimension_semantics<parallel>], iteration_bounds = array<i64: 2>, scalar_prefetch = 0 : i64, scratch_operands = 0 : i64, tpu.core_type = #tpu.core_type<tc>, window_params = [{transform_indices = @transform_0, window_bounds = array<i64: 128, 128>}, {pipeline_mode = #tpu.pipeline_mode<synchronous>, transform_indices = @transform_1, window_bounds = array<i64: 128, 8>}, {pipeline_mode = #tpu.pipeline_mode<synchronous>, transform_indices = @transform_2, window_bounds = array<i64: 8, 2>}, {transform_indices = @transform_3, window_bounds = array<i64: 128, 8>}, {transform_indices = @transform_4, window_bounds = array<i64: 128, 1>}, {transform_indices = @transform_5, window_bounds = array<i64: 128, 1>}]} {
    %c0 = arith.constant 0 : index
    %c0_0 = arith.constant 0 : index
    %0 = vector.load %arg1[%c0, %c0_0] : memref<128x128xf32, #tpu.memory_space<vmem>>, vector<128x128xf32>
    %c0_1 = arith.constant 0 : index
    %c0_2 = arith.constant 0 : index
    %1 = vector.load %arg2[%c0_1, %c0_2] : memref<128x8xf32, #tpu.memory_space<vmem>>, vector<128x8xf32>
    %cst = arith.constant dense<0.000000e+00> : vector<128x8xf32>
    %2 = tpu.matmul %0, %1, %cst {dimension_numbers = #tpu.dot_dimension_numbers<[1], [0], [0], [1], [0, 0, 1, 1], [], []>} : vector<128x128xf32>, vector<128x8xf32>, vector<128x8xf32> -> vector<128x8xf32>
    %c0_3 = arith.constant 0 : index
    %c0_4 = arith.constant 0 : index
    %3 = vector.load %arg4[%c0_3, %c0_4] : memref<128x8xf32, #tpu.memory_space<vmem>>, vector<128x8xf32>
    tpu.vector_store %arg4[%c0_3, %c0_4], %2 {strides = array<i32>} : memref<128x8xf32, #tpu.memory_space<vmem>>, vector<128x8xf32>,
    %c0_5 = arith.constant 0 : index
    %c0_6 = arith.constant 0 : index
    %4 = vector.load %arg3[%c0_5, %c0_6] : memref<8x2xf32, #tpu.memory_space<vmem>>, vector<8x2xf32>
    %cst_7 = arith.constant dense<0.000000e+00> : vector<128x2xf32>
    %5 = tpu.matmul %2, %4, %cst_7 {dimension_numbers = #tpu.dot_dimension_numbers<[1], [0], [0], [1], [0, 0, 1, 1], [], []>} : vector<128x8xf32>, vector<8x2xf32>, vector<128x2xf32> -> vector<128x2xf32>
    %6 = vector.extract_strided_slice %5 {offsets = [0, 0], sizes = [128, 1], strides = [1, 1]} : vector<128x2xf32> to vector<128x1xf32>
    %c0_8 = arith.constant 0 : index
    %c0_9 = arith.constant 0 : index
    %7 = vector.load %arg5[%c0_8, %c0_9] : memref<128x1xf32, #tpu.memory_space<vmem>>, vector<128x1xf32>
    tpu.vector_store %arg5[%c0_8, %c0_9], %6 {strides = array<i32>} : memref<128x1xf32, #tpu.memory_space<vmem>>, vector<128x1xf32>,
    %8 = vector.extract_strided_slice %5 {offsets = [0, 1], sizes = [128, 1], strides = [1, 1]} : vector<128x2xf32> to vector<128x1xf32>
    %c0_10 = arith.constant 0 : index
    %c0_11 = arith.constant 0 : index
    %9 = vector.load %arg6[%c0_10, %c0_11] : memref<128x1xf32, #tpu.memory_space<vmem>>, vector<128x1xf32>
    tpu.vector_store %arg6[%c0_10, %c0_11], %8 {strides = array<i32>} : memref<128x1xf32, #tpu.memory_space<vmem>>, vector<128x1xf32>,
    return
  }
  func.func @transform_0(%arg0: i32) -> (i32, i32) {
    %c0_i32 = arith.constant 0 : i32
    %c0_i32_0 = arith.constant 0 : i32
    return %arg0, %c0_i32 : i32, i32
  }
  func.func @transform_1(%arg0: i32) -> (i32, i32) {
    %c0_i32 = arith.constant 0 : i32
    %c0_i32_0 = arith.constant 0 : i32
    %c0_i32_1 = arith.constant 0 : i32
    return %c0_i32, %c0_i32_0 : i32, i32
  }
  func.func @transform_2(%arg0: i32) -> (i32, i32) {
    %c0_i32 = arith.constant 0 : i32
    %c0_i32_0 = arith.constant 0 : i32
    %c0_i32_1 = arith.constant 0 : i32
    return %c0_i32, %c0_i32_0 : i32, i32
  }
  func.func @transform_3(%arg0: i32) -> (i32, i32) {
    %c0_i32 = arith.constant 0 : i32
    %c0_i32_0 = arith.constant 0 : i32
    return %arg0, %c0_i32 : i32, i32
  }
  func.func @transform_4(%arg0: i32) -> (i32, i32) {
    %c0_i32 = arith.constant 0 : i32
    %c0_i32_0 = arith.constant 0 : i32
    return %arg0, %c0_i32 : i32, i32
  }
  func.func @transform_5(%arg0: i32) -> (i32, i32) {
    %c0_i32 = arith.constant 0 : i32
    %c0_i32_0 = arith.constant 0 : i32
    return %arg0, %c0_i32 : i32, i32
  }
}

module attributes {stable_mosaic.version = 11 : i64} {
  func.func @kernel(%arg0: i32, %arg1: i32, %arg2: memref<2xi32, #tpu.memory_space<smem>>, %arg3: memref<256x8xf32, #tpu.memory_space<vmem>>, %arg4: memref<128x1xf32, #tpu.memory_space<vmem>>, %arg5: memref<1x256xf32, #tpu.memory_space<vmem>>, %arg6: memref<128x256xi8, #tpu.memory_space<vmem>>, %arg7: memref<128x8xf32, #tpu.memory_space<vmem>>, %arg8: memref<128x8xf32, #tpu.memory_space<vmem>>, %arg9: memref<128x8xf32, #tpu.memory_space<vmem>>, %arg10: memref<128x8xf32, #tpu.memory_space<vmem>>) attributes {dimension_semantics = [#tpu.dimension_semantics<parallel>, #tpu.dimension_semantics<arbitrary>], iteration_bounds = array<i64: 2, 1>, scalar_prefetch = 1 : i64, scratch_operands = 3 : i64, tpu.core_type = #tpu.core_type<tc>, window_params = [{transform_indices = @transform_0, window_bounds = array<i64: 256, 8>}, {transform_indices = @transform_1, window_bounds = array<i64: 128, 1>}, {transform_indices = @transform_2, window_bounds = array<i64: 1, 256>}, {transform_indices = @transform_3, window_bounds = array<i64: 128, 256>}, {transform_indices = @transform_4, window_bounds = array<i64: 128, 8>}]} {
    %c0_i32 = arith.constant 0 : i32
    %0 = arith.cmpi eq, %arg1, %c0_i32 : i32
    %1 = arith.extui %0 : i1 to i32
    %c0_i32_0 = arith.constant 0 : i32
    %2 = arith.cmpi ne, %1, %c0_i32_0 : i32
    scf.if %2 {
      %cst = arith.constant -1.000000e+30 : f32
      %13 = vector.broadcast %cst : f32 to vector<128x8xf32>
      %c0 = arith.constant 0 : index
      %c0_5 = arith.constant 0 : index
      %14 = vector.load %arg8[%c0, %c0_5] : memref<128x8xf32, #tpu.memory_space<vmem>>, vector<128x8xf32>
      tpu.vector_store %arg8[%c0, %c0_5], %13 {strides = array<i32>} : memref<128x8xf32, #tpu.memory_space<vmem>>, vector<128x8xf32>,
      %cst_6 = arith.constant 0.000000e+00 : f32
      %15 = vector.broadcast %cst_6 : f32 to vector<128x8xf32>
      %c0_7 = arith.constant 0 : index
      %c0_8 = arith.constant 0 : index
      %16 = vector.load %arg9[%c0_7, %c0_8] : memref<128x8xf32, #tpu.memory_space<vmem>>, vector<128x8xf32>
      tpu.vector_store %arg9[%c0_7, %c0_8], %15 {strides = array<i32>} : memref<128x8xf32, #tpu.memory_space<vmem>>, vector<128x8xf32>,
      %cst_9 = arith.constant 0.000000e+00 : f32
      %17 = vector.broadcast %cst_9 : f32 to vector<128x8xf32>
      %c0_10 = arith.constant 0 : index
      %c0_11 = arith.constant 0 : index
      %18 = vector.load %arg10[%c0_10, %c0_11] : memref<128x8xf32, #tpu.memory_space<vmem>>, vector<128x8xf32>
      tpu.vector_store %arg10[%c0_10, %c0_11], %17 {strides = array<i32>} : memref<128x8xf32, #tpu.memory_space<vmem>>, vector<128x8xf32>,
    } else {
    }
    %c1_i32 = arith.constant 1 : i32
    %3 = arith.muli %arg0, %c1_i32 : i32
    %4 = arith.addi %3, %arg1 : i32
    %5 = arith.index_cast %4 : i32 to index
    %6 = memref.load %arg2[%5] : memref<2xi32, #tpu.memory_space<smem>>
    %c0_i32_1 = arith.constant 0 : i32
    %7 = arith.cmpi sgt, %6, %c0_i32_1 : i32
    %8 = arith.extui %7 : i1 to i32
    %c0_i32_2 = arith.constant 0 : i32
    %9 = arith.cmpi ne, %8, %c0_i32_2 : i32
    scf.if %9 {
      %c0 = arith.constant 0 : index
      %c0_5 = arith.constant 0 : index
      %13 = vector.load %arg6[%c0, %c0_5] : memref<128x256xi8, #tpu.memory_space<vmem>>, vector<128x256xi8>
      %c0_i8 = arith.constant 0 : i8
      %14 = vector.broadcast %c0_i8 : i8 to vector<128x256xi8>
      %15 = arith.cmpi ne, %13, %14 : vector<128x256xi8>
      %c0_6 = arith.constant 0 : index
      %c0_7 = arith.constant 0 : index
      %16 = vector.load %arg3[%c0_6, %c0_7] : memref<256x8xf32, #tpu.memory_space<vmem>>, vector<256x8xf32>
      %c0_8 = arith.constant 0 : index
      %c0_9 = arith.constant 0 : index
      %17 = vector.load %arg4[%c0_8, %c0_9] : memref<128x1xf32, #tpu.memory_space<vmem>>, vector<128x1xf32>
      %c0_10 = arith.constant 0 : index
      %c0_11 = arith.constant 0 : index
      %18 = vector.load %arg5[%c0_10, %c0_11] : memref<1x256xf32, #tpu.memory_space<vmem>>, vector<1x256xf32>
      %c0_12 = arith.constant 0 : index
      %c0_13 = arith.constant 0 : index
      %19 = vector.load %arg8[%c0_12, %c0_13] : memref<128x8xf32, #tpu.memory_space<vmem>>, vector<128x8xf32>
      %20 = vector.broadcast %17 : vector<128x1xf32> to vector<128x256xf32>
      %21 = vector.broadcast %18 : vector<1x256xf32> to vector<128x256xf32>
      %22 = arith.addf %20, %21 : vector<128x256xf32>
      %cst = arith.constant 2.000000e-01 : f32
      %23 = vector.broadcast %cst : f32 to vector<128x256xf32>
      %24 = arith.mulf %23, %22 : vector<128x256xf32>
      %25 = arith.maximumf %22, %24 : vector<128x256xf32>
      %cst_14 = arith.constant -1.000000e+30 : f32
      %26 = vector.broadcast %cst_14 : f32 to vector<128x256xf32>
      %27 = arith.select %15, %25, %26 : vector<128x256xi1>, vector<128x256xf32>
      %28 = vector.extract_strided_slice %19 {offsets = [0, 0], sizes = [128, 1], strides = [1, 1]} : vector<128x8xf32> to vector<128x1xf32>
      %cst_15 = arith.constant dense<0xFF800000> : vector<128xf32>
      %29 = vector.multi_reduction <maximumf>, %27, %cst_15 [1] : vector<128x256xf32> to vector<128xf32>
      %30 = vector.shape_cast %29 : vector<128xf32> to vector<128x1xf32>
      %31 = arith.maximumf %28, %30 : vector<128x1xf32>
      %32 = vector.broadcast %31 : vector<128x1xf32> to vector<128x256xf32>
      %33 = arith.subf %27, %32 : vector<128x256xf32>
      %34 = math.exp %33 : vector<128x256xf32>
      %cst_16 = arith.constant 0.000000e+00 : f32
      %35 = vector.broadcast %cst_16 : f32 to vector<128x256xf32>
      %36 = arith.select %15, %34, %35 : vector<128x256xi1>, vector<128x256xf32>
      %cst_17 = arith.constant dense<0.000000e+00> : vector<128xf32>
      %37 = vector.multi_reduction <add>, %36, %cst_17 [1] : vector<128x256xf32> to vector<128xf32>
      %38 = vector.shape_cast %37 : vector<128xf32> to vector<128x1xf32>
      %cst_18 = arith.constant dense<0.000000e+00> : vector<128x8xf32>
      %39 = tpu.matmul %36, %16, %cst_18 {dimension_numbers = #tpu.dot_dimension_numbers<[1], [0], [0], [1], [0, 0, 1, 1], [], []>} : vector<128x256xf32>, vector<256x8xf32>, vector<128x8xf32> -> vector<128x8xf32>
      %40 = vector.shape_cast %31 : vector<128x1xf32> to vector<128x1xf32>
      %41 = vector.broadcast %40 : vector<128x1xf32> to vector<128x8xf32>
      %42 = vector.shape_cast %38 : vector<128x1xf32> to vector<128x1xf32>
      %43 = vector.broadcast %42 : vector<128x1xf32> to vector<128x8xf32>
      %44 = arith.subf %19, %41 : vector<128x8xf32>
      %45 = math.exp %44 : vector<128x8xf32>
      %c0_19 = arith.constant 0 : index
      %c0_20 = arith.constant 0 : index
      %46 = vector.load %arg9[%c0_19, %c0_20] : memref<128x8xf32, #tpu.memory_space<vmem>>, vector<128x8xf32>
      %47 = arith.mulf %45, %46 : vector<128x8xf32>
      %48 = arith.addf %47, %43 : vector<128x8xf32>
      %c0_21 = arith.constant 0 : index
      %c0_22 = arith.constant 0 : index
      %49 = vector.load %arg9[%c0_21, %c0_22] : memref<128x8xf32, #tpu.memory_space<vmem>>, vector<128x8xf32>
      tpu.vector_store %arg9[%c0_21, %c0_22], %48 {strides = array<i32>} : memref<128x8xf32, #tpu.memory_space<vmem>>, vector<128x8xf32>,
      %c0_23 = arith.constant 0 : index
      %c0_24 = arith.constant 0 : index
      %50 = vector.load %arg10[%c0_23, %c0_24] : memref<128x8xf32, #tpu.memory_space<vmem>>, vector<128x8xf32>
      %51 = arith.mulf %45, %50 : vector<128x8xf32>
      %52 = arith.addf %51, %39 : vector<128x8xf32>
      %c0_25 = arith.constant 0 : index
      %c0_26 = arith.constant 0 : index
      %53 = vector.load %arg10[%c0_25, %c0_26] : memref<128x8xf32, #tpu.memory_space<vmem>>, vector<128x8xf32>
      tpu.vector_store %arg10[%c0_25, %c0_26], %52 {strides = array<i32>} : memref<128x8xf32, #tpu.memory_space<vmem>>, vector<128x8xf32>,
      %c0_27 = arith.constant 0 : index
      %c0_28 = arith.constant 0 : index
      %54 = vector.load %arg8[%c0_27, %c0_28] : memref<128x8xf32, #tpu.memory_space<vmem>>, vector<128x8xf32>
      tpu.vector_store %arg8[%c0_27, %c0_28], %41 {strides = array<i32>} : memref<128x8xf32, #tpu.memory_space<vmem>>, vector<128x8xf32>,
    } else {
    }
    %c0_i32_3 = arith.constant 0 : i32
    %10 = arith.cmpi eq, %arg1, %c0_i32_3 : i32
    %11 = arith.extui %10 : i1 to i32
    %c0_i32_4 = arith.constant 0 : i32
    %12 = arith.cmpi ne, %11, %c0_i32_4 : i32
    scf.if %12 {
      %c0 = arith.constant 0 : index
      %c0_5 = arith.constant 0 : index
      %13 = vector.load %arg9[%c0, %c0_5] : memref<128x8xf32, #tpu.memory_space<vmem>>, vector<128x8xf32>
      %cst = arith.constant 0.000000e+00 : f32
      %14 = vector.broadcast %cst : f32 to vector<128x8xf32>
      %15 = arith.cmpf ogt, %13, %14 : vector<128x8xf32>
      %cst_6 = arith.constant 1.000000e+00 : f32
      %16 = vector.broadcast %cst_6 : f32 to vector<128x8xf32>
      %17 = arith.select %15, %13, %16 : vector<128x8xi1>, vector<128x8xf32>
      %c0_7 = arith.constant 0 : index
      %c0_8 = arith.constant 0 : index
      %18 = vector.load %arg10[%c0_7, %c0_8] : memref<128x8xf32, #tpu.memory_space<vmem>>, vector<128x8xf32>
      %19 = tpu.reciprocal %17 : vector<128x8xf32> -> vector<128x8xf32>
      %20 = arith.mulf %18, %19 : vector<128x8xf32>
      %c0_9 = arith.constant 0 : index
      %c0_10 = arith.constant 0 : index
      %21 = vector.load %arg7[%c0_9, %c0_10] : memref<128x8xf32, #tpu.memory_space<vmem>>, vector<128x8xf32>
      tpu.vector_store %arg7[%c0_9, %c0_10], %20 {strides = array<i32>} : memref<128x8xf32, #tpu.memory_space<vmem>>, vector<128x8xf32>,
    } else {
    }
    return
  }
  func.func @transform_0(%arg0: i32, %arg1: i32, %arg2: memref<2xi32, #tpu.memory_space<smem>>) -> (i32, i32) {
    %c0_i32 = arith.constant 0 : i32
    %c0_i32_0 = arith.constant 0 : i32
    return %arg1, %c0_i32 : i32, i32
  }
  func.func @transform_1(%arg0: i32, %arg1: i32, %arg2: memref<2xi32, #tpu.memory_space<smem>>) -> (i32, i32) {
    %c0_i32 = arith.constant 0 : i32
    %c0_i32_0 = arith.constant 0 : i32
    return %arg0, %c0_i32 : i32, i32
  }
  func.func @transform_2(%arg0: i32, %arg1: i32, %arg2: memref<2xi32, #tpu.memory_space<smem>>) -> (i32, i32) {
    %c0_i32 = arith.constant 0 : i32
    %c0_i32_0 = arith.constant 0 : i32
    return %c0_i32, %arg1 : i32, i32
  }
  func.func @transform_3(%arg0: i32, %arg1: i32, %arg2: memref<2xi32, #tpu.memory_space<smem>>) -> (i32, i32) {
    %c0_i32 = arith.constant 0 : i32
    return %arg0, %arg1 : i32, i32
  }
  func.func @transform_4(%arg0: i32, %arg1: i32, %arg2: memref<2xi32, #tpu.memory_space<smem>>) -> (i32, i32) {
    %c0_i32 = arith.constant 0 : i32
    %c0_i32_0 = arith.constant 0 : i32
    return %arg0, %c0_i32 : i32, i32
  }
}

</mosaic_0001>

<llo_original>
// kernel: gat_forward.6
$region0: #{gat_forward.6}
  #allocation0 [shape = 'u32[]', space=smem, size = 0x4, offset = 0x4, fixed_abs, tag = 'smem constant byte address 0x4 - core index']
  #allocation1 [shape = 'u32[144,128]{1,0:T(1,128)}', space=vmem, size = 0x12000, scoped, tag = 'internal scratch']
  %s0 = inlined_call_operand.vmem [shape: f32[256,64], index: 0, kind: input, shape index: {}]
  %s1 = inlined_call_operand.vmem [shape: f32[64,128], index: 1, kind: input, shape index: {}]
  %s2 = inlined_call_operand.vmem [shape: f32[128,8], index: 2, kind: input, shape index: {}]
  %s3 = inlined_call_operand.vmem [shape: f32[256,128], index: 3, kind: output, shape index: {0}]
  %s4 = inlined_call_operand.vmem [shape: f32[256,4], index: 4, kind: output, shape index: {1}]
  %s5 = inlined_call_operand.vmem [shape: f32[256,4], index: 5, kind: output, shape index: {2}]
  %6 = xla_tuple %s3, %s4, %s5
  %s7 = sld [smem:[#allocation0]]
  $region61: #{gat_forward.6} parent=0
    _
  %s9 = ssub.s32 1, %s7
  %s10 = scalar_select 0, %s9, %s7
  loop: start=0, step=1, limit=4
  $region2: #{gat_forward.6} parent=0 // loop_pre_header
    _
  $region3: #{gat_forward.6} parent=0 // loop_header
    %s12 = sphi 0, %s16
    %p13 = scmp.ge.s32.totalorder %s12, 4
    %s22 = sphi 0, %s24
    %s25 = sphi 0, %s22
    %s26 = sphi 0, %s25
    %s42 = sphi 0, %s26
    %s46 = sphi 0, %s46
    %s48 = sphi 0, %s46
    %s49 = sphi 0, %s48
    %s63 = sphi 0, %s49
    %s67 = sphi 0, %s67
    %s69 = sphi 0, %s67
    %s70 = sphi 0, %s69
    %s84 = sphi 0, %s70
    %s90 = sphi 0, %s92
    %s93 = sphi 0, %s90
    %s94 = sphi 0, %s93
    %s110 = sphi 0, %s94
    %s116 = sphi 0, %s118
    %s119 = sphi 0, %s116
    %s120 = sphi 0, %s119
    %s136 = sphi 0, %s120
    %s142 = sphi 0, %s144
    %s145 = sphi 0, %s142
    %s146 = sphi 0, %s145
    %s162 = sphi 0, %s146
  $region4: #{gat_forward.6} parent=0 // loop_header_branch
    %15 = sbr.rel (%p13) target = $region8
  $region5: #{gat_forward.6} parent=0 // loop_body
    %s17 = ssub.s32 %s12, 1
    %s18 = ssub.s32 %s12, 2
    %s19 = sadd.s32 %s12, 1
    %s20 = ssub.s32 %s12, %s19
    %p21 = scmp.eq.s32.totalorder %s20, 0
    %s23 = sadd.s32 %s22, 1
    %s24 = scalar_select %p21, %s22, %s23
    %p27 = pneg %p21
    %p28 = scmp.eq.s32.totalorder %s12, 1
    %p29 = por %p27, %p28
    %p30 = scmp.ne.s32.totalorder %s22, %s25
    %p31 = scmp.eq.s32.totalorder %s12, 0
    %p32 = por %p30, %p31
    %p33 = scmp.ne.s32.totalorder %s22, %s25
    %p34 = scmp.eq.s32.totalorder %s17, 1
    %p35 = por %p33, %p34
    %p36 = scmp.ne.s32.totalorder %s25, %s26
    %p37 = scmp.eq.s32.totalorder %s17, 0
    %p38 = por %p36, %p37
    %p39 = scmp.ne.s32.totalorder %s25, %s26
    %p40 = scmp.eq.s32.totalorder %s18, 1
    %p41 = por %p39, %p40
    %p43 = scmp.ne.s32.totalorder %s26, %s42
    %p44 = scmp.eq.s32.totalorder %s18, 0
    %p45 = por %p43, %p44
    %s47 = sadd.s32 %s46, 1
    %p50 = scmp.eq.s32.totalorder %s12, 1
    %p51 = scmp.ne.s32.totalorder %s46, %s48
    %p52 = scmp.eq.s32.totalorder %s12, 0
    %p53 = por %p51, %p52
    %p54 = scmp.ne.s32.totalorder %s46, %s48
    %p55 = scmp.eq.s32.totalorder %s17, 1
    %p56 = por %p54, %p55
    %p57 = scmp.ne.s32.totalorder %s48, %s49
    %p58 = scmp.eq.s32.totalorder %s17, 0
    %p59 = por %p57, %p58
    %p60 = scmp.ne.s32.totalorder %s48, %s49
    %p61 = scmp.eq.s32.totalorder %s18, 1
    %p62 = por %p60, %p61
    %p64 = scmp.ne.s32.totalorder %s49, %s63
    %p65 = scmp.eq.s32.totalorder %s18, 0
    %p66 = por %p64, %p65
    %s68 = sadd.s32 %s67, 1
    %p71 = scmp.eq.s32.totalorder %s12, 1
    %p72 = scmp.ne.s32.totalorder %s67, %s69
    %p73 = scmp.eq.s32.totalorder %s12, 0
    %p74 = por %p72, %p73
    %p75 = scmp.ne.s32.totalorder %s67, %s69
    %p76 = scmp.eq.s32.totalorder %s17, 1
    %p77 = por %p75, %p76
    %p78 = scmp.ne.s32.totalorder %s69, %s70
    %p79 = scmp.eq.s32.totalorder %s17, 0
    %p80 = por %p78, %p79
    %p81 = scmp.ne.s32.totalorder %s69, %s70
    %p82 = scmp.eq.s32.totalorder %s18, 1
    %p83 = por %p81, %p82
    %p85 = scmp.ne.s32.totalorder %s70, %s84
    %p86 = scmp.eq.s32.totalorder %s18, 0
    %p87 = por %p85, %p86
    %s88 = ssub.s32 %s12, %s19
    %p89 = scmp.eq.s32.totalorder %s88, 0
    %s91 = sadd.s32 %s90, 1
    %s92 = scalar_select %p89, %s90, %s91
    %p95 = pneg %p89
    %p96 = scmp.eq.s32.totalorder %s12, 1
    %p97 = por %p95, %p96
    %p98 = scmp.ne.s32.totalorder %s90, %s93
    %p99 = scmp.eq.s32.totalorder %s12, 0
    %p100 = por %p98, %p99
    %p101 = scmp.ne.s32.totalorder %s90, %s93
    %p102 = scmp.eq.s32.totalorder %s17, 1
    %p103 = por %p101, %p102
    %p104 = scmp.ne.s32.totalorder %s93, %s94
    %p105 = scmp.eq.s32.totalorder %s17, 0
    %p106 = por %p104, %p105
    %p107 = scmp.ne.s32.totalorder %s93, %s94
    %p108 = scmp.eq.s32.totalorder %s18, 1
    %p109 = por %p107, %p108
    %p111 = scmp.ne.s32.totalorder %s94, %s110
    %p112 = scmp.eq.s32.totalorder %s18, 0
    %p113 = por %p111, %p112
    %s114 = ssub.s32 %s12, %s19
    %p115 = scmp.eq.s32.totalorder %s114, 0
    %s117 = sadd.s32 %s116, 1
    %s118 = scalar_select %p115, %s116, %s117
    %p121 = pneg %p115
    %p122 = scmp.eq.s32.totalorder %s12, 1
    %p123 = por %p121, %p122
    %p124 = scmp.ne.s32.totalorder %s116, %s119
    %p125 = scmp.eq.s32.totalorder %s12, 0
    %p126 = por %p124, %p125
    %p127 = scmp.ne.s32.totalorder %s116, %s119
    %p128 = scmp.eq.s32.totalorder %s17, 1
    %p129 = por %p127, %p128
    %p130 = scmp.ne.s32.totalorder %s119, %s120
    %p131 = scmp.eq.s32.totalorder %s17, 0
    %p132 = por %p130, %p131
    %p133 = scmp.ne.s32.totalorder %s119, %s120
    %p134 = scmp.eq.s32.totalorder %s18, 1
    %p135 = por %p133, %p134
    %p137 = scmp.ne.s32.totalorder %s120, %s136
    %p138 = scmp.eq.s32.totalorder %s18, 0
    %p139 = por %p137, %p138
    %s140 = ssub.s32 %s12, %s19
    %p141 = scmp.eq.s32.totalorder %s140, 0
    %s143 = sadd.s32 %s142, 1
    %s144 = scalar_select %p141, %s142, %s143
    %p147 = pneg %p141
    %p148 = scmp.eq.s32.totalorder %s12, 1
    %p149 = por %p147, %p148
    %p150 = scmp.ne.s32.totalorder %s142, %s145
    %p151 = scmp.eq.s32.totalorder %s12, 0
    %p152 = por %p150, %p151
    %p153 = scmp.ne.s32.totalorder %s142, %s145
    %p154 = scmp.eq.s32.totalorder %s17, 1
    %p155 = por %p153, %p154
    %p156 = scmp.ne.s32.totalorder %s145, %s146
    %p157 = scmp.eq.s32.totalorder %s17, 0
    %p158 = por %p156, %p157
    %p159 = scmp.ne.s32.totalorder %s145, %s146
    %p160 = scmp.eq.s32.totalorder %s18, 1
    %p161 = por %p159, %p160
    %p163 = scmp.ne.s32.totalorder %s146, %s162
    %p164 = scmp.eq.s32.totalorder %s18, 0
    %p165 = por %p163, %p164
    %p166 = scmp.le.s32.totalorder 1, %s12
    %p167 = scmp.lt.s32.totalorder %s12, 3
    %p168 = pnand %p166, %p167
    %p169 = pneg %p168
    // Predicated region
    $region9: #{gat_forward.6} parent=5 // pred_check
      _
    $region10: #{gat_forward.6} parent=5 // pred_check_branch
      %171 = sbr.rel (%p168) target = $region12
    $region11: #{gat_forward.6} parent=5 // pred_region
      %s172 = ssub.s32 %s12, 1
      // Predicated region
      $region13: #{gat_forward.6} parent=11 // pred_check
        %p173 = pneg %p59
      $region14: #{gat_forward.6} parent=11 // pred_check_branch
        %175 = sbr.rel (%p173) target = $region16
      $region15: #{gat_forward.6} parent=11 // pred_region
        _
      $region16: #{gat_forward.6} parent=11 // pred_fallthru
        _
      // Predicated region
      $region17: #{gat_forward.6} parent=11 // pred_check
        %p176 = pneg %p80
      $region18: #{gat_forward.6} parent=11 // pred_check_branch
        %178 = sbr.rel (%p176) target = $region20
      $region19: #{gat_forward.6} parent=11 // pred_region
        _
      $region20: #{gat_forward.6} parent=11 // pred_fallthru
        _
    $region12: #{gat_forward.6} parent=5 // pred_fallthru
      _
    %p179 = scmp.lt.s32.totalorder %s12, 2
    // Predicated region
    $region21: #{gat_forward.6} parent=5 // pred_check
      %p180 = pneg %p179
    $region22: #{gat_forward.6} parent=5 // pred_check_branch
      %182 = sbr.rel (%p180) target = $region24
    $region23: #{gat_forward.6} parent=5 // pred_region
      // Predicated region
      $region25: #{gat_forward.6} parent=23 // pred_check
        %p183 = pneg %p32
      $region26: #{gat_forward.6} parent=23 // pred_check_branch
        %185 = sbr.rel (%p183) target = $region28
      $region27: #{gat_forward.6} parent=23 // pred_region
        %s186 = smul.u32 16, %s12
        %p187 = scmp.lt.s32.totalorder %s186, 31
        %s188 = scalar_select %p187, %s186, 31
        %s189 = smul.addr %s188, 8
        %s190 = scalar_lea.vmem %s0, %s189
        %s191 = smul.u32 16, %s12
      $region28: #{gat_forward.6} parent=23 // pred_fallthru
        _
    $region24: #{gat_forward.6} parent=5 // pred_fallthru
      _
    %p192 = scmp.le.s32.totalorder 1, %s12
    %p193 = scmp.lt.s32.totalorder %s12, 3
    %p194 = pnand %p192, %p193
    %p195 = pneg %p194
    // Predicated region
    $region29: #{gat_forward.6} parent=5 // pred_check
      _
    $region30: #{gat_forward.6} parent=5 // pred_check_branch
      %197 = sbr.rel (%p194) target = $region32
    $region31: #{gat_forward.6} parent=5 // pred_region
      %s198 = ssub.s32 %s12, 1
      %s199 = smul.u32 16, %s17
      %p200 = scmp.lt.s32.totalorder %s199, 31
      %s201 = scalar_select %p200, %s199, 31
      %s202 = smul.addr %s201, 8
      %s203 = scalar_lea.vmem %s0, %s202
      %p204 = pneg %p38
      %p205 = pneg %p35
      %p206 = pneg %p59
      %p207 = pneg %p56
      %p208 = pneg %p80
      %p209 = pneg %p77
      %p210 = pneg %p106
      %p211 = pneg %p103
      %s212 = smul.u32 16, %s17
      %p213 = scmp.lt.s32.totalorder %s212, 31
      %s214 = scalar_select %p213, %s212, 31
      %s215 = smul.addr %s214, 8
      %s216 = scalar_lea.vmem %s3, %s215
      %p217 = pneg %p132
      %p218 = pneg %p129
      %s219 = smul.u32 16, %s17
      %p220 = scmp.lt.s32.totalorder %s219, 31
      %s221 = scalar_select %p220, %s219, 31
      %s222 = smul.addr %s221, 8
      %s223 = scalar_lea.vmem %s4, %s222
      %p224 = pneg %p158
      %p225 = pneg %p155
      %s226 = smul.u32 16, %s17
      %p227 = scmp.lt.s32.totalorder %s226, 31
      %s228 = scalar_select %p227, %s226, 31
      %s229 = smul.addr %s228, 8
      %s230 = scalar_lea.vmem %s5, %s229
      %s231 = smul.u32 16, %s17
      %p232 = scmp.lt.s32.totalorder %s231, 31
      %s233 = scalar_select %p232, %s231, 31
      %s234 = smul.addr %s233, 8
      %s235 = scalar_lea.vmem %s0, %s234
      %s236 = smul.u32 16, %s17
      %s237 = smul.u32 16, %s17
      %p238 = scmp.lt.s32.totalorder %s237, 31
      %s239 = scalar_select %p238, %s237, 31
      %s240 = smul.addr %s239, 8
      %s241 = scalar_lea.vmem %s3, %s240
      %s242 = smul.u32 16, %s17
      %s243 = smul.u32 16, %s17
      %p244 = scmp.lt.s32.totalorder %s243, 31
      %s245 = scalar_select %p244, %s243, 31
      %s246 = smul.addr %s245, 8
      %s247 = scalar_lea.vmem %s4, %s246
      %s248 = smul.u32 16, %s17
      %s249 = smul.u32 16, %s17
      %p250 = scmp.lt.s32.totalorder %s249, 31
      %s251 = scalar_select %p250, %s249, 31
      %s252 = smul.addr %s251, 8
      %s253 = scalar_lea.vmem %s5, %s252
      %s254 = smul.u32 16, %s17
      %v255 = vld [vmem:[%s235] sm:$0xff]
      %v256 = vld [vmem:[%s235 + $0x8] sm:$0xff]
      %v257 = vld [vmem:[%s235 + $0x10] sm:$0xff]
      %v258 = vld [vmem:[%s235 + $0x18] sm:$0xff]
      %v259 = vld [vmem:[%s235 + $0x20] sm:$0xff]
      %v260 = vld [vmem:[%s235 + $0x28] sm:$0xff]
      %v261 = vld [vmem:[%s235 + $0x30] sm:$0xff]
      %v262 = vld [vmem:[%s235 + $0x38] sm:$0xff]
      %v263 = vld [vmem:[%s235 + $0x40] sm:$0xff]
      %v264 = vld [vmem:[%s235 + $0x48] sm:$0xff]
      %v265 = vld [vmem:[%s235 + $0x50] sm:$0xff]
      %v266 = vld [vmem:[%s235 + $0x58] sm:$0xff]
      %v267 = vld [vmem:[%s235 + $0x60] sm:$0xff]
      %v268 = vld [vmem:[%s235 + $0x68] sm:$0xff]
      %v269 = vld [vmem:[%s235 + $0x70] sm:$0xff]
      %v270 = vld [vmem:[%s235 + $0x78] sm:$0xff]
      %v271 = vld [vmem:[%s1] sm:$0xff]
      %v272 = vld [vmem:[%s1 + $0x8] sm:$0xff]
      %v273 = vld [vmem:[%s1 + $0x10] sm:$0xff]
      %v274 = vld [vmem:[%s1 + $0x18] sm:$0xff]
      %v275 = vld [vmem:[%s1 + $0x20] sm:$0xff]
      %v276 = vld [vmem:[%s1 + $0x28] sm:$0xff]
      %v277 = vld [vmem:[%s1 + $0x30] sm:$0xff]
      %v278 = vld [vmem:[%s1 + $0x38] sm:$0xff]
      %vm279 = vcmask 523264
      %v281 = vsel %vm279, %v255, 0
      %v284 = vsel %vm279, %v256, 0
      %v287 = vsel %vm279, %v257, 0
      %v290 = vsel %vm279, %v258, 0
      %v293 = vsel %vm279, %v259, 0
      %v296 = vsel %vm279, %v260, 0
      %v299 = vsel %vm279, %v261, 0
      %v302 = vsel %vm279, %v262, 0
      %v305 = vsel %vm279, %v263, 0
      %v308 = vsel %vm279, %v264, 0
      %v311 = vsel %vm279, %v265, 0
      %v314 = vsel %vm279, %v266, 0
      %v317 = vsel %vm279, %v267, 0
      %v320 = vsel %vm279, %v268, 0
      %v323 = vsel %vm279, %v269, 0
      %v326 = vsel %vm279, %v270, 0
      %328 = vmatprep.subr.mxu0 0.0
      %329 = vmatpush1.msra.mxu0 %v271
      %330 = vmatprep.subr.mxu0 0.0
      %331 = vmatpush1.msra.mxu0 %v272
      %332 = vmatprep.subr.mxu0 0.0
      %333 = vmatpush1.msra.mxu0 %v273
      %334 = vmatprep.subr.mxu0 0.0
      %335 = vmatpush1.msra.mxu0 %v274
      %336 = vmatprep.subr.mxu0 0.0
      %337 = vmatpush1.msra.mxu0 %v275
      %338 = vmatprep.subr.mxu0 0.0
      %339 = vmatpush1.msra.mxu0 %v276
      %340 = vmatprep.subr.mxu0 0.0
      %341 = vmatpush1.msra.mxu0 %v277
      %342 = vmatprep.subr.mxu0 0.0
      %343 = vmatpush1.msra.mxu0 %v278
      %344 = vmatprep.subr.mxu0 0.0
      %345 = vmatpush1.msra.mxu0 0.0
      %346 = vmatprep.subr.mxu0 0.0
      %347 = vmatpush1.msra.mxu0 0.0
      %348 = vmatprep.subr.mxu0 0.0
      %349 = vmatpush1.msra.mxu0 0.0
      %350 = vmatprep.subr.mxu0 0.0
      %351 = vmatpush1.msra.mxu0 0.0
      %352 = vmatprep.subr.mxu0 0.0
      %353 = vmatpush1.msra.mxu0 0.0
      %354 = vmatprep.subr.mxu0 0.0
      %355 = vmatpush1.msra.mxu0 0.0
      %356 = vmatprep.subr.mxu0 0.0
      %357 = vmatpush1.msra.mxu0 0.0
      %358 = vmatprep.subr.mxu0 0.0
      %359 = vmatpush1.msra.mxu0 0.0
      %360 = vmatprep.subr.mxu0 0.0
      %361 = vmatpush1.msra.mxu0 0.0
      %362 = vmatprep.subr.mxu0 0.0
      %363 = vmatpush1.msra.mxu0 0.0
      %364 = vmatprep.subr.mxu0 0.0
      %365 = vmatpush1.msra.mxu0 0.0
      %366 = vmatprep.subr.mxu0 0.0
      %367 = vmatpush1.msra.mxu0 0.0
      %368 = vmatprep.subr.mxu0 0.0
      %369 = vmatpush1.msra.mxu0 0.0
      %370 = vmatprep.subr.mxu0 0.0
      %371 = vmatpush1.msra.mxu0 0.0
      %372 = vmatprep.subr.mxu0 0.0
      %373 = vmatpush1.msra.mxu0 0.0
      %374 = vmatprep.subr.mxu0 0.0
      %375 = vmatpush1.msra.mxu0 0.0
      %376 = vmatprep.subr.mxu0 0.0
      %377 = vmatpush1.msra.mxu0 0.0
      %378 = vmatprep.subr.mxu0 0.0
      %379 = vmatpush1.msra.mxu0 0.0
      %380 = vmatprep.subr.mxu0 0.0
      %381 = vmatpush1.msra.mxu0 0.0
      %382 = vmatprep.subr.mxu0 0.0
      %383 = vmatpush1.msra.mxu0 0.0
      %384 = vmatprep.subr.mxu0 0.0
      %385 = vmatpush1.msra.mxu0 0.0
      %386 = vmatprep.subr.mxu0 0.0
      %387 = vmatpush1.msra.mxu0 0.0
      %388 = vmatprep.subr.mxu0 0.0
      %389 = vmatpush1.msra.mxu0 0.0
      %390 = vmatprep.subr.mxu0 0.0
      %391 = vmatpush1.msra.mxu0 0.0
      %392 = vmatprep.mubr.f32.mxu0 0.0
      %393 = vmatmul.mubr.f32.gmra.mrb[0].mxu0 %v281
      %v394 = vpop.f32.mrb[0].mxu0
      %v395 = vadd.f32 0.0, %v394
      %v396 = vpop.f32.mrb[0].mxu0
      %397 = vmatprep.mubr.f32.mxu0 0.0
      %398 = vmatmul.mubr.f32.gmra.mrb[0].mxu0 %v284
      %v399 = vpop.f32.mrb[0].mxu0
      %v400 = vadd.f32 0.0, %v399
      %v401 = vpop.f32.mrb[0].mxu0
      %402 = vmatprep.mubr.f32.mxu0 0.0
      %403 = vmatmul.mubr.f32.gmra.mrb[0].mxu0 %v287
      %v404 = vpop.f32.mrb[0].mxu0
      %v405 = vadd.f32 0.0, %v404
      %v406 = vpop.f32.mrb[0].mxu0
      %407 = vmatprep.mubr.f32.mxu0 0.0
      %408 = vmatmul.mubr.f32.gmra.mrb[0].mxu0 %v290
      %v409 = vpop.f32.mrb[0].mxu0
      %v410 = vadd.f32 0.0, %v409
      %v411 = vpop.f32.mrb[0].mxu0
      %412 = vmatprep.mubr.f32.mxu0 0.0
      %413 = vmatmul.mubr.f32.gmra.mrb[0].mxu0 %v293
      %v414 = vpop.f32.mrb[0].mxu0
      %v415 = vadd.f32 0.0, %v414
      %v416 = vpop.f32.mrb[0].mxu0
      %417 = vmatprep.mubr.f32.mxu0 0.0
      %418 = vmatmul.mubr.f32.gmra.mrb[0].mxu0 %v296
      %v419 = vpop.f32.mrb[0].mxu0
      %v420 = vadd.f32 0.0, %v419
      %v421 = vpop.f32.mrb[0].mxu0
      %422 = vmatprep.mubr.f32.mxu0 0.0
      %423 = vmatmul.mubr.f32.gmra.mrb[0].mxu0 %v299
      %v424 = vpop.f32.mrb[0].mxu0
      %v425 = vadd.f32 0.0, %v424
      %v426 = vpop.f32.mrb[0].mxu0
      %427 = vmatprep.mubr.f32.mxu0 0.0
      %428 = vmatmul.mubr.f32.gmra.mrb[0].mxu0 %v302
      %v429 = vpop.f32.mrb[0].mxu0
      %v430 = vadd.f32 0.0, %v429
      %v431 = vpop.f32.mrb[0].mxu0
      %432 = vmatprep.mubr.f32.mxu0 0.0
      %433 = vmatmul.mubr.f32.gmra.mrb[0].mxu0 %v305
      %v434 = vpop.f32.mrb[0].mxu0
      %v435 = vadd.f32 0.0, %v434
      %v436 = vpop.f32.mrb[0].mxu0
      %437 = vmatprep.mubr.f32.mxu0 0.0
      %438 = vmatmul.mubr.f32.gmra.mrb[0].mxu0 %v308
      %v439 = vpop.f32.mrb[0].mxu0
      %v440 = vadd.f32 0.0, %v439
      %v441 = vpop.f32.mrb[0].mxu0
      %442 = vmatprep.mubr.f32.mxu0 0.0
      %443 = vmatmul.mubr.f32.gmra.mrb[0].mxu0 %v311
      %v444 = vpop.f32.mrb[0].mxu0
      %v445 = vadd.f32 0.0, %v444
      %v446 = vpop.f32.mrb[0].mxu0
      %447 = vmatprep.mubr.f32.mxu0 0.0
      %448 = vmatmul.mubr.f32.gmra.mrb[0].mxu0 %v314
      %v449 = vpop.f32.mrb[0].mxu0
      %v450 = vadd.f32 0.0, %v449
      %v451 = vpop.f32.mrb[0].mxu0
      %452 = vmatprep.mubr.f32.mxu0 0.0
      %453 = vmatmul.mubr.f32.gmra.mrb[0].mxu0 %v317
      %v454 = vpop.f32.mrb[0].mxu0
      %v455 = vadd.f32 0.0, %v454
      %v456 = vpop.f32.mrb[0].mxu0
      %457 = vmatprep.mubr.f32.mxu0 0.0
      %458 = vmatmul.mubr.f32.gmra.mrb[0].mxu0 %v320
      %v459 = vpop.f32.mrb[0].mxu0
      %v460 = vadd.f32 0.0, %v459
      %v461 = vpop.f32.mrb[0].mxu0
      %462 = vmatprep.mubr.f32.mxu0 0.0
      %463 = vmatmul.mubr.f32.gmra.mrb[0].mxu0 %v323
      %v464 = vpop.f32.mrb[0].mxu0
      %v465 = vadd.f32 0.0, %v464
      %v466 = vpop.f32.mrb[0].mxu0
      %467 = vmatprep.mubr.f32.mxu0 0.0
      %468 = vmatmul.mubr.f32.gmra.mrb[0].mxu0 %v326
      %v469 = vpop.f32.mrb[0].mxu0
      %v470 = vadd.f32 0.0, %v469
      %v471 = vpop.f32.mrb[0].mxu0
      %472 = vdwg.mxu0
      %473 = vst [vmem:[%s241] sm:$0xff] %v395
      %474 = vst [vmem:[%s241 + $0x8] sm:$0xff] %v400
      %475 = vst [vmem:[%s241 + $0x10] sm:$0xff] %v405
      %476 = vst [vmem:[%s241 + $0x18] sm:$0xff] %v410
      %477 = vst [vmem:[%s241 + $0x20] sm:$0xff] %v415
      %478 = vst [vmem:[%s241 + $0x28] sm:$0xff] %v420
      %479 = vst [vmem:[%s241 + $0x30] sm:$0xff] %v425
      %480 = vst [vmem:[%s241 + $0x38] sm:$0xff] %v430
      %481 = vst [vmem:[%s241 + $0x40] sm:$0xff] %v435
      %482 = vst [vmem:[%s241 + $0x48] sm:$0xff] %v440
      %483 = vst [vmem:[%s241 + $0x50] sm:$0xff] %v445
      %484 = vst [vmem:[%s241 + $0x58] sm:$0xff] %v450
      %485 = vst [vmem:[%s241 + $0x60] sm:$0xff] %v455
      %486 = vst [vmem:[%s241 + $0x68] sm:$0xff] %v460
      %487 = vst [vmem:[%s241 + $0x70] sm:$0xff] %v465
      %488 = vst [vmem:[%s241 + $0x78] sm:$0xff] %v470
      %v489 = vld [vmem:[%s2] sm:$0xff]
      %v490 = vld [vmem:[%s2 + $0x8] sm:$0xff]
      %v491 = vld [vmem:[%s2 + $0x10] sm:$0xff]
      %v492 = vld [vmem:[%s2 + $0x18] sm:$0xff]
      %v493 = vld [vmem:[%s2 + $0x20] sm:$0xff]
      %v494 = vld [vmem:[%s2 + $0x28] sm:$0xff]
      %v495 = vld [vmem:[%s2 + $0x30] sm:$0xff]
      %v496 = vld [vmem:[%s2 + $0x38] sm:$0xff]
      %v497 = vld [vmem:[%s2 + $0x40] sm:$0xff]
      %v498 = vld [vmem:[%s2 + $0x48] sm:$0xff]
      %v499 = vld [vmem:[%s2 + $0x50] sm:$0xff]
      %v500 = vld [vmem:[%s2 + $0x58] sm:$0xff]
      %v501 = vld [vmem:[%s2 + $0x60] sm:$0xff]
      %v502 = vld [vmem:[%s2 + $0x68] sm:$0xff]
      %v503 = vld [vmem:[%s2 + $0x70] sm:$0xff]
      %v504 = vld [vmem:[%s2 + $0x78] sm:$0xff]
      %505 = vmatprep.subr.mxu0 0.0
      %506 = vmatpush1.msra.mxu0 %v489
      %507 = vmatprep.subr.mxu0 0.0
      %508 = vmatpush1.msra.mxu0 %v490
      %509 = vmatprep.subr.mxu0 0.0
      %510 = vmatpush1.msra.mxu0 %v491
      %511 = vmatprep.subr.mxu0 0.0
      %512 = vmatpush1.msra.mxu0 %v492
      %513 = vmatprep.subr.mxu0 0.0
      %514 = vmatpush1.msra.mxu0 %v493
      %515 = vmatprep.subr.mxu0 0.0
      %516 = vmatpush1.msra.mxu0 %v494
      %517 = vmatprep.subr.mxu0 0.0
      %518 = vmatpush1.msra.mxu0 %v495
      %519 = vmatprep.subr.mxu0 0.0
      %520 = vmatpush1.msra.mxu0 %v496
      %521 = vmatprep.subr.mxu0 0.0
      %522 = vmatpush1.msra.mxu0 %v497
      %523 = vmatprep.subr.mxu0 0.0
      %524 = vmatpush1.msra.mxu0 %v498
      %525 = vmatprep.subr.mxu0 0.0
      %526 = vmatpush1.msra.mxu0 %v499
      %527 = vmatprep.subr.mxu0 0.0
      %528 = vmatpush1.msra.mxu0 %v500
      %529 = vmatprep.subr.mxu0 0.0
      %530 = vmatpush1.msra.mxu0 %v501
      %531 = vmatprep.subr.mxu0 0.0
      %532 = vmatpush1.msra.mxu0 %v502
      %533 = vmatprep.subr.mxu0 0.0
      %534 = vmatpush1.msra.mxu0 %v503
      %535 = vmatprep.subr.mxu0 0.0
      %536 = vmatpush1.msra.mxu0 %v504
      %537 = vmatprep.subr.mxu0 0.0
      %538 = vmatpush1.msra.mxu0 0.0
      %539 = vmatprep.subr.mxu0 0.0
      %540 = vmatpush1.msra.mxu0 0.0
      %541 = vmatprep.subr.mxu0 0.0
      %542 = vmatpush1.msra.mxu0 0.0
      %543 = vmatprep.subr.mxu0 0.0
      %544 = vmatpush1.msra.mxu0 0.0
      %545 = vmatprep.subr.mxu0 0.0
      %546 = vmatpush1.msra.mxu0 0.0
      %547 = vmatprep.subr.mxu0 0.0
      %548 = vmatpush1.msra.mxu0 0.0
      %549 = vmatprep.subr.mxu0 0.0
      %550 = vmatpush1.msra.mxu0 0.0
      %551 = vmatprep.subr.mxu0 0.0
      %552 = vmatpush1.msra.mxu0 0.0
      %553 = vmatprep.subr.mxu0 0.0
      %554 = vmatpush1.msra.mxu0 0.0
      %555 = vmatprep.subr.mxu0 0.0
      %556 = vmatpush1.msra.mxu0 0.0
      %557 = vmatprep.subr.mxu0 0.0
      %558 = vmatpush1.msra.mxu0 0.0
      %559 = vmatprep.subr.mxu0 0.0
      %560 = vmatpush1.msra.mxu0 0.0
      %561 = vmatprep.subr.mxu0 0.0
      %562 = vmatpush1.msra.mxu0 0.0
      %563 = vmatprep.subr.mxu0 0.0
      %564 = vmatpush1.msra.mxu0 0.0
      %565 = vmatprep.subr.mxu0 0.0
      %566 = vmatpush1.msra.mxu0 0.0
      %567 = vmatprep.subr.mxu0 0.0
      %568 = vmatpush1.msra.mxu0 0.0
      %569 = vmatprep.mubr.f32.mxu0 0.0
      %570 = vmatmul.mubr.f32.gmra.mrb[0].mxu0 %v395
      %v571 = vpop.f32.mrb[0].mxu0
      %v572 = vadd.f32 0.0, %v571
      %v573 = vpop.f32.mrb[0].mxu0
      %574 = vmatprep.mubr.f32.mxu0 0.0
      %575 = vmatmul.mubr.f32.gmra.mrb[0].mxu0 %v400
      %v576 = vpop.f32.mrb[0].mxu0
      %v577 = vadd.f32 0.0, %v576
      %v578 = vpop.f32.mrb[0].mxu0
      %579 = vmatprep.mubr.f32.mxu0 0.0
      %580 = vmatmul.mubr.f32.gmra.mrb[0].mxu0 %v405
      %v581 = vpop.f32.mrb[0].mxu0
      %v582 = vadd.f32 0.0, %v581
      %v583 = vpop.f32.mrb[0].mxu0
      %584 = vmatprep.mubr.f32.mxu0 0.0
      %585 = vmatmul.mubr.f32.gmra.mrb[0].mxu0 %v410
      %v586 = vpop.f32.mrb[0].mxu0
      %v587 = vadd.f32 0.0, %v586
      %v588 = vpop.f32.mrb[0].mxu0
      %589 = vmatprep.mubr.f32.mxu0 0.0
      %590 = vmatmul.mubr.f32.gmra.mrb[0].mxu0 %v415
      %v591 = vpop.f32.mrb[0].mxu0
      %v592 = vadd.f32 0.0, %v591
      %v593 = vpop.f32.mrb[0].mxu0
      %594 = vmatprep.mubr.f32.mxu0 0.0
      %595 = vmatmul.mubr.f32.gmra.mrb[0].mxu0 %v420
      %v596 = vpop.f32.mrb[0].mxu0
      %v597 = vadd.f32 0.0, %v596
      %v598 = vpop.f32.mrb[0].mxu0
      %599 = vmatprep.mubr.f32.mxu0 0.0
      %600 = vmatmul.mubr.f32.gmra.mrb[0].mxu0 %v425
      %v601 = vpop.f32.mrb[0].mxu0
      %v602 = vadd.f32 0.0, %v601
      %v603 = vpop.f32.mrb[0].mxu0
      %604 = vmatprep.mubr.f32.mxu0 0.0
      %605 = vmatmul.mubr.f32.gmra.mrb[0].mxu0 %v430
      %v606 = vpop.f32.mrb[0].mxu0
      %v607 = vadd.f32 0.0, %v606
      %v608 = vpop.f32.mrb[0].mxu0
      %609 = vmatprep.mubr.f32.mxu0 0.0
      %610 = vmatmul.mubr.f32.gmra.mrb[0].mxu0 %v435
      %v611 = vpop.f32.mrb[0].mxu0
      %v612 = vadd.f32 0.0, %v611
      %v613 = vpop.f32.mrb[0].mxu0
      %614 = vmatprep.mubr.f32.mxu0 0.0
      %615 = vmatmul.mubr.f32.gmra.mrb[0].mxu0 %v440
      %v616 = vpop.f32.mrb[0].mxu0
      %v617 = vadd.f32 0.0, %v616
      %v618 = vpop.f32.mrb[0].mxu0
      %619 = vmatprep.mubr.f32.mxu0 0.0
      %620 = vmatmul.mubr.f32.gmra.mrb[0].mxu0 %v445
      %v621 = vpop.f32.mrb[0].mxu0
      %v622 = vadd.f32 0.0, %v621
      %v623 = vpop.f32.mrb[0].mxu0
      %624 = vmatprep.mubr.f32.mxu0 0.0
      %625 = vmatmul.mubr.f32.gmra.mrb[0].mxu0 %v450
      %v626 = vpop.f32.mrb[0].mxu0
      %v627 = vadd.f32 0.0, %v626
      %v628 = vpop.f32.mrb[0].mxu0
      %629 = vmatprep.mubr.f32.mxu0 0.0
      %630 = vmatmul.mubr.f32.gmra.mrb[0].mxu0 %v455
      %v631 = vpop.f32.mrb[0].mxu0
      %v632 = vadd.f32 0.0, %v631
      %v633 = vpop.f32.mrb[0].mxu0
      %634 = vmatprep.mubr.f32.mxu0 0.0
      %635 = vmatmul.mubr.f32.gmra.mrb[0].mxu0 %v460
      %v636 = vpop.f32.mrb[0].mxu0
      %v637 = vadd.f32 0.0, %v636
      %v638 = vpop.f32.mrb[0].mxu0
      %639 = vmatprep.mubr.f32.mxu0 0.0
      %640 = vmatmul.mubr.f32.gmra.mrb[0].mxu0 %v465
      %v641 = vpop.f32.mrb[0].mxu0
      %v642 = vadd.f32 0.0, %v641
      %v643 = vpop.f32.mrb[0].mxu0
      %644 = vmatprep.mubr.f32.mxu0 0.0
      %645 = vmatmul.mubr.f32.gmra.mrb[0].mxu0 %v470
      %v646 = vpop.f32.mrb[0].mxu0
      %v647 = vadd.f32 0.0, %v646
      %v648 = vpop.f32.mrb[0].mxu0
      %649 = vdwg.mxu0
      %vm650 = vcmask 31744
      %651 = vst.msk [vmem:[%s247] sm:$0xff] %vm650, %v572
      %652 = vst.msk [vmem:[%s247 + $0x8] sm:$0xff] %vm650, %v577
      %653 = vst.msk [vmem:[%s247 + $0x10] sm:$0xff] %vm650, %v582
      %654 = vst.msk [vmem:[%s247 + $0x18] sm:$0xff] %vm650, %v587
      %655 = vst.msk [vmem:[%s247 + $0x20] sm:$0xff] %vm650, %v592
      %656 = vst.msk [vmem:[%s247 + $0x28] sm:$0xff] %vm650, %v597
      %657 = vst.msk [vmem:[%s247 + $0x30] sm:$0xff] %vm650, %v602
      %658 = vst.msk [vmem:[%s247 + $0x38] sm:$0xff] %vm650, %v607
      %659 = vst.msk [vmem:[%s247 + $0x40] sm:$0xff] %vm650, %v612
      %660 = vst.msk [vmem:[%s247 + $0x48] sm:$0xff] %vm650, %v617
      %661 = vst.msk [vmem:[%s247 + $0x50] sm:$0xff] %vm650, %v622
      %662 = vst.msk [vmem:[%s247 + $0x58] sm:$0xff] %vm650, %v627
      %663 = vst.msk [vmem:[%s247 + $0x60] sm:$0xff] %vm650, %v632
      %664 = vst.msk [vmem:[%s247 + $0x68] sm:$0xff] %vm650, %v637
      %665 = vst.msk [vmem:[%s247 + $0x70] sm:$0xff] %vm650, %v642
      %666 = vst.msk [vmem:[%s247 + $0x78] sm:$0xff] %vm650, %v647
      %683 = vrot.lane.b32.xlu0 %v572, 124
      %v684 = vpop.permute.xlu0 %683
      %685 = vrot.lane.b32.xlu0 %v577, 124
      %v686 = vpop.permute.xlu0 %685
      %687 = vrot.lane.b32.xlu0 %v582, 124
      %v688 = vpop.permute.xlu0 %687
      %689 = vrot.lane.b32.xlu0 %v587, 124
      %v690 = vpop.permute.xlu0 %689
      %691 = vrot.lane.b32.xlu0 %v592, 124
      %v692 = vpop.permute.xlu0 %691
      %693 = vrot.lane.b32.xlu0 %v597, 124
      %v694 = vpop.permute.xlu0 %693
      %695 = vrot.lane.b32.xlu0 %v602, 124
      %v696 = vpop.permute.xlu0 %695
      %697 = vrot.lane.b32.xlu0 %v607, 124
      %v698 = vpop.permute.xlu0 %697
      %699 = vrot.lane.b32.xlu0 %v612, 124
      %v700 = vpop.permute.xlu0 %699
      %701 = vrot.lane.b32.xlu0 %v617, 124
      %v702 = vpop.permute.xlu0 %701
      %703 = vrot.lane.b32.xlu0 %v622, 124
      %v704 = vpop.permute.xlu0 %703
      %705 = vrot.lane.b32.xlu0 %v627, 124
      %v706 = vpop.permute.xlu0 %705
      %707 = vrot.lane.b32.xlu0 %v632, 124
      %v708 = vpop.permute.xlu0 %707
      %709 = vrot.lane.b32.xlu0 %v637, 124
      %v710 = vpop.permute.xlu0 %709
      %711 = vrot.lane.b32.xlu0 %v642, 124
      %v712 = vpop.permute.xlu0 %711
      %713 = vrot.lane.b32.xlu0 %v647, 124
      %v714 = vpop.permute.xlu0 %713
      %731 = vst.msk [vmem:[%s253] sm:$0xff] %vm650, %v684
      %732 = vst.msk [vmem:[%s253 + $0x8] sm:$0xff] %vm650, %v686
      %733 = vst.msk [vmem:[%s253 + $0x10] sm:$0xff] %vm650, %v688
      %734 = vst.msk [vmem:[%s253 + $0x18] sm:$0xff] %vm650, %v690
      %735 = vst.msk [vmem:[%s253 + $0x20] sm:$0xff] %vm650, %v692
      %736 = vst.msk [vmem:[%s253 + $0x28] sm:$0xff] %vm650, %v694
      %737 = vst.msk [vmem:[%s253 + $0x30] sm:$0xff] %vm650, %v696
      %738 = vst.msk [vmem:[%s253 + $0x38] sm:$0xff] %vm650, %v698
      %739 = vst.msk [vmem:[%s253 + $0x40] sm:$0xff] %vm650, %v700
      %740 = vst.msk [vmem:[%s253 + $0x48] sm:$0xff] %vm650, %v702
      %741 = vst.msk [vmem:[%s253 + $0x50] sm:$0xff] %vm650, %v704
      %742 = vst.msk [vmem:[%s253 + $0x58] sm:$0xff] %vm650, %v706
      %743 = vst.msk [vmem:[%s253 + $0x60] sm:$0xff] %vm650, %v708
      %744 = vst.msk [vmem:[%s253 + $0x68] sm:$0xff] %vm650, %v710
      %745 = vst.msk [vmem:[%s253 + $0x70] sm:$0xff] %vm650, %v712
      %746 = vst.msk [vmem:[%s253 + $0x78] sm:$0xff] %vm650, %v714
      %s747 = smul.u32 16, %s17
      %p748 = scmp.lt.s32.totalorder %s747, 31
      %s749 = scalar_select %p748, %s747, 31
      %s750 = smul.addr %s749, 8
      %s751 = scalar_lea.vmem %s3, %s750
      %s752 = smul.u32 16, %s17
      %p753 = scmp.lt.s32.totalorder %s752, 31
      %s754 = scalar_select %p753, %s752, 31
      %s755 = smul.addr %s754, 8
      %s756 = scalar_lea.vmem %s4, %s755
      %s757 = smul.u32 16, %s17
      %p758 = scmp.lt.s32.totalorder %s757, 31
      %s759 = scalar_select %p758, %s757, 31
      %s760 = smul.addr %s759, 8
      %s761 = scalar_lea.vmem %s5, %s760
      // Predicated region
      $region33: #{gat_forward.6} parent=31 // pred_check
        %p762 = pneg %p103
      $region34: #{gat_forward.6} parent=31 // pred_check_branch
        %764 = sbr.rel (%p762) target = $region36
      $region35: #{gat_forward.6} parent=31 // pred_region
        %s765 = smul.u32 16, %s17
      $region36: #{gat_forward.6} parent=31 // pred_fallthru
        _
      // Predicated region
      $region37: #{gat_forward.6} parent=31 // pred_check
        %p766 = pneg %p129
      $region38: #{gat_forward.6} parent=31 // pred_check_branch
        %768 = sbr.rel (%p766) target = $region40
      $region39: #{gat_forward.6} parent=31 // pred_region
        %s769 = smul.u32 16, %s17
      $region40: #{gat_forward.6} parent=31 // pred_fallthru
        _
      // Predicated region
      $region41: #{gat_forward.6} parent=31 // pred_check
        %p770 = pneg %p155
      $region42: #{gat_forward.6} parent=31 // pred_check_branch
        %772 = sbr.rel (%p770) target = $region44
      $region43: #{gat_forward.6} parent=31 // pred_region
        %s773 = smul.u32 16, %s17
      $region44: #{gat_forward.6} parent=31 // pred_fallthru
        _
    $region32: #{gat_forward.6} parent=5 // pred_fallthru
      _
    %p774 = scmp.le.s32.totalorder 2, %s12
    // Predicated region
    $region45: #{gat_forward.6} parent=5 // pred_check
      %p775 = pneg %p774
    $region46: #{gat_forward.6} parent=5 // pred_check_branch
      %777 = sbr.rel (%p775) target = $region48
    $region47: #{gat_forward.6} parent=5 // pred_region
      %s778 = ssub.s32 %s12, 2
      // Predicated region
      $region49: #{gat_forward.6} parent=47 // pred_check
        %p779 = pneg %p109
      $region50: #{gat_forward.6} parent=47 // pred_check_branch
        %781 = sbr.rel (%p779) target = $region52
      $region51: #{gat_forward.6} parent=47 // pred_region
        %s782 = smul.u32 16, %s18
        %p783 = scmp.lt.s32.totalorder %s782, 31
        %s784 = scalar_select %p783, %s782, 31
        %s785 = smul.addr %s784, 8
        %s786 = scalar_lea.vmem %s3, %s785
      $region52: #{gat_forward.6} parent=47 // pred_fallthru
        _
      // Predicated region
      $region53: #{gat_forward.6} parent=47 // pred_check
        %p787 = pneg %p135
      $region54: #{gat_forward.6} parent=47 // pred_check_branch
        %789 = sbr.rel (%p787) target = $region56
      $region55: #{gat_forward.6} parent=47 // pred_region
        %s790 = smul.u32 16, %s18
        %p791 = scmp.lt.s32.totalorder %s790, 31
        %s792 = scalar_select %p791, %s790, 31
        %s793 = smul.addr %s792, 8
        %s794 = scalar_lea.vmem %s4, %s793
      $region56: #{gat_forward.6} parent=47 // pred_fallthru
        _
      // Predicated region
      $region57: #{gat_forward.6} parent=47 // pred_check
        %p795 = pneg %p161
      $region58: #{gat_forward.6} parent=47 // pred_check_branch
        %797 = sbr.rel (%p795) target = $region60
      $region59: #{gat_forward.6} parent=47 // pred_region
        %s798 = smul.u32 16, %s18
        %p799 = scmp.lt.s32.totalorder %s798, 31
        %s800 = scalar_select %p799, %s798, 31
        %s801 = smul.addr %s800, 8
        %s802 = scalar_lea.vmem %s5, %s801
      $region60: #{gat_forward.6} parent=47 // pred_fallthru
        _
    $region48: #{gat_forward.6} parent=5 // pred_fallthru
      _
  $region6: #{gat_forward.6} parent=0 // loop_footer
    %s16 = sadd.s32 1, %s12
  $region7: #{gat_forward.6} parent=0 // loop_footer_branch
    %11 = sbr.rel target = $region3
  $region8: #{gat_forward.6} parent=0 // loop_exit
    _

// kernel: gat_forward.8
$region0: #{gat_forward.8}
  #allocation0 [shape = 'u32[]', space=smem, size = 0x4, offset = 0x4, fixed_abs, tag = 'smem constant byte address 0x4 - core index']
  #allocation1 [shape = 'u32[144,128]{1,0:T(1,128)}', space=vmem, size = 0x12000, scoped, tag = 'internal scratch']
  %s0 = inlined_call_operand.vmem [shape: f32[256,128], index: 0, kind: input, shape index: {}]
  %s1 = inlined_call_operand.vmem [shape: f32[128,128], index: 1, kind: input, shape index: {}]
  %s2 = inlined_call_operand.vmem [shape: f32[128,8], index: 2, kind: input, shape index: {}]
  %s3 = inlined_call_operand.vmem [shape: f32[256,128], index: 3, kind: output, shape index: {0}]
  %s4 = inlined_call_operand.vmem [shape: f32[256,4], index: 4, kind: output, shape index: {1}]
  %s5 = inlined_call_operand.vmem [shape: f32[256,4], index: 5, kind: output, shape index: {2}]
  %6 = xla_tuple %s3, %s4, %s5
  %s7 = sld [smem:[#allocation0]]
  $region61: #{gat_forward.8} parent=0
    _
  %s9 = ssub.s32 1, %s7
  %s10 = scalar_select 0, %s9, %s7
  loop: start=0, step=1, limit=4
  $region2: #{gat_forward.8} parent=0 // loop_pre_header
    _
  $region3: #{gat_forward.8} parent=0 // loop_header
    %s12 = sphi 0, %s16
    %p13 = scmp.ge.s32.totalorder %s12, 4
    %s22 = sphi 0, %s24
    %s25 = sphi 0, %s22
    %s26 = sphi 0, %s25
    %s42 = sphi 0, %s26
    %s46 = sphi 0, %s46
    %s48 = sphi 0, %s46
    %s49 = sphi 0, %s48
    %s63 = sphi 0, %s49
    %s67 = sphi 0, %s67
    %s69 = sphi 0, %s67
    %s70 = sphi 0, %s69
    %s84 = sphi 0, %s70
    %s90 = sphi 0, %s92
    %s93 = sphi 0, %s90
    %s94 = sphi 0, %s93
    %s110 = sphi 0, %s94
    %s116 = sphi 0, %s118
    %s119 = sphi 0, %s116
    %s120 = sphi 0, %s119
    %s136 = sphi 0, %s120
    %s142 = sphi 0, %s144
    %s145 = sphi 0, %s142
    %s146 = sphi 0, %s145
    %s162 = sphi 0, %s146
  $region4: #{gat_forward.8} parent=0 // loop_header_branch
    %15 = sbr.rel (%p13) target = $region8
  $region5: #{gat_forward.8} parent=0 // loop_body
    %s17 = ssub.s32 %s12, 1
    %s18 = ssub.s32 %s12, 2
    %s19 = sadd.s32 %s12, 1
    %s20 = ssub.s32 %s12, %s19
    %p21 = scmp.eq.s32.totalorder %s20, 0
    %s23 = sadd.s32 %s22, 1
    %s24 = scalar_select %p21, %s22, %s23
    %p27 = pneg %p21
    %p28 = scmp.eq.s32.totalorder %s12, 1
    %p29 = por %p27, %p28
    %p30 = scmp.ne.s32.totalorder %s22, %s25
    %p31 = scmp.eq.s32.totalorder %s12, 0
    %p32 = por %p30, %p31
    %p33 = scmp.ne.s32.totalorder %s22, %s25
    %p34 = scmp.eq.s32.totalorder %s17, 1
    %p35 = por %p33, %p34
    %p36 = scmp.ne.s32.totalorder %s25, %s26
    %p37 = scmp.eq.s32.totalorder %s17, 0
    %p38 = por %p36, %p37
    %p39 = scmp.ne.s32.totalorder %s25, %s26
    %p40 = scmp.eq.s32.totalorder %s18, 1
    %p41 = por %p39, %p40
    %p43 = scmp.ne.s32.totalorder %s26, %s42
    %p44 = scmp.eq.s32.totalorder %s18, 0
    %p45 = por %p43, %p44
    %s47 = sadd.s32 %s46, 1
    %p50 = scmp.eq.s32.totalorder %s12, 1
    %p51 = scmp.ne.s32.totalorder %s46, %s48
    %p52 = scmp.eq.s32.totalorder %s12, 0
    %p53 = por %p51, %p52
    %p54 = scmp.ne.s32.totalorder %s46, %s48
    %p55 = scmp.eq.s32.totalorder %s17, 1
    %p56 = por %p54, %p55
    %p57 = scmp.ne.s32.totalorder %s48, %s49
    %p58 = scmp.eq.s32.totalorder %s17, 0
    %p59 = por %p57, %p58
    %p60 = scmp.ne.s32.totalorder %s48, %s49
    %p61 = scmp.eq.s32.totalorder %s18, 1
    %p62 = por %p60, %p61
    %p64 = scmp.ne.s32.totalorder %s49, %s63
    %p65 = scmp.eq.s32.totalorder %s18, 0
    %p66 = por %p64, %p65
    %s68 = sadd.s32 %s67, 1
    %p71 = scmp.eq.s32.totalorder %s12, 1
    %p72 = scmp.ne.s32.totalorder %s67, %s69
    %p73 = scmp.eq.s32.totalorder %s12, 0
    %p74 = por %p72, %p73
    %p75 = scmp.ne.s32.totalorder %s67, %s69
    %p76 = scmp.eq.s32.totalorder %s17, 1
    %p77 = por %p75, %p76
    %p78 = scmp.ne.s32.totalorder %s69, %s70
    %p79 = scmp.eq.s32.totalorder %s17, 0
    %p80 = por %p78, %p79
    %p81 = scmp.ne.s32.totalorder %s69, %s70
    %p82 = scmp.eq.s32.totalorder %s18, 1
    %p83 = por %p81, %p82
    %p85 = scmp.ne.s32.totalorder %s70, %s84
    %p86 = scmp.eq.s32.totalorder %s18, 0
    %p87 = por %p85, %p86
    %s88 = ssub.s32 %s12, %s19
    %p89 = scmp.eq.s32.totalorder %s88, 0
    %s91 = sadd.s32 %s90, 1
    %s92 = scalar_select %p89, %s90, %s91
    %p95 = pneg %p89
    %p96 = scmp.eq.s32.totalorder %s12, 1
    %p97 = por %p95, %p96
    %p98 = scmp.ne.s32.totalorder %s90, %s93
    %p99 = scmp.eq.s32.totalorder %s12, 0
    %p100 = por %p98, %p99
    %p101 = scmp.ne.s32.totalorder %s90, %s93
    %p102 = scmp.eq.s32.totalorder %s17, 1
    %p103 = por %p101, %p102
    %p104 = scmp.ne.s32.totalorder %s93, %s94
    %p105 = scmp.eq.s32.totalorder %s17, 0
    %p106 = por %p104, %p105
    %p107 = scmp.ne.s32.totalorder %s93, %s94
    %p108 = scmp.eq.s32.totalorder %s18, 1
    %p109 = por %p107, %p108
    %p111 = scmp.ne.s32.totalorder %s94, %s110
    %p112 = scmp.eq.s32.totalorder %s18, 0
    %p113 = por %p111, %p112
    %s114 = ssub.s32 %s12, %s19
    %p115 = scmp.eq.s32.totalorder %s114, 0
    %s117 = sadd.s32 %s116, 1
    %s118 = scalar_select %p115, %s116, %s117
    %p121 = pneg %p115
    %p122 = scmp.eq.s32.totalorder %s12, 1
    %p123 = por %p121, %p122
    %p124 = scmp.ne.s32.totalorder %s116, %s119
    %p125 = scmp.eq.s32.totalorder %s12, 0
    %p126 = por %p124, %p125
    %p127 = scmp.ne.s32.totalorder %s116, %s119
    %p128 = scmp.eq.s32.totalorder %s17, 1
    %p129 = por %p127, %p128
    %p130 = scmp.ne.s32.totalorder %s119, %s120
    %p131 = scmp.eq.s32.totalorder %s17, 0
    %p132 = por %p130, %p131
    %p133 = scmp.ne.s32.totalorder %s119, %s120
    %p134 = scmp.eq.s32.totalorder %s18, 1
    %p135 = por %p133, %p134
    %p137 = scmp.ne.s32.totalorder %s120, %s136
    %p138 = scmp.eq.s32.totalorder %s18, 0
    %p139 = por %p137, %p138
    %s140 = ssub.s32 %s12, %s19
    %p141 = scmp.eq.s32.totalorder %s140, 0
    %s143 = sadd.s32 %s142, 1
    %s144 = scalar_select %p141, %s142, %s143
    %p147 = pneg %p141
    %p148 = scmp.eq.s32.totalorder %s12, 1
    %p149 = por %p147, %p148
    %p150 = scmp.ne.s32.totalorder %s142, %s145
    %p151 = scmp.eq.s32.totalorder %s12, 0
    %p152 = por %p150, %p151
    %p153 = scmp.ne.s32.totalorder %s142, %s145
    %p154 = scmp.eq.s32.totalorder %s17, 1
    %p155 = por %p153, %p154
    %p156 = scmp.ne.s32.totalorder %s145, %s146
    %p157 = scmp.eq.s32.totalorder %s17, 0
    %p158 = por %p156, %p157
    %p159 = scmp.ne.s32.totalorder %s145, %s146
    %p160 = scmp.eq.s32.totalorder %s18, 1
    %p161 = por %p159, %p160
    %p163 = scmp.ne.s32.totalorder %s146, %s162
    %p164 = scmp.eq.s32.totalorder %s18, 0
    %p165 = por %p163, %p164
    %p166 = scmp.le.s32.totalorder 1, %s12
    %p167 = scmp.lt.s32.totalorder %s12, 3
    %p168 = pnand %p166, %p167
    %p169 = pneg %p168
    // Predicated region
    $region9: #{gat_forward.8} parent=5 // pred_check
      _
    $region10: #{gat_forward.8} parent=5 // pred_check_branch
      %171 = sbr.rel (%p168) target = $region12
    $region11: #{gat_forward.8} parent=5 // pred_region
      %s172 = ssub.s32 %s12, 1
      // Predicated region
      $region13: #{gat_forward.8} parent=11 // pred_check
        %p173 = pneg %p59
      $region14: #{gat_forward.8} parent=11 // pred_check_branch
        %175 = sbr.rel (%p173) target = $region16
      $region15: #{gat_forward.8} parent=11 // pred_region
        _
      $region16: #{gat_forward.8} parent=11 // pred_fallthru
        _
      // Predicated region
      $region17: #{gat_forward.8} parent=11 // pred_check
        %p176 = pneg %p80
      $region18: #{gat_forward.8} parent=11 // pred_check_branch
        %178 = sbr.rel (%p176) target = $region20
      $region19: #{gat_forward.8} parent=11 // pred_region
        _
      $region20: #{gat_forward.8} parent=11 // pred_fallthru
        _
    $region12: #{gat_forward.8} parent=5 // pred_fallthru
      _
    %p179 = scmp.lt.s32.totalorder %s12, 2
    // Predicated region
    $region21: #{gat_forward.8} parent=5 // pred_check
      %p180 = pneg %p179
    $region22: #{gat_forward.8} parent=5 // pred_check_branch
      %182 = sbr.rel (%p180) target = $region24
    $region23: #{gat_forward.8} parent=5 // pred_region
      // Predicated region
      $region25: #{gat_forward.8} parent=23 // pred_check
        %p183 = pneg %p32
      $region26: #{gat_forward.8} parent=23 // pred_check_branch
        %185 = sbr.rel (%p183) target = $region28
      $region27: #{gat_forward.8} parent=23 // pred_region
        %s186 = smul.u32 16, %s12
        %p187 = scmp.lt.s32.totalorder %s186, 31
        %s188 = scalar_select %p187, %s186, 31
        %s189 = smul.addr %s188, 8
        %s190 = scalar_lea.vmem %s0, %s189
        %s191 = smul.u32 16, %s12
      $region28: #{gat_forward.8} parent=23 // pred_fallthru
        _
    $region24: #{gat_forward.8} parent=5 // pred_fallthru
      _
    %p192 = scmp.le.s32.totalorder 1, %s12
    %p193 = scmp.lt.s32.totalorder %s12, 3
    %p194 = pnand %p192, %p193
    %p195 = pneg %p194
    // Predicated region
    $region29: #{gat_forward.8} parent=5 // pred_check
      _
    $region30: #{gat_forward.8} parent=5 // pred_check_branch
      %197 = sbr.rel (%p194) target = $region32
    $region31: #{gat_forward.8} parent=5 // pred_region
      %s198 = ssub.s32 %s12, 1
      %s199 = smul.u32 16, %s17
      %p200 = scmp.lt.s32.totalorder %s199, 31
      %s201 = scalar_select %p200, %s199, 31
      %s202 = smul.addr %s201, 8
      %s203 = scalar_lea.vmem %s0, %s202
      %p204 = pneg %p38
      %p205 = pneg %p35
      %p206 = pneg %p59
      %p207 = pneg %p56
      %p208 = pneg %p80
      %p209 = pneg %p77
      %p210 = pneg %p106
      %p211 = pneg %p103
      %s212 = smul.u32 16, %s17
      %p213 = scmp.lt.s32.totalorder %s212, 31
      %s214 = scalar_select %p213, %s212, 31
      %s215 = smul.addr %s214, 8
      %s216 = scalar_lea.vmem %s3, %s215
      %p217 = pneg %p132
      %p218 = pneg %p129
      %s219 = smul.u32 16, %s17
      %p220 = scmp.lt.s32.totalorder %s219, 31
      %s221 = scalar_select %p220, %s219, 31
      %s222 = smul.addr %s221, 8
      %s223 = scalar_lea.vmem %s4, %s222
      %p224 = pneg %p158
      %p225 = pneg %p155
      %s226 = smul.u32 16, %s17
      %p227 = scmp.lt.s32.totalorder %s226, 31
      %s228 = scalar_select %p227, %s226, 31
      %s229 = smul.addr %s228, 8
      %s230 = scalar_lea.vmem %s5, %s229
      %s231 = smul.u32 16, %s17
      %p232 = scmp.lt.s32.totalorder %s231, 31
      %s233 = scalar_select %p232, %s231, 31
      %s234 = smul.addr %s233, 8
      %s235 = scalar_lea.vmem %s0, %s234
      %s236 = smul.u32 16, %s17
      %s237 = smul.u32 16, %s17
      %p238 = scmp.lt.s32.totalorder %s237, 31
      %s239 = scalar_select %p238, %s237, 31
      %s240 = smul.addr %s239, 8
      %s241 = scalar_lea.vmem %s3, %s240
      %s242 = smul.u32 16, %s17
      %s243 = smul.u32 16, %s17
      %p244 = scmp.lt.s32.totalorder %s243, 31
      %s245 = scalar_select %p244, %s243, 31
      %s246 = smul.addr %s245, 8
      %s247 = scalar_lea.vmem %s4, %s246
      %s248 = smul.u32 16, %s17
      %s249 = smul.u32 16, %s17
      %p250 = scmp.lt.s32.totalorder %s249, 31
      %s251 = scalar_select %p250, %s249, 31
      %s252 = smul.addr %s251, 8
      %s253 = scalar_lea.vmem %s5, %s252
      %s254 = smul.u32 16, %s17
      %v255 = vld [vmem:[%s235] sm:$0xff]
      %v256 = vld [vmem:[%s235 + $0x8] sm:$0xff]
      %v257 = vld [vmem:[%s235 + $0x10] sm:$0xff]
      %v258 = vld [vmem:[%s235 + $0x18] sm:$0xff]
      %v259 = vld [vmem:[%s235 + $0x20] sm:$0xff]
      %v260 = vld [vmem:[%s235 + $0x28] sm:$0xff]
      %v261 = vld [vmem:[%s235 + $0x30] sm:$0xff]
      %v262 = vld [vmem:[%s235 + $0x38] sm:$0xff]
      %v263 = vld [vmem:[%s235 + $0x40] sm:$0xff]
      %v264 = vld [vmem:[%s235 + $0x48] sm:$0xff]
      %v265 = vld [vmem:[%s235 + $0x50] sm:$0xff]
      %v266 = vld [vmem:[%s235 + $0x58] sm:$0xff]
      %v267 = vld [vmem:[%s235 + $0x60] sm:$0xff]
      %v268 = vld [vmem:[%s235 + $0x68] sm:$0xff]
      %v269 = vld [vmem:[%s235 + $0x70] sm:$0xff]
      %v270 = vld [vmem:[%s235 + $0x78] sm:$0xff]
      %v271 = vld [vmem:[%s1] sm:$0xff]
      %v272 = vld [vmem:[%s1 + $0x8] sm:$0xff]
      %v273 = vld [vmem:[%s1 + $0x10] sm:$0xff]
      %v274 = vld [vmem:[%s1 + $0x18] sm:$0xff]
      %v275 = vld [vmem:[%s1 + $0x20] sm:$0xff]
      %v276 = vld [vmem:[%s1 + $0x28] sm:$0xff]
      %v277 = vld [vmem:[%s1 + $0x30] sm:$0xff]
      %v278 = vld [vmem:[%s1 + $0x38] sm:$0xff]
      %v279 = vld [vmem:[%s1 + $0x40] sm:$0xff]
      %v280 = vld [vmem:[%s1 + $0x48] sm:$0xff]
      %v281 = vld [vmem:[%s1 + $0x50] sm:$0xff]
      %v282 = vld [vmem:[%s1 + $0x58] sm:$0xff]
      %v283 = vld [vmem:[%s1 + $0x60] sm:$0xff]
      %v284 = vld [vmem:[%s1 + $0x68] sm:$0xff]
      %v285 = vld [vmem:[%s1 + $0x70] sm:$0xff]
      %v286 = vld [vmem:[%s1 + $0x78] sm:$0xff]
      %287 = vmatprep.subr.mxu0 0.0
      %288 = vmatpush1.msra.mxu0 %v271
      %289 = vmatprep.subr.mxu0 0.0
      %290 = vmatpush1.msra.mxu0 %v272
      %291 = vmatprep.subr.mxu0 0.0
      %292 = vmatpush1.msra.mxu0 %v273
      %293 = vmatprep.subr.mxu0 0.0
      %294 = vmatpush1.msra.mxu0 %v274
      %295 = vmatprep.subr.mxu0 0.0
      %296 = vmatpush1.msra.mxu0 %v275
      %297 = vmatprep.subr.mxu0 0.0
      %298 = vmatpush1.msra.mxu0 %v276
      %299 = vmatprep.subr.mxu0 0.0
      %300 = vmatpush1.msra.mxu0 %v277
      %301 = vmatprep.subr.mxu0 0.0
      %302 = vmatpush1.msra.mxu0 %v278
      %303 = vmatprep.subr.mxu0 0.0
      %304 = vmatpush1.msra.mxu0 %v279
      %305 = vmatprep.subr.mxu0 0.0
      %306 = vmatpush1.msra.mxu0 %v280
      %307 = vmatprep.subr.mxu0 0.0
      %308 = vmatpush1.msra.mxu0 %v281
      %309 = vmatprep.subr.mxu0 0.0
      %310 = vmatpush1.msra.mxu0 %v282
      %311 = vmatprep.subr.mxu0 0.0
      %312 = vmatpush1.msra.mxu0 %v283
      %313 = vmatprep.subr.mxu0 0.0
      %314 = vmatpush1.msra.mxu0 %v284
      %315 = vmatprep.subr.mxu0 0.0
      %316 = vmatpush1.msra.mxu0 %v285
      %317 = vmatprep.subr.mxu0 0.0
      %318 = vmatpush1.msra.mxu0 %v286
      %319 = vmatprep.subr.mxu0 0.0
      %320 = vmatpush1.msra.mxu0 0.0
      %321 = vmatprep.subr.mxu0 0.0
      %322 = vmatpush1.msra.mxu0 0.0
      %323 = vmatprep.subr.mxu0 0.0
      %324 = vmatpush1.msra.mxu0 0.0
      %325 = vmatprep.subr.mxu0 0.0
      %326 = vmatpush1.msra.mxu0 0.0
      %327 = vmatprep.subr.mxu0 0.0
      %328 = vmatpush1.msra.mxu0 0.0
      %329 = vmatprep.subr.mxu0 0.0
      %330 = vmatpush1.msra.mxu0 0.0
      %331 = vmatprep.subr.mxu0 0.0
      %332 = vmatpush1.msra.mxu0 0.0
      %333 = vmatprep.subr.mxu0 0.0
      %334 = vmatpush1.msra.mxu0 0.0
      %335 = vmatprep.subr.mxu0 0.0
      %336 = vmatpush1.msra.mxu0 0.0
      %337 = vmatprep.subr.mxu0 0.0
      %338 = vmatpush1.msra.mxu0 0.0
      %339 = vmatprep.subr.mxu0 0.0
      %340 = vmatpush1.msra.mxu0 0.0
      %341 = vmatprep.subr.mxu0 0.0
      %342 = vmatpush1.msra.mxu0 0.0
      %343 = vmatprep.subr.mxu0 0.0
      %344 = vmatpush1.msra.mxu0 0.0
      %345 = vmatprep.subr.mxu0 0.0
      %346 = vmatpush1.msra.mxu0 0.0
      %347 = vmatprep.subr.mxu0 0.0
      %348 = vmatpush1.msra.mxu0 0.0
      %349 = vmatprep.subr.mxu0 0.0
      %350 = vmatpush1.msra.mxu0 0.0
      %351 = vmatprep.mubr.f32.mxu0 0.0
      %352 = vmatmul.mubr.f32.gmra.mrb[0].mxu0 %v255
      %v353 = vpop.f32.mrb[0].mxu0
      %v354 = vadd.f32 0.0, %v353
      %v355 = vpop.f32.mrb[0].mxu0
      %356 = vmatprep.mubr.f32.mxu0 0.0
      %357 = vmatmul.mubr.f32.gmra.mrb[0].mxu0 %v256
      %v358 = vpop.f32.mrb[0].mxu0
      %v359 = vadd.f32 0.0, %v358
      %v360 = vpop.f32.mrb[0].mxu0
      %361 = vmatprep.mubr.f32.mxu0 0.0
      %362 = vmatmul.mubr.f32.gmra.mrb[0].mxu0 %v257
      %v363 = vpop.f32.mrb[0].mxu0
      %v364 = vadd.f32 0.0, %v363
      %v365 = vpop.f32.mrb[0].mxu0
      %366 = vmatprep.mubr.f32.mxu0 0.0
      %367 = vmatmul.mubr.f32.gmra.mrb[0].mxu0 %v258
      %v368 = vpop.f32.mrb[0].mxu0
      %v369 = vadd.f32 0.0, %v368
      %v370 = vpop.f32.mrb[0].mxu0
      %371 = vmatprep.mubr.f32.mxu0 0.0
      %372 = vmatmul.mubr.f32.gmra.mrb[0].mxu0 %v259
      %v373 = vpop.f32.mrb[0].mxu0
      %v374 = vadd.f32 0.0, %v373
      %v375 = vpop.f32.mrb[0].mxu0
      %376 = vmatprep.mubr.f32.mxu0 0.0
      %377 = vmatmul.mubr.f32.gmra.mrb[0].mxu0 %v260
      %v378 = vpop.f32.mrb[0].mxu0
      %v379 = vadd.f32 0.0, %v378
      %v380 = vpop.f32.mrb[0].mxu0
      %381 = vmatprep.mubr.f32.mxu0 0.0
      %382 = vmatmul.mubr.f32.gmra.mrb[0].mxu0 %v261
      %v383 = vpop.f32.mrb[0].mxu0
      %v384 = vadd.f32 0.0, %v383
      %v385 = vpop.f32.mrb[0].mxu0
      %386 = vmatprep.mubr.f32.mxu0 0.0
      %387 = vmatmul.mubr.f32.gmra.mrb[0].mxu0 %v262
      %v388 = vpop.f32.mrb[0].mxu0
      %v389 = vadd.f32 0.0, %v388
      %v390 = vpop.f32.mrb[0].mxu0
      %391 = vmatprep.mubr.f32.mxu0 0.0
      %392 = vmatmul.mubr.f32.gmra.mrb[0].mxu0 %v263
      %v393 = vpop.f32.mrb[0].mxu0
      %v394 = vadd.f32 0.0, %v393
      %v395 = vpop.f32.mrb[0].mxu0
      %396 = vmatprep.mubr.f32.mxu0 0.0
      %397 = vmatmul.mubr.f32.gmra.mrb[0].mxu0 %v264
      %v398 = vpop.f32.mrb[0].mxu0
      %v399 = vadd.f32 0.0, %v398
      %v400 = vpop.f32.mrb[0].mxu0
      %401 = vmatprep.mubr.f32.mxu0 0.0
      %402 = vmatmul.mubr.f32.gmra.mrb[0].mxu0 %v265
      %v403 = vpop.f32.mrb[0].mxu0
      %v404 = vadd.f32 0.0, %v403
      %v405 = vpop.f32.mrb[0].mxu0
      %406 = vmatprep.mubr.f32.mxu0 0.0
      %407 = vmatmul.mubr.f32.gmra.mrb[0].mxu0 %v266
      %v408 = vpop.f32.mrb[0].mxu0
      %v409 = vadd.f32 0.0, %v408
      %v410 = vpop.f32.mrb[0].mxu0
      %411 = vmatprep.mubr.f32.mxu0 0.0
      %412 = vmatmul.mubr.f32.gmra.mrb[0].mxu0 %v267
      %v413 = vpop.f32.mrb[0].mxu0
      %v414 = vadd.f32 0.0, %v413
      %v415 = vpop.f32.mrb[0].mxu0
      %416 = vmatprep.mubr.f32.mxu0 0.0
      %417 = vmatmul.mubr.f32.gmra.mrb[0].mxu0 %v268
      %v418 = vpop.f32.mrb[0].mxu0
      %v419 = vadd.f32 0.0, %v418
      %v420 = vpop.f32.mrb[0].mxu0
      %421 = vmatprep.mubr.f32.mxu0 0.0
      %422 = vmatmul.mubr.f32.gmra.mrb[0].mxu0 %v269
      %v423 = vpop.f32.mrb[0].mxu0
      %v424 = vadd.f32 0.0, %v423
      %v425 = vpop.f32.mrb[0].mxu0
      %426 = vmatprep.mubr.f32.mxu0 0.0
      %427 = vmatmul.mubr.f32.gmra.mrb[0].mxu0 %v270
      %v428 = vpop.f32.mrb[0].mxu0
      %v429 = vadd.f32 0.0, %v428
      %v430 = vpop.f32.mrb[0].mxu0
      %431 = vdwg.mxu0
      %432 = vst [vmem:[%s241] sm:$0xff] %v354
      %433 = vst [vmem:[%s241 + $0x8] sm:$0xff] %v359
      %434 = vst [vmem:[%s241 + $0x10] sm:$0xff] %v364
      %435 = vst [vmem:[%s241 + $0x18] sm:$0xff] %v369
      %436 = vst [vmem:[%s241 + $0x20] sm:$0xff] %v374
      %437 = vst [vmem:[%s241 + $0x28] sm:$0xff] %v379
      %438 = vst [vmem:[%s241 + $0x30] sm:$0xff] %v384
      %439 = vst [vmem:[%s241 + $0x38] sm:$0xff] %v389
      %440 = vst [vmem:[%s241 + $0x40] sm:$0xff] %v394
      %441 = vst [vmem:[%s241 + $0x48] sm:$0xff] %v399
      %442 = vst [vmem:[%s241 + $0x50] sm:$0xff] %v404
      %443 = vst [vmem:[%s241 + $0x58] sm:$0xff] %v409
      %444 = vst [vmem:[%s241 + $0x60] sm:$0xff] %v414
      %445 = vst [vmem:[%s241 + $0x68] sm:$0xff] %v419
      %446 = vst [vmem:[%s241 + $0x70] sm:$0xff] %v424
      %447 = vst [vmem:[%s241 + $0x78] sm:$0xff] %v429
      %v448 = vld [vmem:[%s2] sm:$0xff]
      %v449 = vld [vmem:[%s2 + $0x8] sm:$0xff]
      %v450 = vld [vmem:[%s2 + $0x10] sm:$0xff]
      %v451 = vld [vmem:[%s2 + $0x18] sm:$0xff]
      %v452 = vld [vmem:[%s2 + $0x20] sm:$0xff]
      %v453 = vld [vmem:[%s2 + $0x28] sm:$0xff]
      %v454 = vld [vmem:[%s2 + $0x30] sm:$0xff]
      %v455 = vld [vmem:[%s2 + $0x38] sm:$0xff]
      %v456 = vld [vmem:[%s2 + $0x40] sm:$0xff]
      %v457 = vld [vmem:[%s2 + $0x48] sm:$0xff]
      %v458 = vld [vmem:[%s2 + $0x50] sm:$0xff]
      %v459 = vld [vmem:[%s2 + $0x58] sm:$0xff]
      %v460 = vld [vmem:[%s2 + $0x60] sm:$0xff]
      %v461 = vld [vmem:[%s2 + $0x68] sm:$0xff]
      %v462 = vld [vmem:[%s2 + $0x70] sm:$0xff]
      %v463 = vld [vmem:[%s2 + $0x78] sm:$0xff]
      %464 = vmatprep.subr.mxu0 0.0
      %465 = vmatpush1.msra.mxu0 %v448
      %466 = vmatprep.subr.mxu0 0.0
      %467 = vmatpush1.msra.mxu0 %v449
      %468 = vmatprep.subr.mxu0 0.0
      %469 = vmatpush1.msra.mxu0 %v450
      %470 = vmatprep.subr.mxu0 0.0
      %471 = vmatpush1.msra.mxu0 %v451
      %472 = vmatprep.subr.mxu0 0.0
      %473 = vmatpush1.msra.mxu0 %v452
      %474 = vmatprep.subr.mxu0 0.0
      %475 = vmatpush1.msra.mxu0 %v453
      %476 = vmatprep.subr.mxu0 0.0
      %477 = vmatpush1.msra.mxu0 %v454
      %478 = vmatprep.subr.mxu0 0.0
      %479 = vmatpush1.msra.mxu0 %v455
      %480 = vmatprep.subr.mxu0 0.0
      %481 = vmatpush1.msra.mxu0 %v456
      %482 = vmatprep.subr.mxu0 0.0
      %483 = vmatpush1.msra.mxu0 %v457
      %484 = vmatprep.subr.mxu0 0.0
      %485 = vmatpush1.msra.mxu0 %v458
      %486 = vmatprep.subr.mxu0 0.0
      %487 = vmatpush1.msra.mxu0 %v459
      %488 = vmatprep.subr.mxu0 0.0
      %489 = vmatpush1.msra.mxu0 %v460
      %490 = vmatprep.subr.mxu0 0.0
      %491 = vmatpush1.msra.mxu0 %v461
      %492 = vmatprep.subr.mxu0 0.0
      %493 = vmatpush1.msra.mxu0 %v462
      %494 = vmatprep.subr.mxu0 0.0
      %495 = vmatpush1.msra.mxu0 %v463
      %496 = vmatprep.subr.mxu0 0.0
      %497 = vmatpush1.msra.mxu0 0.0
      %498 = vmatprep.subr.mxu0 0.0
      %499 = vmatpush1.msra.mxu0 0.0
      %500 = vmatprep.subr.mxu0 0.0
      %501 = vmatpush1.msra.mxu0 0.0
      %502 = vmatprep.subr.mxu0 0.0
      %503 = vmatpush1.msra.mxu0 0.0
      %504 = vmatprep.subr.mxu0 0.0
      %505 = vmatpush1.msra.mxu0 0.0
      %506 = vmatprep.subr.mxu0 0.0
      %507 = vmatpush1.msra.mxu0 0.0
      %508 = vmatprep.subr.mxu0 0.0
      %509 = vmatpush1.msra.mxu0 0.0
      %510 = vmatprep.subr.mxu0 0.0
      %511 = vmatpush1.msra.mxu0 0.0
      %512 = vmatprep.subr.mxu0 0.0
      %513 = vmatpush1.msra.mxu0 0.0
      %514 = vmatprep.subr.mxu0 0.0
      %515 = vmatpush1.msra.mxu0 0.0
      %516 = vmatprep.subr.mxu0 0.0
      %517 = vmatpush1.msra.mxu0 0.0
      %518 = vmatprep.subr.mxu0 0.0
      %519 = vmatpush1.msra.mxu0 0.0
      %520 = vmatprep.subr.mxu0 0.0
      %521 = vmatpush1.msra.mxu0 0.0
      %522 = vmatprep.subr.mxu0 0.0
      %523 = vmatpush1.msra.mxu0 0.0
      %524 = vmatprep.subr.mxu0 0.0
      %525 = vmatpush1.msra.mxu0 0.0
      %526 = vmatprep.subr.mxu0 0.0
      %527 = vmatpush1.msra.mxu0 0.0
      %528 = vmatprep.mubr.f32.mxu0 0.0
      %529 = vmatmul.mubr.f32.gmra.mrb[0].mxu0 %v354
      %v530 = vpop.f32.mrb[0].mxu0
      %v531 = vadd.f32 0.0, %v530
      %v532 = vpop.f32.mrb[0].mxu0
      %533 = vmatprep.mubr.f32.mxu0 0.0
      %534 = vmatmul.mubr.f32.gmra.mrb[0].mxu0 %v359
      %v535 = vpop.f32.mrb[0].mxu0
      %v536 = vadd.f32 0.0, %v535
      %v537 = vpop.f32.mrb[0].mxu0
      %538 = vmatprep.mubr.f32.mxu0 0.0
      %539 = vmatmul.mubr.f32.gmra.mrb[0].mxu0 %v364
      %v540 = vpop.f32.mrb[0].mxu0
      %v541 = vadd.f32 0.0, %v540
      %v542 = vpop.f32.mrb[0].mxu0
      %543 = vmatprep.mubr.f32.mxu0 0.0
      %544 = vmatmul.mubr.f32.gmra.mrb[0].mxu0 %v369
      %v545 = vpop.f32.mrb[0].mxu0
      %v546 = vadd.f32 0.0, %v545
      %v547 = vpop.f32.mrb[0].mxu0
      %548 = vmatprep.mubr.f32.mxu0 0.0
      %549 = vmatmul.mubr.f32.gmra.mrb[0].mxu0 %v374
      %v550 = vpop.f32.mrb[0].mxu0
      %v551 = vadd.f32 0.0, %v550
      %v552 = vpop.f32.mrb[0].mxu0
      %553 = vmatprep.mubr.f32.mxu0 0.0
      %554 = vmatmul.mubr.f32.gmra.mrb[0].mxu0 %v379
      %v555 = vpop.f32.mrb[0].mxu0
      %v556 = vadd.f32 0.0, %v555
      %v557 = vpop.f32.mrb[0].mxu0
      %558 = vmatprep.mubr.f32.mxu0 0.0
      %559 = vmatmul.mubr.f32.gmra.mrb[0].mxu0 %v384
      %v560 = vpop.f32.mrb[0].mxu0
      %v561 = vadd.f32 0.0, %v560
      %v562 = vpop.f32.mrb[0].mxu0
      %563 = vmatprep.mubr.f32.mxu0 0.0
      %564 = vmatmul.mubr.f32.gmra.mrb[0].mxu0 %v389
      %v565 = vpop.f32.mrb[0].mxu0
      %v566 = vadd.f32 0.0, %v565
      %v567 = vpop.f32.mrb[0].mxu0
      %568 = vmatprep.mubr.f32.mxu0 0.0
      %569 = vmatmul.mubr.f32.gmra.mrb[0].mxu0 %v394
      %v570 = vpop.f32.mrb[0].mxu0
      %v571 = vadd.f32 0.0, %v570
      %v572 = vpop.f32.mrb[0].mxu0
      %573 = vmatprep.mubr.f32.mxu0 0.0
      %574 = vmatmul.mubr.f32.gmra.mrb[0].mxu0 %v399
      %v575 = vpop.f32.mrb[0].mxu0
      %v576 = vadd.f32 0.0, %v575
      %v577 = vpop.f32.mrb[0].mxu0
      %578 = vmatprep.mubr.f32.mxu0 0.0
      %579 = vmatmul.mubr.f32.gmra.mrb[0].mxu0 %v404
      %v580 = vpop.f32.mrb[0].mxu0
      %v581 = vadd.f32 0.0, %v580
      %v582 = vpop.f32.mrb[0].mxu0
      %583 = vmatprep.mubr.f32.mxu0 0.0
      %584 = vmatmul.mubr.f32.gmra.mrb[0].mxu0 %v409
      %v585 = vpop.f32.mrb[0].mxu0
      %v586 = vadd.f32 0.0, %v585
      %v587 = vpop.f32.mrb[0].mxu0
      %588 = vmatprep.mubr.f32.mxu0 0.0
      %589 = vmatmul.mubr.f32.gmra.mrb[0].mxu0 %v414
      %v590 = vpop.f32.mrb[0].mxu0
      %v591 = vadd.f32 0.0, %v590
      %v592 = vpop.f32.mrb[0].mxu0
      %593 = vmatprep.mubr.f32.mxu0 0.0
      %594 = vmatmul.mubr.f32.gmra.mrb[0].mxu0 %v419
      %v595 = vpop.f32.mrb[0].mxu0
      %v596 = vadd.f32 0.0, %v595
      %v597 = vpop.f32.mrb[0].mxu0
      %598 = vmatprep.mubr.f32.mxu0 0.0
      %599 = vmatmul.mubr.f32.gmra.mrb[0].mxu0 %v424
      %v600 = vpop.f32.mrb[0].mxu0
      %v601 = vadd.f32 0.0, %v600
      %v602 = vpop.f32.mrb[0].mxu0
      %603 = vmatprep.mubr.f32.mxu0 0.0
      %604 = vmatmul.mubr.f32.gmra.mrb[0].mxu0 %v429
      %v605 = vpop.f32.mrb[0].mxu0
      %v606 = vadd.f32 0.0, %v605
      %v607 = vpop.f32.mrb[0].mxu0
      %608 = vdwg.mxu0
      %vm609 = vcmask 31744
      %610 = vst.msk [vmem:[%s247] sm:$0xff] %vm609, %v531
      %611 = vst.msk [vmem:[%s247 + $0x8] sm:$0xff] %vm609, %v536
      %612 = vst.msk [vmem:[%s247 + $0x10] sm:$0xff] %vm609, %v541
      %613 = vst.msk [vmem:[%s247 + $0x18] sm:$0xff] %vm609, %v546
      %614 = vst.msk [vmem:[%s247 + $0x20] sm:$0xff] %vm609, %v551
      %615 = vst.msk [vmem:[%s247 + $0x28] sm:$0xff] %vm609, %v556
      %616 = vst.msk [vmem:[%s247 + $0x30] sm:$0xff] %vm609, %v561
      %617 = vst.msk [vmem:[%s247 + $0x38] sm:$0xff] %vm609, %v566
      %618 = vst.msk [vmem:[%s247 + $0x40] sm:$0xff] %vm609, %v571
      %619 = vst.msk [vmem:[%s247 + $0x48] sm:$0xff] %vm609, %v576
      %620 = vst.msk [vmem:[%s247 + $0x50] sm:$0xff] %vm609, %v581
      %621 = vst.msk [vmem:[%s247 + $0x58] sm:$0xff] %vm609, %v586
      %622 = vst.msk [vmem:[%s247 + $0x60] sm:$0xff] %vm609, %v591
      %623 = vst.msk [vmem:[%s247 + $0x68] sm:$0xff] %vm609, %v596
      %624 = vst.msk [vmem:[%s247 + $0x70] sm:$0xff] %vm609, %v601
      %625 = vst.msk [vmem:[%s247 + $0x78] sm:$0xff] %vm609, %v606
      %642 = vrot.lane.b32.xlu0 %v531, 124
      %v643 = vpop.permute.xlu0 %642
      %644 = vrot.lane.b32.xlu0 %v536, 124
      %v645 = vpop.permute.xlu0 %644
      %646 = vrot.lane.b32.xlu0 %v541, 124
      %v647 = vpop.permute.xlu0 %646
      %648 = vrot.lane.b32.xlu0 %v546, 124
      %v649 = vpop.permute.xlu0 %648
      %650 = vrot.lane.b32.xlu0 %v551, 124
      %v651 = vpop.permute.xlu0 %650
      %652 = vrot.lane.b32.xlu0 %v556, 124
      %v653 = vpop.permute.xlu0 %652
      %654 = vrot.lane.b32.xlu0 %v561, 124
      %v655 = vpop.permute.xlu0 %654
      %656 = vrot.lane.b32.xlu0 %v566, 124
      %v657 = vpop.permute.xlu0 %656
      %658 = vrot.lane.b32.xlu0 %v571, 124
      %v659 = vpop.permute.xlu0 %658
      %660 = vrot.lane.b32.xlu0 %v576, 124
      %v661 = vpop.permute.xlu0 %660
      %662 = vrot.lane.b32.xlu0 %v581, 124
      %v663 = vpop.permute.xlu0 %662
      %664 = vrot.lane.b32.xlu0 %v586, 124
      %v665 = vpop.permute.xlu0 %664
      %666 = vrot.lane.b32.xlu0 %v591, 124
      %v667 = vpop.permute.xlu0 %666
      %668 = vrot.lane.b32.xlu0 %v596, 124
      %v669 = vpop.permute.xlu0 %668
      %670 = vrot.lane.b32.xlu0 %v601, 124
      %v671 = vpop.permute.xlu0 %670
      %672 = vrot.lane.b32.xlu0 %v606, 124
      %v673 = vpop.permute.xlu0 %672
      %690 = vst.msk [vmem:[%s253] sm:$0xff] %vm609, %v643
      %691 = vst.msk [vmem:[%s253 + $0x8] sm:$0xff] %vm609, %v645
      %692 = vst.msk [vmem:[%s253 + $0x10] sm:$0xff] %vm609, %v647
      %693 = vst.msk [vmem:[%s253 + $0x18] sm:$0xff] %vm609, %v649
      %694 = vst.msk [vmem:[%s253 + $0x20] sm:$0xff] %vm609, %v651
      %695 = vst.msk [vmem:[%s253 + $0x28] sm:$0xff] %vm609, %v653
      %696 = vst.msk [vmem:[%s253 + $0x30] sm:$0xff] %vm609, %v655
      %697 = vst.msk [vmem:[%s253 + $0x38] sm:$0xff] %vm609, %v657
      %698 = vst.msk [vmem:[%s253 + $0x40] sm:$0xff] %vm609, %v659
      %699 = vst.msk [vmem:[%s253 + $0x48] sm:$0xff] %vm609, %v661
      %700 = vst.msk [vmem:[%s253 + $0x50] sm:$0xff] %vm609, %v663
      %701 = vst.msk [vmem:[%s253 + $0x58] sm:$0xff] %vm609, %v665
      %702 = vst.msk [vmem:[%s253 + $0x60] sm:$0xff] %vm609, %v667
      %703 = vst.msk [vmem:[%s253 + $0x68] sm:$0xff] %vm609, %v669
      %704 = vst.msk [vmem:[%s253 + $0x70] sm:$0xff] %vm609, %v671
      %705 = vst.msk [vmem:[%s253 + $0x78] sm:$0xff] %vm609, %v673
      %s706 = smul.u32 16, %s17
      %p707 = scmp.lt.s32.totalorder %s706, 31
      %s708 = scalar_select %p707, %s706, 31
      %s709 = smul.addr %s708, 8
      %s710 = scalar_lea.vmem %s3, %s709
      %s711 = smul.u32 16, %s17
      %p712 = scmp.lt.s32.totalorder %s711, 31
      %s713 = scalar_select %p712, %s711, 31
      %s714 = smul.addr %s713, 8
      %s715 = scalar_lea.vmem %s4, %s714
      %s716 = smul.u32 16, %s17
      %p717 = scmp.lt.s32.totalorder %s716, 31
      %s718 = scalar_select %p717, %s716, 31
      %s719 = smul.addr %s718, 8
      %s720 = scalar_lea.vmem %s5, %s719
      // Predicated region
      $region33: #{gat_forward.8} parent=31 // pred_check
        %p721 = pneg %p103
      $region34: #{gat_forward.8} parent=31 // pred_check_branch
        %723 = sbr.rel (%p721) target = $region36
      $region35: #{gat_forward.8} parent=31 // pred_region
        %s724 = smul.u32 16, %s17
      $region36: #{gat_forward.8} parent=31 // pred_fallthru
        _
      // Predicated region
      $region37: #{gat_forward.8} parent=31 // pred_check
        %p725 = pneg %p129
      $region38: #{gat_forward.8} parent=31 // pred_check_branch
        %727 = sbr.rel (%p725) target = $region40
      $region39: #{gat_forward.8} parent=31 // pred_region
        %s728 = smul.u32 16, %s17
      $region40: #{gat_forward.8} parent=31 // pred_fallthru
        _
      // Predicated region
      $region41: #{gat_forward.8} parent=31 // pred_check
        %p729 = pneg %p155
      $region42: #{gat_forward.8} parent=31 // pred_check_branch
        %731 = sbr.rel (%p729) target = $region44
      $region43: #{gat_forward.8} parent=31 // pred_region
        %s732 = smul.u32 16, %s17
      $region44: #{gat_forward.8} parent=31 // pred_fallthru
        _
    $region32: #{gat_forward.8} parent=5 // pred_fallthru
      _
    %p733 = scmp.le.s32.totalorder 2, %s12
    // Predicated region
    $region45: #{gat_forward.8} parent=5 // pred_check
      %p734 = pneg %p733
    $region46: #{gat_forward.8} parent=5 // pred_check_branch
      %736 = sbr.rel (%p734) target = $region48
    $region47: #{gat_forward.8} parent=5 // pred_region
      %s737 = ssub.s32 %s12, 2
      // Predicated region
      $region49: #{gat_forward.8} parent=47 // pred_check
        %p738 = pneg %p109
      $region50: #{gat_forward.8} parent=47 // pred_check_branch
        %740 = sbr.rel (%p738) target = $region52
      $region51: #{gat_forward.8} parent=47 // pred_region
        %s741 = smul.u32 16, %s18
        %p742 = scmp.lt.s32.totalorder %s741, 31
        %s743 = scalar_select %p742, %s741, 31
        %s744 = smul.addr %s743, 8
        %s745 = scalar_lea.vmem %s3, %s744
      $region52: #{gat_forward.8} parent=47 // pred_fallthru
        _
      // Predicated region
      $region53: #{gat_forward.8} parent=47 // pred_check
        %p746 = pneg %p135
      $region54: #{gat_forward.8} parent=47 // pred_check_branch
        %748 = sbr.rel (%p746) target = $region56
      $region55: #{gat_forward.8} parent=47 // pred_region
        %s749 = smul.u32 16, %s18
        %p750 = scmp.lt.s32.totalorder %s749, 31
        %s751 = scalar_select %p750, %s749, 31
        %s752 = smul.addr %s751, 8
        %s753 = scalar_lea.vmem %s4, %s752
      $region56: #{gat_forward.8} parent=47 // pred_fallthru
        _
      // Predicated region
      $region57: #{gat_forward.8} parent=47 // pred_check
        %p754 = pneg %p161
      $region58: #{gat_forward.8} parent=47 // pred_check_branch
        %756 = sbr.rel (%p754) target = $region60
      $region59: #{gat_forward.8} parent=47 // pred_region
        %s757 = smul.u32 16, %s18
        %p758 = scmp.lt.s32.totalorder %s757, 31
        %s759 = scalar_select %p758, %s757, 31
        %s760 = smul.addr %s759, 8
        %s761 = scalar_lea.vmem %s5, %s760
      $region60: #{gat_forward.8} parent=47 // pred_fallthru
        _
    $region48: #{gat_forward.8} parent=5 // pred_fallthru
      _
  $region6: #{gat_forward.8} parent=0 // loop_footer
    %s16 = sadd.s32 1, %s12
  $region7: #{gat_forward.8} parent=0 // loop_footer_branch
    %11 = sbr.rel target = $region3
  $region8: #{gat_forward.8} parent=0 // loop_exit
    _

// kernel: gat_forward.10
$region0: #{gat_forward.10}
  #allocation0 [shape = 'u32[]', space=smem, size = 0x4, offset = 0x4, fixed_abs, tag = 'smem constant byte address 0x4 - core index']
  #allocation1 [shape = 'u32[144,128]{1,0:T(1,128)}', space=vmem, size = 0x12000, scoped, tag = 'internal scratch']
  %s0 = inlined_call_operand.vmem [shape: f32[256,128], index: 0, kind: input, shape index: {}]
  %s1 = inlined_call_operand.vmem [shape: f32[128,8], index: 1, kind: input, shape index: {}]
  %s2 = inlined_call_operand.vmem [shape: f32[8,2], index: 2, kind: input, shape index: {}]
  %s3 = inlined_call_operand.vmem [shape: f32[256,8], index: 3, kind: output, shape index: {0}]
  %s4 = inlined_call_operand.vmem [shape: f32[256,1], index: 4, kind: output, shape index: {1}]
  %s5 = inlined_call_operand.vmem [shape: f32[256,1], index: 5, kind: output, shape index: {2}]
  %6 = xla_tuple %s3, %s4, %s5
  %s7 = sld [smem:[#allocation0]]
  $region61: #{gat_forward.10} parent=0
    _
  %s9 = ssub.s32 1, %s7
  %s10 = scalar_select 0, %s9, %s7
  loop: start=0, step=1, limit=4
  $region2: #{gat_forward.10} parent=0 // loop_pre_header
    _
  $region3: #{gat_forward.10} parent=0 // loop_header
    %s12 = sphi 0, %s16
    %p13 = scmp.ge.s32.totalorder %s12, 4
    %s22 = sphi 0, %s24
    %s25 = sphi 0, %s22
    %s26 = sphi 0, %s25
    %s42 = sphi 0, %s26
    %s46 = sphi 0, %s46
    %s48 = sphi 0, %s46
    %s49 = sphi 0, %s48
    %s63 = sphi 0, %s49
    %s67 = sphi 0, %s67
    %s69 = sphi 0, %s67
    %s70 = sphi 0, %s69
    %s84 = sphi 0, %s70
    %s90 = sphi 0, %s92
    %s93 = sphi 0, %s90
    %s94 = sphi 0, %s93
    %s110 = sphi 0, %s94
    %s116 = sphi 0, %s118
    %s119 = sphi 0, %s116
    %s120 = sphi 0, %s119
    %s136 = sphi 0, %s120
    %s142 = sphi 0, %s144
    %s145 = sphi 0, %s142
    %s146 = sphi 0, %s145
    %s162 = sphi 0, %s146
  $region4: #{gat_forward.10} parent=0 // loop_header_branch
    %15 = sbr.rel (%p13) target = $region8
  $region5: #{gat_forward.10} parent=0 // loop_body
    %s17 = ssub.s32 %s12, 1
    %s18 = ssub.s32 %s12, 2
    %s19 = sadd.s32 %s12, 1
    %s20 = ssub.s32 %s12, %s19
    %p21 = scmp.eq.s32.totalorder %s20, 0
    %s23 = sadd.s32 %s22, 1
    %s24 = scalar_select %p21, %s22, %s23
    %p27 = pneg %p21
    %p28 = scmp.eq.s32.totalorder %s12, 1
    %p29 = por %p27, %p28
    %p30 = scmp.ne.s32.totalorder %s22, %s25
    %p31 = scmp.eq.s32.totalorder %s12, 0
    %p32 = por %p30, %p31
    %p33 = scmp.ne.s32.totalorder %s22, %s25
    %p34 = scmp.eq.s32.totalorder %s17, 1
    %p35 = por %p33, %p34
    %p36 = scmp.ne.s32.totalorder %s25, %s26
    %p37 = scmp.eq.s32.totalorder %s17, 0
    %p38 = por %p36, %p37
    %p39 = scmp.ne.s32.totalorder %s25, %s26
    %p40 = scmp.eq.s32.totalorder %s18, 1
    %p41 = por %p39, %p40
    %p43 = scmp.ne.s32.totalorder %s26, %s42
    %p44 = scmp.eq.s32.totalorder %s18, 0
    %p45 = por %p43, %p44
    %s47 = sadd.s32 %s46, 1
    %p50 = scmp.eq.s32.totalorder %s12, 1
    %p51 = scmp.ne.s32.totalorder %s46, %s48
    %p52 = scmp.eq.s32.totalorder %s12, 0
    %p53 = por %p51, %p52
    %p54 = scmp.ne.s32.totalorder %s46, %s48
    %p55 = scmp.eq.s32.totalorder %s17, 1
    %p56 = por %p54, %p55
    %p57 = scmp.ne.s32.totalorder %s48, %s49
    %p58 = scmp.eq.s32.totalorder %s17, 0
    %p59 = por %p57, %p58
    %p60 = scmp.ne.s32.totalorder %s48, %s49
    %p61 = scmp.eq.s32.totalorder %s18, 1
    %p62 = por %p60, %p61
    %p64 = scmp.ne.s32.totalorder %s49, %s63
    %p65 = scmp.eq.s32.totalorder %s18, 0
    %p66 = por %p64, %p65
    %s68 = sadd.s32 %s67, 1
    %p71 = scmp.eq.s32.totalorder %s12, 1
    %p72 = scmp.ne.s32.totalorder %s67, %s69
    %p73 = scmp.eq.s32.totalorder %s12, 0
    %p74 = por %p72, %p73
    %p75 = scmp.ne.s32.totalorder %s67, %s69
    %p76 = scmp.eq.s32.totalorder %s17, 1
    %p77 = por %p75, %p76
    %p78 = scmp.ne.s32.totalorder %s69, %s70
    %p79 = scmp.eq.s32.totalorder %s17, 0
    %p80 = por %p78, %p79
    %p81 = scmp.ne.s32.totalorder %s69, %s70
    %p82 = scmp.eq.s32.totalorder %s18, 1
    %p83 = por %p81, %p82
    %p85 = scmp.ne.s32.totalorder %s70, %s84
    %p86 = scmp.eq.s32.totalorder %s18, 0
    %p87 = por %p85, %p86
    %s88 = ssub.s32 %s12, %s19
    %p89 = scmp.eq.s32.totalorder %s88, 0
    %s91 = sadd.s32 %s90, 1
    %s92 = scalar_select %p89, %s90, %s91
    %p95 = pneg %p89
    %p96 = scmp.eq.s32.totalorder %s12, 1
    %p97 = por %p95, %p96
    %p98 = scmp.ne.s32.totalorder %s90, %s93
    %p99 = scmp.eq.s32.totalorder %s12, 0
    %p100 = por %p98, %p99
    %p101 = scmp.ne.s32.totalorder %s90, %s93
    %p102 = scmp.eq.s32.totalorder %s17, 1
    %p103 = por %p101, %p102
    %p104 = scmp.ne.s32.totalorder %s93, %s94
    %p105 = scmp.eq.s32.totalorder %s17, 0
    %p106 = por %p104, %p105
    %p107 = scmp.ne.s32.totalorder %s93, %s94
    %p108 = scmp.eq.s32.totalorder %s18, 1
    %p109 = por %p107, %p108
    %p111 = scmp.ne.s32.totalorder %s94, %s110
    %p112 = scmp.eq.s32.totalorder %s18, 0
    %p113 = por %p111, %p112
    %s114 = ssub.s32 %s12, %s19
    %p115 = scmp.eq.s32.totalorder %s114, 0
    %s117 = sadd.s32 %s116, 1
    %s118 = scalar_select %p115, %s116, %s117
    %p121 = pneg %p115
    %p122 = scmp.eq.s32.totalorder %s12, 1
    %p123 = por %p121, %p122
    %p124 = scmp.ne.s32.totalorder %s116, %s119
    %p125 = scmp.eq.s32.totalorder %s12, 0
    %p126 = por %p124, %p125
    %p127 = scmp.ne.s32.totalorder %s116, %s119
    %p128 = scmp.eq.s32.totalorder %s17, 1
    %p129 = por %p127, %p128
    %p130 = scmp.ne.s32.totalorder %s119, %s120
    %p131 = scmp.eq.s32.totalorder %s17, 0
    %p132 = por %p130, %p131
    %p133 = scmp.ne.s32.totalorder %s119, %s120
    %p134 = scmp.eq.s32.totalorder %s18, 1
    %p135 = por %p133, %p134
    %p137 = scmp.ne.s32.totalorder %s120, %s136
    %p138 = scmp.eq.s32.totalorder %s18, 0
    %p139 = por %p137, %p138
    %s140 = ssub.s32 %s12, %s19
    %p141 = scmp.eq.s32.totalorder %s140, 0
    %s143 = sadd.s32 %s142, 1
    %s144 = scalar_select %p141, %s142, %s143
    %p147 = pneg %p141
    %p148 = scmp.eq.s32.totalorder %s12, 1
    %p149 = por %p147, %p148
    %p150 = scmp.ne.s32.totalorder %s142, %s145
    %p151 = scmp.eq.s32.totalorder %s12, 0
    %p152 = por %p150, %p151
    %p153 = scmp.ne.s32.totalorder %s142, %s145
    %p154 = scmp.eq.s32.totalorder %s17, 1
    %p155 = por %p153, %p154
    %p156 = scmp.ne.s32.totalorder %s145, %s146
    %p157 = scmp.eq.s32.totalorder %s17, 0
    %p158 = por %p156, %p157
    %p159 = scmp.ne.s32.totalorder %s145, %s146
    %p160 = scmp.eq.s32.totalorder %s18, 1
    %p161 = por %p159, %p160
    %p163 = scmp.ne.s32.totalorder %s146, %s162
    %p164 = scmp.eq.s32.totalorder %s18, 0
    %p165 = por %p163, %p164
    %p166 = scmp.le.s32.totalorder 1, %s12
    %p167 = scmp.lt.s32.totalorder %s12, 3
    %p168 = pnand %p166, %p167
    %p169 = pneg %p168
    // Predicated region
    $region9: #{gat_forward.10} parent=5 // pred_check
      _
    $region10: #{gat_forward.10} parent=5 // pred_check_branch
      %171 = sbr.rel (%p168) target = $region12
    $region11: #{gat_forward.10} parent=5 // pred_region
      %s172 = ssub.s32 %s12, 1
      // Predicated region
      $region13: #{gat_forward.10} parent=11 // pred_check
        %p173 = pneg %p59
      $region14: #{gat_forward.10} parent=11 // pred_check_branch
        %175 = sbr.rel (%p173) target = $region16
      $region15: #{gat_forward.10} parent=11 // pred_region
        _
      $region16: #{gat_forward.10} parent=11 // pred_fallthru
        _
      // Predicated region
      $region17: #{gat_forward.10} parent=11 // pred_check
        %p176 = pneg %p80
      $region18: #{gat_forward.10} parent=11 // pred_check_branch
        %178 = sbr.rel (%p176) target = $region20
      $region19: #{gat_forward.10} parent=11 // pred_region
        _
      $region20: #{gat_forward.10} parent=11 // pred_fallthru
        _
    $region12: #{gat_forward.10} parent=5 // pred_fallthru
      _
    %p179 = scmp.lt.s32.totalorder %s12, 2
    // Predicated region
    $region21: #{gat_forward.10} parent=5 // pred_check
      %p180 = pneg %p179
    $region22: #{gat_forward.10} parent=5 // pred_check_branch
      %182 = sbr.rel (%p180) target = $region24
    $region23: #{gat_forward.10} parent=5 // pred_region
      // Predicated region
      $region25: #{gat_forward.10} parent=23 // pred_check
        %p183 = pneg %p32
      $region26: #{gat_forward.10} parent=23 // pred_check_branch
        %185 = sbr.rel (%p183) target = $region28
      $region27: #{gat_forward.10} parent=23 // pred_region
        %s186 = smul.u32 16, %s12
        %p187 = scmp.lt.s32.totalorder %s186, 31
        %s188 = scalar_select %p187, %s186, 31
        %s189 = smul.addr %s188, 8
        %s190 = scalar_lea.vmem %s0, %s189
        %s191 = smul.u32 16, %s12
      $region28: #{gat_forward.10} parent=23 // pred_fallthru
        _
    $region24: #{gat_forward.10} parent=5 // pred_fallthru
      _
    %p192 = scmp.le.s32.totalorder 1, %s12
    %p193 = scmp.lt.s32.totalorder %s12, 3
    %p194 = pnand %p192, %p193
    %p195 = pneg %p194
    // Predicated region
    $region29: #{gat_forward.10} parent=5 // pred_check
      _
    $region30: #{gat_forward.10} parent=5 // pred_check_branch
      %197 = sbr.rel (%p194) target = $region32
    $region31: #{gat_forward.10} parent=5 // pred_region
      %s198 = ssub.s32 %s12, 1
      %s199 = smul.u32 16, %s17
      %p200 = scmp.lt.s32.totalorder %s199, 31
      %s201 = scalar_select %p200, %s199, 31
      %s202 = smul.addr %s201, 8
      %s203 = scalar_lea.vmem %s0, %s202
      %p204 = pneg %p38
      %p205 = pneg %p35
      %p206 = pneg %p59
      %p207 = pneg %p56
      %p208 = pneg %p80
      %p209 = pneg %p77
      %p210 = pneg %p106
      %p211 = pneg %p103
      %s212 = smul.u32 16, %s17
      %p213 = scmp.lt.s32.totalorder %s212, 31
      %s214 = scalar_select %p213, %s212, 31
      %s215 = smul.addr %s214, 8
      %s216 = scalar_lea.vmem %s3, %s215
      %p217 = pneg %p132
      %p218 = pneg %p129
      %s219 = smul.u32 16, %s17
      %p220 = scmp.lt.s32.totalorder %s219, 31
      %s221 = scalar_select %p220, %s219, 31
      %s222 = smul.addr %s221, 8
      %s223 = scalar_lea.vmem %s4, %s222
      %p224 = pneg %p158
      %p225 = pneg %p155
      %s226 = smul.u32 16, %s17
      %p227 = scmp.lt.s32.totalorder %s226, 31
      %s228 = scalar_select %p227, %s226, 31
      %s229 = smul.addr %s228, 8
      %s230 = scalar_lea.vmem %s5, %s229
      %s231 = smul.u32 16, %s17
      %p232 = scmp.lt.s32.totalorder %s231, 31
      %s233 = scalar_select %p232, %s231, 31
      %s234 = smul.addr %s233, 8
      %s235 = scalar_lea.vmem %s0, %s234
      %s236 = smul.u32 16, %s17
      %s237 = smul.u32 16, %s17
      %p238 = scmp.lt.s32.totalorder %s237, 31
      %s239 = scalar_select %p238, %s237, 31
      %s240 = smul.addr %s239, 8
      %s241 = scalar_lea.vmem %s3, %s240
      %s242 = smul.u32 16, %s17
      %s243 = smul.u32 16, %s17
      %p244 = scmp.lt.s32.totalorder %s243, 31
      %s245 = scalar_select %p244, %s243, 31
      %s246 = smul.addr %s245, 8
      %s247 = scalar_lea.vmem %s4, %s246
      %s248 = smul.u32 16, %s17
      %s249 = smul.u32 16, %s17
      %p250 = scmp.lt.s32.totalorder %s249, 31
      %s251 = scalar_select %p250, %s249, 31
      %s252 = smul.addr %s251, 8
      %s253 = scalar_lea.vmem %s5, %s252
      %s254 = smul.u32 16, %s17
      %v255 = vld [vmem:[%s235] sm:$0xff]
      %v256 = vld [vmem:[%s235 + $0x8] sm:$0xff]
      %v257 = vld [vmem:[%s235 + $0x10] sm:$0xff]
      %v258 = vld [vmem:[%s235 + $0x18] sm:$0xff]
      %v259 = vld [vmem:[%s235 + $0x20] sm:$0xff]
      %v260 = vld [vmem:[%s235 + $0x28] sm:$0xff]
      %v261 = vld [vmem:[%s235 + $0x30] sm:$0xff]
      %v262 = vld [vmem:[%s235 + $0x38] sm:$0xff]
      %v263 = vld [vmem:[%s235 + $0x40] sm:$0xff]
      %v264 = vld [vmem:[%s235 + $0x48] sm:$0xff]
      %v265 = vld [vmem:[%s235 + $0x50] sm:$0xff]
      %v266 = vld [vmem:[%s235 + $0x58] sm:$0xff]
      %v267 = vld [vmem:[%s235 + $0x60] sm:$0xff]
      %v268 = vld [vmem:[%s235 + $0x68] sm:$0xff]
      %v269 = vld [vmem:[%s235 + $0x70] sm:$0xff]
      %v270 = vld [vmem:[%s235 + $0x78] sm:$0xff]
      %v271 = vld [vmem:[%s1] sm:$0xff]
      %v272 = vld [vmem:[%s1 + $0x8] sm:$0xff]
      %v273 = vld [vmem:[%s1 + $0x10] sm:$0xff]
      %v274 = vld [vmem:[%s1 + $0x18] sm:$0xff]
      %v275 = vld [vmem:[%s1 + $0x20] sm:$0xff]
      %v276 = vld [vmem:[%s1 + $0x28] sm:$0xff]
      %v277 = vld [vmem:[%s1 + $0x30] sm:$0xff]
      %v278 = vld [vmem:[%s1 + $0x38] sm:$0xff]
      %v279 = vld [vmem:[%s1 + $0x40] sm:$0xff]
      %v280 = vld [vmem:[%s1 + $0x48] sm:$0xff]
      %v281 = vld [vmem:[%s1 + $0x50] sm:$0xff]
      %v282 = vld [vmem:[%s1 + $0x58] sm:$0xff]
      %v283 = vld [vmem:[%s1 + $0x60] sm:$0xff]
      %v284 = vld [vmem:[%s1 + $0x68] sm:$0xff]
      %v285 = vld [vmem:[%s1 + $0x70] sm:$0xff]
      %v286 = vld [vmem:[%s1 + $0x78] sm:$0xff]
      %287 = vmatprep.subr.mxu0 0.0
      %288 = vmatpush1.msra.mxu0 %v271
      %289 = vmatprep.subr.mxu0 0.0
      %290 = vmatpush1.msra.mxu0 %v272
      %291 = vmatprep.subr.mxu0 0.0
      %292 = vmatpush1.msra.mxu0 %v273
      %293 = vmatprep.subr.mxu0 0.0
      %294 = vmatpush1.msra.mxu0 %v274
      %295 = vmatprep.subr.mxu0 0.0
      %296 = vmatpush1.msra.mxu0 %v275
      %297 = vmatprep.subr.mxu0 0.0
      %298 = vmatpush1.msra.mxu0 %v276
      %299 = vmatprep.subr.mxu0 0.0
      %300 = vmatpush1.msra.mxu0 %v277
      %301 = vmatprep.subr.mxu0 0.0
      %302 = vmatpush1.msra.mxu0 %v278
      %303 = vmatprep.subr.mxu0 0.0
      %304 = vmatpush1.msra.mxu0 %v279
      %305 = vmatprep.subr.mxu0 0.0
      %306 = vmatpush1.msra.mxu0 %v280
      %307 = vmatprep.subr.mxu0 0.0
      %308 = vmatpush1.msra.mxu0 %v281
      %309 = vmatprep.subr.mxu0 0.0
      %310 = vmatpush1.msra.mxu0 %v282
      %311 = vmatprep.subr.mxu0 0.0
      %312 = vmatpush1.msra.mxu0 %v283
      %313 = vmatprep.subr.mxu0 0.0
      %314 = vmatpush1.msra.mxu0 %v284
      %315 = vmatprep.subr.mxu0 0.0
      %316 = vmatpush1.msra.mxu0 %v285
      %317 = vmatprep.subr.mxu0 0.0
      %318 = vmatpush1.msra.mxu0 %v286
      %319 = vmatprep.subr.mxu0 0.0
      %320 = vmatpush1.msra.mxu0 0.0
      %321 = vmatprep.subr.mxu0 0.0
      %322 = vmatpush1.msra.mxu0 0.0
      %323 = vmatprep.subr.mxu0 0.0
      %324 = vmatpush1.msra.mxu0 0.0
      %325 = vmatprep.subr.mxu0 0.0
      %326 = vmatpush1.msra.mxu0 0.0
      %327 = vmatprep.subr.mxu0 0.0
      %328 = vmatpush1.msra.mxu0 0.0
      %329 = vmatprep.subr.mxu0 0.0
      %330 = vmatpush1.msra.mxu0 0.0
      %331 = vmatprep.subr.mxu0 0.0
      %332 = vmatpush1.msra.mxu0 0.0
      %333 = vmatprep.subr.mxu0 0.0
      %334 = vmatpush1.msra.mxu0 0.0
      %335 = vmatprep.subr.mxu0 0.0
      %336 = vmatpush1.msra.mxu0 0.0
      %337 = vmatprep.subr.mxu0 0.0
      %338 = vmatpush1.msra.mxu0 0.0
      %339 = vmatprep.subr.mxu0 0.0
      %340 = vmatpush1.msra.mxu0 0.0
      %341 = vmatprep.subr.mxu0 0.0
      %342 = vmatpush1.msra.mxu0 0.0
      %343 = vmatprep.subr.mxu0 0.0
      %344 = vmatpush1.msra.mxu0 0.0
      %345 = vmatprep.subr.mxu0 0.0
      %346 = vmatpush1.msra.mxu0 0.0
      %347 = vmatprep.subr.mxu0 0.0
      %348 = vmatpush1.msra.mxu0 0.0
      %349 = vmatprep.subr.mxu0 0.0
      %350 = vmatpush1.msra.mxu0 0.0
      %351 = vmatprep.mubr.f32.mxu0 0.0
      %352 = vmatmul.mubr.f32.gmra.mrb[0].mxu0 %v255
      %v353 = vpop.f32.mrb[0].mxu0
      %v354 = vadd.f32 0.0, %v353
      %v355 = vpop.f32.mrb[0].mxu0
      %356 = vmatprep.mubr.f32.mxu0 0.0
      %357 = vmatmul.mubr.f32.gmra.mrb[0].mxu0 %v256
      %v358 = vpop.f32.mrb[0].mxu0
      %v359 = vadd.f32 0.0, %v358
      %v360 = vpop.f32.mrb[0].mxu0
      %361 = vmatprep.mubr.f32.mxu0 0.0
      %362 = vmatmul.mubr.f32.gmra.mrb[0].mxu0 %v257
      %v363 = vpop.f32.mrb[0].mxu0
      %v364 = vadd.f32 0.0, %v363
      %v365 = vpop.f32.mrb[0].mxu0
      %366 = vmatprep.mubr.f32.mxu0 0.0
      %367 = vmatmul.mubr.f32.gmra.mrb[0].mxu0 %v258
      %v368 = vpop.f32.mrb[0].mxu0
      %v369 = vadd.f32 0.0, %v368
      %v370 = vpop.f32.mrb[0].mxu0
      %371 = vmatprep.mubr.f32.mxu0 0.0
      %372 = vmatmul.mubr.f32.gmra.mrb[0].mxu0 %v259
      %v373 = vpop.f32.mrb[0].mxu0
      %v374 = vadd.f32 0.0, %v373
      %v375 = vpop.f32.mrb[0].mxu0
      %376 = vmatprep.mubr.f32.mxu0 0.0
      %377 = vmatmul.mubr.f32.gmra.mrb[0].mxu0 %v260
      %v378 = vpop.f32.mrb[0].mxu0
      %v379 = vadd.f32 0.0, %v378
      %v380 = vpop.f32.mrb[0].mxu0
      %381 = vmatprep.mubr.f32.mxu0 0.0
      %382 = vmatmul.mubr.f32.gmra.mrb[0].mxu0 %v261
      %v383 = vpop.f32.mrb[0].mxu0
      %v384 = vadd.f32 0.0, %v383
      %v385 = vpop.f32.mrb[0].mxu0
      %386 = vmatprep.mubr.f32.mxu0 0.0
      %387 = vmatmul.mubr.f32.gmra.mrb[0].mxu0 %v262
      %v388 = vpop.f32.mrb[0].mxu0
      %v389 = vadd.f32 0.0, %v388
      %v390 = vpop.f32.mrb[0].mxu0
      %391 = vmatprep.mubr.f32.mxu0 0.0
      %392 = vmatmul.mubr.f32.gmra.mrb[0].mxu0 %v263
      %v393 = vpop.f32.mrb[0].mxu0
      %v394 = vadd.f32 0.0, %v393
      %v395 = vpop.f32.mrb[0].mxu0
      %396 = vmatprep.mubr.f32.mxu0 0.0
      %397 = vmatmul.mubr.f32.gmra.mrb[0].mxu0 %v264
      %v398 = vpop.f32.mrb[0].mxu0
      %v399 = vadd.f32 0.0, %v398
      %v400 = vpop.f32.mrb[0].mxu0
      %401 = vmatprep.mubr.f32.mxu0 0.0
      %402 = vmatmul.mubr.f32.gmra.mrb[0].mxu0 %v265
      %v403 = vpop.f32.mrb[0].mxu0
      %v404 = vadd.f32 0.0, %v403
      %v405 = vpop.f32.mrb[0].mxu0
      %406 = vmatprep.mubr.f32.mxu0 0.0
      %407 = vmatmul.mubr.f32.gmra.mrb[0].mxu0 %v266
      %v408 = vpop.f32.mrb[0].mxu0
      %v409 = vadd.f32 0.0, %v408
      %v410 = vpop.f32.mrb[0].mxu0
      %411 = vmatprep.mubr.f32.mxu0 0.0
      %412 = vmatmul.mubr.f32.gmra.mrb[0].mxu0 %v267
      %v413 = vpop.f32.mrb[0].mxu0
      %v414 = vadd.f32 0.0, %v413
      %v415 = vpop.f32.mrb[0].mxu0
      %416 = vmatprep.mubr.f32.mxu0 0.0
      %417 = vmatmul.mubr.f32.gmra.mrb[0].mxu0 %v268
      %v418 = vpop.f32.mrb[0].mxu0
      %v419 = vadd.f32 0.0, %v418
      %v420 = vpop.f32.mrb[0].mxu0
      %421 = vmatprep.mubr.f32.mxu0 0.0
      %422 = vmatmul.mubr.f32.gmra.mrb[0].mxu0 %v269
      %v423 = vpop.f32.mrb[0].mxu0
      %v424 = vadd.f32 0.0, %v423
      %v425 = vpop.f32.mrb[0].mxu0
      %426 = vmatprep.mubr.f32.mxu0 0.0
      %427 = vmatmul.mubr.f32.gmra.mrb[0].mxu0 %v270
      %v428 = vpop.f32.mrb[0].mxu0
      %v429 = vadd.f32 0.0, %v428
      %v430 = vpop.f32.mrb[0].mxu0
      %431 = vdwg.mxu0
      %vm432 = vcmask 64512
      %433 = vst.msk [vmem:[%s241] sm:$0xff] %vm432, %v354
      %434 = vst.msk [vmem:[%s241 + $0x8] sm:$0xff] %vm432, %v359
      %435 = vst.msk [vmem:[%s241 + $0x10] sm:$0xff] %vm432, %v364
      %436 = vst.msk [vmem:[%s241 + $0x18] sm:$0xff] %vm432, %v369
      %437 = vst.msk [vmem:[%s241 + $0x20] sm:$0xff] %vm432, %v374
      %438 = vst.msk [vmem:[%s241 + $0x28] sm:$0xff] %vm432, %v379
      %439 = vst.msk [vmem:[%s241 + $0x30] sm:$0xff] %vm432, %v384
      %440 = vst.msk [vmem:[%s241 + $0x38] sm:$0xff] %vm432, %v389
      %441 = vst.msk [vmem:[%s241 + $0x40] sm:$0xff] %vm432, %v394
      %442 = vst.msk [vmem:[%s241 + $0x48] sm:$0xff] %vm432, %v399
      %443 = vst.msk [vmem:[%s241 + $0x50] sm:$0xff] %vm432, %v404
      %444 = vst.msk [vmem:[%s241 + $0x58] sm:$0xff] %vm432, %v409
      %445 = vst.msk [vmem:[%s241 + $0x60] sm:$0xff] %vm432, %v414
      %446 = vst.msk [vmem:[%s241 + $0x68] sm:$0xff] %vm432, %v419
      %447 = vst.msk [vmem:[%s241 + $0x70] sm:$0xff] %vm432, %v424
      %448 = vst.msk [vmem:[%s241 + $0x78] sm:$0xff] %vm432, %v429
      %v449 = vld [vmem:[%s2] sm:$0xff]
      %v451 = vsel %vm432, %v354, 0
      %v454 = vsel %vm432, %v359, 0
      %v457 = vsel %vm432, %v364, 0
      %v460 = vsel %vm432, %v369, 0
      %v463 = vsel %vm432, %v374, 0
      %v466 = vsel %vm432, %v379, 0
      %v469 = vsel %vm432, %v384, 0
      %v472 = vsel %vm432, %v389, 0
      %v475 = vsel %vm432, %v394, 0
      %v478 = vsel %vm432, %v399, 0
      %v481 = vsel %vm432, %v404, 0
      %v484 = vsel %vm432, %v409, 0
      %v487 = vsel %vm432, %v414, 0
      %v490 = vsel %vm432, %v419, 0
      %v493 = vsel %vm432, %v424, 0
      %v496 = vsel %vm432, %v429, 0
      %498 = vmatprep.subr.mxu0 0.0
      %499 = vmatpush1.msra.mxu0 %v449
      %500 = vmatprep.subr.mxu0 0.0
      %501 = vmatpush1.msra.mxu0 0.0
      %502 = vmatprep.subr.mxu0 0.0
      %503 = vmatpush1.msra.mxu0 0.0
      %504 = vmatprep.subr.mxu0 0.0
      %505 = vmatpush1.msra.mxu0 0.0
      %506 = vmatprep.subr.mxu0 0.0
      %507 = vmatpush1.msra.mxu0 0.0
      %508 = vmatprep.subr.mxu0 0.0
      %509 = vmatpush1.msra.mxu0 0.0
      %510 = vmatprep.subr.mxu0 0.0
      %511 = vmatpush1.msra.mxu0 0.0
      %512 = vmatprep.subr.mxu0 0.0
      %513 = vmatpush1.msra.mxu0 0.0
      %514 = vmatprep.subr.mxu0 0.0
      %515 = vmatpush1.msra.mxu0 0.0
      %516 = vmatprep.subr.mxu0 0.0
      %517 = vmatpush1.msra.mxu0 0.0
      %518 = vmatprep.subr.mxu0 0.0
      %519 = vmatpush1.msra.mxu0 0.0
      %520 = vmatprep.subr.mxu0 0.0
      %521 = vmatpush1.msra.mxu0 0.0
      %522 = vmatprep.subr.mxu0 0.0
      %523 = vmatpush1.msra.mxu0 0.0
      %524 = vmatprep.subr.mxu0 0.0
      %525 = vmatpush1.msra.mxu0 0.0
      %526 = vmatprep.subr.mxu0 0.0
      %527 = vmatpush1.msra.mxu0 0.0
      %528 = vmatprep.subr.mxu0 0.0
      %529 = vmatpush1.msra.mxu0 0.0
      %530 = vmatprep.subr.mxu0 0.0
      %531 = vmatpush1.msra.mxu0 0.0
      %532 = vmatprep.subr.mxu0 0.0
      %533 = vmatpush1.msra.mxu0 0.0
      %534 = vmatprep.subr.mxu0 0.0
      %535 = vmatpush1.msra.mxu0 0.0
      %536 = vmatprep.subr.mxu0 0.0
      %537 = vmatpush1.msra.mxu0 0.0
      %538 = vmatprep.subr.mxu0 0.0
      %539 = vmatpush1.msra.mxu0 0.0
      %540 = vmatprep.subr.mxu0 0.0
      %541 = vmatpush1.msra.mxu0 0.0
      %542 = vmatprep.subr.mxu0 0.0
      %543 = vmatpush1.msra.mxu0 0.0
      %544 = vmatprep.subr.mxu0 0.0
      %545 = vmatpush1.msra.mxu0 0.0
      %546 = vmatprep.subr.mxu0 0.0
      %547 = vmatpush1.msra.mxu0 0.0
      %548 = vmatprep.subr.mxu0 0.0
      %549 = vmatpush1.msra.mxu0 0.0
      %550 = vmatprep.subr.mxu0 0.0
      %551 = vmatpush1.msra.mxu0 0.0
      %552 = vmatprep.subr.mxu0 0.0
      %553 = vmatpush1.msra.mxu0 0.0
      %554 = vmatprep.subr.mxu0 0.0
      %555 = vmatpush1.msra.mxu0 0.0
      %556 = vmatprep.subr.mxu0 0.0
      %557 = vmatpush1.msra.mxu0 0.0
      %558 = vmatprep.subr.mxu0 0.0
      %559 = vmatpush1.msra.mxu0 0.0
      %560 = vmatprep.subr.mxu0 0.0
      %561 = vmatpush1.msra.mxu0 0.0
      %562 = vmatprep.mubr.f32.mxu0 0.0
      %563 = vmatmul.mubr.f32.gmra.mrb[0].mxu0 %v451
      %v564 = vpop.f32.mrb[0].mxu0
      %v565 = vadd.f32 0.0, %v564
      %v566 = vpop.f32.mrb[0].mxu0
      %567 = vmatprep.mubr.f32.mxu0 0.0
      %568 = vmatmul.mubr.f32.gmra.mrb[0].mxu0 %v454
      %v569 = vpop.f32.mrb[0].mxu0
      %v570 = vadd.f32 0.0, %v569
      %v571 = vpop.f32.mrb[0].mxu0
      %572 = vmatprep.mubr.f32.mxu0 0.0
      %573 = vmatmul.mubr.f32.gmra.mrb[0].mxu0 %v457
      %v574 = vpop.f32.mrb[0].mxu0
      %v575 = vadd.f32 0.0, %v574
      %v576 = vpop.f32.mrb[0].mxu0
      %577 = vmatprep.mubr.f32.mxu0 0.0
      %578 = vmatmul.mubr.f32.gmra.mrb[0].mxu0 %v460
      %v579 = vpop.f32.mrb[0].mxu0
      %v580 = vadd.f32 0.0, %v579
      %v581 = vpop.f32.mrb[0].mxu0
      %582 = vmatprep.mubr.f32.mxu0 0.0
      %583 = vmatmul.mubr.f32.gmra.mrb[0].mxu0 %v463
      %v584 = vpop.f32.mrb[0].mxu0
      %v585 = vadd.f32 0.0, %v584
      %v586 = vpop.f32.mrb[0].mxu0
      %587 = vmatprep.mubr.f32.mxu0 0.0
      %588 = vmatmul.mubr.f32.gmra.mrb[0].mxu0 %v466
      %v589 = vpop.f32.mrb[0].mxu0
      %v590 = vadd.f32 0.0, %v589
      %v591 = vpop.f32.mrb[0].mxu0
      %592 = vmatprep.mubr.f32.mxu0 0.0
      %593 = vmatmul.mubr.f32.gmra.mrb[0].mxu0 %v469
      %v594 = vpop.f32.mrb[0].mxu0
      %v595 = vadd.f32 0.0, %v594
      %v596 = vpop.f32.mrb[0].mxu0
      %597 = vmatprep.mubr.f32.mxu0 0.0
      %598 = vmatmul.mubr.f32.gmra.mrb[0].mxu0 %v472
      %v599 = vpop.f32.mrb[0].mxu0
      %v600 = vadd.f32 0.0, %v599
      %v601 = vpop.f32.mrb[0].mxu0
      %602 = vmatprep.mubr.f32.mxu0 0.0
      %603 = vmatmul.mubr.f32.gmra.mrb[0].mxu0 %v475
      %v604 = vpop.f32.mrb[0].mxu0
      %v605 = vadd.f32 0.0, %v604
      %v606 = vpop.f32.mrb[0].mxu0
      %607 = vmatprep.mubr.f32.mxu0 0.0
      %608 = vmatmul.mubr.f32.gmra.mrb[0].mxu0 %v478
      %v609 = vpop.f32.mrb[0].mxu0
      %v610 = vadd.f32 0.0, %v609
      %v611 = vpop.f32.mrb[0].mxu0
      %612 = vmatprep.mubr.f32.mxu0 0.0
      %613 = vmatmul.mubr.f32.gmra.mrb[0].mxu0 %v481
      %v614 = vpop.f32.mrb[0].mxu0
      %v615 = vadd.f32 0.0, %v614
      %v616 = vpop.f32.mrb[0].mxu0
      %617 = vmatprep.mubr.f32.mxu0 0.0
      %618 = vmatmul.mubr.f32.gmra.mrb[0].mxu0 %v484
      %v619 = vpop.f32.mrb[0].mxu0
      %v620 = vadd.f32 0.0, %v619
      %v621 = vpop.f32.mrb[0].mxu0
      %622 = vmatprep.mubr.f32.mxu0 0.0
      %623 = vmatmul.mubr.f32.gmra.mrb[0].mxu0 %v487
      %v624 = vpop.f32.mrb[0].mxu0
      %v625 = vadd.f32 0.0, %v624
      %v626 = vpop.f32.mrb[0].mxu0
      %627 = vmatprep.mubr.f32.mxu0 0.0
      %628 = vmatmul.mubr.f32.gmra.mrb[0].mxu0 %v490
      %v629 = vpop.f32.mrb[0].mxu0
      %v630 = vadd.f32 0.0, %v629
      %v631 = vpop.f32.mrb[0].mxu0
      %632 = vmatprep.mubr.f32.mxu0 0.0
      %633 = vmatmul.mubr.f32.gmra.mrb[0].mxu0 %v493
      %v634 = vpop.f32.mrb[0].mxu0
      %v635 = vadd.f32 0.0, %v634
      %v636 = vpop.f32.mrb[0].mxu0
      %637 = vmatprep.mubr.f32.mxu0 0.0
      %638 = vmatmul.mubr.f32.gmra.mrb[0].mxu0 %v496
      %v639 = vpop.f32.mrb[0].mxu0
      %v640 = vadd.f32 0.0, %v639
      %v641 = vpop.f32.mrb[0].mxu0
      %642 = vdwg.mxu0
      %vm643 = vcmask 7168
      %644 = vst.msk [vmem:[%s247] sm:$0xff] %vm643, %v565
      %645 = vst.msk [vmem:[%s247 + $0x8] sm:$0xff] %vm643, %v570
      %646 = vst.msk [vmem:[%s247 + $0x10] sm:$0xff] %vm643, %v575
      %647 = vst.msk [vmem:[%s247 + $0x18] sm:$0xff] %vm643, %v580
      %648 = vst.msk [vmem:[%s247 + $0x20] sm:$0xff] %vm643, %v585
      %649 = vst.msk [vmem:[%s247 + $0x28] sm:$0xff] %vm643, %v590
      %650 = vst.msk [vmem:[%s247 + $0x30] sm:$0xff] %vm643, %v595
      %651 = vst.msk [vmem:[%s247 + $0x38] sm:$0xff] %vm643, %v600
      %652 = vst.msk [vmem:[%s247 + $0x40] sm:$0xff] %vm643, %v605
      %653 = vst.msk [vmem:[%s247 + $0x48] sm:$0xff] %vm643, %v610
      %654 = vst.msk [vmem:[%s247 + $0x50] sm:$0xff] %vm643, %v615
      %655 = vst.msk [vmem:[%s247 + $0x58] sm:$0xff] %vm643, %v620
      %656 = vst.msk [vmem:[%s247 + $0x60] sm:$0xff] %vm643, %v625
      %657 = vst.msk [vmem:[%s247 + $0x68] sm:$0xff] %vm643, %v630
      %658 = vst.msk [vmem:[%s247 + $0x70] sm:$0xff] %vm643, %v635
      %659 = vst.msk [vmem:[%s247 + $0x78] sm:$0xff] %vm643, %v640
      %676 = vrot.lane.b32.xlu0 %v565, 127
      %v677 = vpop.permute.xlu0 %676
      %678 = vrot.lane.b32.xlu0 %v570, 127
      %v679 = vpop.permute.xlu0 %678
      %680 = vrot.lane.b32.xlu0 %v575, 127
      %v681 = vpop.permute.xlu0 %680
      %682 = vrot.lane.b32.xlu0 %v580, 127
      %v683 = vpop.permute.xlu0 %682
      %684 = vrot.lane.b32.xlu0 %v585, 127
      %v685 = vpop.permute.xlu0 %684
      %686 = vrot.lane.b32.xlu0 %v590, 127
      %v687 = vpop.permute.xlu0 %686
      %688 = vrot.lane.b32.xlu0 %v595, 127
      %v689 = vpop.permute.xlu0 %688
      %690 = vrot.lane.b32.xlu0 %v600, 127
      %v691 = vpop.permute.xlu0 %690
      %692 = vrot.lane.b32.xlu0 %v605, 127
      %v693 = vpop.permute.xlu0 %692
      %694 = vrot.lane.b32.xlu0 %v610, 127
      %v695 = vpop.permute.xlu0 %694
      %696 = vrot.lane.b32.xlu0 %v615, 127
      %v697 = vpop.permute.xlu0 %696
      %698 = vrot.lane.b32.xlu0 %v620, 127
      %v699 = vpop.permute.xlu0 %698
      %700 = vrot.lane.b32.xlu0 %v625, 127
      %v701 = vpop.permute.xlu0 %700
      %702 = vrot.lane.b32.xlu0 %v630, 127
      %v703 = vpop.permute.xlu0 %702
      %704 = vrot.lane.b32.xlu0 %v635, 127
      %v705 = vpop.permute.xlu0 %704
      %706 = vrot.lane.b32.xlu0 %v640, 127
      %v707 = vpop.permute.xlu0 %706
      %724 = vst.msk [vmem:[%s253] sm:$0xff] %vm643, %v677
      %725 = vst.msk [vmem:[%s253 + $0x8] sm:$0xff] %vm643, %v679
      %726 = vst.msk [vmem:[%s253 + $0x10] sm:$0xff] %vm643, %v681
      %727 = vst.msk [vmem:[%s253 + $0x18] sm:$0xff] %vm643, %v683
      %728 = vst.msk [vmem:[%s253 + $0x20] sm:$0xff] %vm643, %v685
      %729 = vst.msk [vmem:[%s253 + $0x28] sm:$0xff] %vm643, %v687
      %730 = vst.msk [vmem:[%s253 + $0x30] sm:$0xff] %vm643, %v689
      %731 = vst.msk [vmem:[%s253 + $0x38] sm:$0xff] %vm643, %v691
      %732 = vst.msk [vmem:[%s253 + $0x40] sm:$0xff] %vm643, %v693
      %733 = vst.msk [vmem:[%s253 + $0x48] sm:$0xff] %vm643, %v695
      %734 = vst.msk [vmem:[%s253 + $0x50] sm:$0xff] %vm643, %v697
      %735 = vst.msk [vmem:[%s253 + $0x58] sm:$0xff] %vm643, %v699
      %736 = vst.msk [vmem:[%s253 + $0x60] sm:$0xff] %vm643, %v701
      %737 = vst.msk [vmem:[%s253 + $0x68] sm:$0xff] %vm643, %v703
      %738 = vst.msk [vmem:[%s253 + $0x70] sm:$0xff] %vm643, %v705
      %739 = vst.msk [vmem:[%s253 + $0x78] sm:$0xff] %vm643, %v707
      %s740 = smul.u32 16, %s17
      %p741 = scmp.lt.s32.totalorder %s740, 31
      %s742 = scalar_select %p741, %s740, 31
      %s743 = smul.addr %s742, 8
      %s744 = scalar_lea.vmem %s3, %s743
      %s745 = smul.u32 16, %s17
      %p746 = scmp.lt.s32.totalorder %s745, 31
      %s747 = scalar_select %p746, %s745, 31
      %s748 = smul.addr %s747, 8
      %s749 = scalar_lea.vmem %s4, %s748
      %s750 = smul.u32 16, %s17
      %p751 = scmp.lt.s32.totalorder %s750, 31
      %s752 = scalar_select %p751, %s750, 31
      %s753 = smul.addr %s752, 8
      %s754 = scalar_lea.vmem %s5, %s753
      // Predicated region
      $region33: #{gat_forward.10} parent=31 // pred_check
        %p755 = pneg %p103
      $region34: #{gat_forward.10} parent=31 // pred_check_branch
        %757 = sbr.rel (%p755) target = $region36
      $region35: #{gat_forward.10} parent=31 // pred_region
        %s758 = smul.u32 16, %s17
      $region36: #{gat_forward.10} parent=31 // pred_fallthru
        _
      // Predicated region
      $region37: #{gat_forward.10} parent=31 // pred_check
        %p759 = pneg %p129
      $region38: #{gat_forward.10} parent=31 // pred_check_branch
        %761 = sbr.rel (%p759) target = $region40
      $region39: #{gat_forward.10} parent=31 // pred_region
        %s762 = smul.u32 16, %s17
      $region40: #{gat_forward.10} parent=31 // pred_fallthru
        _
      // Predicated region
      $region41: #{gat_forward.10} parent=31 // pred_check
        %p763 = pneg %p155
      $region42: #{gat_forward.10} parent=31 // pred_check_branch
        %765 = sbr.rel (%p763) target = $region44
      $region43: #{gat_forward.10} parent=31 // pred_region
        %s766 = smul.u32 16, %s17
      $region44: #{gat_forward.10} parent=31 // pred_fallthru
        _
    $region32: #{gat_forward.10} parent=5 // pred_fallthru
      _
    %p767 = scmp.le.s32.totalorder 2, %s12
    // Predicated region
    $region45: #{gat_forward.10} parent=5 // pred_check
      %p768 = pneg %p767
    $region46: #{gat_forward.10} parent=5 // pred_check_branch
      %770 = sbr.rel (%p768) target = $region48
    $region47: #{gat_forward.10} parent=5 // pred_region
      %s771 = ssub.s32 %s12, 2
      // Predicated region
      $region49: #{gat_forward.10} parent=47 // pred_check
        %p772 = pneg %p109
      $region50: #{gat_forward.10} parent=47 // pred_check_branch
        %774 = sbr.rel (%p772) target = $region52
      $region51: #{gat_forward.10} parent=47 // pred_region
        %s775 = smul.u32 16, %s18
        %p776 = scmp.lt.s32.totalorder %s775, 31
        %s777 = scalar_select %p776, %s775, 31
        %s778 = smul.addr %s777, 8
        %s779 = scalar_lea.vmem %s3, %s778
      $region52: #{gat_forward.10} parent=47 // pred_fallthru
        _
      // Predicated region
      $region53: #{gat_forward.10} parent=47 // pred_check
        %p780 = pneg %p135
      $region54: #{gat_forward.10} parent=47 // pred_check_branch
        %782 = sbr.rel (%p780) target = $region56
      $region55: #{gat_forward.10} parent=47 // pred_region
        %s783 = smul.u32 16, %s18
        %p784 = scmp.lt.s32.totalorder %s783, 31
        %s785 = scalar_select %p784, %s783, 31
        %s786 = smul.addr %s785, 8
        %s787 = scalar_lea.vmem %s4, %s786
      $region56: #{gat_forward.10} parent=47 // pred_fallthru
        _
      // Predicated region
      $region57: #{gat_forward.10} parent=47 // pred_check
        %p788 = pneg %p161
      $region58: #{gat_forward.10} parent=47 // pred_check_branch
        %790 = sbr.rel (%p788) target = $region60
      $region59: #{gat_forward.10} parent=47 // pred_region
        %s791 = smul.u32 16, %s18
        %p792 = scmp.lt.s32.totalorder %s791, 31
        %s793 = scalar_select %p792, %s791, 31
        %s794 = smul.addr %s793, 8
        %s795 = scalar_lea.vmem %s5, %s794
      $region60: #{gat_forward.10} parent=47 // pred_fallthru
        _
    $region48: #{gat_forward.10} parent=5 // pred_fallthru
      _
  $region6: #{gat_forward.10} parent=0 // loop_footer
    %s16 = sadd.s32 1, %s12
  $region7: #{gat_forward.10} parent=0 // loop_footer_branch
    %11 = sbr.rel target = $region3
  $region8: #{gat_forward.10} parent=0 // loop_exit
    _

// kernel: gat_forward.11
$region0: #{gat_forward.11}
  #allocation0 [shape = 'u32[]', space=smem, size = 0x4, offset = 0x4, fixed_abs, tag = 'smem constant byte address 0x4 - core index']
  #allocation1 [shape = 'u32[144,128]{1,0:T(1,128)}', space=vmem, size = 0x12000, scoped, tag = 'internal scratch']
  #allocation2 [shape = 'f32[128,8]{1,0:T(8,128)}', space=vmem, size = 0x10000, scoped, tag = 'scratch operand']
  #allocation3 [shape = 'f32[128,8]{1,0:T(8,128)}', space=vmem, size = 0x10000, scoped, tag = 'scratch operand']
  #allocation4 [shape = 'f32[128,8]{1,0:T(8,128)}', space=vmem, size = 0x10000, scoped, tag = 'scratch operand']
  #allocation5 [shape = 's32[1]{0}', space=sflag, size = 0x4, scoped, tag = 'scoped memory for gat_forward.11']
  #allocation6 [shape = 'u8[512]{0}', space=smem, size = 0x200, scoped, tag = 'prefetched SMEM operand 0']
  %s0 = inlined_call_operand.vmem [shape: s32[2], index: 0, kind: input, shape index: {}]
  %s1 = inlined_call_operand.vmem [shape: f32[256,8], index: 1, kind: input, shape index: {}]
  %s2 = inlined_call_operand.vmem [shape: f32[256,1], index: 2, kind: input, shape index: {}]
  %s3 = inlined_call_operand.vmem [shape: f32[1,256], index: 3, kind: input, shape index: {}]
  %s4 = inlined_call_operand.vmem [shape: s8[256,256], index: 4, kind: input, shape index: {}]
  %s5 = inlined_call_operand.vmem [shape: f32[256,8], index: 5, kind: output, shape index: {}]
  %s6 = sld [smem:[#allocation0]]
  $region61: #{gat_forward.11} parent=0
    _
  %s8 = ssub.s32 1, %s6
  %s9 = scalar_select 0, %s8, %s6
  %s10 = sshll.u32 %s0, 4
  %s11 = int_to_ptr.vmem [resolvable:$true] %s10
  %13 = dma.vmem_to_smem %s11, 16, [#allocation6], [#allocation5]
  %14 = dma.done [#allocation5], 16
  %15 = sfence
  loop: start=0, step=1, limit=4
  $region2: #{gat_forward.11} parent=0 // loop_pre_header
    _
  $region3: #{gat_forward.11} parent=0 // loop_header
    %s17 = sphi 0, %s21
    %p18 = scmp.ge.s32.totalorder %s17, 4
    %s24 = sphi 0, %s36
    %s25 = sphi 0, %s32
    %s26 = sphi 0, %s24
    %s27 = sphi 0, %s25
    %s28 = sphi 0, %s26
    %s29 = sphi 0, %s27
    %s39 = sphi 0, %s41
    %s42 = sphi 0, %s39
    %s43 = sphi 0, %s42
    %s59 = sphi 0, %s43
    %s65 = sphi 0, %s67
    %s68 = sphi 0, %s65
    %s69 = sphi 0, %s68
    %s85 = sphi 0, %s69
    %s91 = sphi 0, %s93
    %s94 = sphi 0, %s91
    %s95 = sphi 0, %s94
    %s111 = sphi 0, %s95
    %s119 = sphi 0, %s121
    %s122 = sphi 0, %s119
    %s123 = sphi 0, %s122
    %s139 = sphi 0, %s123
    %s145 = sphi 0, %s147
    %s148 = sphi 0, %s145
    %s149 = sphi 0, %s148
    %s165 = sphi 0, %s149
  $region4: #{gat_forward.11} parent=0 // loop_header_branch
    %20 = sbr.rel (%p18) target = $region8
  $region5: #{gat_forward.11} parent=0 // loop_body
    %s22 = ssub.s32 %s17, 1
    %s23 = ssub.s32 %s17, 2
    %s30 = sadd.s32 1, %s25
    %p31 = scmp.ge.s32.totalorder %s30, 1
    %s32 = scalar_select %p31, 0, %s30
    %s33 = sadd.s32 1, %s24
    %s34 = scalar_select %p31, %s33, %s24
    %p35 = scmp.ge.s32.totalorder %s34, 2
    %s36 = scalar_select %p35, 0, %s34
    %s37 = ssub.s32 %s25, %s32
    %p38 = scmp.eq.s32.totalorder %s37, 0
    %s40 = sadd.s32 %s39, 1
    %s41 = scalar_select %p38, %s39, %s40
    %p44 = pneg %p38
    %p45 = scmp.eq.s32.totalorder %s17, 1
    %p46 = por %p44, %p45
    %p47 = scmp.ne.s32.totalorder %s39, %s42
    %p48 = scmp.eq.s32.totalorder %s17, 0
    %p49 = por %p47, %p48
    %p50 = scmp.ne.s32.totalorder %s39, %s42
    %p51 = scmp.eq.s32.totalorder %s22, 1
    %p52 = por %p50, %p51
    %p53 = scmp.ne.s32.totalorder %s42, %s43
    %p54 = scmp.eq.s32.totalorder %s22, 0
    %p55 = por %p53, %p54
    %p56 = scmp.ne.s32.totalorder %s42, %s43
    %p57 = scmp.eq.s32.totalorder %s23, 1
    %p58 = por %p56, %p57
    %p60 = scmp.ne.s32.totalorder %s43, %s59
    %p61 = scmp.eq.s32.totalorder %s23, 0
    %p62 = por %p60, %p61
    %s63 = ssub.s32 %s24, %s36
    %p64 = scmp.eq.s32.totalorder %s63, 0
    %s66 = sadd.s32 %s65, 1
    %s67 = scalar_select %p64, %s65, %s66
    %p70 = pneg %p64
    %p71 = scmp.eq.s32.totalorder %s17, 1
    %p72 = por %p70, %p71
    %p73 = scmp.ne.s32.totalorder %s65, %s68
    %p74 = scmp.eq.s32.totalorder %s17, 0
    %p75 = por %p73, %p74
    %p76 = scmp.ne.s32.totalorder %s65, %s68
    %p77 = scmp.eq.s32.totalorder %s22, 1
    %p78 = por %p76, %p77
    %p79 = scmp.ne.s32.totalorder %s68, %s69
    %p80 = scmp.eq.s32.totalorder %s22, 0
    %p81 = por %p79, %p80
    %p82 = scmp.ne.s32.totalorder %s68, %s69
    %p83 = scmp.eq.s32.totalorder %s23, 1
    %p84 = por %p82, %p83
    %p86 = scmp.ne.s32.totalorder %s69, %s85
    %p87 = scmp.eq.s32.totalorder %s23, 0
    %p88 = por %p86, %p87
    %s89 = ssub.s32 %s25, %s32
    %p90 = scmp.eq.s32.totalorder %s89, 0
    %s92 = sadd.s32 %s91, 1
    %s93 = scalar_select %p90, %s91, %s92
    %p96 = pneg %p90
    %p97 = scmp.eq.s32.totalorder %s17, 1
    %p98 = por %p96, %p97
    %p99 = scmp.ne.s32.totalorder %s91, %s94
    %p100 = scmp.eq.s32.totalorder %s17, 0
    %p101 = por %p99, %p100
    %p102 = scmp.ne.s32.totalorder %s91, %s94
    %p103 = scmp.eq.s32.totalorder %s22, 1
    %p104 = por %p102, %p103
    %p105 = scmp.ne.s32.totalorder %s94, %s95
    %p106 = scmp.eq.s32.totalorder %s22, 0
    %p107 = por %p105, %p106
    %p108 = scmp.ne.s32.totalorder %s94, %s95
    %p109 = scmp.eq.s32.totalorder %s23, 1
    %p110 = por %p108, %p109
    %p112 = scmp.ne.s32.totalorder %s95, %s111
    %p113 = scmp.eq.s32.totalorder %s23, 0
    %p114 = por %p112, %p113
    %s115 = ssub.s32 %s24, %s36
    %s116 = ssub.s32 %s25, %s32
    %s117 = sor.u32 %s115, %s116
    %p118 = scmp.eq.s32.totalorder %s117, 0
    %s120 = sadd.s32 %s119, 1
    %s121 = scalar_select %p118, %s119, %s120
    %p124 = pneg %p118
    %p125 = scmp.eq.s32.totalorder %s17, 1
    %p126 = por %p124, %p125
    %p127 = scmp.ne.s32.totalorder %s119, %s122
    %p128 = scmp.eq.s32.totalorder %s17, 0
    %p129 = por %p127, %p128
    %p130 = scmp.ne.s32.totalorder %s119, %s122
    %p131 = scmp.eq.s32.totalorder %s22, 1
    %p132 = por %p130, %p131
    %p133 = scmp.ne.s32.totalorder %s122, %s123
    %p134 = scmp.eq.s32.totalorder %s22, 0
    %p135 = por %p133, %p134
    %p136 = scmp.ne.s32.totalorder %s122, %s123
    %p137 = scmp.eq.s32.totalorder %s23, 1
    %p138 = por %p136, %p137
    %p140 = scmp.ne.s32.totalorder %s123, %s139
    %p141 = scmp.eq.s32.totalorder %s23, 0
    %p142 = por %p140, %p141
    %s143 = ssub.s32 %s24, %s36
    %p144 = scmp.eq.s32.totalorder %s143, 0
    %s146 = sadd.s32 %s145, 1
    %s147 = scalar_select %p144, %s145, %s146
    %p150 = pneg %p144
    %p151 = scmp.eq.s32.totalorder %s17, 1
    %p152 = por %p150, %p151
    %p153 = scmp.ne.s32.totalorder %s145, %s148
    %p154 = scmp.eq.s32.totalorder %s17, 0
    %p155 = por %p153, %p154
    %p156 = scmp.ne.s32.totalorder %s145, %s148
    %p157 = scmp.eq.s32.totalorder %s22, 1
    %p158 = por %p156, %p157
    %p159 = scmp.ne.s32.totalorder %s148, %s149
    %p160 = scmp.eq.s32.totalorder %s22, 0
    %p161 = por %p159, %p160
    %p162 = scmp.ne.s32.totalorder %s148, %s149
    %p163 = scmp.eq.s32.totalorder %s23, 1
    %p164 = por %p162, %p163
    %p166 = scmp.ne.s32.totalorder %s149, %s165
    %p167 = scmp.eq.s32.totalorder %s23, 0
    %p168 = por %p166, %p167
    %p169 = scmp.le.s32.totalorder 1, %s17
    %p170 = scmp.lt.s32.totalorder %s17, 3
    %p171 = pnand %p169, %p170
    %p172 = pneg %p171
    // Predicated region
    $region9: #{gat_forward.11} parent=5 // pred_check
      _
    $region10: #{gat_forward.11} parent=5 // pred_check_branch
      %174 = sbr.rel (%p171) target = $region12
    $region11: #{gat_forward.11} parent=5 // pred_region
      %s175 = ssub.s32 %s17, 1
      // Predicated region
      $region13: #{gat_forward.11} parent=11 // pred_check
        %p176 = pneg %p55
      $region14: #{gat_forward.11} parent=11 // pred_check_branch
        %178 = sbr.rel (%p176) target = $region16
      $region15: #{gat_forward.11} parent=11 // pred_region
        %s179 = smul.u32 32, %s27
        %p180 = scmp.lt.s32.totalorder %s179, 31
        %s181 = scalar_select %p180, %s179, 31
        %s182 = smul.addr %s181, 8
        %s183 = scalar_lea.vmem %s1, %s182
        %s184 = smul.u32 32, %s27
      $region16: #{gat_forward.11} parent=11 // pred_fallthru
        _
      // Predicated region
      $region17: #{gat_forward.11} parent=11 // pred_check
        %p185 = pneg %p107
      $region18: #{gat_forward.11} parent=11 // pred_check_branch
        %187 = sbr.rel (%p185) target = $region20
      $region19: #{gat_forward.11} parent=11 // pred_region
        %s188 = smul.u32 2, %s27
        %p189 = scmp.lt.s32.totalorder %s188, 1
        %s190 = scalar_select %p189, %s188, 1
        %s191 = scalar_lea.vmem %s3, %s190
        %s192 = smul.u32 2, %s27
      $region20: #{gat_forward.11} parent=11 // pred_fallthru
        _
    $region12: #{gat_forward.11} parent=5 // pred_fallthru
      _
    %p193 = scmp.lt.s32.totalorder %s17, 2
    // Predicated region
    $region21: #{gat_forward.11} parent=5 // pred_check
      %p194 = pneg %p193
    $region22: #{gat_forward.11} parent=5 // pred_check_branch
      %196 = sbr.rel (%p194) target = $region24
    $region23: #{gat_forward.11} parent=5 // pred_region
      // Predicated region
      $region25: #{gat_forward.11} parent=23 // pred_check
        %p197 = pneg %p75
      $region26: #{gat_forward.11} parent=23 // pred_check_branch
        %199 = sbr.rel (%p197) target = $region28
      $region27: #{gat_forward.11} parent=23 // pred_region
        %s200 = smul.u32 16, %s24
        %p201 = scmp.lt.s32.totalorder %s200, 31
        %s202 = scalar_select %p201, %s200, 31
        %s203 = smul.addr %s202, 8
        %s204 = scalar_lea.vmem %s2, %s203
        %s205 = smul.u32 16, %s24
      $region28: #{gat_forward.11} parent=23 // pred_fallthru
        _
      // Predicated region
      $region29: #{gat_forward.11} parent=23 // pred_check
        %p206 = pneg %p129
      $region30: #{gat_forward.11} parent=23 // pred_check_branch
        %208 = sbr.rel (%p206) target = $region32
      $region31: #{gat_forward.11} parent=23 // pred_region
        %s209 = smul.u32 4, %s24
        %s210 = smul.u32 2, %s25
        %p211 = scmp.lt.s32.totalorder %s209, 7
        %s212 = scalar_select %p211, %s209, 7
        %p213 = scmp.lt.s32.totalorder %s210, 1
        %s214 = scalar_select %p213, %s210, 1
        %s215 = smul.addr %s212, 2
        %s216 = sadd.s32 %s214, %s215
        %s217 = smul.addr %s216, 8
        %s218 = scalar_lea.vmem %s4, %s217
        %s219 = smul.u32 4, %s24
        %s220 = smul.u32 2, %s25
      $region32: #{gat_forward.11} parent=23 // pred_fallthru
        _
    $region24: #{gat_forward.11} parent=5 // pred_fallthru
      _
    %p221 = scmp.le.s32.totalorder 1, %s17
    %p222 = scmp.lt.s32.totalorder %s17, 3
    %p223 = pnand %p221, %p222
    %p224 = pneg %p223
    // Predicated region
    $region33: #{gat_forward.11} parent=5 // pred_check
      _
    $region34: #{gat_forward.11} parent=5 // pred_check_branch
      %226 = sbr.rel (%p223) target = $region36
    $region35: #{gat_forward.11} parent=5 // pred_region
      %s227 = ssub.s32 %s17, 1
      %s228 = smul.u32 32, %s27
      %p229 = scmp.lt.s32.totalorder %s228, 31
      %s230 = scalar_select %p229, %s228, 31
      %s231 = smul.addr %s230, 8
      %s232 = scalar_lea.vmem %s1, %s231
      %p233 = pneg %p55
      %p234 = pneg %p52
      %s235 = smul.u32 16, %s26
      %p236 = scmp.lt.s32.totalorder %s235, 31
      %s237 = scalar_select %p236, %s235, 31
      %s238 = smul.addr %s237, 8
      %s239 = scalar_lea.vmem %s2, %s238
      %p240 = pneg %p81
      %p241 = pneg %p78
      %s242 = smul.u32 2, %s27
      %p243 = scmp.lt.s32.totalorder %s242, 1
      %s244 = scalar_select %p243, %s242, 1
      %s245 = scalar_lea.vmem %s3, %s244
      %p246 = pneg %p107
      %p247 = pneg %p104
      %s248 = smul.u32 4, %s26
      %s249 = smul.u32 2, %s27
      %p250 = scmp.lt.s32.totalorder %s248, 7
      %s251 = scalar_select %p250, %s248, 7
      %p252 = scmp.lt.s32.totalorder %s249, 1
      %s253 = scalar_select %p252, %s249, 1
      %s254 = smul.addr %s251, 2
      %s255 = sadd.s32 %s253, %s254
      %s256 = smul.addr %s255, 8
      %s257 = scalar_lea.vmem %s4, %s256
      %p258 = pneg %p135
      %p259 = pneg %p132
      %p260 = pneg %p161
      %p261 = pneg %p158
      %s262 = smul.u32 16, %s26
      %p263 = scmp.lt.s32.totalorder %s262, 31
      %s264 = scalar_select %p263, %s262, 31
      %s265 = smul.addr %s264, 8
      %s266 = scalar_lea.vmem %s5, %s265
      %s267 = smul.u32 32, %s27
      %p268 = scmp.lt.s32.totalorder %s267, 31
      %s269 = scalar_select %p268, %s267, 31
      %s270 = smul.addr %s269, 8
      %s271 = scalar_lea.vmem %s1, %s270
      %s272 = smul.u32 32, %s27
      %s273 = smul.u32 16, %s26
      %p274 = scmp.lt.s32.totalorder %s273, 31
      %s275 = scalar_select %p274, %s273, 31
      %s276 = smul.addr %s275, 8
      %s277 = scalar_lea.vmem %s2, %s276
      %s278 = smul.u32 16, %s26
      %s279 = smul.u32 2, %s27
      %p280 = scmp.lt.s32.totalorder %s279, 1
      %s281 = scalar_select %p280, %s279, 1
      %s282 = scalar_lea.vmem %s3, %s281
      %s283 = smul.u32 2, %s27
      %s284 = smul.u32 4, %s26
      %s285 = smul.u32 2, %s27
      %p286 = scmp.lt.s32.totalorder %s284, 7
      %s287 = scalar_select %p286, %s284, 7
      %p288 = scmp.lt.s32.totalorder %s285, 1
      %s289 = scalar_select %p288, %s285, 1
      %s290 = smul.addr %s287, 2
      %s291 = sadd.s32 %s289, %s290
      %s292 = smul.addr %s291, 8
      %s293 = scalar_lea.vmem %s4, %s292
      %s294 = smul.u32 4, %s26
      %s295 = smul.u32 2, %s27
      %s296 = smul.u32 16, %s26
      %p297 = scmp.lt.s32.totalorder %s296, 31
      %s298 = scalar_select %p297, %s296, 31
      %s299 = smul.addr %s298, 8
      %s300 = scalar_lea.vmem %s5, %s299
      %s301 = smul.u32 16, %s26
      %p304 = scmp.eq.s32.totalorder %s27, 0
      // Predicated region
      $region37: #{gat_forward.11} parent=35 // pred_check
        %p305 = pneg %p304
      $region38: #{gat_forward.11} parent=35 // pred_check_branch
        %307 = sbr.rel (%p305) target = $region40
      $region39: #{gat_forward.11} parent=35 // pred_region
        %vm308 = vcmask 64512
        %309 = vst.msk [vmem:[#allocation2] sm:$0xff] %vm308, -1e+30
        %310 = vst.msk [vmem:[#allocation2 + $0x8] sm:$0xff] %vm308, -1e+30
        %311 = vst.msk [vmem:[#allocation2 + $0x10] sm:$0xff] %vm308, -1e+30
        %312 = vst.msk [vmem:[#allocation2 + $0x18] sm:$0xff] %vm308, -1e+30
        %313 = vst.msk [vmem:[#allocation2 + $0x20] sm:$0xff] %vm308, -1e+30
        %314 = vst.msk [vmem:[#allocation2 + $0x28] sm:$0xff] %vm308, -1e+30
        %315 = vst.msk [vmem:[#allocation2 + $0x30] sm:$0xff] %vm308, -1e+30
        %316 = vst.msk [vmem:[#allocation2 + $0x38] sm:$0xff] %vm308, -1e+30
        %317 = vst.msk [vmem:[#allocation2 + $0x40] sm:$0xff] %vm308, -1e+30
        %318 = vst.msk [vmem:[#allocation2 + $0x48] sm:$0xff] %vm308, -1e+30
        %319 = vst.msk [vmem:[#allocation2 + $0x50] sm:$0xff] %vm308, -1e+30
        %320 = vst.msk [vmem:[#allocation2 + $0x58] sm:$0xff] %vm308, -1e+30
        %321 = vst.msk [vmem:[#allocation2 + $0x60] sm:$0xff] %vm308, -1e+30
        %322 = vst.msk [vmem:[#allocation2 + $0x68] sm:$0xff] %vm308, -1e+30
        %323 = vst.msk [vmem:[#allocation2 + $0x70] sm:$0xff] %vm308, -1e+30
        %324 = vst.msk [vmem:[#allocation2 + $0x78] sm:$0xff] %vm308, -1e+30
        %325 = vst.msk [vmem:[#allocation3] sm:$0xff] %vm308, 0.0
        %326 = vst.msk [vmem:[#allocation3 + $0x8] sm:$0xff] %vm308, 0.0
        %327 = vst.msk [vmem:[#allocation3 + $0x10] sm:$0xff] %vm308, 0.0
        %328 = vst.msk [vmem:[#allocation3 + $0x18] sm:$0xff] %vm308, 0.0
        %329 = vst.msk [vmem:[#allocation3 + $0x20] sm:$0xff] %vm308, 0.0
        %330 = vst.msk [vmem:[#allocation3 + $0x28] sm:$0xff] %vm308, 0.0
        %331 = vst.msk [vmem:[#allocation3 + $0x30] sm:$0xff] %vm308, 0.0
        %332 = vst.msk [vmem:[#allocation3 + $0x38] sm:$0xff] %vm308, 0.0
        %333 = vst.msk [vmem:[#allocation3 + $0x40] sm:$0xff] %vm308, 0.0
        %334 = vst.msk [vmem:[#allocation3 + $0x48] sm:$0xff] %vm308, 0.0
        %335 = vst.msk [vmem:[#allocation3 + $0x50] sm:$0xff] %vm308, 0.0
        %336 = vst.msk [vmem:[#allocation3 + $0x58] sm:$0xff] %vm308, 0.0
        %337 = vst.msk [vmem:[#allocation3 + $0x60] sm:$0xff] %vm308, 0.0
        %338 = vst.msk [vmem:[#allocation3 + $0x68] sm:$0xff] %vm308, 0.0
        %339 = vst.msk [vmem:[#allocation3 + $0x70] sm:$0xff] %vm308, 0.0
        %340 = vst.msk [vmem:[#allocation3 + $0x78] sm:$0xff] %vm308, 0.0
        %341 = vst.msk [vmem:[#allocation4] sm:$0xff] %vm308, 0.0
        %342 = vst.msk [vmem:[#allocation4 + $0x8] sm:$0xff] %vm308, 0.0
        %343 = vst.msk [vmem:[#allocation4 + $0x10] sm:$0xff] %vm308, 0.0
        %344 = vst.msk [vmem:[#allocation4 + $0x18] sm:$0xff] %vm308, 0.0
        %345 = vst.msk [vmem:[#allocation4 + $0x20] sm:$0xff] %vm308, 0.0
        %346 = vst.msk [vmem:[#allocation4 + $0x28] sm:$0xff] %vm308, 0.0
        %347 = vst.msk [vmem:[#allocation4 + $0x30] sm:$0xff] %vm308, 0.0
        %348 = vst.msk [vmem:[#allocation4 + $0x38] sm:$0xff] %vm308, 0.0
        %349 = vst.msk [vmem:[#allocation4 + $0x40] sm:$0xff] %vm308, 0.0
        %350 = vst.msk [vmem:[#allocation4 + $0x48] sm:$0xff] %vm308, 0.0
        %351 = vst.msk [vmem:[#allocation4 + $0x50] sm:$0xff] %vm308, 0.0
        %352 = vst.msk [vmem:[#allocation4 + $0x58] sm:$0xff] %vm308, 0.0
        %353 = vst.msk [vmem:[#allocation4 + $0x60] sm:$0xff] %vm308, 0.0
        %354 = vst.msk [vmem:[#allocation4 + $0x68] sm:$0xff] %vm308, 0.0
        %355 = vst.msk [vmem:[#allocation4 + $0x70] sm:$0xff] %vm308, 0.0
        %356 = vst.msk [vmem:[#allocation4 + $0x78] sm:$0xff] %vm308, 0.0
      $region40: #{gat_forward.11} parent=35 // pred_fallthru
        _
      %s357 = sadd.s32 %s26, %s27
      %s358 = sld [smem:[#allocation6 + %s357]]
      %p359 = scmp.gt.s32.totalorder %s358, 0
      // Predicated region
      $region41: #{gat_forward.11} parent=35 // pred_check
        %p360 = pneg %p359
      $region42: #{gat_forward.11} parent=35 // pred_check_branch
        %362 = sbr.rel (%p360) target = $region44
      $region43: #{gat_forward.11} parent=35 // pred_region
        %v363 = vld [vmem:[%s293] sm:$0xff]
        %v364 = vld [vmem:[%s293 + $0x8] sm:$0xff]
        %v365 = vld [vmem:[%s293 + $0x10] sm:$0xff]
        %v366 = vld [vmem:[%s293 + $0x18] sm:$0xff]
        %v367 = vld [vmem:[%s293 + $0x20] sm:$0xff]
        %v368 = vld [vmem:[%s293 + $0x28] sm:$0xff]
        %v369 = vld [vmem:[%s293 + $0x30] sm:$0xff]
        %v370 = vld [vmem:[%s293 + $0x38] sm:$0xff]
        %vm371 = vnez %v363
        %vm372 = vnez %v364
        %vm373 = vnez %v365
        %vm374 = vnez %v366
        %vm375 = vnez %v367
        %vm376 = vnez %v368
        %vm377 = vnez %v369
        %vm378 = vnez %v370
        %v379 = vld [vmem:[%s271] sm:$0xff]
        %v380 = vld [vmem:[%s271 + $0x8] sm:$0xff]
        %v381 = vld [vmem:[%s271 + $0x10] sm:$0xff]
        %v382 = vld [vmem:[%s271 + $0x18] sm:$0xff]
        %v383 = vld [vmem:[%s271 + $0x20] sm:$0xff]
        %v384 = vld [vmem:[%s271 + $0x28] sm:$0xff]
        %v385 = vld [vmem:[%s271 + $0x30] sm:$0xff]
        %v386 = vld [vmem:[%s271 + $0x38] sm:$0xff]
        %v387 = vld [vmem:[%s271 + $0x40] sm:$0xff]
        %v388 = vld [vmem:[%s271 + $0x48] sm:$0xff]
        %v389 = vld [vmem:[%s271 + $0x50] sm:$0xff]
        %v390 = vld [vmem:[%s271 + $0x58] sm:$0xff]
        %v391 = vld [vmem:[%s271 + $0x60] sm:$0xff]
        %v392 = vld [vmem:[%s271 + $0x68] sm:$0xff]
        %v393 = vld [vmem:[%s271 + $0x70] sm:$0xff]
        %v394 = vld [vmem:[%s271 + $0x78] sm:$0xff]
        %v395 = vld [vmem:[%s271 + $0x80] sm:$0xff]
        %v396 = vld [vmem:[%s271 + $0x88] sm:$0xff]
        %v397 = vld [vmem:[%s271 + $0x90] sm:$0xff]
        %v398 = vld [vmem:[%s271 + $0x98] sm:$0xff]
        %v399 = vld [vmem:[%s271 + $0xa0] sm:$0xff]
        %v400 = vld [vmem:[%s271 + $0xa8] sm:$0xff]
        %v401 = vld [vmem:[%s271 + $0xb0] sm:$0xff]
        %v402 = vld [vmem:[%s271 + $0xb8] sm:$0xff]
        %v403 = vld [vmem:[%s271 + $0xc0] sm:$0xff]
        %v404 = vld [vmem:[%s271 + $0xc8] sm:$0xff]
        %v405 = vld [vmem:[%s271 + $0xd0] sm:$0xff]
        %v406 = vld [vmem:[%s271 + $0xd8] sm:$0xff]
        %v407 = vld [vmem:[%s271 + $0xe0] sm:$0xff]
        %v408 = vld [vmem:[%s271 + $0xe8] sm:$0xff]
        %v409 = vld [vmem:[%s271 + $0xf0] sm:$0xff]
        %v410 = vld [vmem:[%s271 + $0xf8] sm:$0xff]
        %v411 = vld [vmem:[%s277] sm:$0xff]
        %v412 = vld [vmem:[%s277 + $0x8] sm:$0xff]
        %v413 = vld [vmem:[%s277 + $0x10] sm:$0xff]
        %v414 = vld [vmem:[%s277 + $0x18] sm:$0xff]
        %v415 = vld [vmem:[%s277 + $0x20] sm:$0xff]
        %v416 = vld [vmem:[%s277 + $0x28] sm:$0xff]
        %v417 = vld [vmem:[%s277 + $0x30] sm:$0xff]
        %v418 = vld [vmem:[%s277 + $0x38] sm:$0xff]
        %v419 = vld [vmem:[%s277 + $0x40] sm:$0xff]
        %v420 = vld [vmem:[%s277 + $0x48] sm:$0xff]
        %v421 = vld [vmem:[%s277 + $0x50] sm:$0xff]
        %v422 = vld [vmem:[%s277 + $0x58] sm:$0xff]
        %v423 = vld [vmem:[%s277 + $0x60] sm:$0xff]
        %v424 = vld [vmem:[%s277 + $0x68] sm:$0xff]
        %v425 = vld [vmem:[%s277 + $0x70] sm:$0xff]
        %v426 = vld [vmem:[%s277 + $0x78] sm:$0xff]
        %v427 = vld [vmem:[%s282] sm:$0x3]
        %v428 = vld [vmem:[#allocation2] sm:$0xff]
        %v429 = vld [vmem:[#allocation2 + $0x8] sm:$0xff]
        %v430 = vld [vmem:[#allocation2 + $0x10] sm:$0xff]
        %v431 = vld [vmem:[#allocation2 + $0x18] sm:$0xff]
        %v432 = vld [vmem:[#allocation2 + $0x20] sm:$0xff]
        %v433 = vld [vmem:[#allocation2 + $0x28] sm:$0xff]
        %v434 = vld [vmem:[#allocation2 + $0x30] sm:$0xff]
        %v435 = vld [vmem:[#allocation2 + $0x38] sm:$0xff]
        %v436 = vld [vmem:[#allocation2 + $0x40] sm:$0xff]
        %v437 = vld [vmem:[#allocation2 + $0x48] sm:$0xff]
        %v438 = vld [vmem:[#allocation2 + $0x50] sm:$0xff]
        %v439 = vld [vmem:[#allocation2 + $0x58] sm:$0xff]
        %v440 = vld [vmem:[#allocation2 + $0x60] sm:$0xff]
        %v441 = vld [vmem:[#allocation2 + $0x68] sm:$0xff]
        %v442 = vld [vmem:[#allocation2 + $0x70] sm:$0xff]
        %v443 = vld [vmem:[#allocation2 + $0x78] sm:$0xff]
        %445 = vset.pattern.permute.xlu0 0
        %446 = vperm.xlu0 %445, %v411
        %v447 = vpop.permute.xlu0 %446
        %450 = vset.pattern.permute.xlu0 0
        %451 = vperm.xlu0 %450, %v412
        %v452 = vpop.permute.xlu0 %451
        %455 = vset.pattern.permute.xlu0 0
        %456 = vperm.xlu0 %455, %v413
        %v457 = vpop.permute.xlu0 %456
        %460 = vset.pattern.permute.xlu0 0
        %461 = vperm.xlu0 %460, %v414
        %v462 = vpop.permute.xlu0 %461
        %465 = vset.pattern.permute.xlu0 0
        %466 = vperm.xlu0 %465, %v415
        %v467 = vpop.permute.xlu0 %466
        %470 = vset.pattern.permute.xlu0 0
        %471 = vperm.xlu0 %470, %v416
        %v472 = vpop.permute.xlu0 %471
        %475 = vset.pattern.permute.xlu0 0
        %476 = vperm.xlu0 %475, %v417
        %v477 = vpop.permute.xlu0 %476
        %480 = vset.pattern.permute.xlu0 0
        %481 = vperm.xlu0 %480, %v418
        %v482 = vpop.permute.xlu0 %481
        %485 = vset.pattern.permute.xlu0 0
        %486 = vperm.xlu0 %485, %v419
        %v487 = vpop.permute.xlu0 %486
        %490 = vset.pattern.permute.xlu0 0
        %491 = vperm.xlu0 %490, %v420
        %v492 = vpop.permute.xlu0 %491
        %495 = vset.pattern.permute.xlu0 0
        %496 = vperm.xlu0 %495, %v421
        %v497 = vpop.permute.xlu0 %496
        %500 = vset.pattern.permute.xlu0 0
        %501 = vperm.xlu0 %500, %v422
        %v502 = vpop.permute.xlu0 %501
        %505 = vset.pattern.permute.xlu0 0
        %506 = vperm.xlu0 %505, %v423
        %v507 = vpop.permute.xlu0 %506
        %510 = vset.pattern.permute.xlu0 0
        %511 = vperm.xlu0 %510, %v424
        %v512 = vpop.permute.xlu0 %511
        %515 = vset.pattern.permute.xlu0 0
        %516 = vperm.xlu0 %515, %v425
        %v517 = vpop.permute.xlu0 %516
        %520 = vset.pattern.permute.xlu0 0
        %521 = vperm.xlu0 %520, %v426
        %v522 = vpop.permute.xlu0 %521
        %v525 = vlaneseq
        %v526 = vshrl.u32 %v525, 7
        %v527 = vsub.s32 0, %v526
        %v528 = vrot.slane %v427, %v527
        %v529 = vlaneseq
        %v530 = vshrl.u32 %v529, 7
        %v531 = vsub.s32 1, %v530
        %v532 = vrot.slane %v427, %v531
        %v535 = vadd.f32 %v447, %v528
        %v536 = vadd.f32 %v447, %v532
        %v537 = vadd.f32 %v452, %v528
        %v538 = vadd.f32 %v452, %v532
        %v539 = vadd.f32 %v457, %v528
        %v540 = vadd.f32 %v457, %v532
        %v541 = vadd.f32 %v462, %v528
        %v542 = vadd.f32 %v462, %v532
        %v543 = vadd.f32 %v467, %v528
        %v544 = vadd.f32 %v467, %v532
        %v545 = vadd.f32 %v472, %v528
        %v546 = vadd.f32 %v472, %v532
        %v547 = vadd.f32 %v477, %v528
        %v548 = vadd.f32 %v477, %v532
        %v549 = vadd.f32 %v482, %v528
        %v550 = vadd.f32 %v482, %v532
        %v551 = vadd.f32 %v487, %v528
        %v552 = vadd.f32 %v487, %v532
        %v553 = vadd.f32 %v492, %v528
        %v554 = vadd.f32 %v492, %v532
        %v555 = vadd.f32 %v497, %v528
        %v556 = vadd.f32 %v497, %v532
        %v557 = vadd.f32 %v502, %v528
        %v558 = vadd.f32 %v502, %v532
        %v559 = vadd.f32 %v507, %v528
        %v560 = vadd.f32 %v507, %v532
        %v561 = vadd.f32 %v512, %v528
        %v562 = vadd.f32 %v512, %v532
        %v563 = vadd.f32 %v517, %v528
        %v564 = vadd.f32 %v517, %v532
        %v565 = vadd.f32 %v522, %v528
        %v566 = vadd.f32 %v522, %v532
        %v567 = vmul.f32 %v535, 0.2
        %v568 = vmul.f32 %v536, 0.2
        %v569 = vmul.f32 %v537, 0.2
        %v570 = vmul.f32 %v538, 0.2
        %v571 = vmul.f32 %v539, 0.2
        %v572 = vmul.f32 %v540, 0.2
        %v573 = vmul.f32 %v541, 0.2
        %v574 = vmul.f32 %v542, 0.2
        %v575 = vmul.f32 %v543, 0.2
        %v576 = vmul.f32 %v544, 0.2
        %v577 = vmul.f32 %v545, 0.2
        %v578 = vmul.f32 %v546, 0.2
        %v579 = vmul.f32 %v547, 0.2
        %v580 = vmul.f32 %v548, 0.2
        %v581 = vmul.f32 %v549, 0.2
        %v582 = vmul.f32 %v550, 0.2
        %v583 = vmul.f32 %v551, 0.2
        %v584 = vmul.f32 %v552, 0.2
        %v585 = vmul.f32 %v553, 0.2
        %v586 = vmul.f32 %v554, 0.2
        %v587 = vmul.f32 %v555, 0.2
        %v588 = vmul.f32 %v556, 0.2
        %v589 = vmul.f32 %v557, 0.2
        %v590 = vmul.f32 %v558, 0.2
        %v591 = vmul.f32 %v559, 0.2
        %v592 = vmul.f32 %v560, 0.2
        %v593 = vmul.f32 %v561, 0.2
        %v594 = vmul.f32 %v562, 0.2
        %v595 = vmul.f32 %v563, 0.2
        %v596 = vmul.f32 %v564, 0.2
        %v597 = vmul.f32 %v565, 0.2
        %v598 = vmul.f32 %v566, 0.2
        %v599 = vmax.f32 %v535, %v567
        %v600 = vmax.f32 %v536, %v568
        %v601 = vmax.f32 %v537, %v569
        %v602 = vmax.f32 %v538, %v570
        %v603 = vmax.f32 %v539, %v571
        %v604 = vmax.f32 %v540, %v572
        %v605 = vmax.f32 %v541, %v573
        %v606 = vmax.f32 %v542, %v574
        %v607 = vmax.f32 %v543, %v575
        %v608 = vmax.f32 %v544, %v576
        %v609 = vmax.f32 %v545, %v577
        %v610 = vmax.f32 %v546, %v578
        %v611 = vmax.f32 %v547, %v579
        %v612 = vmax.f32 %v548, %v580
        %v613 = vmax.f32 %v549, %v581
        %v614 = vmax.f32 %v550, %v582
        %v615 = vmax.f32 %v551, %v583
        %v616 = vmax.f32 %v552, %v584
        %v617 = vmax.f32 %v553, %v585
        %v618 = vmax.f32 %v554, %v586
        %v619 = vmax.f32 %v555, %v587
        %v620 = vmax.f32 %v556, %v588
        %v621 = vmax.f32 %v557, %v589
        %v622 = vmax.f32 %v558, %v590
        %v623 = vmax.f32 %v559, %v591
        %v624 = vmax.f32 %v560, %v592
        %v625 = vmax.f32 %v561, %v593
        %v626 = vmax.f32 %v562, %v594
        %v627 = vmax.f32 %v563, %v595
        %v628 = vmax.f32 %v564, %v596
        %v629 = vmax.f32 %v565, %v597
        %v630 = vmax.f32 %v566, %v598
        %v631 = vsel %vm371, 16843009, 0
        %v632 = vsel %vm372, 16843009, 0
        %v633 = vsel %vm373, 16843009, 0
        %v634 = vsel %vm374, 16843009, 0
        %v635 = vsel %vm375, 16843009, 0
        %v636 = vsel %vm376, 16843009, 0
        %v637 = vsel %vm377, 16843009, 0
        %v638 = vsel %vm378, 16843009, 0
        %v639 = vunpack.c.0.s8 %v631
        %v640 = vunpack.c.0.s8 %v632
        %v641 = vunpack.c.1.s8 %v631
        %v642 = vunpack.c.1.s8 %v632
        %v643 = vunpack.c.2.s8 %v631
        %v644 = vunpack.c.2.s8 %v632
        %v645 = vunpack.c.3.s8 %v631
        %v646 = vunpack.c.3.s8 %v632
        %v647 = vunpack.c.0.s8 %v633
        %v648 = vunpack.c.0.s8 %v634
        %v649 = vunpack.c.1.s8 %v633
        %v650 = vunpack.c.1.s8 %v634
        %v651 = vunpack.c.2.s8 %v633
        %v652 = vunpack.c.2.s8 %v634
        %v653 = vunpack.c.3.s8 %v633
        %v654 = vunpack.c.3.s8 %v634
        %v655 = vunpack.c.0.s8 %v635
        %v656 = vunpack.c.0.s8 %v636
        %v657 = vunpack.c.1.s8 %v635
        %v658 = vunpack.c.1.s8 %v636
        %v659 = vunpack.c.2.s8 %v635
        %v660 = vunpack.c.2.s8 %v636
        %v661 = vunpack.c.3.s8 %v635
        %v662 = vunpack.c.3.s8 %v636
        %v663 = vunpack.c.0.s8 %v637
        %v664 = vunpack.c.0.s8 %v638
        %v665 = vunpack.c.1.s8 %v637
        %v666 = vunpack.c.1.s8 %v638
        %v667 = vunpack.c.2.s8 %v637
        %v668 = vunpack.c.2.s8 %v638
        %v669 = vunpack.c.3.s8 %v637
        %v670 = vunpack.c.3.s8 %v638
        %v671 = vpack.c.b16 %v640, %v639
        %v672 = vpack.c.b8 %v671, %v671
        %v673 = vpack.c.b16 %v642, %v641
        %v674 = vpack.c.b8 %v673, %v673
        %v675 = vpack.c.b16 %v644, %v643
        %v676 = vpack.c.b8 %v675, %v675
        %v677 = vpack.c.b16 %v646, %v645
        %v678 = vpack.c.b8 %v677, %v677
        %v679 = vpack.c.b16 %v648, %v647
        %v680 = vpack.c.b8 %v679, %v679
        %v681 = vpack.c.b16 %v650, %v649
        %v682 = vpack.c.b8 %v681, %v681
        %v683 = vpack.c.b16 %v652, %v651
        %v684 = vpack.c.b8 %v683, %v683
        %v685 = vpack.c.b16 %v654, %v653
        %v686 = vpack.c.b8 %v685, %v685
        %v687 = vpack.c.b16 %v656, %v655
        %v688 = vpack.c.b8 %v687, %v687
        %v689 = vpack.c.b16 %v658, %v657
        %v690 = vpack.c.b8 %v689, %v689
        %v691 = vpack.c.b16 %v660, %v659
        %v692 = vpack.c.b8 %v691, %v691
        %v693 = vpack.c.b16 %v662, %v661
        %v694 = vpack.c.b8 %v693, %v693
        %v695 = vpack.c.b16 %v664, %v663
        %v696 = vpack.c.b8 %v695, %v695
        %v697 = vpack.c.b16 %v666, %v665
        %v698 = vpack.c.b8 %v697, %v697
        %v699 = vpack.c.b16 %v668, %v667
        %v700 = vpack.c.b8 %v699, %v699
        %v701 = vpack.c.b16 %v670, %v669
        %v702 = vpack.c.b8 %v701, %v701
        %vm703 = vnez %v672
        %vm704 = vnez %v674
        %vm705 = vnez %v676
        %vm706 = vnez %v678
        %vm707 = vnez %v680
        %vm708 = vnez %v682
        %vm709 = vnez %v684
        %vm710 = vnez %v686
        %vm711 = vnez %v688
        %vm712 = vnez %v690
        %vm713 = vnez %v692
        %vm714 = vnez %v694
        %vm715 = vnez %v696
        %vm716 = vnez %v698
        %vm717 = vnez %v700
        %vm718 = vnez %v702
        %v719 = vsel %vm703, 16843009, 0
        %v720 = vsel %vm704, 16843009, 0
        %v721 = vsel %vm705, 16843009, 0
        %v722 = vsel %vm706, 16843009, 0
        %v723 = vsel %vm707, 16843009, 0
        %v724 = vsel %vm708, 16843009, 0
        %v725 = vsel %vm709, 16843009, 0
        %v726 = vsel %vm710, 16843009, 0
        %v727 = vsel %vm711, 16843009, 0
        %v728 = vsel %vm712, 16843009, 0
        %v729 = vsel %vm713, 16843009, 0
        %v730 = vsel %vm714, 16843009, 0
        %v731 = vsel %vm715, 16843009, 0
        %v732 = vsel %vm716, 16843009, 0
        %v733 = vsel %vm717, 16843009, 0
        %v734 = vsel %vm718, 16843009, 0
        %v735 = vunpack.c.0.s8 %v719
        %v736 = vunpack.c.1.s8 %v719
        %v737 = vunpack.c.0.s8 %v720
        %v738 = vunpack.c.1.s8 %v720
        %v739 = vunpack.c.0.s8 %v721
        %v740 = vunpack.c.1.s8 %v721
        %v741 = vunpack.c.0.s8 %v722
        %v742 = vunpack.c.1.s8 %v722
        %v743 = vunpack.c.0.s8 %v723
        %v744 = vunpack.c.1.s8 %v723
        %v745 = vunpack.c.0.s8 %v724
        %v746 = vunpack.c.1.s8 %v724
        %v747 = vunpack.c.0.s8 %v725
        %v748 = vunpack.c.1.s8 %v725
        %v749 = vunpack.c.0.s8 %v726
        %v750 = vunpack.c.1.s8 %v726
        %v751 = vunpack.c.0.s8 %v727
        %v752 = vunpack.c.1.s8 %v727
        %v753 = vunpack.c.0.s8 %v728
        %v754 = vunpack.c.1.s8 %v728
        %v755 = vunpack.c.0.s8 %v729
        %v756 = vunpack.c.1.s8 %v729
        %v757 = vunpack.c.0.s8 %v730
        %v758 = vunpack.c.1.s8 %v730
        %v759 = vunpack.c.0.s8 %v731
        %v760 = vunpack.c.1.s8 %v731
        %v761 = vunpack.c.0.s8 %v732
        %v762 = vunpack.c.1.s8 %v732
        %v763 = vunpack.c.0.s8 %v733
        %v764 = vunpack.c.1.s8 %v733
        %v765 = vunpack.c.0.s8 %v734
        %v766 = vunpack.c.1.s8 %v734
        %vm767 = vcmp.ne.s32.totalorder %v735, 0
        %vm768 = vcmp.ne.s32.totalorder %v736, 0
        %vm769 = vcmp.ne.s32.totalorder %v737, 0
        %vm770 = vcmp.ne.s32.totalorder %v738, 0
        %vm771 = vcmp.ne.s32.totalorder %v739, 0
        %vm772 = vcmp.ne.s32.totalorder %v740, 0
        %vm773 = vcmp.ne.s32.totalorder %v741, 0
        %vm774 = vcmp.ne.s32.totalorder %v742, 0
        %vm775 = vcmp.ne.s32.totalorder %v743, 0
        %vm776 = vcmp.ne.s32.totalorder %v744, 0
        %vm777 = vcmp.ne.s32.totalorder %v745, 0
        %vm778 = vcmp.ne.s32.totalorder %v746, 0
        %vm779 = vcmp.ne.s32.totalorder %v747, 0
        %vm780 = vcmp.ne.s32.totalorder %v748, 0
        %vm781 = vcmp.ne.s32.totalorder %v749, 0
        %vm782 = vcmp.ne.s32.totalorder %v750, 0
        %vm783 = vcmp.ne.s32.totalorder %v751, 0
        %vm784 = vcmp.ne.s32.totalorder %v752, 0
        %vm785 = vcmp.ne.s32.totalorder %v753, 0
        %vm786 = vcmp.ne.s32.totalorder %v754, 0
        %vm787 = vcmp.ne.s32.totalorder %v755, 0
        %vm788 = vcmp.ne.s32.totalorder %v756, 0
        %vm789 = vcmp.ne.s32.totalorder %v757, 0
        %vm790 = vcmp.ne.s32.totalorder %v758, 0
        %vm791 = vcmp.ne.s32.totalorder %v759, 0
        %vm792 = vcmp.ne.s32.totalorder %v760, 0
        %vm793 = vcmp.ne.s32.totalorder %v761, 0
        %vm794 = vcmp.ne.s32.totalorder %v762, 0
        %vm795 = vcmp.ne.s32.totalorder %v763, 0
        %vm796 = vcmp.ne.s32.totalorder %v764, 0
        %vm797 = vcmp.ne.s32.totalorder %v765, 0
        %vm798 = vcmp.ne.s32.totalorder %v766, 0
        %v799 = vsel %vm767, %v599, -1e+30
        %v800 = vsel %vm768, %v600, -1e+30
        %v801 = vsel %vm769, %v601, -1e+30
        %v802 = vsel %vm770, %v602, -1e+30
        %v803 = vsel %vm771, %v603, -1e+30
        %v804 = vsel %vm772, %v604, -1e+30
        %v805 = vsel %vm773, %v605, -1e+30
        %v806 = vsel %vm774, %v606, -1e+30
        %v807 = vsel %vm775, %v607, -1e+30
        %v808 = vsel %vm776, %v608, -1e+30
        %v809 = vsel %vm777, %v609, -1e+30
        %v810 = vsel %vm778, %v610, -1e+30
        %v811 = vsel %vm779, %v611, -1e+30
        %v812 = vsel %vm780, %v612, -1e+30
        %v813 = vsel %vm781, %v613, -1e+30
        %v814 = vsel %vm782, %v614, -1e+30
        %v815 = vsel %vm783, %v615, -1e+30
        %v816 = vsel %vm784, %v616, -1e+30
        %v817 = vsel %vm785, %v617, -1e+30
        %v818 = vsel %vm786, %v618, -1e+30
        %v819 = vsel %vm787, %v619, -1e+30
        %v820 = vsel %vm788, %v620, -1e+30
        %v821 = vsel %vm789, %v621, -1e+30
        %v822 = vsel %vm790, %v622, -1e+30
        %v823 = vsel %vm791, %v623, -1e+30
        %v824 = vsel %vm792, %v624, -1e+30
        %v825 = vsel %vm793, %v625, -1e+30
        %v826 = vsel %vm794, %v626, -1e+30
        %v827 = vsel %vm795, %v627, -1e+30
        %v828 = vsel %vm796, %v628, -1e+30
        %v829 = vsel %vm797, %v629, -1e+30
        %v830 = vsel %vm798, %v630, -1e+30
        %v831 = vmax.f32 %v799, %v800
        %832 = vmax.xlane.f32.xlu0 %v831
        %v833 = vpop.xlane.xlu0 %832
        %v834 = vmax.f32 %v801, %v802
        %835 = vmax.xlane.f32.xlu0 %v834
        %v836 = vpop.xlane.xlu0 %835
        %v837 = vmax.f32 %v803, %v804
        %838 = vmax.xlane.f32.xlu0 %v837
        %v839 = vpop.xlane.xlu0 %838
        %v840 = vmax.f32 %v805, %v806
        %841 = vmax.xlane.f32.xlu0 %v840
        %v842 = vpop.xlane.xlu0 %841
        %v843 = vmax.f32 %v807, %v808
        %844 = vmax.xlane.f32.xlu0 %v843
        %v845 = vpop.xlane.xlu0 %844
        %v846 = vmax.f32 %v809, %v810
        %847 = vmax.xlane.f32.xlu0 %v846
        %v848 = vpop.xlane.xlu0 %847
        %v849 = vmax.f32 %v811, %v812
        %850 = vmax.xlane.f32.xlu0 %v849
        %v851 = vpop.xlane.xlu0 %850
        %v852 = vmax.f32 %v813, %v814
        %853 = vmax.xlane.f32.xlu0 %v852
        %v854 = vpop.xlane.xlu0 %853
        %v855 = vmax.f32 %v815, %v816
        %856 = vmax.xlane.f32.xlu0 %v855
        %v857 = vpop.xlane.xlu0 %856
        %v858 = vmax.f32 %v817, %v818
        %859 = vmax.xlane.f32.xlu0 %v858
        %v860 = vpop.xlane.xlu0 %859
        %v861 = vmax.f32 %v819, %v820
        %862 = vmax.xlane.f32.xlu0 %v861
        %v863 = vpop.xlane.xlu0 %862
        %v864 = vmax.f32 %v821, %v822
        %865 = vmax.xlane.f32.xlu0 %v864
        %v866 = vpop.xlane.xlu0 %865
        %v867 = vmax.f32 %v823, %v824
        %868 = vmax.xlane.f32.xlu0 %v867
        %v869 = vpop.xlane.xlu0 %868
        %v870 = vmax.f32 %v825, %v826
        %871 = vmax.xlane.f32.xlu0 %v870
        %v872 = vpop.xlane.xlu0 %871
        %v873 = vmax.f32 %v827, %v828
        %874 = vmax.xlane.f32.xlu0 %v873
        %v875 = vpop.xlane.xlu0 %874
        %v876 = vmax.f32 %v829, %v830
        %877 = vmax.xlane.f32.xlu0 %v876
        %v878 = vpop.xlane.xlu0 %877
        %v879 = vmax.f32 %v428, %v833
        %v880 = vmax.f32 %v429, %v836
        %v881 = vmax.f32 %v430, %v839
        %v882 = vmax.f32 %v431, %v842
        %v883 = vmax.f32 %v432, %v845
        %v884 = vmax.f32 %v433, %v848
        %v885 = vmax.f32 %v434, %v851
        %v886 = vmax.f32 %v435, %v854
        %v887 = vmax.f32 %v436, %v857
        %v888 = vmax.f32 %v437, %v860
        %v889 = vmax.f32 %v438, %v863
        %v890 = vmax.f32 %v439, %v866
        %v891 = vmax.f32 %v440, %v869
        %v892 = vmax.f32 %v441, %v872
        %v893 = vmax.f32 %v442, %v875
        %v894 = vmax.f32 %v443, %v878
        %896 = vset.pattern.permute.xlu0 0
        %897 = vperm.xlu0 %896, %v879
        %v898 = vpop.permute.xlu0 %897
        %901 = vset.pattern.permute.xlu0 0
        %902 = vperm.xlu0 %901, %v880
        %v903 = vpop.permute.xlu0 %902
        %906 = vset.pattern.permute.xlu0 0
        %907 = vperm.xlu0 %906, %v881
        %v908 = vpop.permute.xlu0 %907
        %911 = vset.pattern.permute.xlu0 0
        %912 = vperm.xlu0 %911, %v882
        %v913 = vpop.permute.xlu0 %912
        %916 = vset.pattern.permute.xlu0 0
        %917 = vperm.xlu0 %916, %v883
        %v918 = vpop.permute.xlu0 %917
        %921 = vset.pattern.permute.xlu0 0
        %922 = vperm.xlu0 %921, %v884
        %v923 = vpop.permute.xlu0 %922
        %926 = vset.pattern.permute.xlu0 0
        %927 = vperm.xlu0 %926, %v885
        %v928 = vpop.permute.xlu0 %927
        %931 = vset.pattern.permute.xlu0 0
        %932 = vperm.xlu0 %931, %v886
        %v933 = vpop.permute.xlu0 %932
        %936 = vset.pattern.permute.xlu0 0
        %937 = vperm.xlu0 %936, %v887
        %v938 = vpop.permute.xlu0 %937
        %941 = vset.pattern.permute.xlu0 0
        %942 = vperm.xlu0 %941, %v888
        %v943 = vpop.permute.xlu0 %942
        %946 = vset.pattern.permute.xlu0 0
        %947 = vperm.xlu0 %946, %v889
        %v948 = vpop.permute.xlu0 %947
        %951 = vset.pattern.permute.xlu0 0
        %952 = vperm.xlu0 %951, %v890
        %v953 = vpop.permute.xlu0 %952
        %956 = vset.pattern.permute.xlu0 0
        %957 = vperm.xlu0 %956, %v891
        %v958 = vpop.permute.xlu0 %957
        %961 = vset.pattern.permute.xlu0 0
        %962 = vperm.xlu0 %961, %v892
        %v963 = vpop.permute.xlu0 %962
        %966 = vset.pattern.permute.xlu0 0
        %967 = vperm.xlu0 %966, %v893
        %v968 = vpop.permute.xlu0 %967
        %971 = vset.pattern.permute.xlu0 0
        %972 = vperm.xlu0 %971, %v894
        %v973 = vpop.permute.xlu0 %972
        %v975 = vsub.f32 %v799, %v898
        %v976 = vsub.f32 %v800, %v898
        %v977 = vsub.f32 %v801, %v903
        %v978 = vsub.f32 %v802, %v903
        %v979 = vsub.f32 %v803, %v908
        %v980 = vsub.f32 %v804, %v908
        %v981 = vsub.f32 %v805, %v913
        %v982 = vsub.f32 %v806, %v913
        %v983 = vsub.f32 %v807, %v918
        %v984 = vsub.f32 %v808, %v918
        %v985 = vsub.f32 %v809, %v923
        %v986 = vsub.f32 %v810, %v923
        %v987 = vsub.f32 %v811, %v928
        %v988 = vsub.f32 %v812, %v928
        %v989 = vsub.f32 %v813, %v933
        %v990 = vsub.f32 %v814, %v933
        %v991 = vsub.f32 %v815, %v938
        %v992 = vsub.f32 %v816, %v938
        %v993 = vsub.f32 %v817, %v943
        %v994 = vsub.f32 %v818, %v943
        %v995 = vsub.f32 %v819, %v948
        %v996 = vsub.f32 %v820, %v948
        %v997 = vsub.f32 %v821, %v953
        %v998 = vsub.f32 %v822, %v953
        %v999 = vsub.f32 %v823, %v958
        %v1000 = vsub.f32 %v824, %v958
        %v1001 = vsub.f32 %v825, %v963
        %v1002 = vsub.f32 %v826, %v963
        %v1003 = vsub.f32 %v827, %v968
        %v1004 = vsub.f32 %v828, %v968
        %v1005 = vsub.f32 %v829, %v973
        %v1006 = vsub.f32 %v830, %v973
        %v1007 = vmul.f32 %v975, 1.442695
        %v1008 = vpow.pop %v1007
        %v1009 = vmul.f32 %v976, 1.442695
        %v1010 = vpow.pop %v1009
        %v1011 = vmul.f32 %v977, 1.442695
        %v1012 = vpow.pop %v1011
        %v1013 = vmul.f32 %v978, 1.442695
        %v1014 = vpow.pop %v1013
        %v1015 = vmul.f32 %v979, 1.442695
        %v1016 = vpow.pop %v1015
        %v1017 = vmul.f32 %v980, 1.442695
        %v1018 = vpow.pop %v1017
        %v1019 = vmul.f32 %v981, 1.442695
        %v1020 = vpow.pop %v1019
        %v1021 = vmul.f32 %v982, 1.442695
        %v1022 = vpow.pop %v1021
        %v1023 = vmul.f32 %v983, 1.442695
        %v1024 = vpow.pop %v1023
        %v1025 = vmul.f32 %v984, 1.442695
        %v1026 = vpow.pop %v1025
        %v1027 = vmul.f32 %v985, 1.442695
        %v1028 = vpow.pop %v1027
        %v1029 = vmul.f32 %v986, 1.442695
        %v1030 = vpow.pop %v1029
        %v1031 = vmul.f32 %v987, 1.442695
        %v1032 = vpow.pop %v1031
        %v1033 = vmul.f32 %v988, 1.442695
        %v1034 = vpow.pop %v1033
        %v1035 = vmul.f32 %v989, 1.442695
        %v1036 = vpow.pop %v1035
        %v1037 = vmul.f32 %v990, 1.442695
        %v1038 = vpow.pop %v1037
        %v1039 = vmul.f32 %v991, 1.442695
        %v1040 = vpow.pop %v1039
        %v1041 = vmul.f32 %v992, 1.442695
        %v1042 = vpow.pop %v1041
        %v1043 = vmul.f32 %v993, 1.442695
        %v1044 = vpow.pop %v1043
        %v1045 = vmul.f32 %v994, 1.442695
        %v1046 = vpow.pop %v1045
        %v1047 = vmul.f32 %v995, 1.442695
        %v1048 = vpow.pop %v1047
        %v1049 = vmul.f32 %v996, 1.442695
        %v1050 = vpow.pop %v1049
        %v1051 = vmul.f32 %v997, 1.442695
        %v1052 = vpow.pop %v1051
        %v1053 = vmul.f32 %v998, 1.442695
        %v1054 = vpow.pop %v1053
        %v1055 = vmul.f32 %v999, 1.442695
        %v1056 = vpow.pop %v1055
        %v1057 = vmul.f32 %v1000, 1.442695
        %v1058 = vpow.pop %v1057
        %v1059 = vmul.f32 %v1001, 1.442695
        %v1060 = vpow.pop %v1059
        %v1061 = vmul.f32 %v1002, 1.442695
        %v1062 = vpow.pop %v1061
        %v1063 = vmul.f32 %v1003, 1.442695
        %v1064 = vpow.pop %v1063
        %v1065 = vmul.f32 %v1004, 1.442695
        %v1066 = vpow.pop %v1065
        %v1067 = vmul.f32 %v1005, 1.442695
        %v1068 = vpow.pop %v1067
        %v1069 = vmul.f32 %v1006, 1.442695
        %v1070 = vpow.pop %v1069
        %v1071 = vsel %vm767, %v1008, 0.0
        %v1072 = vsel %vm768, %v1010, 0.0
        %v1073 = vsel %vm769, %v1012, 0.0
        %v1074 = vsel %vm770, %v1014, 0.0
        %v1075 = vsel %vm771, %v1016, 0.0
        %v1076 = vsel %vm772, %v1018, 0.0
        %v1077 = vsel %vm773, %v1020, 0.0
        %v1078 = vsel %vm774, %v1022, 0.0
        %v1079 = vsel %vm775, %v1024, 0.0
        %v1080 = vsel %vm776, %v1026, 0.0
        %v1081 = vsel %vm777, %v1028, 0.0
        %v1082 = vsel %vm778, %v1030, 0.0
        %v1083 = vsel %vm779, %v1032, 0.0
        %v1084 = vsel %vm780, %v1034, 0.0
        %v1085 = vsel %vm781, %v1036, 0.0
        %v1086 = vsel %vm782, %v1038, 0.0
        %v1087 = vsel %vm783, %v1040, 0.0
        %v1088 = vsel %vm784, %v1042, 0.0
        %v1089 = vsel %vm785, %v1044, 0.0
        %v1090 = vsel %vm786, %v1046, 0.0
        %v1091 = vsel %vm787, %v1048, 0.0
        %v1092 = vsel %vm788, %v1050, 0.0
        %v1093 = vsel %vm789, %v1052, 0.0
        %v1094 = vsel %vm790, %v1054, 0.0
        %v1095 = vsel %vm791, %v1056, 0.0
        %v1096 = vsel %vm792, %v1058, 0.0
        %v1097 = vsel %vm793, %v1060, 0.0
        %v1098 = vsel %vm794, %v1062, 0.0
        %v1099 = vsel %vm795, %v1064, 0.0
        %v1100 = vsel %vm796, %v1066, 0.0
        %v1101 = vsel %vm797, %v1068, 0.0
        %v1102 = vsel %vm798, %v1070, 0.0
        %v1103 = vadd.f32 %v1071, %v1072
        %1104 = vadd.xlane.f32.xlu0 %v1103
        %v1105 = vpop.xlane.xlu0 %1104
        %v1106 = vadd.f32 %v1073, %v1074
        %1107 = vadd.xlane.f32.xlu0 %v1106
        %v1108 = vpop.xlane.xlu0 %1107
        %v1109 = vadd.f32 %v1075, %v1076
        %1110 = vadd.xlane.f32.xlu0 %v1109
        %v1111 = vpop.xlane.xlu0 %1110
        %v1112 = vadd.f32 %v1077, %v1078
        %1113 = vadd.xlane.f32.xlu0 %v1112
        %v1114 = vpop.xlane.xlu0 %1113
        %v1115 = vadd.f32 %v1079, %v1080
        %1116 = vadd.xlane.f32.xlu0 %v1115
        %v1117 = vpop.xlane.xlu0 %1116
        %v1118 = vadd.f32 %v1081, %v1082
        %1119 = vadd.xlane.f32.xlu0 %v1118
        %v1120 = vpop.xlane.xlu0 %1119
        %v1121 = vadd.f32 %v1083, %v1084
        %1122 = vadd.xlane.f32.xlu0 %v1121
        %v1123 = vpop.xlane.xlu0 %1122
        %v1124 = vadd.f32 %v1085, %v1086
        %1125 = vadd.xlane.f32.xlu0 %v1124
        %v1126 = vpop.xlane.xlu0 %1125
        %v1127 = vadd.f32 %v1087, %v1088
        %1128 = vadd.xlane.f32.xlu0 %v1127
        %v1129 = vpop.xlane.xlu0 %1128
        %v1130 = vadd.f32 %v1089, %v1090
        %1131 = vadd.xlane.f32.xlu0 %v1130
        %v1132 = vpop.xlane.xlu0 %1131
        %v1133 = vadd.f32 %v1091, %v1092
        %1134 = vadd.xlane.f32.xlu0 %v1133
        %v1135 = vpop.xlane.xlu0 %1134
        %v1136 = vadd.f32 %v1093, %v1094
        %1137 = vadd.xlane.f32.xlu0 %v1136
        %v1138 = vpop.xlane.xlu0 %1137
        %v1139 = vadd.f32 %v1095, %v1096
        %1140 = vadd.xlane.f32.xlu0 %v1139
        %v1141 = vpop.xlane.xlu0 %1140
        %v1142 = vadd.f32 %v1097, %v1098
        %1143 = vadd.xlane.f32.xlu0 %v1142
        %v1144 = vpop.xlane.xlu0 %1143
        %v1145 = vadd.f32 %v1099, %v1100
        %1146 = vadd.xlane.f32.xlu0 %v1145
        %v1147 = vpop.xlane.xlu0 %1146
        %v1148 = vadd.f32 %v1101, %v1102
        %1149 = vadd.xlane.f32.xlu0 %v1148
        %v1150 = vpop.xlane.xlu0 %1149
        %1151 = vmatprep.subr.mxu0 0.0
        %1152 = vmatpush1.msra.mxu0 %v379
        %1153 = vmatprep.subr.mxu0 0.0
        %1154 = vmatpush1.msra.mxu0 %v380
        %1155 = vmatprep.subr.mxu0 0.0
        %1156 = vmatpush1.msra.mxu0 %v381
        %1157 = vmatprep.subr.mxu0 0.0
        %1158 = vmatpush1.msra.mxu0 %v382
        %1159 = vmatprep.subr.mxu0 0.0
        %1160 = vmatpush1.msra.mxu0 %v383
        %1161 = vmatprep.subr.mxu0 0.0
        %1162 = vmatpush1.msra.mxu0 %v384
        %1163 = vmatprep.subr.mxu0 0.0
        %1164 = vmatpush1.msra.mxu0 %v385
        %1165 = vmatprep.subr.mxu0 0.0
        %1166 = vmatpush1.msra.mxu0 %v386
        %1167 = vmatprep.subr.mxu0 0.0
        %1168 = vmatpush1.msra.mxu0 %v387
        %1169 = vmatprep.subr.mxu0 0.0
        %1170 = vmatpush1.msra.mxu0 %v388
        %1171 = vmatprep.subr.mxu0 0.0
        %1172 = vmatpush1.msra.mxu0 %v389
        %1173 = vmatprep.subr.mxu0 0.0
        %1174 = vmatpush1.msra.mxu0 %v390
        %1175 = vmatprep.subr.mxu0 0.0
        %1176 = vmatpush1.msra.mxu0 %v391
        %1177 = vmatprep.subr.mxu0 0.0
        %1178 = vmatpush1.msra.mxu0 %v392
        %1179 = vmatprep.subr.mxu0 0.0
        %1180 = vmatpush1.msra.mxu0 %v393
        %1181 = vmatprep.subr.mxu0 0.0
        %1182 = vmatpush1.msra.mxu0 %v394
        %1183 = vmatprep.subr.mxu0 0.0
        %1184 = vmatpush1.msra.mxu0 %v395
        %1185 = vmatprep.subr.mxu0 0.0
        %1186 = vmatpush1.msra.mxu0 %v396
        %1187 = vmatprep.subr.mxu0 0.0
        %1188 = vmatpush1.msra.mxu0 %v397
        %1189 = vmatprep.subr.mxu0 0.0
        %1190 = vmatpush1.msra.mxu0 %v398
        %1191 = vmatprep.subr.mxu0 0.0
        %1192 = vmatpush1.msra.mxu0 %v399
        %1193 = vmatprep.subr.mxu0 0.0
        %1194 = vmatpush1.msra.mxu0 %v400
        %1195 = vmatprep.subr.mxu0 0.0
        %1196 = vmatpush1.msra.mxu0 %v401
        %1197 = vmatprep.subr.mxu0 0.0
        %1198 = vmatpush1.msra.mxu0 %v402
        %1199 = vmatprep.subr.mxu0 0.0
        %1200 = vmatpush1.msra.mxu0 %v403
        %1201 = vmatprep.subr.mxu0 0.0
        %1202 = vmatpush1.msra.mxu0 %v404
        %1203 = vmatprep.subr.mxu0 0.0
        %1204 = vmatpush1.msra.mxu0 %v405
        %1205 = vmatprep.subr.mxu0 0.0
        %1206 = vmatpush1.msra.mxu0 %v406
        %1207 = vmatprep.subr.mxu0 0.0
        %1208 = vmatpush1.msra.mxu0 %v407
        %1209 = vmatprep.subr.mxu0 0.0
        %1210 = vmatpush1.msra.mxu0 %v408
        %1211 = vmatprep.subr.mxu0 0.0
        %1212 = vmatpush1.msra.mxu0 %v409
        %1213 = vmatprep.subr.mxu0 0.0
        %1214 = vmatpush1.msra.mxu0 %v410
        %1215 = vmatprep.mubr.f32.mxu0 %v1072
        %1216 = vmatmul.mubr.f32.gmra.mrb[0].mxu0 %v1071
        %v1217 = vpop.f32.mrb[0].mxu0
        %v1218 = vadd.f32 0.0, %v1217
        %v1219 = vpop.f32.mrb[0].mxu0
        %1220 = vmatprep.mubr.f32.mxu0 %v1074
        %1221 = vmatmul.mubr.f32.gmra.mrb[0].mxu0 %v1073
        %v1222 = vpop.f32.mrb[0].mxu0
        %v1223 = vadd.f32 0.0, %v1222
        %v1224 = vpop.f32.mrb[0].mxu0
        %1225 = vmatprep.mubr.f32.mxu0 %v1076
        %1226 = vmatmul.mubr.f32.gmra.mrb[0].mxu0 %v1075
        %v1227 = vpop.f32.mrb[0].mxu0
        %v1228 = vadd.f32 0.0, %v1227
        %v1229 = vpop.f32.mrb[0].mxu0
        %1230 = vmatprep.mubr.f32.mxu0 %v1078
        %1231 = vmatmul.mubr.f32.gmra.mrb[0].mxu0 %v1077
        %v1232 = vpop.f32.mrb[0].mxu0
        %v1233 = vadd.f32 0.0, %v1232
        %v1234 = vpop.f32.mrb[0].mxu0
        %1235 = vmatprep.mubr.f32.mxu0 %v1080
        %1236 = vmatmul.mubr.f32.gmra.mrb[0].mxu0 %v1079
        %v1237 = vpop.f32.mrb[0].mxu0
        %v1238 = vadd.f32 0.0, %v1237
        %v1239 = vpop.f32.mrb[0].mxu0
        %1240 = vmatprep.mubr.f32.mxu0 %v1082
        %1241 = vmatmul.mubr.f32.gmra.mrb[0].mxu0 %v1081
        %v1242 = vpop.f32.mrb[0].mxu0
        %v1243 = vadd.f32 0.0, %v1242
        %v1244 = vpop.f32.mrb[0].mxu0
        %1245 = vmatprep.mubr.f32.mxu0 %v1084
        %1246 = vmatmul.mubr.f32.gmra.mrb[0].mxu0 %v1083
        %v1247 = vpop.f32.mrb[0].mxu0
        %v1248 = vadd.f32 0.0, %v1247
        %v1249 = vpop.f32.mrb[0].mxu0
        %1250 = vmatprep.mubr.f32.mxu0 %v1086
        %1251 = vmatmul.mubr.f32.gmra.mrb[0].mxu0 %v1085
        %v1252 = vpop.f32.mrb[0].mxu0
        %v1253 = vadd.f32 0.0, %v1252
        %v1254 = vpop.f32.mrb[0].mxu0
        %1255 = vmatprep.mubr.f32.mxu0 %v1088
        %1256 = vmatmul.mubr.f32.gmra.mrb[0].mxu0 %v1087
        %v1257 = vpop.f32.mrb[0].mxu0
        %v1258 = vadd.f32 0.0, %v1257
        %v1259 = vpop.f32.mrb[0].mxu0
        %1260 = vmatprep.mubr.f32.mxu0 %v1090
        %1261 = vmatmul.mubr.f32.gmra.mrb[0].mxu0 %v1089
        %v1262 = vpop.f32.mrb[0].mxu0
        %v1263 = vadd.f32 0.0, %v1262
        %v1264 = vpop.f32.mrb[0].mxu0
        %1265 = vmatprep.mubr.f32.mxu0 %v1092
        %1266 = vmatmul.mubr.f32.gmra.mrb[0].mxu0 %v1091
        %v1267 = vpop.f32.mrb[0].mxu0
        %v1268 = vadd.f32 0.0, %v1267
        %v1269 = vpop.f32.mrb[0].mxu0
        %1270 = vmatprep.mubr.f32.mxu0 %v1094
        %1271 = vmatmul.mubr.f32.gmra.mrb[0].mxu0 %v1093
        %v1272 = vpop.f32.mrb[0].mxu0
        %v1273 = vadd.f32 0.0, %v1272
        %v1274 = vpop.f32.mrb[0].mxu0
        %1275 = vmatprep.mubr.f32.mxu0 %v1096
        %1276 = vmatmul.mubr.f32.gmra.mrb[0].mxu0 %v1095
        %v1277 = vpop.f32.mrb[0].mxu0
        %v1278 = vadd.f32 0.0, %v1277
        %v1279 = vpop.f32.mrb[0].mxu0
        %1280 = vmatprep.mubr.f32.mxu0 %v1098
        %1281 = vmatmul.mubr.f32.gmra.mrb[0].mxu0 %v1097
        %v1282 = vpop.f32.mrb[0].mxu0
        %v1283 = vadd.f32 0.0, %v1282
        %v1284 = vpop.f32.mrb[0].mxu0
        %1285 = vmatprep.mubr.f32.mxu0 %v1100
        %1286 = vmatmul.mubr.f32.gmra.mrb[0].mxu0 %v1099
        %v1287 = vpop.f32.mrb[0].mxu0
        %v1288 = vadd.f32 0.0, %v1287
        %v1289 = vpop.f32.mrb[0].mxu0
        %1290 = vmatprep.mubr.f32.mxu0 %v1102
        %1291 = vmatmul.mubr.f32.gmra.mrb[0].mxu0 %v1101
        %v1292 = vpop.f32.mrb[0].mxu0
        %v1293 = vadd.f32 0.0, %v1292
        %v1294 = vpop.f32.mrb[0].mxu0
        %1295 = vdwg.mxu0
        %v1296 = vsub.f32 %v428, %v898
        %v1297 = vsub.f32 %v429, %v903
        %v1298 = vsub.f32 %v430, %v908
        %v1299 = vsub.f32 %v431, %v913
        %v1300 = vsub.f32 %v432, %v918
        %v1301 = vsub.f32 %v433, %v923
        %v1302 = vsub.f32 %v434, %v928
        %v1303 = vsub.f32 %v435, %v933
        %v1304 = vsub.f32 %v436, %v938
        %v1305 = vsub.f32 %v437, %v943
        %v1306 = vsub.f32 %v438, %v948
        %v1307 = vsub.f32 %v439, %v953
        %v1308 = vsub.f32 %v440, %v958
        %v1309 = vsub.f32 %v441, %v963
        %v1310 = vsub.f32 %v442, %v968
        %v1311 = vsub.f32 %v443, %v973
        %v1312 = vmul.f32 %v1296, 1.442695
        %v1313 = vpow.pop %v1312
        %v1314 = vmul.f32 %v1297, 1.442695
        %v1315 = vpow.pop %v1314
        %v1316 = vmul.f32 %v1298, 1.442695
        %v1317 = vpow.pop %v1316
        %v1318 = vmul.f32 %v1299, 1.442695
        %v1319 = vpow.pop %v1318
        %v1320 = vmul.f32 %v1300, 1.442695
        %v1321 = vpow.pop %v1320
        %v1322 = vmul.f32 %v1301, 1.442695
        %v1323 = vpow.pop %v1322
        %v1324 = vmul.f32 %v1302, 1.442695
        %v1325 = vpow.pop %v1324
        %v1326 = vmul.f32 %v1303, 1.442695
        %v1327 = vpow.pop %v1326
        %v1328 = vmul.f32 %v1304, 1.442695
        %v1329 = vpow.pop %v1328
        %v1330 = vmul.f32 %v1305, 1.442695
        %v1331 = vpow.pop %v1330
        %v1332 = vmul.f32 %v1306, 1.442695
        %v1333 = vpow.pop %v1332
        %v1334 = vmul.f32 %v1307, 1.442695
        %v1335 = vpow.pop %v1334
        %v1336 = vmul.f32 %v1308, 1.442695
        %v1337 = vpow.pop %v1336
        %v1338 = vmul.f32 %v1309, 1.442695
        %v1339 = vpow.pop %v1338
        %v1340 = vmul.f32 %v1310, 1.442695
        %v1341 = vpow.pop %v1340
        %v1342 = vmul.f32 %v1311, 1.442695
        %v1343 = vpow.pop %v1342
        %v1344 = vld [vmem:[#allocation3] sm:$0xff]
        %v1345 = vld [vmem:[#allocation3 + $0x8] sm:$0xff]
        %v1346 = vld [vmem:[#allocation3 + $0x10] sm:$0xff]
        %v1347 = vld [vmem:[#allocation3 + $0x18] sm:$0xff]
        %v1348 = vld [vmem:[#allocation3 + $0x20] sm:$0xff]
        %v1349 = vld [vmem:[#allocation3 + $0x28] sm:$0xff]
        %v1350 = vld [vmem:[#allocation3 + $0x30] sm:$0xff]
        %v1351 = vld [vmem:[#allocation3 + $0x38] sm:$0xff]
        %v1352 = vld [vmem:[#allocation3 + $0x40] sm:$0xff]
        %v1353 = vld [vmem:[#allocation3 + $0x48] sm:$0xff]
        %v1354 = vld [vmem:[#allocation3 + $0x50] sm:$0xff]
        %v1355 = vld [vmem:[#allocation3 + $0x58] sm:$0xff]
        %v1356 = vld [vmem:[#allocation3 + $0x60] sm:$0xff]
        %v1357 = vld [vmem:[#allocation3 + $0x68] sm:$0xff]
        %v1358 = vld [vmem:[#allocation3 + $0x70] sm:$0xff]
        %v1359 = vld [vmem:[#allocation3 + $0x78] sm:$0xff]
        %v1360 = vmul.f32 %v1313, %v1344
        %v1361 = vmul.f32 %v1315, %v1345
        %v1362 = vmul.f32 %v1317, %v1346
        %v1363 = vmul.f32 %v1319, %v1347
        %v1364 = vmul.f32 %v1321, %v1348
        %v1365 = vmul.f32 %v1323, %v1349
        %v1366 = vmul.f32 %v1325, %v1350
        %v1367 = vmul.f32 %v1327, %v1351
        %v1368 = vmul.f32 %v1329, %v1352
        %v1369 = vmul.f32 %v1331, %v1353
        %v1370 = vmul.f32 %v1333, %v1354
        %v1371 = vmul.f32 %v1335, %v1355
        %v1372 = vmul.f32 %v1337, %v1356
        %v1373 = vmul.f32 %v1339, %v1357
        %v1374 = vmul.f32 %v1341, %v1358
        %v1375 = vmul.f32 %v1343, %v1359
        %v1376 = vadd.f32 %v1360, %v1105
        %v1377 = vadd.f32 %v1361, %v1108
        %v1378 = vadd.f32 %v1362, %v1111
        %v1379 = vadd.f32 %v1363, %v1114
        %v1380 = vadd.f32 %v1364, %v1117
        %v1381 = vadd.f32 %v1365, %v1120
        %v1382 = vadd.f32 %v1366, %v1123
        %v1383 = vadd.f32 %v1367, %v1126
        %v1384 = vadd.f32 %v1368, %v1129
        %v1385 = vadd.f32 %v1369, %v1132
        %v1386 = vadd.f32 %v1370, %v1135
        %v1387 = vadd.f32 %v1371, %v1138
        %v1388 = vadd.f32 %v1372, %v1141
        %v1389 = vadd.f32 %v1373, %v1144
        %v1390 = vadd.f32 %v1374, %v1147
        %v1391 = vadd.f32 %v1375, %v1150
        %vm1392 = vcmask 64512
        %1393 = vst.msk [vmem:[#allocation3] sm:$0xff] %vm1392, %v1376
        %1394 = vst.msk [vmem:[#allocation3 + $0x8] sm:$0xff] %vm1392, %v1377
        %1395 = vst.msk [vmem:[#allocation3 + $0x10] sm:$0xff] %vm1392, %v1378
        %1396 = vst.msk [vmem:[#allocation3 + $0x18] sm:$0xff] %vm1392, %v1379
        %1397 = vst.msk [vmem:[#allocation3 + $0x20] sm:$0xff] %vm1392, %v1380
        %1398 = vst.msk [vmem:[#allocation3 + $0x28] sm:$0xff] %vm1392, %v1381
        %1399 = vst.msk [vmem:[#allocation3 + $0x30] sm:$0xff] %vm1392, %v1382
        %1400 = vst.msk [vmem:[#allocation3 + $0x38] sm:$0xff] %vm1392, %v1383
        %1401 = vst.msk [vmem:[#allocation3 + $0x40] sm:$0xff] %vm1392, %v1384
        %1402 = vst.msk [vmem:[#allocation3 + $0x48] sm:$0xff] %vm1392, %v1385
        %1403 = vst.msk [vmem:[#allocation3 + $0x50] sm:$0xff] %vm1392, %v1386
        %1404 = vst.msk [vmem:[#allocation3 + $0x58] sm:$0xff] %vm1392, %v1387
        %1405 = vst.msk [vmem:[#allocation3 + $0x60] sm:$0xff] %vm1392, %v1388
        %1406 = vst.msk [vmem:[#allocation3 + $0x68] sm:$0xff] %vm1392, %v1389
        %1407 = vst.msk [vmem:[#allocation3 + $0x70] sm:$0xff] %vm1392, %v1390
        %1408 = vst.msk [vmem:[#allocation3 + $0x78] sm:$0xff] %vm1392, %v1391
        %v1409 = vld [vmem:[#allocation4] sm:$0xff]
        %v1410 = vld [vmem:[#allocation4 + $0x8] sm:$0xff]
        %v1411 = vld [vmem:[#allocation4 + $0x10] sm:$0xff]
        %v1412 = vld [vmem:[#allocation4 + $0x18] sm:$0xff]
        %v1413 = vld [vmem:[#allocation4 + $0x20] sm:$0xff]
        %v1414 = vld [vmem:[#allocation4 + $0x28] sm:$0xff]
        %v1415 = vld [vmem:[#allocation4 + $0x30] sm:$0xff]
        %v1416 = vld [vmem:[#allocation4 + $0x38] sm:$0xff]
        %v1417 = vld [vmem:[#allocation4 + $0x40] sm:$0xff]
        %v1418 = vld [vmem:[#allocation4 + $0x48] sm:$0xff]
        %v1419 = vld [vmem:[#allocation4 + $0x50] sm:$0xff]
        %v1420 = vld [vmem:[#allocation4 + $0x58] sm:$0xff]
        %v1421 = vld [vmem:[#allocation4 + $0x60] sm:$0xff]
        %v1422 = vld [vmem:[#allocation4 + $0x68] sm:$0xff]
        %v1423 = vld [vmem:[#allocation4 + $0x70] sm:$0xff]
        %v1424 = vld [vmem:[#allocation4 + $0x78] sm:$0xff]
        %v1425 = vmul.f32 %v1313, %v1409
        %v1426 = vmul.f32 %v1315, %v1410
        %v1427 = vmul.f32 %v1317, %v1411
        %v1428 = vmul.f32 %v1319, %v1412
        %v1429 = vmul.f32 %v1321, %v1413
        %v1430 = vmul.f32 %v1323, %v1414
        %v1431 = vmul.f32 %v1325, %v1415
        %v1432 = vmul.f32 %v1327, %v1416
        %v1433 = vmul.f32 %v1329, %v1417
        %v1434 = vmul.f32 %v1331, %v1418
        %v1435 = vmul.f32 %v1333, %v1419
        %v1436 = vmul.f32 %v1335, %v1420
        %v1437 = vmul.f32 %v1337, %v1421
        %v1438 = vmul.f32 %v1339, %v1422
        %v1439 = vmul.f32 %v1341, %v1423
        %v1440 = vmul.f32 %v1343, %v1424
        %v1441 = vadd.f32 %v1425, %v1218
        %v1442 = vadd.f32 %v1426, %v1223
        %v1443 = vadd.f32 %v1427, %v1228
        %v1444 = vadd.f32 %v1428, %v1233
        %v1445 = vadd.f32 %v1429, %v1238
        %v1446 = vadd.f32 %v1430, %v1243
        %v1447 = vadd.f32 %v1431, %v1248
        %v1448 = vadd.f32 %v1432, %v1253
        %v1449 = vadd.f32 %v1433, %v1258
        %v1450 = vadd.f32 %v1434, %v1263
        %v1451 = vadd.f32 %v1435, %v1268
        %v1452 = vadd.f32 %v1436, %v1273
        %v1453 = vadd.f32 %v1437, %v1278
        %v1454 = vadd.f32 %v1438, %v1283
        %v1455 = vadd.f32 %v1439, %v1288
        %v1456 = vadd.f32 %v1440, %v1293
        %1457 = vst.msk [vmem:[#allocation4] sm:$0xff] %vm1392, %v1441
        %1458 = vst.msk [vmem:[#allocation4 + $0x8] sm:$0xff] %vm1392, %v1442
        %1459 = vst.msk [vmem:[#allocation4 + $0x10] sm:$0xff] %vm1392, %v1443
        %1460 = vst.msk [vmem:[#allocation4 + $0x18] sm:$0xff] %vm1392, %v1444
        %1461 = vst.msk [vmem:[#allocation4 + $0x20] sm:$0xff] %vm1392, %v1445
        %1462 = vst.msk [vmem:[#allocation4 + $0x28] sm:$0xff] %vm1392, %v1446
        %1463 = vst.msk [vmem:[#allocation4 + $0x30] sm:$0xff] %vm1392, %v1447
        %1464 = vst.msk [vmem:[#allocation4 + $0x38] sm:$0xff] %vm1392, %v1448
        %1465 = vst.msk [vmem:[#allocation4 + $0x40] sm:$0xff] %vm1392, %v1449
        %1466 = vst.msk [vmem:[#allocation4 + $0x48] sm:$0xff] %vm1392, %v1450
        %1467 = vst.msk [vmem:[#allocation4 + $0x50] sm:$0xff] %vm1392, %v1451
        %1468 = vst.msk [vmem:[#allocation4 + $0x58] sm:$0xff] %vm1392, %v1452
        %1469 = vst.msk [vmem:[#allocation4 + $0x60] sm:$0xff] %vm1392, %v1453
        %1470 = vst.msk [vmem:[#allocation4 + $0x68] sm:$0xff] %vm1392, %v1454
        %1471 = vst.msk [vmem:[#allocation4 + $0x70] sm:$0xff] %vm1392, %v1455
        %1472 = vst.msk [vmem:[#allocation4 + $0x78] sm:$0xff] %vm1392, %v1456
        %1473 = vst.msk [vmem:[#allocation2] sm:$0xff] %vm1392, %v898
        %1474 = vst.msk [vmem:[#allocation2 + $0x8] sm:$0xff] %vm1392, %v903
        %1475 = vst.msk [vmem:[#allocation2 + $0x10] sm:$0xff] %vm1392, %v908
        %1476 = vst.msk [vmem:[#allocation2 + $0x18] sm:$0xff] %vm1392, %v913
        %1477 = vst.msk [vmem:[#allocation2 + $0x20] sm:$0xff] %vm1392, %v918
        %1478 = vst.msk [vmem:[#allocation2 + $0x28] sm:$0xff] %vm1392, %v923
        %1479 = vst.msk [vmem:[#allocation2 + $0x30] sm:$0xff] %vm1392, %v928
        %1480 = vst.msk [vmem:[#allocation2 + $0x38] sm:$0xff] %vm1392, %v933
        %1481 = vst.msk [vmem:[#allocation2 + $0x40] sm:$0xff] %vm1392, %v938
        %1482 = vst.msk [vmem:[#allocation2 + $0x48] sm:$0xff] %vm1392, %v943
        %1483 = vst.msk [vmem:[#allocation2 + $0x50] sm:$0xff] %vm1392, %v948
        %1484 = vst.msk [vmem:[#allocation2 + $0x58] sm:$0xff] %vm1392, %v953
        %1485 = vst.msk [vmem:[#allocation2 + $0x60] sm:$0xff] %vm1392, %v958
        %1486 = vst.msk [vmem:[#allocation2 + $0x68] sm:$0xff] %vm1392, %v963
        %1487 = vst.msk [vmem:[#allocation2 + $0x70] sm:$0xff] %vm1392, %v968
        %1488 = vst.msk [vmem:[#allocation2 + $0x78] sm:$0xff] %vm1392, %v973
      $region44: #{gat_forward.11} parent=35 // pred_fallthru
        _
      // Predicated region
      $region45: #{gat_forward.11} parent=35 // pred_check
        %p1489 = pneg %p304
      $region46: #{gat_forward.11} parent=35 // pred_check_branch
        %1491 = sbr.rel (%p1489) target = $region48
      $region47: #{gat_forward.11} parent=35 // pred_region
        %v1492 = vld [vmem:[#allocation3] sm:$0xff]
        %v1493 = vld [vmem:[#allocation3 + $0x8] sm:$0xff]
        %v1494 = vld [vmem:[#allocation3 + $0x10] sm:$0xff]
        %v1495 = vld [vmem:[#allocation3 + $0x18] sm:$0xff]
        %v1496 = vld [vmem:[#allocation3 + $0x20] sm:$0xff]
        %v1497 = vld [vmem:[#allocation3 + $0x28] sm:$0xff]
        %v1498 = vld [vmem:[#allocation3 + $0x30] sm:$0xff]
        %v1499 = vld [vmem:[#allocation3 + $0x38] sm:$0xff]
        %v1500 = vld [vmem:[#allocation3 + $0x40] sm:$0xff]
        %v1501 = vld [vmem:[#allocation3 + $0x48] sm:$0xff]
        %v1502 = vld [vmem:[#allocation3 + $0x50] sm:$0xff]
        %v1503 = vld [vmem:[#allocation3 + $0x58] sm:$0xff]
        %v1504 = vld [vmem:[#allocation3 + $0x60] sm:$0xff]
        %v1505 = vld [vmem:[#allocation3 + $0x68] sm:$0xff]
        %v1506 = vld [vmem:[#allocation3 + $0x70] sm:$0xff]
        %v1507 = vld [vmem:[#allocation3 + $0x78] sm:$0xff]
        %vm1508 = vcmp.gt.f32.partialorder %v1492, 0.0
        %vm1509 = vcmp.gt.f32.partialorder %v1493, 0.0
        %vm1510 = vcmp.gt.f32.partialorder %v1494, 0.0
        %vm1511 = vcmp.gt.f32.partialorder %v1495, 0.0
        %vm1512 = vcmp.gt.f32.partialorder %v1496, 0.0
        %vm1513 = vcmp.gt.f32.partialorder %v1497, 0.0
        %vm1514 = vcmp.gt.f32.partialorder %v1498, 0.0
        %vm1515 = vcmp.gt.f32.partialorder %v1499, 0.0
        %vm1516 = vcmp.gt.f32.partialorder %v1500, 0.0
        %vm1517 = vcmp.gt.f32.partialorder %v1501, 0.0
        %vm1518 = vcmp.gt.f32.partialorder %v1502, 0.0
        %vm1519 = vcmp.gt.f32.partialorder %v1503, 0.0
        %vm1520 = vcmp.gt.f32.partialorder %v1504, 0.0
        %vm1521 = vcmp.gt.f32.partialorder %v1505, 0.0
        %vm1522 = vcmp.gt.f32.partialorder %v1506, 0.0
        %vm1523 = vcmp.gt.f32.partialorder %v1507, 0.0
        %v1524 = vsel %vm1508, %v1492, 1.0
        %v1525 = vsel %vm1509, %v1493, 1.0
        %v1526 = vsel %vm1510, %v1494, 1.0
        %v1527 = vsel %vm1511, %v1495, 1.0
        %v1528 = vsel %vm1512, %v1496, 1.0
        %v1529 = vsel %vm1513, %v1497, 1.0
        %v1530 = vsel %vm1514, %v1498, 1.0
        %v1531 = vsel %vm1515, %v1499, 1.0
        %v1532 = vsel %vm1516, %v1500, 1.0
        %v1533 = vsel %vm1517, %v1501, 1.0
        %v1534 = vsel %vm1518, %v1502, 1.0
        %v1535 = vsel %vm1519, %v1503, 1.0
        %v1536 = vsel %vm1520, %v1504, 1.0
        %v1537 = vsel %vm1521, %v1505, 1.0
        %v1538 = vsel %vm1522, %v1506, 1.0
        %v1539 = vsel %vm1523, %v1507, 1.0
        %v1540 = vld [vmem:[#allocation4] sm:$0xff]
        %v1541 = vld [vmem:[#allocation4 + $0x8] sm:$0xff]
        %v1542 = vld [vmem:[#allocation4 + $0x10] sm:$0xff]
        %v1543 = vld [vmem:[#allocation4 + $0x18] sm:$0xff]
        %v1544 = vld [vmem:[#allocation4 + $0x20] sm:$0xff]
        %v1545 = vld [vmem:[#allocation4 + $0x28] sm:$0xff]
        %v1546 = vld [vmem:[#allocation4 + $0x30] sm:$0xff]
        %v1547 = vld [vmem:[#allocation4 + $0x38] sm:$0xff]
        %v1548 = vld [vmem:[#allocation4 + $0x40] sm:$0xff]
        %v1549 = vld [vmem:[#allocation4 + $0x48] sm:$0xff]
        %v1550 = vld [vmem:[#allocation4 + $0x50] sm:$0xff]
        %v1551 = vld [vmem:[#allocation4 + $0x58] sm:$0xff]
        %v1552 = vld [vmem:[#allocation4 + $0x60] sm:$0xff]
        %v1553 = vld [vmem:[#allocation4 + $0x68] sm:$0xff]
        %v1554 = vld [vmem:[#allocation4 + $0x70] sm:$0xff]
        %v1555 = vld [vmem:[#allocation4 + $0x78] sm:$0xff]
        %v1556 = vrcp.pop %v1524
        %v1557 = vrcp.pop %v1525
        %v1558 = vrcp.pop %v1526
        %v1559 = vrcp.pop %v1527
        %v1560 = vrcp.pop %v1528
        %v1561 = vrcp.pop %v1529
        %v1562 = vrcp.pop %v1530
        %v1563 = vrcp.pop %v1531
        %v1564 = vrcp.pop %v1532
        %v1565 = vrcp.pop %v1533
        %v1566 = vrcp.pop %v1534
        %v1567 = vrcp.pop %v1535
        %v1568 = vrcp.pop %v1536
        %v1569 = vrcp.pop %v1537
        %v1570 = vrcp.pop %v1538
        %v1571 = vrcp.pop %v1539
        %v1572 = vmul.f32 %v1540, %v1556
        %v1573 = vmul.f32 %v1541, %v1557
        %v1574 = vmul.f32 %v1542, %v1558
        %v1575 = vmul.f32 %v1543, %v1559
        %v1576 = vmul.f32 %v1544, %v1560
        %v1577 = vmul.f32 %v1545, %v1561
        %v1578 = vmul.f32 %v1546, %v1562
        %v1579 = vmul.f32 %v1547, %v1563
        %v1580 = vmul.f32 %v1548, %v1564
        %v1581 = vmul.f32 %v1549, %v1565
        %v1582 = vmul.f32 %v1550, %v1566
        %v1583 = vmul.f32 %v1551, %v1567
        %v1584 = vmul.f32 %v1552, %v1568
        %v1585 = vmul.f32 %v1553, %v1569
        %v1586 = vmul.f32 %v1554, %v1570
        %v1587 = vmul.f32 %v1555, %v1571
        %vm1588 = vcmask 64512
        %1589 = vst.msk [vmem:[%s300] sm:$0xff] %vm1588, %v1572
        %1590 = vst.msk [vmem:[%s300 + $0x8] sm:$0xff] %vm1588, %v1573
        %1591 = vst.msk [vmem:[%s300 + $0x10] sm:$0xff] %vm1588, %v1574
        %1592 = vst.msk [vmem:[%s300 + $0x18] sm:$0xff] %vm1588, %v1575
        %1593 = vst.msk [vmem:[%s300 + $0x20] sm:$0xff] %vm1588, %v1576
        %1594 = vst.msk [vmem:[%s300 + $0x28] sm:$0xff] %vm1588, %v1577
        %1595 = vst.msk [vmem:[%s300 + $0x30] sm:$0xff] %vm1588, %v1578
        %1596 = vst.msk [vmem:[%s300 + $0x38] sm:$0xff] %vm1588, %v1579
        %1597 = vst.msk [vmem:[%s300 + $0x40] sm:$0xff] %vm1588, %v1580
        %1598 = vst.msk [vmem:[%s300 + $0x48] sm:$0xff] %vm1588, %v1581
        %1599 = vst.msk [vmem:[%s300 + $0x50] sm:$0xff] %vm1588, %v1582
        %1600 = vst.msk [vmem:[%s300 + $0x58] sm:$0xff] %vm1588, %v1583
        %1601 = vst.msk [vmem:[%s300 + $0x60] sm:$0xff] %vm1588, %v1584
        %1602 = vst.msk [vmem:[%s300 + $0x68] sm:$0xff] %vm1588, %v1585
        %1603 = vst.msk [vmem:[%s300 + $0x70] sm:$0xff] %vm1588, %v1586
        %1604 = vst.msk [vmem:[%s300 + $0x78] sm:$0xff] %vm1588, %v1587
      $region48: #{gat_forward.11} parent=35 // pred_fallthru
        _
      %s1605 = smul.u32 16, %s26
      %p1606 = scmp.lt.s32.totalorder %s1605, 31
      %s1607 = scalar_select %p1606, %s1605, 31
      %s1608 = smul.addr %s1607, 8
      %s1609 = scalar_lea.vmem %s5, %s1608
      // Predicated region
      $region49: #{gat_forward.11} parent=35 // pred_check
        %p1610 = pneg %p158
      $region50: #{gat_forward.11} parent=35 // pred_check_branch
        %1612 = sbr.rel (%p1610) target = $region52
      $region51: #{gat_forward.11} parent=35 // pred_region
        %s1613 = smul.u32 16, %s26
      $region52: #{gat_forward.11} parent=35 // pred_fallthru
        _
    $region36: #{gat_forward.11} parent=5 // pred_fallthru
      _
    %p1614 = scmp.le.s32.totalorder 2, %s17
    // Predicated region
    $region53: #{gat_forward.11} parent=5 // pred_check
      %p1615 = pneg %p1614
    $region54: #{gat_forward.11} parent=5 // pred_check_branch
      %1617 = sbr.rel (%p1615) target = $region56
    $region55: #{gat_forward.11} parent=5 // pred_region
      %s1618 = ssub.s32 %s17, 2
      // Predicated region
      $region57: #{gat_forward.11} parent=55 // pred_check
        %p1619 = pneg %p164
      $region58: #{gat_forward.11} parent=55 // pred_check_branch
        %1621 = sbr.rel (%p1619) target = $region60
      $region59: #{gat_forward.11} parent=55 // pred_region
        %s1622 = smul.u32 16, %s28
        %p1623 = scmp.lt.s32.totalorder %s1622, 31
        %s1624 = scalar_select %p1623, %s1622, 31
        %s1625 = smul.addr %s1624, 8
        %s1626 = scalar_lea.vmem %s5, %s1625
      $region60: #{gat_forward.11} parent=55 // pred_fallthru
        _
    $region56: #{gat_forward.11} parent=5 // pred_fallthru
      _
  $region6: #{gat_forward.11} parent=0 // loop_footer
    %s21 = sadd.s32 1, %s17
  $region7: #{gat_forward.11} parent=0 // loop_footer_branch
    %16 = sbr.rel target = $region3
  $region8: #{gat_forward.11} parent=0 // loop_exit
    _

// kernel: gat_forward.7
$region0: #{gat_forward.7}
  #allocation0 [shape = 'u32[]', space=smem, size = 0x4, offset = 0x4, fixed_abs, tag = 'smem constant byte address 0x4 - core index']
  #allocation1 [shape = 'u32[144,128]{1,0:T(1,128)}', space=vmem, size = 0x12000, scoped, tag = 'internal scratch']
  #allocation2 [shape = 'f32[128,128]{1,0:T(8,128)}', space=vmem, size = 0x10000, scoped, tag = 'scratch operand']
  #allocation3 [shape = 'f32[128,128]{1,0:T(8,128)}', space=vmem, size = 0x10000, scoped, tag = 'scratch operand']
  #allocation4 [shape = 'f32[128,128]{1,0:T(8,128)}', space=vmem, size = 0x10000, scoped, tag = 'scratch operand']
  #allocation5 [shape = 's32[1]{0}', space=sflag, size = 0x4, scoped, tag = 'scoped memory for gat_forward.7']
  #allocation6 [shape = 'u8[512]{0}', space=smem, size = 0x200, scoped, tag = 'prefetched SMEM operand 0']
  %s0 = inlined_call_operand.vmem [shape: s32[2], index: 0, kind: input, shape index: {}]
  %s1 = inlined_call_operand.vmem [shape: f32[256,128], index: 1, kind: input, shape index: {}]
  %s2 = inlined_call_operand.vmem [shape: f32[256,4], index: 2, kind: input, shape index: {}]
  %s3 = inlined_call_operand.vmem [shape: f32[4,256], index: 3, kind: input, shape index: {}]
  %s4 = inlined_call_operand.vmem [shape: s8[256,256], index: 4, kind: input, shape index: {}]
  %s5 = inlined_call_operand.vmem [shape: f32[256,128], index: 5, kind: output, shape index: {}]
  %s6 = sld [smem:[#allocation0]]
  $region61: #{gat_forward.7} parent=0
    _
  %s8 = ssub.s32 1, %s6
  %s9 = scalar_select 0, %s8, %s6
  %s10 = sshll.u32 %s0, 4
  %s11 = int_to_ptr.vmem [resolvable:$true] %s10
  %13 = dma.vmem_to_smem %s11, 16, [#allocation6], [#allocation5]
  %14 = dma.done [#allocation5], 16
  %15 = sfence
  loop: start=0, step=1, limit=4
  $region2: #{gat_forward.7} parent=0 // loop_pre_header
    _
  $region3: #{gat_forward.7} parent=0 // loop_header
    %s17 = sphi 0, %s21
    %p18 = scmp.ge.s32.totalorder %s17, 4
    %s24 = sphi 0, %s36
    %s25 = sphi 0, %s32
    %s26 = sphi 0, %s24
    %s27 = sphi 0, %s25
    %s28 = sphi 0, %s26
    %s29 = sphi 0, %s27
    %s39 = sphi 0, %s41
    %s42 = sphi 0, %s39
    %s43 = sphi 0, %s42
    %s59 = sphi 0, %s43
    %s65 = sphi 0, %s67
    %s68 = sphi 0, %s65
    %s69 = sphi 0, %s68
    %s85 = sphi 0, %s69
    %s91 = sphi 0, %s93
    %s94 = sphi 0, %s91
    %s95 = sphi 0, %s94
    %s111 = sphi 0, %s95
    %s119 = sphi 0, %s121
    %s122 = sphi 0, %s119
    %s123 = sphi 0, %s122
    %s139 = sphi 0, %s123
    %s145 = sphi 0, %s147
    %s148 = sphi 0, %s145
    %s149 = sphi 0, %s148
    %s165 = sphi 0, %s149
  $region4: #{gat_forward.7} parent=0 // loop_header_branch
    %20 = sbr.rel (%p18) target = $region8
  $region5: #{gat_forward.7} parent=0 // loop_body
    %s22 = ssub.s32 %s17, 1
    %s23 = ssub.s32 %s17, 2
    %s30 = sadd.s32 1, %s25
    %p31 = scmp.ge.s32.totalorder %s30, 1
    %s32 = scalar_select %p31, 0, %s30
    %s33 = sadd.s32 1, %s24
    %s34 = scalar_select %p31, %s33, %s24
    %p35 = scmp.ge.s32.totalorder %s34, 2
    %s36 = scalar_select %p35, 0, %s34
    %s37 = ssub.s32 %s25, %s32
    %p38 = scmp.eq.s32.totalorder %s37, 0
    %s40 = sadd.s32 %s39, 1
    %s41 = scalar_select %p38, %s39, %s40
    %p44 = pneg %p38
    %p45 = scmp.eq.s32.totalorder %s17, 1
    %p46 = por %p44, %p45
    %p47 = scmp.ne.s32.totalorder %s39, %s42
    %p48 = scmp.eq.s32.totalorder %s17, 0
    %p49 = por %p47, %p48
    %p50 = scmp.ne.s32.totalorder %s39, %s42
    %p51 = scmp.eq.s32.totalorder %s22, 1
    %p52 = por %p50, %p51
    %p53 = scmp.ne.s32.totalorder %s42, %s43
    %p54 = scmp.eq.s32.totalorder %s22, 0
    %p55 = por %p53, %p54
    %p56 = scmp.ne.s32.totalorder %s42, %s43
    %p57 = scmp.eq.s32.totalorder %s23, 1
    %p58 = por %p56, %p57
    %p60 = scmp.ne.s32.totalorder %s43, %s59
    %p61 = scmp.eq.s32.totalorder %s23, 0
    %p62 = por %p60, %p61
    %s63 = ssub.s32 %s24, %s36
    %p64 = scmp.eq.s32.totalorder %s63, 0
    %s66 = sadd.s32 %s65, 1
    %s67 = scalar_select %p64, %s65, %s66
    %p70 = pneg %p64
    %p71 = scmp.eq.s32.totalorder %s17, 1
    %p72 = por %p70, %p71
    %p73 = scmp.ne.s32.totalorder %s65, %s68
    %p74 = scmp.eq.s32.totalorder %s17, 0
    %p75 = por %p73, %p74
    %p76 = scmp.ne.s32.totalorder %s65, %s68
    %p77 = scmp.eq.s32.totalorder %s22, 1
    %p78 = por %p76, %p77
    %p79 = scmp.ne.s32.totalorder %s68, %s69
    %p80 = scmp.eq.s32.totalorder %s22, 0
    %p81 = por %p79, %p80
    %p82 = scmp.ne.s32.totalorder %s68, %s69
    %p83 = scmp.eq.s32.totalorder %s23, 1
    %p84 = por %p82, %p83
    %p86 = scmp.ne.s32.totalorder %s69, %s85
    %p87 = scmp.eq.s32.totalorder %s23, 0
    %p88 = por %p86, %p87
    %s89 = ssub.s32 %s25, %s32
    %p90 = scmp.eq.s32.totalorder %s89, 0
    %s92 = sadd.s32 %s91, 1
    %s93 = scalar_select %p90, %s91, %s92
    %p96 = pneg %p90
    %p97 = scmp.eq.s32.totalorder %s17, 1
    %p98 = por %p96, %p97
    %p99 = scmp.ne.s32.totalorder %s91, %s94
    %p100 = scmp.eq.s32.totalorder %s17, 0
    %p101 = por %p99, %p100
    %p102 = scmp.ne.s32.totalorder %s91, %s94
    %p103 = scmp.eq.s32.totalorder %s22, 1
    %p104 = por %p102, %p103
    %p105 = scmp.ne.s32.totalorder %s94, %s95
    %p106 = scmp.eq.s32.totalorder %s22, 0
    %p107 = por %p105, %p106
    %p108 = scmp.ne.s32.totalorder %s94, %s95
    %p109 = scmp.eq.s32.totalorder %s23, 1
    %p110 = por %p108, %p109
    %p112 = scmp.ne.s32.totalorder %s95, %s111
    %p113 = scmp.eq.s32.totalorder %s23, 0
    %p114 = por %p112, %p113
    %s115 = ssub.s32 %s24, %s36
    %s116 = ssub.s32 %s25, %s32
    %s117 = sor.u32 %s115, %s116
    %p118 = scmp.eq.s32.totalorder %s117, 0
    %s120 = sadd.s32 %s119, 1
    %s121 = scalar_select %p118, %s119, %s120
    %p124 = pneg %p118
    %p125 = scmp.eq.s32.totalorder %s17, 1
    %p126 = por %p124, %p125
    %p127 = scmp.ne.s32.totalorder %s119, %s122
    %p128 = scmp.eq.s32.totalorder %s17, 0
    %p129 = por %p127, %p128
    %p130 = scmp.ne.s32.totalorder %s119, %s122
    %p131 = scmp.eq.s32.totalorder %s22, 1
    %p132 = por %p130, %p131
    %p133 = scmp.ne.s32.totalorder %s122, %s123
    %p134 = scmp.eq.s32.totalorder %s22, 0
    %p135 = por %p133, %p134
    %p136 = scmp.ne.s32.totalorder %s122, %s123
    %p137 = scmp.eq.s32.totalorder %s23, 1
    %p138 = por %p136, %p137
    %p140 = scmp.ne.s32.totalorder %s123, %s139
    %p141 = scmp.eq.s32.totalorder %s23, 0
    %p142 = por %p140, %p141
    %s143 = ssub.s32 %s24, %s36
    %p144 = scmp.eq.s32.totalorder %s143, 0
    %s146 = sadd.s32 %s145, 1
    %s147 = scalar_select %p144, %s145, %s146
    %p150 = pneg %p144
    %p151 = scmp.eq.s32.totalorder %s17, 1
    %p152 = por %p150, %p151
    %p153 = scmp.ne.s32.totalorder %s145, %s148
    %p154 = scmp.eq.s32.totalorder %s17, 0
    %p155 = por %p153, %p154
    %p156 = scmp.ne.s32.totalorder %s145, %s148
    %p157 = scmp.eq.s32.totalorder %s22, 1
    %p158 = por %p156, %p157
    %p159 = scmp.ne.s32.totalorder %s148, %s149
    %p160 = scmp.eq.s32.totalorder %s22, 0
    %p161 = por %p159, %p160
    %p162 = scmp.ne.s32.totalorder %s148, %s149
    %p163 = scmp.eq.s32.totalorder %s23, 1
    %p164 = por %p162, %p163
    %p166 = scmp.ne.s32.totalorder %s149, %s165
    %p167 = scmp.eq.s32.totalorder %s23, 0
    %p168 = por %p166, %p167
    %p169 = scmp.le.s32.totalorder 1, %s17
    %p170 = scmp.lt.s32.totalorder %s17, 3
    %p171 = pnand %p169, %p170
    %p172 = pneg %p171
    // Predicated region
    $region9: #{gat_forward.7} parent=5 // pred_check
      _
    $region10: #{gat_forward.7} parent=5 // pred_check_branch
      %174 = sbr.rel (%p171) target = $region12
    $region11: #{gat_forward.7} parent=5 // pred_region
      %s175 = ssub.s32 %s17, 1
      // Predicated region
      $region13: #{gat_forward.7} parent=11 // pred_check
        %p176 = pneg %p55
      $region14: #{gat_forward.7} parent=11 // pred_check_branch
        %178 = sbr.rel (%p176) target = $region16
      $region15: #{gat_forward.7} parent=11 // pred_region
        %s179 = smul.u32 32, %s27
        %p180 = scmp.lt.s32.totalorder %s179, 31
        %s181 = scalar_select %p180, %s179, 31
        %s182 = smul.addr %s181, 8
        %s183 = scalar_lea.vmem %s1, %s182
        %s184 = smul.u32 32, %s27
      $region16: #{gat_forward.7} parent=11 // pred_fallthru
        _
      // Predicated region
      $region17: #{gat_forward.7} parent=11 // pred_check
        %p185 = pneg %p107
      $region18: #{gat_forward.7} parent=11 // pred_check_branch
        %187 = sbr.rel (%p185) target = $region20
      $region19: #{gat_forward.7} parent=11 // pred_region
        %s188 = smul.u32 2, %s27
        %p189 = scmp.lt.s32.totalorder %s188, 1
        %s190 = scalar_select %p189, %s188, 1
        %s191 = smul.addr %s190, 4
        %s192 = scalar_lea.vmem %s3, %s191
        %s193 = smul.u32 2, %s27
      $region20: #{gat_forward.7} parent=11 // pred_fallthru
        _
    $region12: #{gat_forward.7} parent=5 // pred_fallthru
      _
    %p194 = scmp.lt.s32.totalorder %s17, 2
    // Predicated region
    $region21: #{gat_forward.7} parent=5 // pred_check
      %p195 = pneg %p194
    $region22: #{gat_forward.7} parent=5 // pred_check_branch
      %197 = sbr.rel (%p195) target = $region24
    $region23: #{gat_forward.7} parent=5 // pred_region
      // Predicated region
      $region25: #{gat_forward.7} parent=23 // pred_check
        %p198 = pneg %p75
      $region26: #{gat_forward.7} parent=23 // pred_check_branch
        %200 = sbr.rel (%p198) target = $region28
      $region27: #{gat_forward.7} parent=23 // pred_region
        %s201 = smul.u32 16, %s24
        %p202 = scmp.lt.s32.totalorder %s201, 31
        %s203 = scalar_select %p202, %s201, 31
        %s204 = smul.addr %s203, 8
        %s205 = scalar_lea.vmem %s2, %s204
        %s206 = smul.u32 16, %s24
      $region28: #{gat_forward.7} parent=23 // pred_fallthru
        _
      // Predicated region
      $region29: #{gat_forward.7} parent=23 // pred_check
        %p207 = pneg %p129
      $region30: #{gat_forward.7} parent=23 // pred_check_branch
        %209 = sbr.rel (%p207) target = $region32
      $region31: #{gat_forward.7} parent=23 // pred_region
        %s210 = smul.u32 4, %s24
        %s211 = smul.u32 2, %s25
        %p212 = scmp.lt.s32.totalorder %s210, 7
        %s213 = scalar_select %p212, %s210, 7
        %p214 = scmp.lt.s32.totalorder %s211, 1
        %s215 = scalar_select %p214, %s211, 1
        %s216 = smul.addr %s213, 2
        %s217 = sadd.s32 %s215, %s216
        %s218 = smul.addr %s217, 8
        %s219 = scalar_lea.vmem %s4, %s218
        %s220 = smul.u32 4, %s24
        %s221 = smul.u32 2, %s25
      $region32: #{gat_forward.7} parent=23 // pred_fallthru
        _
    $region24: #{gat_forward.7} parent=5 // pred_fallthru
      _
    %p222 = scmp.le.s32.totalorder 1, %s17
    %p223 = scmp.lt.s32.totalorder %s17, 3
    %p224 = pnand %p222, %p223
    %p225 = pneg %p224
    // Predicated region
    $region33: #{gat_forward.7} parent=5 // pred_check
      _
    $region34: #{gat_forward.7} parent=5 // pred_check_branch
      %227 = sbr.rel (%p224) target = $region36
    $region35: #{gat_forward.7} parent=5 // pred_region
      %s228 = ssub.s32 %s17, 1
      %s229 = smul.u32 32, %s27
      %p230 = scmp.lt.s32.totalorder %s229, 31
      %s231 = scalar_select %p230, %s229, 31
      %s232 = smul.addr %s231, 8
      %s233 = scalar_lea.vmem %s1, %s232
      %p234 = pneg %p55
      %p235 = pneg %p52
      %s236 = smul.u32 16, %s26
      %p237 = scmp.lt.s32.totalorder %s236, 31
      %s238 = scalar_select %p237, %s236, 31
      %s239 = smul.addr %s238, 8
      %s240 = scalar_lea.vmem %s2, %s239
      %p241 = pneg %p81
      %p242 = pneg %p78
      %s243 = smul.u32 2, %s27
      %p244 = scmp.lt.s32.totalorder %s243, 1
      %s245 = scalar_select %p244, %s243, 1
      %s246 = smul.addr %s245, 4
      %s247 = scalar_lea.vmem %s3, %s246
      %p248 = pneg %p107
      %p249 = pneg %p104
      %s250 = smul.u32 4, %s26
      %s251 = smul.u32 2, %s27
      %p252 = scmp.lt.s32.totalorder %s250, 7
      %s253 = scalar_select %p252, %s250, 7
      %p254 = scmp.lt.s32.totalorder %s251, 1
      %s255 = scalar_select %p254, %s251, 1
      %s256 = smul.addr %s253, 2
      %s257 = sadd.s32 %s255, %s256
      %s258 = smul.addr %s257, 8
      %s259 = scalar_lea.vmem %s4, %s258
      %p260 = pneg %p135
      %p261 = pneg %p132
      %p262 = pneg %p161
      %p263 = pneg %p158
      %s264 = smul.u32 16, %s26
      %p265 = scmp.lt.s32.totalorder %s264, 31
      %s266 = scalar_select %p265, %s264, 31
      %s267 = smul.addr %s266, 8
      %s268 = scalar_lea.vmem %s5, %s267
      %s269 = smul.u32 32, %s27
      %p270 = scmp.lt.s32.totalorder %s269, 31
      %s271 = scalar_select %p270, %s269, 31
      %s272 = smul.addr %s271, 8
      %s273 = scalar_lea.vmem %s1, %s272
      %s274 = smul.u32 32, %s27
      %s275 = smul.u32 16, %s26
      %p276 = scmp.lt.s32.totalorder %s275, 31
      %s277 = scalar_select %p276, %s275, 31
      %s278 = smul.addr %s277, 8
      %s279 = scalar_lea.vmem %s2, %s278
      %s280 = smul.u32 16, %s26
      %s281 = smul.u32 2, %s27
      %p282 = scmp.lt.s32.totalorder %s281, 1
      %s283 = scalar_select %p282, %s281, 1
      %s284 = smul.addr %s283, 4
      %s285 = scalar_lea.vmem %s3, %s284
      %s286 = smul.u32 2, %s27
      %s287 = smul.u32 4, %s26
      %s288 = smul.u32 2, %s27
      %p289 = scmp.lt.s32.totalorder %s287, 7
      %s290 = scalar_select %p289, %s287, 7
      %p291 = scmp.lt.s32.totalorder %s288, 1
      %s292 = scalar_select %p291, %s288, 1
      %s293 = smul.addr %s290, 2
      %s294 = sadd.s32 %s292, %s293
      %s295 = smul.addr %s294, 8
      %s296 = scalar_lea.vmem %s4, %s295
      %s297 = smul.u32 4, %s26
      %s298 = smul.u32 2, %s27
      %s299 = smul.u32 16, %s26
      %p300 = scmp.lt.s32.totalorder %s299, 31
      %s301 = scalar_select %p300, %s299, 31
      %s302 = smul.addr %s301, 8
      %s303 = scalar_lea.vmem %s5, %s302
      %s304 = smul.u32 16, %s26
      %p307 = scmp.eq.s32.totalorder %s27, 0
      // Predicated region
      $region37: #{gat_forward.7} parent=35 // pred_check
        %p308 = pneg %p307
      $region38: #{gat_forward.7} parent=35 // pred_check_branch
        %310 = sbr.rel (%p308) target = $region40
      $region39: #{gat_forward.7} parent=35 // pred_region
        %311 = vst [vmem:[#allocation2] sm:$0xff] -1e+30
        %312 = vst [vmem:[#allocation2 + $0x8] sm:$0xff] -1e+30
        %313 = vst [vmem:[#allocation2 + $0x10] sm:$0xff] -1e+30
        %314 = vst [vmem:[#allocation2 + $0x18] sm:$0xff] -1e+30
        %315 = vst [vmem:[#allocation2 + $0x20] sm:$0xff] -1e+30
        %316 = vst [vmem:[#allocation2 + $0x28] sm:$0xff] -1e+30
        %317 = vst [vmem:[#allocation2 + $0x30] sm:$0xff] -1e+30
        %318 = vst [vmem:[#allocation2 + $0x38] sm:$0xff] -1e+30
        %319 = vst [vmem:[#allocation2 + $0x40] sm:$0xff] -1e+30
        %320 = vst [vmem:[#allocation2 + $0x48] sm:$0xff] -1e+30
        %321 = vst [vmem:[#allocation2 + $0x50] sm:$0xff] -1e+30
        %322 = vst [vmem:[#allocation2 + $0x58] sm:$0xff] -1e+30
        %323 = vst [vmem:[#allocation2 + $0x60] sm:$0xff] -1e+30
        %324 = vst [vmem:[#allocation2 + $0x68] sm:$0xff] -1e+30
        %325 = vst [vmem:[#allocation2 + $0x70] sm:$0xff] -1e+30
        %326 = vst [vmem:[#allocation2 + $0x78] sm:$0xff] -1e+30
        %327 = vst [vmem:[#allocation3] sm:$0xff] 0.0
        %328 = vst [vmem:[#allocation3 + $0x8] sm:$0xff] 0.0
        %329 = vst [vmem:[#allocation3 + $0x10] sm:$0xff] 0.0
        %330 = vst [vmem:[#allocation3 + $0x18] sm:$0xff] 0.0
        %331 = vst [vmem:[#allocation3 + $0x20] sm:$0xff] 0.0
        %332 = vst [vmem:[#allocation3 + $0x28] sm:$0xff] 0.0
        %333 = vst [vmem:[#allocation3 + $0x30] sm:$0xff] 0.0
        %334 = vst [vmem:[#allocation3 + $0x38] sm:$0xff] 0.0
        %335 = vst [vmem:[#allocation3 + $0x40] sm:$0xff] 0.0
        %336 = vst [vmem:[#allocation3 + $0x48] sm:$0xff] 0.0
        %337 = vst [vmem:[#allocation3 + $0x50] sm:$0xff] 0.0
        %338 = vst [vmem:[#allocation3 + $0x58] sm:$0xff] 0.0
        %339 = vst [vmem:[#allocation3 + $0x60] sm:$0xff] 0.0
        %340 = vst [vmem:[#allocation3 + $0x68] sm:$0xff] 0.0
        %341 = vst [vmem:[#allocation3 + $0x70] sm:$0xff] 0.0
        %342 = vst [vmem:[#allocation3 + $0x78] sm:$0xff] 0.0
        %343 = vst [vmem:[#allocation4] sm:$0xff] 0.0
        %344 = vst [vmem:[#allocation4 + $0x8] sm:$0xff] 0.0
        %345 = vst [vmem:[#allocation4 + $0x10] sm:$0xff] 0.0
        %346 = vst [vmem:[#allocation4 + $0x18] sm:$0xff] 0.0
        %347 = vst [vmem:[#allocation4 + $0x20] sm:$0xff] 0.0
        %348 = vst [vmem:[#allocation4 + $0x28] sm:$0xff] 0.0
        %349 = vst [vmem:[#allocation4 + $0x30] sm:$0xff] 0.0
        %350 = vst [vmem:[#allocation4 + $0x38] sm:$0xff] 0.0
        %351 = vst [vmem:[#allocation4 + $0x40] sm:$0xff] 0.0
        %352 = vst [vmem:[#allocation4 + $0x48] sm:$0xff] 0.0
        %353 = vst [vmem:[#allocation4 + $0x50] sm:$0xff] 0.0
        %354 = vst [vmem:[#allocation4 + $0x58] sm:$0xff] 0.0
        %355 = vst [vmem:[#allocation4 + $0x60] sm:$0xff] 0.0
        %356 = vst [vmem:[#allocation4 + $0x68] sm:$0xff] 0.0
        %357 = vst [vmem:[#allocation4 + $0x70] sm:$0xff] 0.0
        %358 = vst [vmem:[#allocation4 + $0x78] sm:$0xff] 0.0
      $region40: #{gat_forward.7} parent=35 // pred_fallthru
        _
      %s359 = sadd.s32 %s26, %s27
      %s360 = sld [smem:[#allocation6 + %s359]]
      %p361 = scmp.gt.s32.totalorder %s360, 0
      // Predicated region
      $region41: #{gat_forward.7} parent=35 // pred_check
        %p362 = pneg %p361
      $region42: #{gat_forward.7} parent=35 // pred_check_branch
        %364 = sbr.rel (%p362) target = $region44
      $region43: #{gat_forward.7} parent=35 // pred_region
        %v365 = vld [vmem:[%s296] sm:$0xff]
        %v366 = vld [vmem:[%s296 + $0x8] sm:$0xff]
        %v367 = vld [vmem:[%s296 + $0x10] sm:$0xff]
        %v368 = vld [vmem:[%s296 + $0x18] sm:$0xff]
        %v369 = vld [vmem:[%s296 + $0x20] sm:$0xff]
        %v370 = vld [vmem:[%s296 + $0x28] sm:$0xff]
        %v371 = vld [vmem:[%s296 + $0x30] sm:$0xff]
        %v372 = vld [vmem:[%s296 + $0x38] sm:$0xff]
        %vm373 = vnez %v365
        %vm374 = vnez %v366
        %vm375 = vnez %v367
        %vm376 = vnez %v368
        %vm377 = vnez %v369
        %vm378 = vnez %v370
        %vm379 = vnez %v371
        %vm380 = vnez %v372
        %v381 = vld [vmem:[%s273] sm:$0xff]
        %v382 = vld [vmem:[%s273 + $0x8] sm:$0xff]
        %v383 = vld [vmem:[%s273 + $0x10] sm:$0xff]
        %v384 = vld [vmem:[%s273 + $0x18] sm:$0xff]
        %v385 = vld [vmem:[%s273 + $0x20] sm:$0xff]
        %v386 = vld [vmem:[%s273 + $0x28] sm:$0xff]
        %v387 = vld [vmem:[%s273 + $0x30] sm:$0xff]
        %v388 = vld [vmem:[%s273 + $0x38] sm:$0xff]
        %v389 = vld [vmem:[%s273 + $0x40] sm:$0xff]
        %v390 = vld [vmem:[%s273 + $0x48] sm:$0xff]
        %v391 = vld [vmem:[%s273 + $0x50] sm:$0xff]
        %v392 = vld [vmem:[%s273 + $0x58] sm:$0xff]
        %v393 = vld [vmem:[%s273 + $0x60] sm:$0xff]
        %v394 = vld [vmem:[%s273 + $0x68] sm:$0xff]
        %v395 = vld [vmem:[%s273 + $0x70] sm:$0xff]
        %v396 = vld [vmem:[%s273 + $0x78] sm:$0xff]
        %v397 = vld [vmem:[%s273 + $0x80] sm:$0xff]
        %v398 = vld [vmem:[%s273 + $0x88] sm:$0xff]
        %v399 = vld [vmem:[%s273 + $0x90] sm:$0xff]
        %v400 = vld [vmem:[%s273 + $0x98] sm:$0xff]
        %v401 = vld [vmem:[%s273 + $0xa0] sm:$0xff]
        %v402 = vld [vmem:[%s273 + $0xa8] sm:$0xff]
        %v403 = vld [vmem:[%s273 + $0xb0] sm:$0xff]
        %v404 = vld [vmem:[%s273 + $0xb8] sm:$0xff]
        %v405 = vld [vmem:[%s273 + $0xc0] sm:$0xff]
        %v406 = vld [vmem:[%s273 + $0xc8] sm:$0xff]
        %v407 = vld [vmem:[%s273 + $0xd0] sm:$0xff]
        %v408 = vld [vmem:[%s273 + $0xd8] sm:$0xff]
        %v409 = vld [vmem:[%s273 + $0xe0] sm:$0xff]
        %v410 = vld [vmem:[%s273 + $0xe8] sm:$0xff]
        %v411 = vld [vmem:[%s273 + $0xf0] sm:$0xff]
        %v412 = vld [vmem:[%s273 + $0xf8] sm:$0xff]
        %v413 = vld [vmem:[%s279] sm:$0xff]
        %v414 = vld [vmem:[%s279 + $0x8] sm:$0xff]
        %v415 = vld [vmem:[%s279 + $0x10] sm:$0xff]
        %v416 = vld [vmem:[%s279 + $0x18] sm:$0xff]
        %v417 = vld [vmem:[%s279 + $0x20] sm:$0xff]
        %v418 = vld [vmem:[%s279 + $0x28] sm:$0xff]
        %v419 = vld [vmem:[%s279 + $0x30] sm:$0xff]
        %v420 = vld [vmem:[%s279 + $0x38] sm:$0xff]
        %v421 = vld [vmem:[%s279 + $0x40] sm:$0xff]
        %v422 = vld [vmem:[%s279 + $0x48] sm:$0xff]
        %v423 = vld [vmem:[%s279 + $0x50] sm:$0xff]
        %v424 = vld [vmem:[%s279 + $0x58] sm:$0xff]
        %v425 = vld [vmem:[%s279 + $0x60] sm:$0xff]
        %v426 = vld [vmem:[%s279 + $0x68] sm:$0xff]
        %v427 = vld [vmem:[%s279 + $0x70] sm:$0xff]
        %v428 = vld [vmem:[%s279 + $0x78] sm:$0xff]
        %v429 = vld [vmem:[%s285] sm:$0xff]
        %v430 = vld [vmem:[#allocation2] sm:$0xff]
        %v431 = vld [vmem:[#allocation2 + $0x8] sm:$0xff]
        %v432 = vld [vmem:[#allocation2 + $0x10] sm:$0xff]
        %v433 = vld [vmem:[#allocation2 + $0x18] sm:$0xff]
        %v434 = vld [vmem:[#allocation2 + $0x20] sm:$0xff]
        %v435 = vld [vmem:[#allocation2 + $0x28] sm:$0xff]
        %v436 = vld [vmem:[#allocation2 + $0x30] sm:$0xff]
        %v437 = vld [vmem:[#allocation2 + $0x38] sm:$0xff]
        %v438 = vld [vmem:[#allocation2 + $0x40] sm:$0xff]
        %v439 = vld [vmem:[#allocation2 + $0x48] sm:$0xff]
        %v440 = vld [vmem:[#allocation2 + $0x50] sm:$0xff]
        %v441 = vld [vmem:[#allocation2 + $0x58] sm:$0xff]
        %v442 = vld [vmem:[#allocation2 + $0x60] sm:$0xff]
        %v443 = vld [vmem:[#allocation2 + $0x68] sm:$0xff]
        %v444 = vld [vmem:[#allocation2 + $0x70] sm:$0xff]
        %v445 = vld [vmem:[#allocation2 + $0x78] sm:$0xff]
        %447 = vset.pattern.permute.xlu0 0
        %448 = vperm.xlu0 %447, %v413
        %v449 = vpop.permute.xlu0 %448
        %452 = vset.pattern.permute.xlu0 0
        %453 = vperm.xlu0 %452, %v414
        %v454 = vpop.permute.xlu0 %453
        %457 = vset.pattern.permute.xlu0 0
        %458 = vperm.xlu0 %457, %v415
        %v459 = vpop.permute.xlu0 %458
        %462 = vset.pattern.permute.xlu0 0
        %463 = vperm.xlu0 %462, %v416
        %v464 = vpop.permute.xlu0 %463
        %467 = vset.pattern.permute.xlu0 0
        %468 = vperm.xlu0 %467, %v417
        %v469 = vpop.permute.xlu0 %468
        %472 = vset.pattern.permute.xlu0 0
        %473 = vperm.xlu0 %472, %v418
        %v474 = vpop.permute.xlu0 %473
        %477 = vset.pattern.permute.xlu0 0
        %478 = vperm.xlu0 %477, %v419
        %v479 = vpop.permute.xlu0 %478
        %482 = vset.pattern.permute.xlu0 0
        %483 = vperm.xlu0 %482, %v420
        %v484 = vpop.permute.xlu0 %483
        %487 = vset.pattern.permute.xlu0 0
        %488 = vperm.xlu0 %487, %v421
        %v489 = vpop.permute.xlu0 %488
        %492 = vset.pattern.permute.xlu0 0
        %493 = vperm.xlu0 %492, %v422
        %v494 = vpop.permute.xlu0 %493
        %497 = vset.pattern.permute.xlu0 0
        %498 = vperm.xlu0 %497, %v423
        %v499 = vpop.permute.xlu0 %498
        %502 = vset.pattern.permute.xlu0 0
        %503 = vperm.xlu0 %502, %v424
        %v504 = vpop.permute.xlu0 %503
        %507 = vset.pattern.permute.xlu0 0
        %508 = vperm.xlu0 %507, %v425
        %v509 = vpop.permute.xlu0 %508
        %512 = vset.pattern.permute.xlu0 0
        %513 = vperm.xlu0 %512, %v426
        %v514 = vpop.permute.xlu0 %513
        %517 = vset.pattern.permute.xlu0 0
        %518 = vperm.xlu0 %517, %v427
        %v519 = vpop.permute.xlu0 %518
        %522 = vset.pattern.permute.xlu0 0
        %523 = vperm.xlu0 %522, %v428
        %v524 = vpop.permute.xlu0 %523
        %v527 = vlaneseq
        %v528 = vshrl.u32 %v527, 7
        %v529 = vsub.s32 0, %v528
        %v530 = vrot.slane %v429, %v529
        %v531 = vlaneseq
        %v532 = vshrl.u32 %v531, 7
        %v533 = vsub.s32 4, %v532
        %v534 = vrot.slane %v429, %v533
        %v537 = vlaneseq
        %v538 = vshrl.u32 %v537, 7
        %v539 = vsub.s32 0, %v538
        %v540 = vrot.slane %v530, %v539
        %v541 = vlaneseq
        %v542 = vshrl.u32 %v541, 7
        %v543 = vsub.s32 0, %v542
        %v544 = vrot.slane %v534, %v543
        %v545 = vadd.f32 %v449, %v540
        %v546 = vadd.f32 %v449, %v544
        %v547 = vadd.f32 %v454, %v540
        %v548 = vadd.f32 %v454, %v544
        %v549 = vadd.f32 %v459, %v540
        %v550 = vadd.f32 %v459, %v544
        %v551 = vadd.f32 %v464, %v540
        %v552 = vadd.f32 %v464, %v544
        %v553 = vadd.f32 %v469, %v540
        %v554 = vadd.f32 %v469, %v544
        %v555 = vadd.f32 %v474, %v540
        %v556 = vadd.f32 %v474, %v544
        %v557 = vadd.f32 %v479, %v540
        %v558 = vadd.f32 %v479, %v544
        %v559 = vadd.f32 %v484, %v540
        %v560 = vadd.f32 %v484, %v544
        %v561 = vadd.f32 %v489, %v540
        %v562 = vadd.f32 %v489, %v544
        %v563 = vadd.f32 %v494, %v540
        %v564 = vadd.f32 %v494, %v544
        %v565 = vadd.f32 %v499, %v540
        %v566 = vadd.f32 %v499, %v544
        %v567 = vadd.f32 %v504, %v540
        %v568 = vadd.f32 %v504, %v544
        %v569 = vadd.f32 %v509, %v540
        %v570 = vadd.f32 %v509, %v544
        %v571 = vadd.f32 %v514, %v540
        %v572 = vadd.f32 %v514, %v544
        %v573 = vadd.f32 %v519, %v540
        %v574 = vadd.f32 %v519, %v544
        %v575 = vadd.f32 %v524, %v540
        %v576 = vadd.f32 %v524, %v544
        %v577 = vmul.f32 %v545, 0.2
        %v578 = vmul.f32 %v546, 0.2
        %v579 = vmul.f32 %v547, 0.2
        %v580 = vmul.f32 %v548, 0.2
        %v581 = vmul.f32 %v549, 0.2
        %v582 = vmul.f32 %v550, 0.2
        %v583 = vmul.f32 %v551, 0.2
        %v584 = vmul.f32 %v552, 0.2
        %v585 = vmul.f32 %v553, 0.2
        %v586 = vmul.f32 %v554, 0.2
        %v587 = vmul.f32 %v555, 0.2
        %v588 = vmul.f32 %v556, 0.2
        %v589 = vmul.f32 %v557, 0.2
        %v590 = vmul.f32 %v558, 0.2
        %v591 = vmul.f32 %v559, 0.2
        %v592 = vmul.f32 %v560, 0.2
        %v593 = vmul.f32 %v561, 0.2
        %v594 = vmul.f32 %v562, 0.2
        %v595 = vmul.f32 %v563, 0.2
        %v596 = vmul.f32 %v564, 0.2
        %v597 = vmul.f32 %v565, 0.2
        %v598 = vmul.f32 %v566, 0.2
        %v599 = vmul.f32 %v567, 0.2
        %v600 = vmul.f32 %v568, 0.2
        %v601 = vmul.f32 %v569, 0.2
        %v602 = vmul.f32 %v570, 0.2
        %v603 = vmul.f32 %v571, 0.2
        %v604 = vmul.f32 %v572, 0.2
        %v605 = vmul.f32 %v573, 0.2
        %v606 = vmul.f32 %v574, 0.2
        %v607 = vmul.f32 %v575, 0.2
        %v608 = vmul.f32 %v576, 0.2
        %v609 = vmax.f32 %v545, %v577
        %v610 = vmax.f32 %v546, %v578
        %v611 = vmax.f32 %v547, %v579
        %v612 = vmax.f32 %v548, %v580
        %v613 = vmax.f32 %v549, %v581
        %v614 = vmax.f32 %v550, %v582
        %v615 = vmax.f32 %v551, %v583
        %v616 = vmax.f32 %v552, %v584
        %v617 = vmax.f32 %v553, %v585
        %v618 = vmax.f32 %v554, %v586
        %v619 = vmax.f32 %v555, %v587
        %v620 = vmax.f32 %v556, %v588
        %v621 = vmax.f32 %v557, %v589
        %v622 = vmax.f32 %v558, %v590
        %v623 = vmax.f32 %v559, %v591
        %v624 = vmax.f32 %v560, %v592
        %v625 = vmax.f32 %v561, %v593
        %v626 = vmax.f32 %v562, %v594
        %v627 = vmax.f32 %v563, %v595
        %v628 = vmax.f32 %v564, %v596
        %v629 = vmax.f32 %v565, %v597
        %v630 = vmax.f32 %v566, %v598
        %v631 = vmax.f32 %v567, %v599
        %v632 = vmax.f32 %v568, %v600
        %v633 = vmax.f32 %v569, %v601
        %v634 = vmax.f32 %v570, %v602
        %v635 = vmax.f32 %v571, %v603
        %v636 = vmax.f32 %v572, %v604
        %v637 = vmax.f32 %v573, %v605
        %v638 = vmax.f32 %v574, %v606
        %v639 = vmax.f32 %v575, %v607
        %v640 = vmax.f32 %v576, %v608
        %v641 = vsel %vm373, 16843009, 0
        %v642 = vsel %vm374, 16843009, 0
        %v643 = vsel %vm375, 16843009, 0
        %v644 = vsel %vm376, 16843009, 0
        %v645 = vsel %vm377, 16843009, 0
        %v646 = vsel %vm378, 16843009, 0
        %v647 = vsel %vm379, 16843009, 0
        %v648 = vsel %vm380, 16843009, 0
        %v649 = vunpack.c.0.s8 %v641
        %v650 = vunpack.c.0.s8 %v642
        %v651 = vunpack.c.1.s8 %v641
        %v652 = vunpack.c.1.s8 %v642
        %v653 = vunpack.c.2.s8 %v641
        %v654 = vunpack.c.2.s8 %v642
        %v655 = vunpack.c.3.s8 %v641
        %v656 = vunpack.c.3.s8 %v642
        %v657 = vunpack.c.0.s8 %v643
        %v658 = vunpack.c.0.s8 %v644
        %v659 = vunpack.c.1.s8 %v643
        %v660 = vunpack.c.1.s8 %v644
        %v661 = vunpack.c.2.s8 %v643
        %v662 = vunpack.c.2.s8 %v644
        %v663 = vunpack.c.3.s8 %v643
        %v664 = vunpack.c.3.s8 %v644
        %v665 = vunpack.c.0.s8 %v645
        %v666 = vunpack.c.0.s8 %v646
        %v667 = vunpack.c.1.s8 %v645
        %v668 = vunpack.c.1.s8 %v646
        %v669 = vunpack.c.2.s8 %v645
        %v670 = vunpack.c.2.s8 %v646
        %v671 = vunpack.c.3.s8 %v645
        %v672 = vunpack.c.3.s8 %v646
        %v673 = vunpack.c.0.s8 %v647
        %v674 = vunpack.c.0.s8 %v648
        %v675 = vunpack.c.1.s8 %v647
        %v676 = vunpack.c.1.s8 %v648
        %v677 = vunpack.c.2.s8 %v647
        %v678 = vunpack.c.2.s8 %v648
        %v679 = vunpack.c.3.s8 %v647
        %v680 = vunpack.c.3.s8 %v648
        %v681 = vpack.c.b16 %v650, %v649
        %v682 = vpack.c.b8 %v681, %v681
        %v683 = vpack.c.b16 %v652, %v651
        %v684 = vpack.c.b8 %v683, %v683
        %v685 = vpack.c.b16 %v654, %v653
        %v686 = vpack.c.b8 %v685, %v685
        %v687 = vpack.c.b16 %v656, %v655
        %v688 = vpack.c.b8 %v687, %v687
        %v689 = vpack.c.b16 %v658, %v657
        %v690 = vpack.c.b8 %v689, %v689
        %v691 = vpack.c.b16 %v660, %v659
        %v692 = vpack.c.b8 %v691, %v691
        %v693 = vpack.c.b16 %v662, %v661
        %v694 = vpack.c.b8 %v693, %v693
        %v695 = vpack.c.b16 %v664, %v663
        %v696 = vpack.c.b8 %v695, %v695
        %v697 = vpack.c.b16 %v666, %v665
        %v698 = vpack.c.b8 %v697, %v697
        %v699 = vpack.c.b16 %v668, %v667
        %v700 = vpack.c.b8 %v699, %v699
        %v701 = vpack.c.b16 %v670, %v669
        %v702 = vpack.c.b8 %v701, %v701
        %v703 = vpack.c.b16 %v672, %v671
        %v704 = vpack.c.b8 %v703, %v703
        %v705 = vpack.c.b16 %v674, %v673
        %v706 = vpack.c.b8 %v705, %v705
        %v707 = vpack.c.b16 %v676, %v675
        %v708 = vpack.c.b8 %v707, %v707
        %v709 = vpack.c.b16 %v678, %v677
        %v710 = vpack.c.b8 %v709, %v709
        %v711 = vpack.c.b16 %v680, %v679
        %v712 = vpack.c.b8 %v711, %v711
        %vm713 = vnez %v682
        %vm714 = vnez %v684
        %vm715 = vnez %v686
        %vm716 = vnez %v688
        %vm717 = vnez %v690
        %vm718 = vnez %v692
        %vm719 = vnez %v694
        %vm720 = vnez %v696
        %vm721 = vnez %v698
        %vm722 = vnez %v700
        %vm723 = vnez %v702
        %vm724 = vnez %v704
        %vm725 = vnez %v706
        %vm726 = vnez %v708
        %vm727 = vnez %v710
        %vm728 = vnez %v712
        %v729 = vsel %vm713, 16843009, 0
        %v730 = vsel %vm714, 16843009, 0
        %v731 = vsel %vm715, 16843009, 0
        %v732 = vsel %vm716, 16843009, 0
        %v733 = vsel %vm717, 16843009, 0
        %v734 = vsel %vm718, 16843009, 0
        %v735 = vsel %vm719, 16843009, 0
        %v736 = vsel %vm720, 16843009, 0
        %v737 = vsel %vm721, 16843009, 0
        %v738 = vsel %vm722, 16843009, 0
        %v739 = vsel %vm723, 16843009, 0
        %v740 = vsel %vm724, 16843009, 0
        %v741 = vsel %vm725, 16843009, 0
        %v742 = vsel %vm726, 16843009, 0
        %v743 = vsel %vm727, 16843009, 0
        %v744 = vsel %vm728, 16843009, 0
        %v745 = vunpack.c.0.s8 %v729
        %v746 = vunpack.c.1.s8 %v729
        %v747 = vunpack.c.0.s8 %v730
        %v748 = vunpack.c.1.s8 %v730
        %v749 = vunpack.c.0.s8 %v731
        %v750 = vunpack.c.1.s8 %v731
        %v751 = vunpack.c.0.s8 %v732
        %v752 = vunpack.c.1.s8 %v732
        %v753 = vunpack.c.0.s8 %v733
        %v754 = vunpack.c.1.s8 %v733
        %v755 = vunpack.c.0.s8 %v734
        %v756 = vunpack.c.1.s8 %v734
        %v757 = vunpack.c.0.s8 %v735
        %v758 = vunpack.c.1.s8 %v735
        %v759 = vunpack.c.0.s8 %v736
        %v760 = vunpack.c.1.s8 %v736
        %v761 = vunpack.c.0.s8 %v737
        %v762 = vunpack.c.1.s8 %v737
        %v763 = vunpack.c.0.s8 %v738
        %v764 = vunpack.c.1.s8 %v738
        %v765 = vunpack.c.0.s8 %v739
        %v766 = vunpack.c.1.s8 %v739
        %v767 = vunpack.c.0.s8 %v740
        %v768 = vunpack.c.1.s8 %v740
        %v769 = vunpack.c.0.s8 %v741
        %v770 = vunpack.c.1.s8 %v741
        %v771 = vunpack.c.0.s8 %v742
        %v772 = vunpack.c.1.s8 %v742
        %v773 = vunpack.c.0.s8 %v743
        %v774 = vunpack.c.1.s8 %v743
        %v775 = vunpack.c.0.s8 %v744
        %v776 = vunpack.c.1.s8 %v744
        %vm777 = vcmp.ne.s32.totalorder %v745, 0
        %vm778 = vcmp.ne.s32.totalorder %v746, 0
        %vm779 = vcmp.ne.s32.totalorder %v747, 0
        %vm780 = vcmp.ne.s32.totalorder %v748, 0
        %vm781 = vcmp.ne.s32.totalorder %v749, 0
        %vm782 = vcmp.ne.s32.totalorder %v750, 0
        %vm783 = vcmp.ne.s32.totalorder %v751, 0
        %vm784 = vcmp.ne.s32.totalorder %v752, 0
        %vm785 = vcmp.ne.s32.totalorder %v753, 0
        %vm786 = vcmp.ne.s32.totalorder %v754, 0
        %vm787 = vcmp.ne.s32.totalorder %v755, 0
        %vm788 = vcmp.ne.s32.totalorder %v756, 0
        %vm789 = vcmp.ne.s32.totalorder %v757, 0
        %vm790 = vcmp.ne.s32.totalorder %v758, 0
        %vm791 = vcmp.ne.s32.totalorder %v759, 0
        %vm792 = vcmp.ne.s32.totalorder %v760, 0
        %vm793 = vcmp.ne.s32.totalorder %v761, 0
        %vm794 = vcmp.ne.s32.totalorder %v762, 0
        %vm795 = vcmp.ne.s32.totalorder %v763, 0
        %vm796 = vcmp.ne.s32.totalorder %v764, 0
        %vm797 = vcmp.ne.s32.totalorder %v765, 0
        %vm798 = vcmp.ne.s32.totalorder %v766, 0
        %vm799 = vcmp.ne.s32.totalorder %v767, 0
        %vm800 = vcmp.ne.s32.totalorder %v768, 0
        %vm801 = vcmp.ne.s32.totalorder %v769, 0
        %vm802 = vcmp.ne.s32.totalorder %v770, 0
        %vm803 = vcmp.ne.s32.totalorder %v771, 0
        %vm804 = vcmp.ne.s32.totalorder %v772, 0
        %vm805 = vcmp.ne.s32.totalorder %v773, 0
        %vm806 = vcmp.ne.s32.totalorder %v774, 0
        %vm807 = vcmp.ne.s32.totalorder %v775, 0
        %vm808 = vcmp.ne.s32.totalorder %v776, 0
        %v809 = vsel %vm777, %v609, -1e+30
        %v810 = vsel %vm778, %v610, -1e+30
        %v811 = vsel %vm779, %v611, -1e+30
        %v812 = vsel %vm780, %v612, -1e+30
        %v813 = vsel %vm781, %v613, -1e+30
        %v814 = vsel %vm782, %v614, -1e+30
        %v815 = vsel %vm783, %v615, -1e+30
        %v816 = vsel %vm784, %v616, -1e+30
        %v817 = vsel %vm785, %v617, -1e+30
        %v818 = vsel %vm786, %v618, -1e+30
        %v819 = vsel %vm787, %v619, -1e+30
        %v820 = vsel %vm788, %v620, -1e+30
        %v821 = vsel %vm789, %v621, -1e+30
        %v822 = vsel %vm790, %v622, -1e+30
        %v823 = vsel %vm791, %v623, -1e+30
        %v824 = vsel %vm792, %v624, -1e+30
        %v825 = vsel %vm793, %v625, -1e+30
        %v826 = vsel %vm794, %v626, -1e+30
        %v827 = vsel %vm795, %v627, -1e+30
        %v828 = vsel %vm796, %v628, -1e+30
        %v829 = vsel %vm797, %v629, -1e+30
        %v830 = vsel %vm798, %v630, -1e+30
        %v831 = vsel %vm799, %v631, -1e+30
        %v832 = vsel %vm800, %v632, -1e+30
        %v833 = vsel %vm801, %v633, -1e+30
        %v834 = vsel %vm802, %v634, -1e+30
        %v835 = vsel %vm803, %v635, -1e+30
        %v836 = vsel %vm804, %v636, -1e+30
        %v837 = vsel %vm805, %v637, -1e+30
        %v838 = vsel %vm806, %v638, -1e+30
        %v839 = vsel %vm807, %v639, -1e+30
        %v840 = vsel %vm808, %v640, -1e+30
        %v841 = vmax.f32 %v809, %v810
        %842 = vmax.xlane.f32.xlu0 %v841
        %v843 = vpop.xlane.xlu0 %842
        %v844 = vmax.f32 %v811, %v812
        %845 = vmax.xlane.f32.xlu0 %v844
        %v846 = vpop.xlane.xlu0 %845
        %v847 = vmax.f32 %v813, %v814
        %848 = vmax.xlane.f32.xlu0 %v847
        %v849 = vpop.xlane.xlu0 %848
        %v850 = vmax.f32 %v815, %v816
        %851 = vmax.xlane.f32.xlu0 %v850
        %v852 = vpop.xlane.xlu0 %851
        %v853 = vmax.f32 %v817, %v818
        %854 = vmax.xlane.f32.xlu0 %v853
        %v855 = vpop.xlane.xlu0 %854
        %v856 = vmax.f32 %v819, %v820
        %857 = vmax.xlane.f32.xlu0 %v856
        %v858 = vpop.xlane.xlu0 %857
        %v859 = vmax.f32 %v821, %v822
        %860 = vmax.xlane.f32.xlu0 %v859
        %v861 = vpop.xlane.xlu0 %860
        %v862 = vmax.f32 %v823, %v824
        %863 = vmax.xlane.f32.xlu0 %v862
        %v864 = vpop.xlane.xlu0 %863
        %v865 = vmax.f32 %v825, %v826
        %866 = vmax.xlane.f32.xlu0 %v865
        %v867 = vpop.xlane.xlu0 %866
        %v868 = vmax.f32 %v827, %v828
        %869 = vmax.xlane.f32.xlu0 %v868
        %v870 = vpop.xlane.xlu0 %869
        %v871 = vmax.f32 %v829, %v830
        %872 = vmax.xlane.f32.xlu0 %v871
        %v873 = vpop.xlane.xlu0 %872
        %v874 = vmax.f32 %v831, %v832
        %875 = vmax.xlane.f32.xlu0 %v874
        %v876 = vpop.xlane.xlu0 %875
        %v877 = vmax.f32 %v833, %v834
        %878 = vmax.xlane.f32.xlu0 %v877
        %v879 = vpop.xlane.xlu0 %878
        %v880 = vmax.f32 %v835, %v836
        %881 = vmax.xlane.f32.xlu0 %v880
        %v882 = vpop.xlane.xlu0 %881
        %v883 = vmax.f32 %v837, %v838
        %884 = vmax.xlane.f32.xlu0 %v883
        %v885 = vpop.xlane.xlu0 %884
        %v886 = vmax.f32 %v839, %v840
        %887 = vmax.xlane.f32.xlu0 %v886
        %v888 = vpop.xlane.xlu0 %887
        %v889 = vmax.f32 %v430, %v843
        %v890 = vmax.f32 %v431, %v846
        %v891 = vmax.f32 %v432, %v849
        %v892 = vmax.f32 %v433, %v852
        %v893 = vmax.f32 %v434, %v855
        %v894 = vmax.f32 %v435, %v858
        %v895 = vmax.f32 %v436, %v861
        %v896 = vmax.f32 %v437, %v864
        %v897 = vmax.f32 %v438, %v867
        %v898 = vmax.f32 %v439, %v870
        %v899 = vmax.f32 %v440, %v873
        %v900 = vmax.f32 %v441, %v876
        %v901 = vmax.f32 %v442, %v879
        %v902 = vmax.f32 %v443, %v882
        %v903 = vmax.f32 %v444, %v885
        %v904 = vmax.f32 %v445, %v888
        %906 = vset.pattern.permute.xlu0 0
        %907 = vperm.xlu0 %906, %v889
        %v908 = vpop.permute.xlu0 %907
        %911 = vset.pattern.permute.xlu0 0
        %912 = vperm.xlu0 %911, %v890
        %v913 = vpop.permute.xlu0 %912
        %916 = vset.pattern.permute.xlu0 0
        %917 = vperm.xlu0 %916, %v891
        %v918 = vpop.permute.xlu0 %917
        %921 = vset.pattern.permute.xlu0 0
        %922 = vperm.xlu0 %921, %v892
        %v923 = vpop.permute.xlu0 %922
        %926 = vset.pattern.permute.xlu0 0
        %927 = vperm.xlu0 %926, %v893
        %v928 = vpop.permute.xlu0 %927
        %931 = vset.pattern.permute.xlu0 0
        %932 = vperm.xlu0 %931, %v894
        %v933 = vpop.permute.xlu0 %932
        %936 = vset.pattern.permute.xlu0 0
        %937 = vperm.xlu0 %936, %v895
        %v938 = vpop.permute.xlu0 %937
        %941 = vset.pattern.permute.xlu0 0
        %942 = vperm.xlu0 %941, %v896
        %v943 = vpop.permute.xlu0 %942
        %946 = vset.pattern.permute.xlu0 0
        %947 = vperm.xlu0 %946, %v897
        %v948 = vpop.permute.xlu0 %947
        %951 = vset.pattern.permute.xlu0 0
        %952 = vperm.xlu0 %951, %v898
        %v953 = vpop.permute.xlu0 %952
        %956 = vset.pattern.permute.xlu0 0
        %957 = vperm.xlu0 %956, %v899
        %v958 = vpop.permute.xlu0 %957
        %961 = vset.pattern.permute.xlu0 0
        %962 = vperm.xlu0 %961, %v900
        %v963 = vpop.permute.xlu0 %962
        %966 = vset.pattern.permute.xlu0 0
        %967 = vperm.xlu0 %966, %v901
        %v968 = vpop.permute.xlu0 %967
        %971 = vset.pattern.permute.xlu0 0
        %972 = vperm.xlu0 %971, %v902
        %v973 = vpop.permute.xlu0 %972
        %976 = vset.pattern.permute.xlu0 0
        %977 = vperm.xlu0 %976, %v903
        %v978 = vpop.permute.xlu0 %977
        %981 = vset.pattern.permute.xlu0 0
        %982 = vperm.xlu0 %981, %v904
        %v983 = vpop.permute.xlu0 %982
        %v985 = vsub.f32 %v809, %v908
        %v986 = vsub.f32 %v810, %v908
        %v987 = vsub.f32 %v811, %v913
        %v988 = vsub.f32 %v812, %v913
        %v989 = vsub.f32 %v813, %v918
        %v990 = vsub.f32 %v814, %v918
        %v991 = vsub.f32 %v815, %v923
        %v992 = vsub.f32 %v816, %v923
        %v993 = vsub.f32 %v817, %v928
        %v994 = vsub.f32 %v818, %v928
        %v995 = vsub.f32 %v819, %v933
        %v996 = vsub.f32 %v820, %v933
        %v997 = vsub.f32 %v821, %v938
        %v998 = vsub.f32 %v822, %v938
        %v999 = vsub.f32 %v823, %v943
        %v1000 = vsub.f32 %v824, %v943
        %v1001 = vsub.f32 %v825, %v948
        %v1002 = vsub.f32 %v826, %v948
        %v1003 = vsub.f32 %v827, %v953
        %v1004 = vsub.f32 %v828, %v953
        %v1005 = vsub.f32 %v829, %v958
        %v1006 = vsub.f32 %v830, %v958
        %v1007 = vsub.f32 %v831, %v963
        %v1008 = vsub.f32 %v832, %v963
        %v1009 = vsub.f32 %v833, %v968
        %v1010 = vsub.f32 %v834, %v968
        %v1011 = vsub.f32 %v835, %v973
        %v1012 = vsub.f32 %v836, %v973
        %v1013 = vsub.f32 %v837, %v978
        %v1014 = vsub.f32 %v838, %v978
        %v1015 = vsub.f32 %v839, %v983
        %v1016 = vsub.f32 %v840, %v983
        %v1017 = vmul.f32 %v985, 1.442695
        %v1018 = vpow.pop %v1017
        %v1019 = vmul.f32 %v986, 1.442695
        %v1020 = vpow.pop %v1019
        %v1021 = vmul.f32 %v987, 1.442695
        %v1022 = vpow.pop %v1021
        %v1023 = vmul.f32 %v988, 1.442695
        %v1024 = vpow.pop %v1023
        %v1025 = vmul.f32 %v989, 1.442695
        %v1026 = vpow.pop %v1025
        %v1027 = vmul.f32 %v990, 1.442695
        %v1028 = vpow.pop %v1027
        %v1029 = vmul.f32 %v991, 1.442695
        %v1030 = vpow.pop %v1029
        %v1031 = vmul.f32 %v992, 1.442695
        %v1032 = vpow.pop %v1031
        %v1033 = vmul.f32 %v993, 1.442695
        %v1034 = vpow.pop %v1033
        %v1035 = vmul.f32 %v994, 1.442695
        %v1036 = vpow.pop %v1035
        %v1037 = vmul.f32 %v995, 1.442695
        %v1038 = vpow.pop %v1037
        %v1039 = vmul.f32 %v996, 1.442695
        %v1040 = vpow.pop %v1039
        %v1041 = vmul.f32 %v997, 1.442695
        %v1042 = vpow.pop %v1041
        %v1043 = vmul.f32 %v998, 1.442695
        %v1044 = vpow.pop %v1043
        %v1045 = vmul.f32 %v999, 1.442695
        %v1046 = vpow.pop %v1045
        %v1047 = vmul.f32 %v1000, 1.442695
        %v1048 = vpow.pop %v1047
        %v1049 = vmul.f32 %v1001, 1.442695
        %v1050 = vpow.pop %v1049
        %v1051 = vmul.f32 %v1002, 1.442695
        %v1052 = vpow.pop %v1051
        %v1053 = vmul.f32 %v1003, 1.442695
        %v1054 = vpow.pop %v1053
        %v1055 = vmul.f32 %v1004, 1.442695
        %v1056 = vpow.pop %v1055
        %v1057 = vmul.f32 %v1005, 1.442695
        %v1058 = vpow.pop %v1057
        %v1059 = vmul.f32 %v1006, 1.442695
        %v1060 = vpow.pop %v1059
        %v1061 = vmul.f32 %v1007, 1.442695
        %v1062 = vpow.pop %v1061
        %v1063 = vmul.f32 %v1008, 1.442695
        %v1064 = vpow.pop %v1063
        %v1065 = vmul.f32 %v1009, 1.442695
        %v1066 = vpow.pop %v1065
        %v1067 = vmul.f32 %v1010, 1.442695
        %v1068 = vpow.pop %v1067
        %v1069 = vmul.f32 %v1011, 1.442695
        %v1070 = vpow.pop %v1069
        %v1071 = vmul.f32 %v1012, 1.442695
        %v1072 = vpow.pop %v1071
        %v1073 = vmul.f32 %v1013, 1.442695
        %v1074 = vpow.pop %v1073
        %v1075 = vmul.f32 %v1014, 1.442695
        %v1076 = vpow.pop %v1075
        %v1077 = vmul.f32 %v1015, 1.442695
        %v1078 = vpow.pop %v1077
        %v1079 = vmul.f32 %v1016, 1.442695
        %v1080 = vpow.pop %v1079
        %v1081 = vsel %vm777, %v1018, 0.0
        %v1082 = vsel %vm778, %v1020, 0.0
        %v1083 = vsel %vm779, %v1022, 0.0
        %v1084 = vsel %vm780, %v1024, 0.0
        %v1085 = vsel %vm781, %v1026, 0.0
        %v1086 = vsel %vm782, %v1028, 0.0
        %v1087 = vsel %vm783, %v1030, 0.0
        %v1088 = vsel %vm784, %v1032, 0.0
        %v1089 = vsel %vm785, %v1034, 0.0
        %v1090 = vsel %vm786, %v1036, 0.0
        %v1091 = vsel %vm787, %v1038, 0.0
        %v1092 = vsel %vm788, %v1040, 0.0
        %v1093 = vsel %vm789, %v1042, 0.0
        %v1094 = vsel %vm790, %v1044, 0.0
        %v1095 = vsel %vm791, %v1046, 0.0
        %v1096 = vsel %vm792, %v1048, 0.0
        %v1097 = vsel %vm793, %v1050, 0.0
        %v1098 = vsel %vm794, %v1052, 0.0
        %v1099 = vsel %vm795, %v1054, 0.0
        %v1100 = vsel %vm796, %v1056, 0.0
        %v1101 = vsel %vm797, %v1058, 0.0
        %v1102 = vsel %vm798, %v1060, 0.0
        %v1103 = vsel %vm799, %v1062, 0.0
        %v1104 = vsel %vm800, %v1064, 0.0
        %v1105 = vsel %vm801, %v1066, 0.0
        %v1106 = vsel %vm802, %v1068, 0.0
        %v1107 = vsel %vm803, %v1070, 0.0
        %v1108 = vsel %vm804, %v1072, 0.0
        %v1109 = vsel %vm805, %v1074, 0.0
        %v1110 = vsel %vm806, %v1076, 0.0
        %v1111 = vsel %vm807, %v1078, 0.0
        %v1112 = vsel %vm808, %v1080, 0.0
        %v1113 = vadd.f32 %v1081, %v1082
        %1114 = vadd.xlane.f32.xlu0 %v1113
        %v1115 = vpop.xlane.xlu0 %1114
        %v1116 = vadd.f32 %v1083, %v1084
        %1117 = vadd.xlane.f32.xlu0 %v1116
        %v1118 = vpop.xlane.xlu0 %1117
        %v1119 = vadd.f32 %v1085, %v1086
        %1120 = vadd.xlane.f32.xlu0 %v1119
        %v1121 = vpop.xlane.xlu0 %1120
        %v1122 = vadd.f32 %v1087, %v1088
        %1123 = vadd.xlane.f32.xlu0 %v1122
        %v1124 = vpop.xlane.xlu0 %1123
        %v1125 = vadd.f32 %v1089, %v1090
        %1126 = vadd.xlane.f32.xlu0 %v1125
        %v1127 = vpop.xlane.xlu0 %1126
        %v1128 = vadd.f32 %v1091, %v1092
        %1129 = vadd.xlane.f32.xlu0 %v1128
        %v1130 = vpop.xlane.xlu0 %1129
        %v1131 = vadd.f32 %v1093, %v1094
        %1132 = vadd.xlane.f32.xlu0 %v1131
        %v1133 = vpop.xlane.xlu0 %1132
        %v1134 = vadd.f32 %v1095, %v1096
        %1135 = vadd.xlane.f32.xlu0 %v1134
        %v1136 = vpop.xlane.xlu0 %1135
        %v1137 = vadd.f32 %v1097, %v1098
        %1138 = vadd.xlane.f32.xlu0 %v1137
        %v1139 = vpop.xlane.xlu0 %1138
        %v1140 = vadd.f32 %v1099, %v1100
        %1141 = vadd.xlane.f32.xlu0 %v1140
        %v1142 = vpop.xlane.xlu0 %1141
        %v1143 = vadd.f32 %v1101, %v1102
        %1144 = vadd.xlane.f32.xlu0 %v1143
        %v1145 = vpop.xlane.xlu0 %1144
        %v1146 = vadd.f32 %v1103, %v1104
        %1147 = vadd.xlane.f32.xlu0 %v1146
        %v1148 = vpop.xlane.xlu0 %1147
        %v1149 = vadd.f32 %v1105, %v1106
        %1150 = vadd.xlane.f32.xlu0 %v1149
        %v1151 = vpop.xlane.xlu0 %1150
        %v1152 = vadd.f32 %v1107, %v1108
        %1153 = vadd.xlane.f32.xlu0 %v1152
        %v1154 = vpop.xlane.xlu0 %1153
        %v1155 = vadd.f32 %v1109, %v1110
        %1156 = vadd.xlane.f32.xlu0 %v1155
        %v1157 = vpop.xlane.xlu0 %1156
        %v1158 = vadd.f32 %v1111, %v1112
        %1159 = vadd.xlane.f32.xlu0 %v1158
        %v1160 = vpop.xlane.xlu0 %1159
        %1161 = vmatprep.subr.mxu0 0.0
        %1162 = vmatpush1.msra.mxu0 %v381
        %1163 = vmatprep.subr.mxu0 0.0
        %1164 = vmatpush1.msra.mxu0 %v382
        %1165 = vmatprep.subr.mxu0 0.0
        %1166 = vmatpush1.msra.mxu0 %v383
        %1167 = vmatprep.subr.mxu0 0.0
        %1168 = vmatpush1.msra.mxu0 %v384
        %1169 = vmatprep.subr.mxu0 0.0
        %1170 = vmatpush1.msra.mxu0 %v385
        %1171 = vmatprep.subr.mxu0 0.0
        %1172 = vmatpush1.msra.mxu0 %v386
        %1173 = vmatprep.subr.mxu0 0.0
        %1174 = vmatpush1.msra.mxu0 %v387
        %1175 = vmatprep.subr.mxu0 0.0
        %1176 = vmatpush1.msra.mxu0 %v388
        %1177 = vmatprep.subr.mxu0 0.0
        %1178 = vmatpush1.msra.mxu0 %v389
        %1179 = vmatprep.subr.mxu0 0.0
        %1180 = vmatpush1.msra.mxu0 %v390
        %1181 = vmatprep.subr.mxu0 0.0
        %1182 = vmatpush1.msra.mxu0 %v391
        %1183 = vmatprep.subr.mxu0 0.0
        %1184 = vmatpush1.msra.mxu0 %v392
        %1185 = vmatprep.subr.mxu0 0.0
        %1186 = vmatpush1.msra.mxu0 %v393
        %1187 = vmatprep.subr.mxu0 0.0
        %1188 = vmatpush1.msra.mxu0 %v394
        %1189 = vmatprep.subr.mxu0 0.0
        %1190 = vmatpush1.msra.mxu0 %v395
        %1191 = vmatprep.subr.mxu0 0.0
        %1192 = vmatpush1.msra.mxu0 %v396
        %1193 = vmatprep.subr.mxu0 0.0
        %1194 = vmatpush1.msra.mxu0 %v397
        %1195 = vmatprep.subr.mxu0 0.0
        %1196 = vmatpush1.msra.mxu0 %v398
        %1197 = vmatprep.subr.mxu0 0.0
        %1198 = vmatpush1.msra.mxu0 %v399
        %1199 = vmatprep.subr.mxu0 0.0
        %1200 = vmatpush1.msra.mxu0 %v400
        %1201 = vmatprep.subr.mxu0 0.0
        %1202 = vmatpush1.msra.mxu0 %v401
        %1203 = vmatprep.subr.mxu0 0.0
        %1204 = vmatpush1.msra.mxu0 %v402
        %1205 = vmatprep.subr.mxu0 0.0
        %1206 = vmatpush1.msra.mxu0 %v403
        %1207 = vmatprep.subr.mxu0 0.0
        %1208 = vmatpush1.msra.mxu0 %v404
        %1209 = vmatprep.subr.mxu0 0.0
        %1210 = vmatpush1.msra.mxu0 %v405
        %1211 = vmatprep.subr.mxu0 0.0
        %1212 = vmatpush1.msra.mxu0 %v406
        %1213 = vmatprep.subr.mxu0 0.0
        %1214 = vmatpush1.msra.mxu0 %v407
        %1215 = vmatprep.subr.mxu0 0.0
        %1216 = vmatpush1.msra.mxu0 %v408
        %1217 = vmatprep.subr.mxu0 0.0
        %1218 = vmatpush1.msra.mxu0 %v409
        %1219 = vmatprep.subr.mxu0 0.0
        %1220 = vmatpush1.msra.mxu0 %v410
        %1221 = vmatprep.subr.mxu0 0.0
        %1222 = vmatpush1.msra.mxu0 %v411
        %1223 = vmatprep.subr.mxu0 0.0
        %1224 = vmatpush1.msra.mxu0 %v412
        %1225 = vmatprep.mubr.f32.mxu0 %v1082
        %1226 = vmatmul.mubr.f32.gmra.mrb[0].mxu0 %v1081
        %v1227 = vpop.f32.mrb[0].mxu0
        %v1228 = vadd.f32 0.0, %v1227
        %v1229 = vpop.f32.mrb[0].mxu0
        %1230 = vmatprep.mubr.f32.mxu0 %v1084
        %1231 = vmatmul.mubr.f32.gmra.mrb[0].mxu0 %v1083
        %v1232 = vpop.f32.mrb[0].mxu0
        %v1233 = vadd.f32 0.0, %v1232
        %v1234 = vpop.f32.mrb[0].mxu0
        %1235 = vmatprep.mubr.f32.mxu0 %v1086
        %1236 = vmatmul.mubr.f32.gmra.mrb[0].mxu0 %v1085
        %v1237 = vpop.f32.mrb[0].mxu0
        %v1238 = vadd.f32 0.0, %v1237
        %v1239 = vpop.f32.mrb[0].mxu0
        %1240 = vmatprep.mubr.f32.mxu0 %v1088
        %1241 = vmatmul.mubr.f32.gmra.mrb[0].mxu0 %v1087
        %v1242 = vpop.f32.mrb[0].mxu0
        %v1243 = vadd.f32 0.0, %v1242
        %v1244 = vpop.f32.mrb[0].mxu0
        %1245 = vmatprep.mubr.f32.mxu0 %v1090
        %1246 = vmatmul.mubr.f32.gmra.mrb[0].mxu0 %v1089
        %v1247 = vpop.f32.mrb[0].mxu0
        %v1248 = vadd.f32 0.0, %v1247
        %v1249 = vpop.f32.mrb[0].mxu0
        %1250 = vmatprep.mubr.f32.mxu0 %v1092
        %1251 = vmatmul.mubr.f32.gmra.mrb[0].mxu0 %v1091
        %v1252 = vpop.f32.mrb[0].mxu0
        %v1253 = vadd.f32 0.0, %v1252
        %v1254 = vpop.f32.mrb[0].mxu0
        %1255 = vmatprep.mubr.f32.mxu0 %v1094
        %1256 = vmatmul.mubr.f32.gmra.mrb[0].mxu0 %v1093
        %v1257 = vpop.f32.mrb[0].mxu0
        %v1258 = vadd.f32 0.0, %v1257
        %v1259 = vpop.f32.mrb[0].mxu0
        %1260 = vmatprep.mubr.f32.mxu0 %v1096
        %1261 = vmatmul.mubr.f32.gmra.mrb[0].mxu0 %v1095
        %v1262 = vpop.f32.mrb[0].mxu0
        %v1263 = vadd.f32 0.0, %v1262
        %v1264 = vpop.f32.mrb[0].mxu0
        %1265 = vmatprep.mubr.f32.mxu0 %v1098
        %1266 = vmatmul.mubr.f32.gmra.mrb[0].mxu0 %v1097
        %v1267 = vpop.f32.mrb[0].mxu0
        %v1268 = vadd.f32 0.0, %v1267
        %v1269 = vpop.f32.mrb[0].mxu0
        %1270 = vmatprep.mubr.f32.mxu0 %v1100
        %1271 = vmatmul.mubr.f32.gmra.mrb[0].mxu0 %v1099
        %v1272 = vpop.f32.mrb[0].mxu0
        %v1273 = vadd.f32 0.0, %v1272
        %v1274 = vpop.f32.mrb[0].mxu0
        %1275 = vmatprep.mubr.f32.mxu0 %v1102
        %1276 = vmatmul.mubr.f32.gmra.mrb[0].mxu0 %v1101
        %v1277 = vpop.f32.mrb[0].mxu0
        %v1278 = vadd.f32 0.0, %v1277
        %v1279 = vpop.f32.mrb[0].mxu0
        %1280 = vmatprep.mubr.f32.mxu0 %v1104
        %1281 = vmatmul.mubr.f32.gmra.mrb[0].mxu0 %v1103
        %v1282 = vpop.f32.mrb[0].mxu0
        %v1283 = vadd.f32 0.0, %v1282
        %v1284 = vpop.f32.mrb[0].mxu0
        %1285 = vmatprep.mubr.f32.mxu0 %v1106
        %1286 = vmatmul.mubr.f32.gmra.mrb[0].mxu0 %v1105
        %v1287 = vpop.f32.mrb[0].mxu0
        %v1288 = vadd.f32 0.0, %v1287
        %v1289 = vpop.f32.mrb[0].mxu0
        %1290 = vmatprep.mubr.f32.mxu0 %v1108
        %1291 = vmatmul.mubr.f32.gmra.mrb[0].mxu0 %v1107
        %v1292 = vpop.f32.mrb[0].mxu0
        %v1293 = vadd.f32 0.0, %v1292
        %v1294 = vpop.f32.mrb[0].mxu0
        %1295 = vmatprep.mubr.f32.mxu0 %v1110
        %1296 = vmatmul.mubr.f32.gmra.mrb[0].mxu0 %v1109
        %v1297 = vpop.f32.mrb[0].mxu0
        %v1298 = vadd.f32 0.0, %v1297
        %v1299 = vpop.f32.mrb[0].mxu0
        %1300 = vmatprep.mubr.f32.mxu0 %v1112
        %1301 = vmatmul.mubr.f32.gmra.mrb[0].mxu0 %v1111
        %v1302 = vpop.f32.mrb[0].mxu0
        %v1303 = vadd.f32 0.0, %v1302
        %v1304 = vpop.f32.mrb[0].mxu0
        %1305 = vdwg.mxu0
        %1306 = vset.pattern.permute.xlu0 1
        %1307 = vperm.xlu0 %1306, %v413
        %v1308 = vpop.permute.xlu0 %1307
        %1310 = vset.pattern.permute.xlu0 1
        %1311 = vperm.xlu0 %1310, %v414
        %v1312 = vpop.permute.xlu0 %1311
        %1314 = vset.pattern.permute.xlu0 1
        %1315 = vperm.xlu0 %1314, %v415
        %v1316 = vpop.permute.xlu0 %1315
        %1318 = vset.pattern.permute.xlu0 1
        %1319 = vperm.xlu0 %1318, %v416
        %v1320 = vpop.permute.xlu0 %1319
        %1322 = vset.pattern.permute.xlu0 1
        %1323 = vperm.xlu0 %1322, %v417
        %v1324 = vpop.permute.xlu0 %1323
        %1326 = vset.pattern.permute.xlu0 1
        %1327 = vperm.xlu0 %1326, %v418
        %v1328 = vpop.permute.xlu0 %1327
        %1330 = vset.pattern.permute.xlu0 1
        %1331 = vperm.xlu0 %1330, %v419
        %v1332 = vpop.permute.xlu0 %1331
        %1334 = vset.pattern.permute.xlu0 1
        %1335 = vperm.xlu0 %1334, %v420
        %v1336 = vpop.permute.xlu0 %1335
        %1338 = vset.pattern.permute.xlu0 1
        %1339 = vperm.xlu0 %1338, %v421
        %v1340 = vpop.permute.xlu0 %1339
        %1342 = vset.pattern.permute.xlu0 1
        %1343 = vperm.xlu0 %1342, %v422
        %v1344 = vpop.permute.xlu0 %1343
        %1346 = vset.pattern.permute.xlu0 1
        %1347 = vperm.xlu0 %1346, %v423
        %v1348 = vpop.permute.xlu0 %1347
        %1350 = vset.pattern.permute.xlu0 1
        %1351 = vperm.xlu0 %1350, %v424
        %v1352 = vpop.permute.xlu0 %1351
        %1354 = vset.pattern.permute.xlu0 1
        %1355 = vperm.xlu0 %1354, %v425
        %v1356 = vpop.permute.xlu0 %1355
        %1358 = vset.pattern.permute.xlu0 1
        %1359 = vperm.xlu0 %1358, %v426
        %v1360 = vpop.permute.xlu0 %1359
        %1362 = vset.pattern.permute.xlu0 1
        %1363 = vperm.xlu0 %1362, %v427
        %v1364 = vpop.permute.xlu0 %1363
        %1366 = vset.pattern.permute.xlu0 1
        %1367 = vperm.xlu0 %1366, %v428
        %v1368 = vpop.permute.xlu0 %1367
        %v1370 = vlaneseq
        %v1371 = vshrl.u32 %v1370, 7
        %v1372 = vsub.s32 1, %v1371
        %v1373 = vrot.slane %v429, %v1372
        %v1374 = vlaneseq
        %v1375 = vshrl.u32 %v1374, 7
        %v1376 = vsub.s32 5, %v1375
        %v1377 = vrot.slane %v429, %v1376
        %v1380 = vlaneseq
        %v1381 = vshrl.u32 %v1380, 7
        %v1382 = vsub.s32 1, %v1381
        %v1383 = vrot.slane %v1373, %v1382
        %v1384 = vlaneseq
        %v1385 = vshrl.u32 %v1384, 7
        %v1386 = vsub.s32 1, %v1385
        %v1387 = vrot.slane %v1377, %v1386
        %v1388 = vadd.f32 %v1308, %v1383
        %v1389 = vadd.f32 %v1308, %v1387
        %v1390 = vadd.f32 %v1312, %v1383
        %v1391 = vadd.f32 %v1312, %v1387
        %v1392 = vadd.f32 %v1316, %v1383
        %v1393 = vadd.f32 %v1316, %v1387
        %v1394 = vadd.f32 %v1320, %v1383
        %v1395 = vadd.f32 %v1320, %v1387
        %v1396 = vadd.f32 %v1324, %v1383
        %v1397 = vadd.f32 %v1324, %v1387
        %v1398 = vadd.f32 %v1328, %v1383
        %v1399 = vadd.f32 %v1328, %v1387
        %v1400 = vadd.f32 %v1332, %v1383
        %v1401 = vadd.f32 %v1332, %v1387
        %v1402 = vadd.f32 %v1336, %v1383
        %v1403 = vadd.f32 %v1336, %v1387
        %v1404 = vadd.f32 %v1340, %v1383
        %v1405 = vadd.f32 %v1340, %v1387
        %v1406 = vadd.f32 %v1344, %v1383
        %v1407 = vadd.f32 %v1344, %v1387
        %v1408 = vadd.f32 %v1348, %v1383
        %v1409 = vadd.f32 %v1348, %v1387
        %v1410 = vadd.f32 %v1352, %v1383
        %v1411 = vadd.f32 %v1352, %v1387
        %v1412 = vadd.f32 %v1356, %v1383
        %v1413 = vadd.f32 %v1356, %v1387
        %v1414 = vadd.f32 %v1360, %v1383
        %v1415 = vadd.f32 %v1360, %v1387
        %v1416 = vadd.f32 %v1364, %v1383
        %v1417 = vadd.f32 %v1364, %v1387
        %v1418 = vadd.f32 %v1368, %v1383
        %v1419 = vadd.f32 %v1368, %v1387
        %v1420 = vmul.f32 %v1388, 0.2
        %v1421 = vmul.f32 %v1389, 0.2
        %v1422 = vmul.f32 %v1390, 0.2
        %v1423 = vmul.f32 %v1391, 0.2
        %v1424 = vmul.f32 %v1392, 0.2
        %v1425 = vmul.f32 %v1393, 0.2
        %v1426 = vmul.f32 %v1394, 0.2
        %v1427 = vmul.f32 %v1395, 0.2
        %v1428 = vmul.f32 %v1396, 0.2
        %v1429 = vmul.f32 %v1397, 0.2
        %v1430 = vmul.f32 %v1398, 0.2
        %v1431 = vmul.f32 %v1399, 0.2
        %v1432 = vmul.f32 %v1400, 0.2
        %v1433 = vmul.f32 %v1401, 0.2
        %v1434 = vmul.f32 %v1402, 0.2
        %v1435 = vmul.f32 %v1403, 0.2
        %v1436 = vmul.f32 %v1404, 0.2
        %v1437 = vmul.f32 %v1405, 0.2
        %v1438 = vmul.f32 %v1406, 0.2
        %v1439 = vmul.f32 %v1407, 0.2
        %v1440 = vmul.f32 %v1408, 0.2
        %v1441 = vmul.f32 %v1409, 0.2
        %v1442 = vmul.f32 %v1410, 0.2
        %v1443 = vmul.f32 %v1411, 0.2
        %v1444 = vmul.f32 %v1412, 0.2
        %v1445 = vmul.f32 %v1413, 0.2
        %v1446 = vmul.f32 %v1414, 0.2
        %v1447 = vmul.f32 %v1415, 0.2
        %v1448 = vmul.f32 %v1416, 0.2
        %v1449 = vmul.f32 %v1417, 0.2
        %v1450 = vmul.f32 %v1418, 0.2
        %v1451 = vmul.f32 %v1419, 0.2
        %v1452 = vmax.f32 %v1388, %v1420
        %v1453 = vmax.f32 %v1389, %v1421
        %v1454 = vmax.f32 %v1390, %v1422
        %v1455 = vmax.f32 %v1391, %v1423
        %v1456 = vmax.f32 %v1392, %v1424
        %v1457 = vmax.f32 %v1393, %v1425
        %v1458 = vmax.f32 %v1394, %v1426
        %v1459 = vmax.f32 %v1395, %v1427
        %v1460 = vmax.f32 %v1396, %v1428
        %v1461 = vmax.f32 %v1397, %v1429
        %v1462 = vmax.f32 %v1398, %v1430
        %v1463 = vmax.f32 %v1399, %v1431
        %v1464 = vmax.f32 %v1400, %v1432
        %v1465 = vmax.f32 %v1401, %v1433
        %v1466 = vmax.f32 %v1402, %v1434
        %v1467 = vmax.f32 %v1403, %v1435
        %v1468 = vmax.f32 %v1404, %v1436
        %v1469 = vmax.f32 %v1405, %v1437
        %v1470 = vmax.f32 %v1406, %v1438
        %v1471 = vmax.f32 %v1407, %v1439
        %v1472 = vmax.f32 %v1408, %v1440
        %v1473 = vmax.f32 %v1409, %v1441
        %v1474 = vmax.f32 %v1410, %v1442
        %v1475 = vmax.f32 %v1411, %v1443
        %v1476 = vmax.f32 %v1412, %v1444
        %v1477 = vmax.f32 %v1413, %v1445
        %v1478 = vmax.f32 %v1414, %v1446
        %v1479 = vmax.f32 %v1415, %v1447
        %v1480 = vmax.f32 %v1416, %v1448
        %v1481 = vmax.f32 %v1417, %v1449
        %v1482 = vmax.f32 %v1418, %v1450
        %v1483 = vmax.f32 %v1419, %v1451
        %v1484 = vsel %vm777, %v1452, -1e+30
        %v1485 = vsel %vm778, %v1453, -1e+30
        %v1486 = vsel %vm779, %v1454, -1e+30
        %v1487 = vsel %vm780, %v1455, -1e+30
        %v1488 = vsel %vm781, %v1456, -1e+30
        %v1489 = vsel %vm782, %v1457, -1e+30
        %v1490 = vsel %vm783, %v1458, -1e+30
        %v1491 = vsel %vm784, %v1459, -1e+30
        %v1492 = vsel %vm785, %v1460, -1e+30
        %v1493 = vsel %vm786, %v1461, -1e+30
        %v1494 = vsel %vm787, %v1462, -1e+30
        %v1495 = vsel %vm788, %v1463, -1e+30
        %v1496 = vsel %vm789, %v1464, -1e+30
        %v1497 = vsel %vm790, %v1465, -1e+30
        %v1498 = vsel %vm791, %v1466, -1e+30
        %v1499 = vsel %vm792, %v1467, -1e+30
        %v1500 = vsel %vm793, %v1468, -1e+30
        %v1501 = vsel %vm794, %v1469, -1e+30
        %v1502 = vsel %vm795, %v1470, -1e+30
        %v1503 = vsel %vm796, %v1471, -1e+30
        %v1504 = vsel %vm797, %v1472, -1e+30
        %v1505 = vsel %vm798, %v1473, -1e+30
        %v1506 = vsel %vm799, %v1474, -1e+30
        %v1507 = vsel %vm800, %v1475, -1e+30
        %v1508 = vsel %vm801, %v1476, -1e+30
        %v1509 = vsel %vm802, %v1477, -1e+30
        %v1510 = vsel %vm803, %v1478, -1e+30
        %v1511 = vsel %vm804, %v1479, -1e+30
        %v1512 = vsel %vm805, %v1480, -1e+30
        %v1513 = vsel %vm806, %v1481, -1e+30
        %v1514 = vsel %vm807, %v1482, -1e+30
        %v1515 = vsel %vm808, %v1483, -1e+30
        %v1516 = vmax.f32 %v1484, %v1485
        %1517 = vmax.xlane.f32.xlu0 %v1516
        %v1518 = vpop.xlane.xlu0 %1517
        %v1519 = vmax.f32 %v1486, %v1487
        %1520 = vmax.xlane.f32.xlu0 %v1519
        %v1521 = vpop.xlane.xlu0 %1520
        %v1522 = vmax.f32 %v1488, %v1489
        %1523 = vmax.xlane.f32.xlu0 %v1522
        %v1524 = vpop.xlane.xlu0 %1523
        %v1525 = vmax.f32 %v1490, %v1491
        %1526 = vmax.xlane.f32.xlu0 %v1525
        %v1527 = vpop.xlane.xlu0 %1526
        %v1528 = vmax.f32 %v1492, %v1493
        %1529 = vmax.xlane.f32.xlu0 %v1528
        %v1530 = vpop.xlane.xlu0 %1529
        %v1531 = vmax.f32 %v1494, %v1495
        %1532 = vmax.xlane.f32.xlu0 %v1531
        %v1533 = vpop.xlane.xlu0 %1532
        %v1534 = vmax.f32 %v1496, %v1497
        %1535 = vmax.xlane.f32.xlu0 %v1534
        %v1536 = vpop.xlane.xlu0 %1535
        %v1537 = vmax.f32 %v1498, %v1499
        %1538 = vmax.xlane.f32.xlu0 %v1537
        %v1539 = vpop.xlane.xlu0 %1538
        %v1540 = vmax.f32 %v1500, %v1501
        %1541 = vmax.xlane.f32.xlu0 %v1540
        %v1542 = vpop.xlane.xlu0 %1541
        %v1543 = vmax.f32 %v1502, %v1503
        %1544 = vmax.xlane.f32.xlu0 %v1543
        %v1545 = vpop.xlane.xlu0 %1544
        %v1546 = vmax.f32 %v1504, %v1505
        %1547 = vmax.xlane.f32.xlu0 %v1546
        %v1548 = vpop.xlane.xlu0 %1547
        %v1549 = vmax.f32 %v1506, %v1507
        %1550 = vmax.xlane.f32.xlu0 %v1549
        %v1551 = vpop.xlane.xlu0 %1550
        %v1552 = vmax.f32 %v1508, %v1509
        %1553 = vmax.xlane.f32.xlu0 %v1552
        %v1554 = vpop.xlane.xlu0 %1553
        %v1555 = vmax.f32 %v1510, %v1511
        %1556 = vmax.xlane.f32.xlu0 %v1555
        %v1557 = vpop.xlane.xlu0 %1556
        %v1558 = vmax.f32 %v1512, %v1513
        %1559 = vmax.xlane.f32.xlu0 %v1558
        %v1560 = vpop.xlane.xlu0 %1559
        %v1561 = vmax.f32 %v1514, %v1515
        %1562 = vmax.xlane.f32.xlu0 %v1561
        %v1563 = vpop.xlane.xlu0 %1562
        %v1564 = vmax.f32 %v430, %v1518
        %v1565 = vmax.f32 %v431, %v1521
        %v1566 = vmax.f32 %v432, %v1524
        %v1567 = vmax.f32 %v433, %v1527
        %v1568 = vmax.f32 %v434, %v1530
        %v1569 = vmax.f32 %v435, %v1533
        %v1570 = vmax.f32 %v436, %v1536
        %v1571 = vmax.f32 %v437, %v1539
        %v1572 = vmax.f32 %v438, %v1542
        %v1573 = vmax.f32 %v439, %v1545
        %v1574 = vmax.f32 %v440, %v1548
        %v1575 = vmax.f32 %v441, %v1551
        %v1576 = vmax.f32 %v442, %v1554
        %v1577 = vmax.f32 %v443, %v1557
        %v1578 = vmax.f32 %v444, %v1560
        %v1579 = vmax.f32 %v445, %v1563
        %1581 = vset.pattern.permute.xlu0 32
        %1582 = vperm.xlu0 %1581, %v1564
        %v1583 = vpop.permute.xlu0 %1582
        %1586 = vset.pattern.permute.xlu0 32
        %1587 = vperm.xlu0 %1586, %v1565
        %v1588 = vpop.permute.xlu0 %1587
        %1591 = vset.pattern.permute.xlu0 32
        %1592 = vperm.xlu0 %1591, %v1566
        %v1593 = vpop.permute.xlu0 %1592
        %1596 = vset.pattern.permute.xlu0 32
        %1597 = vperm.xlu0 %1596, %v1567
        %v1598 = vpop.permute.xlu0 %1597
        %1601 = vset.pattern.permute.xlu0 32
        %1602 = vperm.xlu0 %1601, %v1568
        %v1603 = vpop.permute.xlu0 %1602
        %1606 = vset.pattern.permute.xlu0 32
        %1607 = vperm.xlu0 %1606, %v1569
        %v1608 = vpop.permute.xlu0 %1607
        %1611 = vset.pattern.permute.xlu0 32
        %1612 = vperm.xlu0 %1611, %v1570
        %v1613 = vpop.permute.xlu0 %1612
        %1616 = vset.pattern.permute.xlu0 32
        %1617 = vperm.xlu0 %1616, %v1571
        %v1618 = vpop.permute.xlu0 %1617
        %1621 = vset.pattern.permute.xlu0 32
        %1622 = vperm.xlu0 %1621, %v1572
        %v1623 = vpop.permute.xlu0 %1622
        %1626 = vset.pattern.permute.xlu0 32
        %1627 = vperm.xlu0 %1626, %v1573
        %v1628 = vpop.permute.xlu0 %1627
        %1631 = vset.pattern.permute.xlu0 32
        %1632 = vperm.xlu0 %1631, %v1574
        %v1633 = vpop.permute.xlu0 %1632
        %1636 = vset.pattern.permute.xlu0 32
        %1637 = vperm.xlu0 %1636, %v1575
        %v1638 = vpop.permute.xlu0 %1637
        %1641 = vset.pattern.permute.xlu0 32
        %1642 = vperm.xlu0 %1641, %v1576
        %v1643 = vpop.permute.xlu0 %1642
        %1646 = vset.pattern.permute.xlu0 32
        %1647 = vperm.xlu0 %1646, %v1577
        %v1648 = vpop.permute.xlu0 %1647
        %1651 = vset.pattern.permute.xlu0 32
        %1652 = vperm.xlu0 %1651, %v1578
        %v1653 = vpop.permute.xlu0 %1652
        %1656 = vset.pattern.permute.xlu0 32
        %1657 = vperm.xlu0 %1656, %v1579
        %v1658 = vpop.permute.xlu0 %1657
        %v1660 = vsub.f32 %v1484, %v1583
        %v1661 = vsub.f32 %v1485, %v1583
        %v1662 = vsub.f32 %v1486, %v1588
        %v1663 = vsub.f32 %v1487, %v1588
        %v1664 = vsub.f32 %v1488, %v1593
        %v1665 = vsub.f32 %v1489, %v1593
        %v1666 = vsub.f32 %v1490, %v1598
        %v1667 = vsub.f32 %v1491, %v1598
        %v1668 = vsub.f32 %v1492, %v1603
        %v1669 = vsub.f32 %v1493, %v1603
        %v1670 = vsub.f32 %v1494, %v1608
        %v1671 = vsub.f32 %v1495, %v1608
        %v1672 = vsub.f32 %v1496, %v1613
        %v1673 = vsub.f32 %v1497, %v1613
        %v1674 = vsub.f32 %v1498, %v1618
        %v1675 = vsub.f32 %v1499, %v1618
        %v1676 = vsub.f32 %v1500, %v1623
        %v1677 = vsub.f32 %v1501, %v1623
        %v1678 = vsub.f32 %v1502, %v1628
        %v1679 = vsub.f32 %v1503, %v1628
        %v1680 = vsub.f32 %v1504, %v1633
        %v1681 = vsub.f32 %v1505, %v1633
        %v1682 = vsub.f32 %v1506, %v1638
        %v1683 = vsub.f32 %v1507, %v1638
        %v1684 = vsub.f32 %v1508, %v1643
        %v1685 = vsub.f32 %v1509, %v1643
        %v1686 = vsub.f32 %v1510, %v1648
        %v1687 = vsub.f32 %v1511, %v1648
        %v1688 = vsub.f32 %v1512, %v1653
        %v1689 = vsub.f32 %v1513, %v1653
        %v1690 = vsub.f32 %v1514, %v1658
        %v1691 = vsub.f32 %v1515, %v1658
        %v1692 = vmul.f32 %v1660, 1.442695
        %v1693 = vpow.pop %v1692
        %v1694 = vmul.f32 %v1661, 1.442695
        %v1695 = vpow.pop %v1694
        %v1696 = vmul.f32 %v1662, 1.442695
        %v1697 = vpow.pop %v1696
        %v1698 = vmul.f32 %v1663, 1.442695
        %v1699 = vpow.pop %v1698
        %v1700 = vmul.f32 %v1664, 1.442695
        %v1701 = vpow.pop %v1700
        %v1702 = vmul.f32 %v1665, 1.442695
        %v1703 = vpow.pop %v1702
        %v1704 = vmul.f32 %v1666, 1.442695
        %v1705 = vpow.pop %v1704
        %v1706 = vmul.f32 %v1667, 1.442695
        %v1707 = vpow.pop %v1706
        %v1708 = vmul.f32 %v1668, 1.442695
        %v1709 = vpow.pop %v1708
        %v1710 = vmul.f32 %v1669, 1.442695
        %v1711 = vpow.pop %v1710
        %v1712 = vmul.f32 %v1670, 1.442695
        %v1713 = vpow.pop %v1712
        %v1714 = vmul.f32 %v1671, 1.442695
        %v1715 = vpow.pop %v1714
        %v1716 = vmul.f32 %v1672, 1.442695
        %v1717 = vpow.pop %v1716
        %v1718 = vmul.f32 %v1673, 1.442695
        %v1719 = vpow.pop %v1718
        %v1720 = vmul.f32 %v1674, 1.442695
        %v1721 = vpow.pop %v1720
        %v1722 = vmul.f32 %v1675, 1.442695
        %v1723 = vpow.pop %v1722
        %v1724 = vmul.f32 %v1676, 1.442695
        %v1725 = vpow.pop %v1724
        %v1726 = vmul.f32 %v1677, 1.442695
        %v1727 = vpow.pop %v1726
        %v1728 = vmul.f32 %v1678, 1.442695
        %v1729 = vpow.pop %v1728
        %v1730 = vmul.f32 %v1679, 1.442695
        %v1731 = vpow.pop %v1730
        %v1732 = vmul.f32 %v1680, 1.442695
        %v1733 = vpow.pop %v1732
        %v1734 = vmul.f32 %v1681, 1.442695
        %v1735 = vpow.pop %v1734
        %v1736 = vmul.f32 %v1682, 1.442695
        %v1737 = vpow.pop %v1736
        %v1738 = vmul.f32 %v1683, 1.442695
        %v1739 = vpow.pop %v1738
        %v1740 = vmul.f32 %v1684, 1.442695
        %v1741 = vpow.pop %v1740
        %v1742 = vmul.f32 %v1685, 1.442695
        %v1743 = vpow.pop %v1742
        %v1744 = vmul.f32 %v1686, 1.442695
        %v1745 = vpow.pop %v1744
        %v1746 = vmul.f32 %v1687, 1.442695
        %v1747 = vpow.pop %v1746
        %v1748 = vmul.f32 %v1688, 1.442695
        %v1749 = vpow.pop %v1748
        %v1750 = vmul.f32 %v1689, 1.442695
        %v1751 = vpow.pop %v1750
        %v1752 = vmul.f32 %v1690, 1.442695
        %v1753 = vpow.pop %v1752
        %v1754 = vmul.f32 %v1691, 1.442695
        %v1755 = vpow.pop %v1754
        %v1756 = vsel %vm777, %v1693, 0.0
        %v1757 = vsel %vm778, %v1695, 0.0
        %v1758 = vsel %vm779, %v1697, 0.0
        %v1759 = vsel %vm780, %v1699, 0.0
        %v1760 = vsel %vm781, %v1701, 0.0
        %v1761 = vsel %vm782, %v1703, 0.0
        %v1762 = vsel %vm783, %v1705, 0.0
        %v1763 = vsel %vm784, %v1707, 0.0
        %v1764 = vsel %vm785, %v1709, 0.0
        %v1765 = vsel %vm786, %v1711, 0.0
        %v1766 = vsel %vm787, %v1713, 0.0
        %v1767 = vsel %vm788, %v1715, 0.0
        %v1768 = vsel %vm789, %v1717, 0.0
        %v1769 = vsel %vm790, %v1719, 0.0
        %v1770 = vsel %vm791, %v1721, 0.0
        %v1771 = vsel %vm792, %v1723, 0.0
        %v1772 = vsel %vm793, %v1725, 0.0
        %v1773 = vsel %vm794, %v1727, 0.0
        %v1774 = vsel %vm795, %v1729, 0.0
        %v1775 = vsel %vm796, %v1731, 0.0
        %v1776 = vsel %vm797, %v1733, 0.0
        %v1777 = vsel %vm798, %v1735, 0.0
        %v1778 = vsel %vm799, %v1737, 0.0
        %v1779 = vsel %vm800, %v1739, 0.0
        %v1780 = vsel %vm801, %v1741, 0.0
        %v1781 = vsel %vm802, %v1743, 0.0
        %v1782 = vsel %vm803, %v1745, 0.0
        %v1783 = vsel %vm804, %v1747, 0.0
        %v1784 = vsel %vm805, %v1749, 0.0
        %v1785 = vsel %vm806, %v1751, 0.0
        %v1786 = vsel %vm807, %v1753, 0.0
        %v1787 = vsel %vm808, %v1755, 0.0
        %v1788 = vadd.f32 %v1756, %v1757
        %1789 = vadd.xlane.f32.xlu0 %v1788
        %v1790 = vpop.xlane.xlu0 %1789
        %v1791 = vadd.f32 %v1758, %v1759
        %1792 = vadd.xlane.f32.xlu0 %v1791
        %v1793 = vpop.xlane.xlu0 %1792
        %v1794 = vadd.f32 %v1760, %v1761
        %1795 = vadd.xlane.f32.xlu0 %v1794
        %v1796 = vpop.xlane.xlu0 %1795
        %v1797 = vadd.f32 %v1762, %v1763
        %1798 = vadd.xlane.f32.xlu0 %v1797
        %v1799 = vpop.xlane.xlu0 %1798
        %v1800 = vadd.f32 %v1764, %v1765
        %1801 = vadd.xlane.f32.xlu0 %v1800
        %v1802 = vpop.xlane.xlu0 %1801
        %v1803 = vadd.f32 %v1766, %v1767
        %1804 = vadd.xlane.f32.xlu0 %v1803
        %v1805 = vpop.xlane.xlu0 %1804
        %v1806 = vadd.f32 %v1768, %v1769
        %1807 = vadd.xlane.f32.xlu0 %v1806
        %v1808 = vpop.xlane.xlu0 %1807
        %v1809 = vadd.f32 %v1770, %v1771
        %1810 = vadd.xlane.f32.xlu0 %v1809
        %v1811 = vpop.xlane.xlu0 %1810
        %v1812 = vadd.f32 %v1772, %v1773
        %1813 = vadd.xlane.f32.xlu0 %v1812
        %v1814 = vpop.xlane.xlu0 %1813
        %v1815 = vadd.f32 %v1774, %v1775
        %1816 = vadd.xlane.f32.xlu0 %v1815
        %v1817 = vpop.xlane.xlu0 %1816
        %v1818 = vadd.f32 %v1776, %v1777
        %1819 = vadd.xlane.f32.xlu0 %v1818
        %v1820 = vpop.xlane.xlu0 %1819
        %v1821 = vadd.f32 %v1778, %v1779
        %1822 = vadd.xlane.f32.xlu0 %v1821
        %v1823 = vpop.xlane.xlu0 %1822
        %v1824 = vadd.f32 %v1780, %v1781
        %1825 = vadd.xlane.f32.xlu0 %v1824
        %v1826 = vpop.xlane.xlu0 %1825
        %v1827 = vadd.f32 %v1782, %v1783
        %1828 = vadd.xlane.f32.xlu0 %v1827
        %v1829 = vpop.xlane.xlu0 %1828
        %v1830 = vadd.f32 %v1784, %v1785
        %1831 = vadd.xlane.f32.xlu0 %v1830
        %v1832 = vpop.xlane.xlu0 %1831
        %v1833 = vadd.f32 %v1786, %v1787
        %1834 = vadd.xlane.f32.xlu0 %v1833
        %v1835 = vpop.xlane.xlu0 %1834
        %1868 = vrot.lane.b32.xlu0 %v381, 96
        %v1869 = vpop.permute.xlu0 %1868
        %1870 = vrot.lane.b32.xlu0 %v382, 96
        %v1871 = vpop.permute.xlu0 %1870
        %1872 = vrot.lane.b32.xlu0 %v383, 96
        %v1873 = vpop.permute.xlu0 %1872
        %1874 = vrot.lane.b32.xlu0 %v384, 96
        %v1875 = vpop.permute.xlu0 %1874
        %1876 = vrot.lane.b32.xlu0 %v385, 96
        %v1877 = vpop.permute.xlu0 %1876
        %1878 = vrot.lane.b32.xlu0 %v386, 96
        %v1879 = vpop.permute.xlu0 %1878
        %1880 = vrot.lane.b32.xlu0 %v387, 96
        %v1881 = vpop.permute.xlu0 %1880
        %1882 = vrot.lane.b32.xlu0 %v388, 96
        %v1883 = vpop.permute.xlu0 %1882
        %1884 = vrot.lane.b32.xlu0 %v389, 96
        %v1885 = vpop.permute.xlu0 %1884
        %1886 = vrot.lane.b32.xlu0 %v390, 96
        %v1887 = vpop.permute.xlu0 %1886
        %1888 = vrot.lane.b32.xlu0 %v391, 96
        %v1889 = vpop.permute.xlu0 %1888
        %1890 = vrot.lane.b32.xlu0 %v392, 96
        %v1891 = vpop.permute.xlu0 %1890
        %1892 = vrot.lane.b32.xlu0 %v393, 96
        %v1893 = vpop.permute.xlu0 %1892
        %1894 = vrot.lane.b32.xlu0 %v394, 96
        %v1895 = vpop.permute.xlu0 %1894
        %1896 = vrot.lane.b32.xlu0 %v395, 96
        %v1897 = vpop.permute.xlu0 %1896
        %1898 = vrot.lane.b32.xlu0 %v396, 96
        %v1899 = vpop.permute.xlu0 %1898
        %1900 = vrot.lane.b32.xlu0 %v397, 96
        %v1901 = vpop.permute.xlu0 %1900
        %1902 = vrot.lane.b32.xlu0 %v398, 96
        %v1903 = vpop.permute.xlu0 %1902
        %1904 = vrot.lane.b32.xlu0 %v399, 96
        %v1905 = vpop.permute.xlu0 %1904
        %1906 = vrot.lane.b32.xlu0 %v400, 96
        %v1907 = vpop.permute.xlu0 %1906
        %1908 = vrot.lane.b32.xlu0 %v401, 96
        %v1909 = vpop.permute.xlu0 %1908
        %1910 = vrot.lane.b32.xlu0 %v402, 96
        %v1911 = vpop.permute.xlu0 %1910
        %1912 = vrot.lane.b32.xlu0 %v403, 96
        %v1913 = vpop.permute.xlu0 %1912
        %1914 = vrot.lane.b32.xlu0 %v404, 96
        %v1915 = vpop.permute.xlu0 %1914
        %1916 = vrot.lane.b32.xlu0 %v405, 96
        %v1917 = vpop.permute.xlu0 %1916
        %1918 = vrot.lane.b32.xlu0 %v406, 96
        %v1919 = vpop.permute.xlu0 %1918
        %1920 = vrot.lane.b32.xlu0 %v407, 96
        %v1921 = vpop.permute.xlu0 %1920
        %1922 = vrot.lane.b32.xlu0 %v408, 96
        %v1923 = vpop.permute.xlu0 %1922
        %1924 = vrot.lane.b32.xlu0 %v409, 96
        %v1925 = vpop.permute.xlu0 %1924
        %1926 = vrot.lane.b32.xlu0 %v410, 96
        %v1927 = vpop.permute.xlu0 %1926
        %1928 = vrot.lane.b32.xlu0 %v411, 96
        %v1929 = vpop.permute.xlu0 %1928
        %1930 = vrot.lane.b32.xlu0 %v412, 96
        %v1931 = vpop.permute.xlu0 %1930
        %1964 = vmatprep.subr.mxu0 0.0
        %1965 = vmatpush1.msra.mxu0 %v1869
        %1966 = vmatprep.subr.mxu0 0.0
        %1967 = vmatpush1.msra.mxu0 %v1871
        %1968 = vmatprep.subr.mxu0 0.0
        %1969 = vmatpush1.msra.mxu0 %v1873
        %1970 = vmatprep.subr.mxu0 0.0
        %1971 = vmatpush1.msra.mxu0 %v1875
        %1972 = vmatprep.subr.mxu0 0.0
        %1973 = vmatpush1.msra.mxu0 %v1877
        %1974 = vmatprep.subr.mxu0 0.0
        %1975 = vmatpush1.msra.mxu0 %v1879
        %1976 = vmatprep.subr.mxu0 0.0
        %1977 = vmatpush1.msra.mxu0 %v1881
        %1978 = vmatprep.subr.mxu0 0.0
        %1979 = vmatpush1.msra.mxu0 %v1883
        %1980 = vmatprep.subr.mxu0 0.0
        %1981 = vmatpush1.msra.mxu0 %v1885
        %1982 = vmatprep.subr.mxu0 0.0
        %1983 = vmatpush1.msra.mxu0 %v1887
        %1984 = vmatprep.subr.mxu0 0.0
        %1985 = vmatpush1.msra.mxu0 %v1889
        %1986 = vmatprep.subr.mxu0 0.0
        %1987 = vmatpush1.msra.mxu0 %v1891
        %1988 = vmatprep.subr.mxu0 0.0
        %1989 = vmatpush1.msra.mxu0 %v1893
        %1990 = vmatprep.subr.mxu0 0.0
        %1991 = vmatpush1.msra.mxu0 %v1895
        %1992 = vmatprep.subr.mxu0 0.0
        %1993 = vmatpush1.msra.mxu0 %v1897
        %1994 = vmatprep.subr.mxu0 0.0
        %1995 = vmatpush1.msra.mxu0 %v1899
        %1996 = vmatprep.subr.mxu0 0.0
        %1997 = vmatpush1.msra.mxu0 %v1901
        %1998 = vmatprep.subr.mxu0 0.0
        %1999 = vmatpush1.msra.mxu0 %v1903
        %2000 = vmatprep.subr.mxu0 0.0
        %2001 = vmatpush1.msra.mxu0 %v1905
        %2002 = vmatprep.subr.mxu0 0.0
        %2003 = vmatpush1.msra.mxu0 %v1907
        %2004 = vmatprep.subr.mxu0 0.0
        %2005 = vmatpush1.msra.mxu0 %v1909
        %2006 = vmatprep.subr.mxu0 0.0
        %2007 = vmatpush1.msra.mxu0 %v1911
        %2008 = vmatprep.subr.mxu0 0.0
        %2009 = vmatpush1.msra.mxu0 %v1913
        %2010 = vmatprep.subr.mxu0 0.0
        %2011 = vmatpush1.msra.mxu0 %v1915
        %2012 = vmatprep.subr.mxu0 0.0
        %2013 = vmatpush1.msra.mxu0 %v1917
        %2014 = vmatprep.subr.mxu0 0.0
        %2015 = vmatpush1.msra.mxu0 %v1919
        %2016 = vmatprep.subr.mxu0 0.0
        %2017 = vmatpush1.msra.mxu0 %v1921
        %2018 = vmatprep.subr.mxu0 0.0
        %2019 = vmatpush1.msra.mxu0 %v1923
        %2020 = vmatprep.subr.mxu0 0.0
        %2021 = vmatpush1.msra.mxu0 %v1925
        %2022 = vmatprep.subr.mxu0 0.0
        %2023 = vmatpush1.msra.mxu0 %v1927
        %2024 = vmatprep.subr.mxu0 0.0
        %2025 = vmatpush1.msra.mxu0 %v1929
        %2026 = vmatprep.subr.mxu0 0.0
        %2027 = vmatpush1.msra.mxu0 %v1931
        %2028 = vmatprep.mubr.f32.mxu0 %v1757
        %2029 = vmatmul.mubr.f32.gmra.mrb[0].mxu0 %v1756
        %v2030 = vpop.f32.mrb[0].mxu0
        %v2031 = vadd.f32 0.0, %v2030
        %v2032 = vpop.f32.mrb[0].mxu0
        %2033 = vmatprep.mubr.f32.mxu0 %v1759
        %2034 = vmatmul.mubr.f32.gmra.mrb[0].mxu0 %v1758
        %v2035 = vpop.f32.mrb[0].mxu0
        %v2036 = vadd.f32 0.0, %v2035
        %v2037 = vpop.f32.mrb[0].mxu0
        %2038 = vmatprep.mubr.f32.mxu0 %v1761
        %2039 = vmatmul.mubr.f32.gmra.mrb[0].mxu0 %v1760
        %v2040 = vpop.f32.mrb[0].mxu0
        %v2041 = vadd.f32 0.0, %v2040
        %v2042 = vpop.f32.mrb[0].mxu0
        %2043 = vmatprep.mubr.f32.mxu0 %v1763
        %2044 = vmatmul.mubr.f32.gmra.mrb[0].mxu0 %v1762
        %v2045 = vpop.f32.mrb[0].mxu0
        %v2046 = vadd.f32 0.0, %v2045
        %v2047 = vpop.f32.mrb[0].mxu0
        %2048 = vmatprep.mubr.f32.mxu0 %v1765
        %2049 = vmatmul.mubr.f32.gmra.mrb[0].mxu0 %v1764
        %v2050 = vpop.f32.mrb[0].mxu0
        %v2051 = vadd.f32 0.0, %v2050
        %v2052 = vpop.f32.mrb[0].mxu0
        %2053 = vmatprep.mubr.f32.mxu0 %v1767
        %2054 = vmatmul.mubr.f32.gmra.mrb[0].mxu0 %v1766
        %v2055 = vpop.f32.mrb[0].mxu0
        %v2056 = vadd.f32 0.0, %v2055
        %v2057 = vpop.f32.mrb[0].mxu0
        %2058 = vmatprep.mubr.f32.mxu0 %v1769
        %2059 = vmatmul.mubr.f32.gmra.mrb[0].mxu0 %v1768
        %v2060 = vpop.f32.mrb[0].mxu0
        %v2061 = vadd.f32 0.0, %v2060
        %v2062 = vpop.f32.mrb[0].mxu0
        %2063 = vmatprep.mubr.f32.mxu0 %v1771
        %2064 = vmatmul.mubr.f32.gmra.mrb[0].mxu0 %v1770
        %v2065 = vpop.f32.mrb[0].mxu0
        %v2066 = vadd.f32 0.0, %v2065
        %v2067 = vpop.f32.mrb[0].mxu0
        %2068 = vmatprep.mubr.f32.mxu0 %v1773
        %2069 = vmatmul.mubr.f32.gmra.mrb[0].mxu0 %v1772
        %v2070 = vpop.f32.mrb[0].mxu0
        %v2071 = vadd.f32 0.0, %v2070
        %v2072 = vpop.f32.mrb[0].mxu0
        %2073 = vmatprep.mubr.f32.mxu0 %v1775
        %2074 = vmatmul.mubr.f32.gmra.mrb[0].mxu0 %v1774
        %v2075 = vpop.f32.mrb[0].mxu0
        %v2076 = vadd.f32 0.0, %v2075
        %v2077 = vpop.f32.mrb[0].mxu0
        %2078 = vmatprep.mubr.f32.mxu0 %v1777
        %2079 = vmatmul.mubr.f32.gmra.mrb[0].mxu0 %v1776
        %v2080 = vpop.f32.mrb[0].mxu0
        %v2081 = vadd.f32 0.0, %v2080
        %v2082 = vpop.f32.mrb[0].mxu0
        %2083 = vmatprep.mubr.f32.mxu0 %v1779
        %2084 = vmatmul.mubr.f32.gmra.mrb[0].mxu0 %v1778
        %v2085 = vpop.f32.mrb[0].mxu0
        %v2086 = vadd.f32 0.0, %v2085
        %v2087 = vpop.f32.mrb[0].mxu0
        %2088 = vmatprep.mubr.f32.mxu0 %v1781
        %2089 = vmatmul.mubr.f32.gmra.mrb[0].mxu0 %v1780
        %v2090 = vpop.f32.mrb[0].mxu0
        %v2091 = vadd.f32 0.0, %v2090
        %v2092 = vpop.f32.mrb[0].mxu0
        %2093 = vmatprep.mubr.f32.mxu0 %v1783
        %2094 = vmatmul.mubr.f32.gmra.mrb[0].mxu0 %v1782
        %v2095 = vpop.f32.mrb[0].mxu0
        %v2096 = vadd.f32 0.0, %v2095
        %v2097 = vpop.f32.mrb[0].mxu0
        %2098 = vmatprep.mubr.f32.mxu0 %v1785
        %2099 = vmatmul.mubr.f32.gmra.mrb[0].mxu0 %v1784
        %v2100 = vpop.f32.mrb[0].mxu0
        %v2101 = vadd.f32 0.0, %v2100
        %v2102 = vpop.f32.mrb[0].mxu0
        %2103 = vmatprep.mubr.f32.mxu0 %v1787
        %2104 = vmatmul.mubr.f32.gmra.mrb[0].mxu0 %v1786
        %v2105 = vpop.f32.mrb[0].mxu0
        %v2106 = vadd.f32 0.0, %v2105
        %v2107 = vpop.f32.mrb[0].mxu0
        %2108 = vdwg.mxu0
        %2109 = vset.pattern.permute.xlu0 2
        %2110 = vperm.xlu0 %2109, %v413
        %v2111 = vpop.permute.xlu0 %2110
        %2113 = vset.pattern.permute.xlu0 2
        %2114 = vperm.xlu0 %2113, %v414
        %v2115 = vpop.permute.xlu0 %2114
        %2117 = vset.pattern.permute.xlu0 2
        %2118 = vperm.xlu0 %2117, %v415
        %v2119 = vpop.permute.xlu0 %2118
        %2121 = vset.pattern.permute.xlu0 2
        %2122 = vperm.xlu0 %2121, %v416
        %v2123 = vpop.permute.xlu0 %2122
        %2125 = vset.pattern.permute.xlu0 2
        %2126 = vperm.xlu0 %2125, %v417
        %v2127 = vpop.permute.xlu0 %2126
        %2129 = vset.pattern.permute.xlu0 2
        %2130 = vperm.xlu0 %2129, %v418
        %v2131 = vpop.permute.xlu0 %2130
        %2133 = vset.pattern.permute.xlu0 2
        %2134 = vperm.xlu0 %2133, %v419
        %v2135 = vpop.permute.xlu0 %2134
        %2137 = vset.pattern.permute.xlu0 2
        %2138 = vperm.xlu0 %2137, %v420
        %v2139 = vpop.permute.xlu0 %2138
        %2141 = vset.pattern.permute.xlu0 2
        %2142 = vperm.xlu0 %2141, %v421
        %v2143 = vpop.permute.xlu0 %2142
        %2145 = vset.pattern.permute.xlu0 2
        %2146 = vperm.xlu0 %2145, %v422
        %v2147 = vpop.permute.xlu0 %2146
        %2149 = vset.pattern.permute.xlu0 2
        %2150 = vperm.xlu0 %2149, %v423
        %v2151 = vpop.permute.xlu0 %2150
        %2153 = vset.pattern.permute.xlu0 2
        %2154 = vperm.xlu0 %2153, %v424
        %v2155 = vpop.permute.xlu0 %2154
        %2157 = vset.pattern.permute.xlu0 2
        %2158 = vperm.xlu0 %2157, %v425
        %v2159 = vpop.permute.xlu0 %2158
        %2161 = vset.pattern.permute.xlu0 2
        %2162 = vperm.xlu0 %2161, %v426
        %v2163 = vpop.permute.xlu0 %2162
        %2165 = vset.pattern.permute.xlu0 2
        %2166 = vperm.xlu0 %2165, %v427
        %v2167 = vpop.permute.xlu0 %2166
        %2169 = vset.pattern.permute.xlu0 2
        %2170 = vperm.xlu0 %2169, %v428
        %v2171 = vpop.permute.xlu0 %2170
        %v2173 = vlaneseq
        %v2174 = vshrl.u32 %v2173, 7
        %v2175 = vsub.s32 2, %v2174
        %v2176 = vrot.slane %v429, %v2175
        %v2177 = vlaneseq
        %v2178 = vshrl.u32 %v2177, 7
        %v2179 = vsub.s32 6, %v2178
        %v2180 = vrot.slane %v429, %v2179
        %v2183 = vlaneseq
        %v2184 = vshrl.u32 %v2183, 7
        %v2185 = vsub.s32 2, %v2184
        %v2186 = vrot.slane %v2176, %v2185
        %v2187 = vlaneseq
        %v2188 = vshrl.u32 %v2187, 7
        %v2189 = vsub.s32 2, %v2188
        %v2190 = vrot.slane %v2180, %v2189
        %v2191 = vadd.f32 %v2111, %v2186
        %v2192 = vadd.f32 %v2111, %v2190
        %v2193 = vadd.f32 %v2115, %v2186
        %v2194 = vadd.f32 %v2115, %v2190
        %v2195 = vadd.f32 %v2119, %v2186
        %v2196 = vadd.f32 %v2119, %v2190
        %v2197 = vadd.f32 %v2123, %v2186
        %v2198 = vadd.f32 %v2123, %v2190
        %v2199 = vadd.f32 %v2127, %v2186
        %v2200 = vadd.f32 %v2127, %v2190
        %v2201 = vadd.f32 %v2131, %v2186
        %v2202 = vadd.f32 %v2131, %v2190
        %v2203 = vadd.f32 %v2135, %v2186
        %v2204 = vadd.f32 %v2135, %v2190
        %v2205 = vadd.f32 %v2139, %v2186
        %v2206 = vadd.f32 %v2139, %v2190
        %v2207 = vadd.f32 %v2143, %v2186
        %v2208 = vadd.f32 %v2143, %v2190
        %v2209 = vadd.f32 %v2147, %v2186
        %v2210 = vadd.f32 %v2147, %v2190
        %v2211 = vadd.f32 %v2151, %v2186
        %v2212 = vadd.f32 %v2151, %v2190
        %v2213 = vadd.f32 %v2155, %v2186
        %v2214 = vadd.f32 %v2155, %v2190
        %v2215 = vadd.f32 %v2159, %v2186
        %v2216 = vadd.f32 %v2159, %v2190
        %v2217 = vadd.f32 %v2163, %v2186
        %v2218 = vadd.f32 %v2163, %v2190
        %v2219 = vadd.f32 %v2167, %v2186
        %v2220 = vadd.f32 %v2167, %v2190
        %v2221 = vadd.f32 %v2171, %v2186
        %v2222 = vadd.f32 %v2171, %v2190
        %v2223 = vmul.f32 %v2191, 0.2
        %v2224 = vmul.f32 %v2192, 0.2
        %v2225 = vmul.f32 %v2193, 0.2
        %v2226 = vmul.f32 %v2194, 0.2
        %v2227 = vmul.f32 %v2195, 0.2
        %v2228 = vmul.f32 %v2196, 0.2
        %v2229 = vmul.f32 %v2197, 0.2
        %v2230 = vmul.f32 %v2198, 0.2
        %v2231 = vmul.f32 %v2199, 0.2
        %v2232 = vmul.f32 %v2200, 0.2
        %v2233 = vmul.f32 %v2201, 0.2
        %v2234 = vmul.f32 %v2202, 0.2
        %v2235 = vmul.f32 %v2203, 0.2
        %v2236 = vmul.f32 %v2204, 0.2
        %v2237 = vmul.f32 %v2205, 0.2
        %v2238 = vmul.f32 %v2206, 0.2
        %v2239 = vmul.f32 %v2207, 0.2
        %v2240 = vmul.f32 %v2208, 0.2
        %v2241 = vmul.f32 %v2209, 0.2
        %v2242 = vmul.f32 %v2210, 0.2
        %v2243 = vmul.f32 %v2211, 0.2
        %v2244 = vmul.f32 %v2212, 0.2
        %v2245 = vmul.f32 %v2213, 0.2
        %v2246 = vmul.f32 %v2214, 0.2
        %v2247 = vmul.f32 %v2215, 0.2
        %v2248 = vmul.f32 %v2216, 0.2
        %v2249 = vmul.f32 %v2217, 0.2
        %v2250 = vmul.f32 %v2218, 0.2
        %v2251 = vmul.f32 %v2219, 0.2
        %v2252 = vmul.f32 %v2220, 0.2
        %v2253 = vmul.f32 %v2221, 0.2
        %v2254 = vmul.f32 %v2222, 0.2
        %v2255 = vmax.f32 %v2191, %v2223
        %v2256 = vmax.f32 %v2192, %v2224
        %v2257 = vmax.f32 %v2193, %v2225
        %v2258 = vmax.f32 %v2194, %v2226
        %v2259 = vmax.f32 %v2195, %v2227
        %v2260 = vmax.f32 %v2196, %v2228
        %v2261 = vmax.f32 %v2197, %v2229
        %v2262 = vmax.f32 %v2198, %v2230
        %v2263 = vmax.f32 %v2199, %v2231
        %v2264 = vmax.f32 %v2200, %v2232
        %v2265 = vmax.f32 %v2201, %v2233
        %v2266 = vmax.f32 %v2202, %v2234
        %v2267 = vmax.f32 %v2203, %v2235
        %v2268 = vmax.f32 %v2204, %v2236
        %v2269 = vmax.f32 %v2205, %v2237
        %v2270 = vmax.f32 %v2206, %v2238
        %v2271 = vmax.f32 %v2207, %v2239
        %v2272 = vmax.f32 %v2208, %v2240
        %v2273 = vmax.f32 %v2209, %v2241
        %v2274 = vmax.f32 %v2210, %v2242
        %v2275 = vmax.f32 %v2211, %v2243
        %v2276 = vmax.f32 %v2212, %v2244
        %v2277 = vmax.f32 %v2213, %v2245
        %v2278 = vmax.f32 %v2214, %v2246
        %v2279 = vmax.f32 %v2215, %v2247
        %v2280 = vmax.f32 %v2216, %v2248
        %v2281 = vmax.f32 %v2217, %v2249
        %v2282 = vmax.f32 %v2218, %v2250
        %v2283 = vmax.f32 %v2219, %v2251
        %v2284 = vmax.f32 %v2220, %v2252
        %v2285 = vmax.f32 %v2221, %v2253
        %v2286 = vmax.f32 %v2222, %v2254
        %v2287 = vsel %vm777, %v2255, -1e+30
        %v2288 = vsel %vm778, %v2256, -1e+30
        %v2289 = vsel %vm779, %v2257, -1e+30
        %v2290 = vsel %vm780, %v2258, -1e+30
        %v2291 = vsel %vm781, %v2259, -1e+30
        %v2292 = vsel %vm782, %v2260, -1e+30
        %v2293 = vsel %vm783, %v2261, -1e+30
        %v2294 = vsel %vm784, %v2262, -1e+30
        %v2295 = vsel %vm785, %v2263, -1e+30
        %v2296 = vsel %vm786, %v2264, -1e+30
        %v2297 = vsel %vm787, %v2265, -1e+30
        %v2298 = vsel %vm788, %v2266, -1e+30
        %v2299 = vsel %vm789, %v2267, -1e+30
        %v2300 = vsel %vm790, %v2268, -1e+30
        %v2301 = vsel %vm791, %v2269, -1e+30
        %v2302 = vsel %vm792, %v2270, -1e+30
        %v2303 = vsel %vm793, %v2271, -1e+30
        %v2304 = vsel %vm794, %v2272, -1e+30
        %v2305 = vsel %vm795, %v2273, -1e+30
        %v2306 = vsel %vm796, %v2274, -1e+30
        %v2307 = vsel %vm797, %v2275, -1e+30
        %v2308 = vsel %vm798, %v2276, -1e+30
        %v2309 = vsel %vm799, %v2277, -1e+30
        %v2310 = vsel %vm800, %v2278, -1e+30
        %v2311 = vsel %vm801, %v2279, -1e+30
        %v2312 = vsel %vm802, %v2280, -1e+30
        %v2313 = vsel %vm803, %v2281, -1e+30
        %v2314 = vsel %vm804, %v2282, -1e+30
        %v2315 = vsel %vm805, %v2283, -1e+30
        %v2316 = vsel %vm806, %v2284, -1e+30
        %v2317 = vsel %vm807, %v2285, -1e+30
        %v2318 = vsel %vm808, %v2286, -1e+30
        %v2319 = vmax.f32 %v2287, %v2288
        %2320 = vmax.xlane.f32.xlu0 %v2319
        %v2321 = vpop.xlane.xlu0 %2320
        %v2322 = vmax.f32 %v2289, %v2290
        %2323 = vmax.xlane.f32.xlu0 %v2322
        %v2324 = vpop.xlane.xlu0 %2323
        %v2325 = vmax.f32 %v2291, %v2292
        %2326 = vmax.xlane.f32.xlu0 %v2325
        %v2327 = vpop.xlane.xlu0 %2326
        %v2328 = vmax.f32 %v2293, %v2294
        %2329 = vmax.xlane.f32.xlu0 %v2328
        %v2330 = vpop.xlane.xlu0 %2329
        %v2331 = vmax.f32 %v2295, %v2296
        %2332 = vmax.xlane.f32.xlu0 %v2331
        %v2333 = vpop.xlane.xlu0 %2332
        %v2334 = vmax.f32 %v2297, %v2298
        %2335 = vmax.xlane.f32.xlu0 %v2334
        %v2336 = vpop.xlane.xlu0 %2335
        %v2337 = vmax.f32 %v2299, %v2300
        %2338 = vmax.xlane.f32.xlu0 %v2337
        %v2339 = vpop.xlane.xlu0 %2338
        %v2340 = vmax.f32 %v2301, %v2302
        %2341 = vmax.xlane.f32.xlu0 %v2340
        %v2342 = vpop.xlane.xlu0 %2341
        %v2343 = vmax.f32 %v2303, %v2304
        %2344 = vmax.xlane.f32.xlu0 %v2343
        %v2345 = vpop.xlane.xlu0 %2344
        %v2346 = vmax.f32 %v2305, %v2306
        %2347 = vmax.xlane.f32.xlu0 %v2346
        %v2348 = vpop.xlane.xlu0 %2347
        %v2349 = vmax.f32 %v2307, %v2308
        %2350 = vmax.xlane.f32.xlu0 %v2349
        %v2351 = vpop.xlane.xlu0 %2350
        %v2352 = vmax.f32 %v2309, %v2310
        %2353 = vmax.xlane.f32.xlu0 %v2352
        %v2354 = vpop.xlane.xlu0 %2353
        %v2355 = vmax.f32 %v2311, %v2312
        %2356 = vmax.xlane.f32.xlu0 %v2355
        %v2357 = vpop.xlane.xlu0 %2356
        %v2358 = vmax.f32 %v2313, %v2314
        %2359 = vmax.xlane.f32.xlu0 %v2358
        %v2360 = vpop.xlane.xlu0 %2359
        %v2361 = vmax.f32 %v2315, %v2316
        %2362 = vmax.xlane.f32.xlu0 %v2361
        %v2363 = vpop.xlane.xlu0 %2362
        %v2364 = vmax.f32 %v2317, %v2318
        %2365 = vmax.xlane.f32.xlu0 %v2364
        %v2366 = vpop.xlane.xlu0 %2365
        %v2367 = vmax.f32 %v430, %v2321
        %v2368 = vmax.f32 %v431, %v2324
        %v2369 = vmax.f32 %v432, %v2327
        %v2370 = vmax.f32 %v433, %v2330
        %v2371 = vmax.f32 %v434, %v2333
        %v2372 = vmax.f32 %v435, %v2336
        %v2373 = vmax.f32 %v436, %v2339
        %v2374 = vmax.f32 %v437, %v2342
        %v2375 = vmax.f32 %v438, %v2345
        %v2376 = vmax.f32 %v439, %v2348
        %v2377 = vmax.f32 %v440, %v2351
        %v2378 = vmax.f32 %v441, %v2354
        %v2379 = vmax.f32 %v442, %v2357
        %v2380 = vmax.f32 %v443, %v2360
        %v2381 = vmax.f32 %v444, %v2363
        %v2382 = vmax.f32 %v445, %v2366
        %2384 = vset.pattern.permute.xlu0 64
        %2385 = vperm.xlu0 %2384, %v2367
        %v2386 = vpop.permute.xlu0 %2385
        %2389 = vset.pattern.permute.xlu0 64
        %2390 = vperm.xlu0 %2389, %v2368
        %v2391 = vpop.permute.xlu0 %2390
        %2394 = vset.pattern.permute.xlu0 64
        %2395 = vperm.xlu0 %2394, %v2369
        %v2396 = vpop.permute.xlu0 %2395
        %2399 = vset.pattern.permute.xlu0 64
        %2400 = vperm.xlu0 %2399, %v2370
        %v2401 = vpop.permute.xlu0 %2400
        %2404 = vset.pattern.permute.xlu0 64
        %2405 = vperm.xlu0 %2404, %v2371
        %v2406 = vpop.permute.xlu0 %2405
        %2409 = vset.pattern.permute.xlu0 64
        %2410 = vperm.xlu0 %2409, %v2372
        %v2411 = vpop.permute.xlu0 %2410
        %2414 = vset.pattern.permute.xlu0 64
        %2415 = vperm.xlu0 %2414, %v2373
        %v2416 = vpop.permute.xlu0 %2415
        %2419 = vset.pattern.permute.xlu0 64
        %2420 = vperm.xlu0 %2419, %v2374
        %v2421 = vpop.permute.xlu0 %2420
        %2424 = vset.pattern.permute.xlu0 64
        %2425 = vperm.xlu0 %2424, %v2375
        %v2426 = vpop.permute.xlu0 %2425
        %2429 = vset.pattern.permute.xlu0 64
        %2430 = vperm.xlu0 %2429, %v2376
        %v2431 = vpop.permute.xlu0 %2430
        %2434 = vset.pattern.permute.xlu0 64
        %2435 = vperm.xlu0 %2434, %v2377
        %v2436 = vpop.permute.xlu0 %2435
        %2439 = vset.pattern.permute.xlu0 64
        %2440 = vperm.xlu0 %2439, %v2378
        %v2441 = vpop.permute.xlu0 %2440
        %2444 = vset.pattern.permute.xlu0 64
        %2445 = vperm.xlu0 %2444, %v2379
        %v2446 = vpop.permute.xlu0 %2445
        %2449 = vset.pattern.permute.xlu0 64
        %2450 = vperm.xlu0 %2449, %v2380
        %v2451 = vpop.permute.xlu0 %2450
        %2454 = vset.pattern.permute.xlu0 64
        %2455 = vperm.xlu0 %2454, %v2381
        %v2456 = vpop.permute.xlu0 %2455
        %2459 = vset.pattern.permute.xlu0 64
        %2460 = vperm.xlu0 %2459, %v2382
        %v2461 = vpop.permute.xlu0 %2460
        %v2463 = vsub.f32 %v2287, %v2386
        %v2464 = vsub.f32 %v2288, %v2386
        %v2465 = vsub.f32 %v2289, %v2391
        %v2466 = vsub.f32 %v2290, %v2391
        %v2467 = vsub.f32 %v2291, %v2396
        %v2468 = vsub.f32 %v2292, %v2396
        %v2469 = vsub.f32 %v2293, %v2401
        %v2470 = vsub.f32 %v2294, %v2401
        %v2471 = vsub.f32 %v2295, %v2406
        %v2472 = vsub.f32 %v2296, %v2406
        %v2473 = vsub.f32 %v2297, %v2411
        %v2474 = vsub.f32 %v2298, %v2411
        %v2475 = vsub.f32 %v2299, %v2416
        %v2476 = vsub.f32 %v2300, %v2416
        %v2477 = vsub.f32 %v2301, %v2421
        %v2478 = vsub.f32 %v2302, %v2421
        %v2479 = vsub.f32 %v2303, %v2426
        %v2480 = vsub.f32 %v2304, %v2426
        %v2481 = vsub.f32 %v2305, %v2431
        %v2482 = vsub.f32 %v2306, %v2431
        %v2483 = vsub.f32 %v2307, %v2436
        %v2484 = vsub.f32 %v2308, %v2436
        %v2485 = vsub.f32 %v2309, %v2441
        %v2486 = vsub.f32 %v2310, %v2441
        %v2487 = vsub.f32 %v2311, %v2446
        %v2488 = vsub.f32 %v2312, %v2446
        %v2489 = vsub.f32 %v2313, %v2451
        %v2490 = vsub.f32 %v2314, %v2451
        %v2491 = vsub.f32 %v2315, %v2456
        %v2492 = vsub.f32 %v2316, %v2456
        %v2493 = vsub.f32 %v2317, %v2461
        %v2494 = vsub.f32 %v2318, %v2461
        %v2495 = vmul.f32 %v2463, 1.442695
        %v2496 = vpow.pop %v2495
        %v2497 = vmul.f32 %v2464, 1.442695
        %v2498 = vpow.pop %v2497
        %v2499 = vmul.f32 %v2465, 1.442695
        %v2500 = vpow.pop %v2499
        %v2501 = vmul.f32 %v2466, 1.442695
        %v2502 = vpow.pop %v2501
        %v2503 = vmul.f32 %v2467, 1.442695
        %v2504 = vpow.pop %v2503
        %v2505 = vmul.f32 %v2468, 1.442695
        %v2506 = vpow.pop %v2505
        %v2507 = vmul.f32 %v2469, 1.442695
        %v2508 = vpow.pop %v2507
        %v2509 = vmul.f32 %v2470, 1.442695
        %v2510 = vpow.pop %v2509
        %v2511 = vmul.f32 %v2471, 1.442695
        %v2512 = vpow.pop %v2511
        %v2513 = vmul.f32 %v2472, 1.442695
        %v2514 = vpow.pop %v2513
        %v2515 = vmul.f32 %v2473, 1.442695
        %v2516 = vpow.pop %v2515
        %v2517 = vmul.f32 %v2474, 1.442695
        %v2518 = vpow.pop %v2517
        %v2519 = vmul.f32 %v2475, 1.442695
        %v2520 = vpow.pop %v2519
        %v2521 = vmul.f32 %v2476, 1.442695
        %v2522 = vpow.pop %v2521
        %v2523 = vmul.f32 %v2477, 1.442695
        %v2524 = vpow.pop %v2523
        %v2525 = vmul.f32 %v2478, 1.442695
        %v2526 = vpow.pop %v2525
        %v2527 = vmul.f32 %v2479, 1.442695
        %v2528 = vpow.pop %v2527
        %v2529 = vmul.f32 %v2480, 1.442695
        %v2530 = vpow.pop %v2529
        %v2531 = vmul.f32 %v2481, 1.442695
        %v2532 = vpow.pop %v2531
        %v2533 = vmul.f32 %v2482, 1.442695
        %v2534 = vpow.pop %v2533
        %v2535 = vmul.f32 %v2483, 1.442695
        %v2536 = vpow.pop %v2535
        %v2537 = vmul.f32 %v2484, 1.442695
        %v2538 = vpow.pop %v2537
        %v2539 = vmul.f32 %v2485, 1.442695
        %v2540 = vpow.pop %v2539
        %v2541 = vmul.f32 %v2486, 1.442695
        %v2542 = vpow.pop %v2541
        %v2543 = vmul.f32 %v2487, 1.442695
        %v2544 = vpow.pop %v2543
        %v2545 = vmul.f32 %v2488, 1.442695
        %v2546 = vpow.pop %v2545
        %v2547 = vmul.f32 %v2489, 1.442695
        %v2548 = vpow.pop %v2547
        %v2549 = vmul.f32 %v2490, 1.442695
        %v2550 = vpow.pop %v2549
        %v2551 = vmul.f32 %v2491, 1.442695
        %v2552 = vpow.pop %v2551
        %v2553 = vmul.f32 %v2492, 1.442695
        %v2554 = vpow.pop %v2553
        %v2555 = vmul.f32 %v2493, 1.442695
        %v2556 = vpow.pop %v2555
        %v2557 = vmul.f32 %v2494, 1.442695
        %v2558 = vpow.pop %v2557
        %v2559 = vsel %vm777, %v2496, 0.0
        %v2560 = vsel %vm778, %v2498, 0.0
        %v2561 = vsel %vm779, %v2500, 0.0
        %v2562 = vsel %vm780, %v2502, 0.0
        %v2563 = vsel %vm781, %v2504, 0.0
        %v2564 = vsel %vm782, %v2506, 0.0
        %v2565 = vsel %vm783, %v2508, 0.0
        %v2566 = vsel %vm784, %v2510, 0.0
        %v2567 = vsel %vm785, %v2512, 0.0
        %v2568 = vsel %vm786, %v2514, 0.0
        %v2569 = vsel %vm787, %v2516, 0.0
        %v2570 = vsel %vm788, %v2518, 0.0
        %v2571 = vsel %vm789, %v2520, 0.0
        %v2572 = vsel %vm790, %v2522, 0.0
        %v2573 = vsel %vm791, %v2524, 0.0
        %v2574 = vsel %vm792, %v2526, 0.0
        %v2575 = vsel %vm793, %v2528, 0.0
        %v2576 = vsel %vm794, %v2530, 0.0
        %v2577 = vsel %vm795, %v2532, 0.0
        %v2578 = vsel %vm796, %v2534, 0.0
        %v2579 = vsel %vm797, %v2536, 0.0
        %v2580 = vsel %vm798, %v2538, 0.0
        %v2581 = vsel %vm799, %v2540, 0.0
        %v2582 = vsel %vm800, %v2542, 0.0
        %v2583 = vsel %vm801, %v2544, 0.0
        %v2584 = vsel %vm802, %v2546, 0.0
        %v2585 = vsel %vm803, %v2548, 0.0
        %v2586 = vsel %vm804, %v2550, 0.0
        %v2587 = vsel %vm805, %v2552, 0.0
        %v2588 = vsel %vm806, %v2554, 0.0
        %v2589 = vsel %vm807, %v2556, 0.0
        %v2590 = vsel %vm808, %v2558, 0.0
        %v2591 = vadd.f32 %v2559, %v2560
        %2592 = vadd.xlane.f32.xlu0 %v2591
        %v2593 = vpop.xlane.xlu0 %2592
        %v2594 = vadd.f32 %v2561, %v2562
        %2595 = vadd.xlane.f32.xlu0 %v2594
        %v2596 = vpop.xlane.xlu0 %2595
        %v2597 = vadd.f32 %v2563, %v2564
        %2598 = vadd.xlane.f32.xlu0 %v2597
        %v2599 = vpop.xlane.xlu0 %2598
        %v2600 = vadd.f32 %v2565, %v2566
        %2601 = vadd.xlane.f32.xlu0 %v2600
        %v2602 = vpop.xlane.xlu0 %2601
        %v2603 = vadd.f32 %v2567, %v2568
        %2604 = vadd.xlane.f32.xlu0 %v2603
        %v2605 = vpop.xlane.xlu0 %2604
        %v2606 = vadd.f32 %v2569, %v2570
        %2607 = vadd.xlane.f32.xlu0 %v2606
        %v2608 = vpop.xlane.xlu0 %2607
        %v2609 = vadd.f32 %v2571, %v2572
        %2610 = vadd.xlane.f32.xlu0 %v2609
        %v2611 = vpop.xlane.xlu0 %2610
        %v2612 = vadd.f32 %v2573, %v2574
        %2613 = vadd.xlane.f32.xlu0 %v2612
        %v2614 = vpop.xlane.xlu0 %2613
        %v2615 = vadd.f32 %v2575, %v2576
        %2616 = vadd.xlane.f32.xlu0 %v2615
        %v2617 = vpop.xlane.xlu0 %2616
        %v2618 = vadd.f32 %v2577, %v2578
        %2619 = vadd.xlane.f32.xlu0 %v2618
        %v2620 = vpop.xlane.xlu0 %2619
        %v2621 = vadd.f32 %v2579, %v2580
        %2622 = vadd.xlane.f32.xlu0 %v2621
        %v2623 = vpop.xlane.xlu0 %2622
        %v2624 = vadd.f32 %v2581, %v2582
        %2625 = vadd.xlane.f32.xlu0 %v2624
        %v2626 = vpop.xlane.xlu0 %2625
        %v2627 = vadd.f32 %v2583, %v2584
        %2628 = vadd.xlane.f32.xlu0 %v2627
        %v2629 = vpop.xlane.xlu0 %2628
        %v2630 = vadd.f32 %v2585, %v2586
        %2631 = vadd.xlane.f32.xlu0 %v2630
        %v2632 = vpop.xlane.xlu0 %2631
        %v2633 = vadd.f32 %v2587, %v2588
        %2634 = vadd.xlane.f32.xlu0 %v2633
        %v2635 = vpop.xlane.xlu0 %2634
        %v2636 = vadd.f32 %v2589, %v2590
        %2637 = vadd.xlane.f32.xlu0 %v2636
        %v2638 = vpop.xlane.xlu0 %2637
        %2639 = vrot.lane.b32.xlu0 %v381, 64
        %v2640 = vpop.permute.xlu0 %2639
        %2641 = vrot.lane.b32.xlu0 %v382, 64
        %v2642 = vpop.permute.xlu0 %2641
        %2643 = vrot.lane.b32.xlu0 %v383, 64
        %v2644 = vpop.permute.xlu0 %2643
        %2645 = vrot.lane.b32.xlu0 %v384, 64
        %v2646 = vpop.permute.xlu0 %2645
        %2647 = vrot.lane.b32.xlu0 %v385, 64
        %v2648 = vpop.permute.xlu0 %2647
        %2649 = vrot.lane.b32.xlu0 %v386, 64
        %v2650 = vpop.permute.xlu0 %2649
        %2651 = vrot.lane.b32.xlu0 %v387, 64
        %v2652 = vpop.permute.xlu0 %2651
        %2653 = vrot.lane.b32.xlu0 %v388, 64
        %v2654 = vpop.permute.xlu0 %2653
        %2655 = vrot.lane.b32.xlu0 %v389, 64
        %v2656 = vpop.permute.xlu0 %2655
        %2657 = vrot.lane.b32.xlu0 %v390, 64
        %v2658 = vpop.permute.xlu0 %2657
        %2659 = vrot.lane.b32.xlu0 %v391, 64
        %v2660 = vpop.permute.xlu0 %2659
        %2661 = vrot.lane.b32.xlu0 %v392, 64
        %v2662 = vpop.permute.xlu0 %2661
        %2663 = vrot.lane.b32.xlu0 %v393, 64
        %v2664 = vpop.permute.xlu0 %2663
        %2665 = vrot.lane.b32.xlu0 %v394, 64
        %v2666 = vpop.permute.xlu0 %2665
        %2667 = vrot.lane.b32.xlu0 %v395, 64
        %v2668 = vpop.permute.xlu0 %2667
        %2669 = vrot.lane.b32.xlu0 %v396, 64
        %v2670 = vpop.permute.xlu0 %2669
        %2671 = vrot.lane.b32.xlu0 %v397, 64
        %v2672 = vpop.permute.xlu0 %2671
        %2673 = vrot.lane.b32.xlu0 %v398, 64
        %v2674 = vpop.permute.xlu0 %2673
        %2675 = vrot.lane.b32.xlu0 %v399, 64
        %v2676 = vpop.permute.xlu0 %2675
        %2677 = vrot.lane.b32.xlu0 %v400, 64
        %v2678 = vpop.permute.xlu0 %2677
        %2679 = vrot.lane.b32.xlu0 %v401, 64
        %v2680 = vpop.permute.xlu0 %2679
        %2681 = vrot.lane.b32.xlu0 %v402, 64
        %v2682 = vpop.permute.xlu0 %2681
        %2683 = vrot.lane.b32.xlu0 %v403, 64
        %v2684 = vpop.permute.xlu0 %2683
        %2685 = vrot.lane.b32.xlu0 %v404, 64
        %v2686 = vpop.permute.xlu0 %2685
        %2687 = vrot.lane.b32.xlu0 %v405, 64
        %v2688 = vpop.permute.xlu0 %2687
        %2689 = vrot.lane.b32.xlu0 %v406, 64
        %v2690 = vpop.permute.xlu0 %2689
        %2691 = vrot.lane.b32.xlu0 %v407, 64
        %v2692 = vpop.permute.xlu0 %2691
        %2693 = vrot.lane.b32.xlu0 %v408, 64
        %v2694 = vpop.permute.xlu0 %2693
        %2695 = vrot.lane.b32.xlu0 %v409, 64
        %v2696 = vpop.permute.xlu0 %2695
        %2697 = vrot.lane.b32.xlu0 %v410, 64
        %v2698 = vpop.permute.xlu0 %2697
        %2699 = vrot.lane.b32.xlu0 %v411, 64
        %v2700 = vpop.permute.xlu0 %2699
        %2701 = vrot.lane.b32.xlu0 %v412, 64
        %v2702 = vpop.permute.xlu0 %2701
        %2735 = vmatprep.subr.mxu0 0.0
        %2736 = vmatpush1.msra.mxu0 %v2640
        %2737 = vmatprep.subr.mxu0 0.0
        %2738 = vmatpush1.msra.mxu0 %v2642
        %2739 = vmatprep.subr.mxu0 0.0
        %2740 = vmatpush1.msra.mxu0 %v2644
        %2741 = vmatprep.subr.mxu0 0.0
        %2742 = vmatpush1.msra.mxu0 %v2646
        %2743 = vmatprep.subr.mxu0 0.0
        %2744 = vmatpush1.msra.mxu0 %v2648
        %2745 = vmatprep.subr.mxu0 0.0
        %2746 = vmatpush1.msra.mxu0 %v2650
        %2747 = vmatprep.subr.mxu0 0.0
        %2748 = vmatpush1.msra.mxu0 %v2652
        %2749 = vmatprep.subr.mxu0 0.0
        %2750 = vmatpush1.msra.mxu0 %v2654
        %2751 = vmatprep.subr.mxu0 0.0
        %2752 = vmatpush1.msra.mxu0 %v2656
        %2753 = vmatprep.subr.mxu0 0.0
        %2754 = vmatpush1.msra.mxu0 %v2658
        %2755 = vmatprep.subr.mxu0 0.0
        %2756 = vmatpush1.msra.mxu0 %v2660
        %2757 = vmatprep.subr.mxu0 0.0
        %2758 = vmatpush1.msra.mxu0 %v2662
        %2759 = vmatprep.subr.mxu0 0.0
        %2760 = vmatpush1.msra.mxu0 %v2664
        %2761 = vmatprep.subr.mxu0 0.0
        %2762 = vmatpush1.msra.mxu0 %v2666
        %2763 = vmatprep.subr.mxu0 0.0
        %2764 = vmatpush1.msra.mxu0 %v2668
        %2765 = vmatprep.subr.mxu0 0.0
        %2766 = vmatpush1.msra.mxu0 %v2670
        %2767 = vmatprep.subr.mxu0 0.0
        %2768 = vmatpush1.msra.mxu0 %v2672
        %2769 = vmatprep.subr.mxu0 0.0
        %2770 = vmatpush1.msra.mxu0 %v2674
        %2771 = vmatprep.subr.mxu0 0.0
        %2772 = vmatpush1.msra.mxu0 %v2676
        %2773 = vmatprep.subr.mxu0 0.0
        %2774 = vmatpush1.msra.mxu0 %v2678
        %2775 = vmatprep.subr.mxu0 0.0
        %2776 = vmatpush1.msra.mxu0 %v2680
        %2777 = vmatprep.subr.mxu0 0.0
        %2778 = vmatpush1.msra.mxu0 %v2682
        %2779 = vmatprep.subr.mxu0 0.0
        %2780 = vmatpush1.msra.mxu0 %v2684
        %2781 = vmatprep.subr.mxu0 0.0
        %2782 = vmatpush1.msra.mxu0 %v2686
        %2783 = vmatprep.subr.mxu0 0.0
        %2784 = vmatpush1.msra.mxu0 %v2688
        %2785 = vmatprep.subr.mxu0 0.0
        %2786 = vmatpush1.msra.mxu0 %v2690
        %2787 = vmatprep.subr.mxu0 0.0
        %2788 = vmatpush1.msra.mxu0 %v2692
        %2789 = vmatprep.subr.mxu0 0.0
        %2790 = vmatpush1.msra.mxu0 %v2694
        %2791 = vmatprep.subr.mxu0 0.0
        %2792 = vmatpush1.msra.mxu0 %v2696
        %2793 = vmatprep.subr.mxu0 0.0
        %2794 = vmatpush1.msra.mxu0 %v2698
        %2795 = vmatprep.subr.mxu0 0.0
        %2796 = vmatpush1.msra.mxu0 %v2700
        %2797 = vmatprep.subr.mxu0 0.0
        %2798 = vmatpush1.msra.mxu0 %v2702
        %2799 = vmatprep.mubr.f32.mxu0 %v2560
        %2800 = vmatmul.mubr.f32.gmra.mrb[0].mxu0 %v2559
        %v2801 = vpop.f32.mrb[0].mxu0
        %v2802 = vadd.f32 0.0, %v2801
        %v2803 = vpop.f32.mrb[0].mxu0
        %2804 = vmatprep.mubr.f32.mxu0 %v2562
        %2805 = vmatmul.mubr.f32.gmra.mrb[0].mxu0 %v2561
        %v2806 = vpop.f32.mrb[0].mxu0
        %v2807 = vadd.f32 0.0, %v2806
        %v2808 = vpop.f32.mrb[0].mxu0
        %2809 = vmatprep.mubr.f32.mxu0 %v2564
        %2810 = vmatmul.mubr.f32.gmra.mrb[0].mxu0 %v2563
        %v2811 = vpop.f32.mrb[0].mxu0
        %v2812 = vadd.f32 0.0, %v2811
        %v2813 = vpop.f32.mrb[0].mxu0
        %2814 = vmatprep.mubr.f32.mxu0 %v2566
        %2815 = vmatmul.mubr.f32.gmra.mrb[0].mxu0 %v2565
        %v2816 = vpop.f32.mrb[0].mxu0
        %v2817 = vadd.f32 0.0, %v2816
        %v2818 = vpop.f32.mrb[0].mxu0
        %2819 = vmatprep.mubr.f32.mxu0 %v2568
        %2820 = vmatmul.mubr.f32.gmra.mrb[0].mxu0 %v2567
        %v2821 = vpop.f32.mrb[0].mxu0
        %v2822 = vadd.f32 0.0, %v2821
        %v2823 = vpop.f32.mrb[0].mxu0
        %2824 = vmatprep.mubr.f32.mxu0 %v2570
        %2825 = vmatmul.mubr.f32.gmra.mrb[0].mxu0 %v2569
        %v2826 = vpop.f32.mrb[0].mxu0
        %v2827 = vadd.f32 0.0, %v2826
        %v2828 = vpop.f32.mrb[0].mxu0
        %2829 = vmatprep.mubr.f32.mxu0 %v2572
        %2830 = vmatmul.mubr.f32.gmra.mrb[0].mxu0 %v2571
        %v2831 = vpop.f32.mrb[0].mxu0
        %v2832 = vadd.f32 0.0, %v2831
        %v2833 = vpop.f32.mrb[0].mxu0
        %2834 = vmatprep.mubr.f32.mxu0 %v2574
        %2835 = vmatmul.mubr.f32.gmra.mrb[0].mxu0 %v2573
        %v2836 = vpop.f32.mrb[0].mxu0
        %v2837 = vadd.f32 0.0, %v2836
        %v2838 = vpop.f32.mrb[0].mxu0
        %2839 = vmatprep.mubr.f32.mxu0 %v2576
        %2840 = vmatmul.mubr.f32.gmra.mrb[0].mxu0 %v2575
        %v2841 = vpop.f32.mrb[0].mxu0
        %v2842 = vadd.f32 0.0, %v2841
        %v2843 = vpop.f32.mrb[0].mxu0
        %2844 = vmatprep.mubr.f32.mxu0 %v2578
        %2845 = vmatmul.mubr.f32.gmra.mrb[0].mxu0 %v2577
        %v2846 = vpop.f32.mrb[0].mxu0
        %v2847 = vadd.f32 0.0, %v2846
        %v2848 = vpop.f32.mrb[0].mxu0
        %2849 = vmatprep.mubr.f32.mxu0 %v2580
        %2850 = vmatmul.mubr.f32.gmra.mrb[0].mxu0 %v2579
        %v2851 = vpop.f32.mrb[0].mxu0
        %v2852 = vadd.f32 0.0, %v2851
        %v2853 = vpop.f32.mrb[0].mxu0
        %2854 = vmatprep.mubr.f32.mxu0 %v2582
        %2855 = vmatmul.mubr.f32.gmra.mrb[0].mxu0 %v2581
        %v2856 = vpop.f32.mrb[0].mxu0
        %v2857 = vadd.f32 0.0, %v2856
        %v2858 = vpop.f32.mrb[0].mxu0
        %2859 = vmatprep.mubr.f32.mxu0 %v2584
        %2860 = vmatmul.mubr.f32.gmra.mrb[0].mxu0 %v2583
        %v2861 = vpop.f32.mrb[0].mxu0
        %v2862 = vadd.f32 0.0, %v2861
        %v2863 = vpop.f32.mrb[0].mxu0
        %2864 = vmatprep.mubr.f32.mxu0 %v2586
        %2865 = vmatmul.mubr.f32.gmra.mrb[0].mxu0 %v2585
        %v2866 = vpop.f32.mrb[0].mxu0
        %v2867 = vadd.f32 0.0, %v2866
        %v2868 = vpop.f32.mrb[0].mxu0
        %2869 = vmatprep.mubr.f32.mxu0 %v2588
        %2870 = vmatmul.mubr.f32.gmra.mrb[0].mxu0 %v2587
        %v2871 = vpop.f32.mrb[0].mxu0
        %v2872 = vadd.f32 0.0, %v2871
        %v2873 = vpop.f32.mrb[0].mxu0
        %2874 = vmatprep.mubr.f32.mxu0 %v2590
        %2875 = vmatmul.mubr.f32.gmra.mrb[0].mxu0 %v2589
        %v2876 = vpop.f32.mrb[0].mxu0
        %v2877 = vadd.f32 0.0, %v2876
        %v2878 = vpop.f32.mrb[0].mxu0
        %2879 = vdwg.mxu0
        %2880 = vset.pattern.permute.xlu0 3
        %2881 = vperm.xlu0 %2880, %v413
        %v2882 = vpop.permute.xlu0 %2881
        %2884 = vset.pattern.permute.xlu0 3
        %2885 = vperm.xlu0 %2884, %v414
        %v2886 = vpop.permute.xlu0 %2885
        %2888 = vset.pattern.permute.xlu0 3
        %2889 = vperm.xlu0 %2888, %v415
        %v2890 = vpop.permute.xlu0 %2889
        %2892 = vset.pattern.permute.xlu0 3
        %2893 = vperm.xlu0 %2892, %v416
        %v2894 = vpop.permute.xlu0 %2893
        %2896 = vset.pattern.permute.xlu0 3
        %2897 = vperm.xlu0 %2896, %v417
        %v2898 = vpop.permute.xlu0 %2897
        %2900 = vset.pattern.permute.xlu0 3
        %2901 = vperm.xlu0 %2900, %v418
        %v2902 = vpop.permute.xlu0 %2901
        %2904 = vset.pattern.permute.xlu0 3
        %2905 = vperm.xlu0 %2904, %v419
        %v2906 = vpop.permute.xlu0 %2905
        %2908 = vset.pattern.permute.xlu0 3
        %2909 = vperm.xlu0 %2908, %v420
        %v2910 = vpop.permute.xlu0 %2909
        %2912 = vset.pattern.permute.xlu0 3
        %2913 = vperm.xlu0 %2912, %v421
        %v2914 = vpop.permute.xlu0 %2913
        %2916 = vset.pattern.permute.xlu0 3
        %2917 = vperm.xlu0 %2916, %v422
        %v2918 = vpop.permute.xlu0 %2917
        %2920 = vset.pattern.permute.xlu0 3
        %2921 = vperm.xlu0 %2920, %v423
        %v2922 = vpop.permute.xlu0 %2921
        %2924 = vset.pattern.permute.xlu0 3
        %2925 = vperm.xlu0 %2924, %v424
        %v2926 = vpop.permute.xlu0 %2925
        %2928 = vset.pattern.permute.xlu0 3
        %2929 = vperm.xlu0 %2928, %v425
        %v2930 = vpop.permute.xlu0 %2929
        %2932 = vset.pattern.permute.xlu0 3
        %2933 = vperm.xlu0 %2932, %v426
        %v2934 = vpop.permute.xlu0 %2933
        %2936 = vset.pattern.permute.xlu0 3
        %2937 = vperm.xlu0 %2936, %v427
        %v2938 = vpop.permute.xlu0 %2937
        %2940 = vset.pattern.permute.xlu0 3
        %2941 = vperm.xlu0 %2940, %v428
        %v2942 = vpop.permute.xlu0 %2941
        %v2944 = vlaneseq
        %v2945 = vshrl.u32 %v2944, 7
        %v2946 = vsub.s32 3, %v2945
        %v2947 = vrot.slane %v429, %v2946
        %v2948 = vlaneseq
        %v2949 = vshrl.u32 %v2948, 7
        %v2950 = vsub.s32 7, %v2949
        %v2951 = vrot.slane %v429, %v2950
        %v2954 = vlaneseq
        %v2955 = vshrl.u32 %v2954, 7
        %v2956 = vsub.s32 3, %v2955
        %v2957 = vrot.slane %v2947, %v2956
        %v2958 = vlaneseq
        %v2959 = vshrl.u32 %v2958, 7
        %v2960 = vsub.s32 3, %v2959
        %v2961 = vrot.slane %v2951, %v2960
        %v2962 = vadd.f32 %v2882, %v2957
        %v2963 = vadd.f32 %v2882, %v2961
        %v2964 = vadd.f32 %v2886, %v2957
        %v2965 = vadd.f32 %v2886, %v2961
        %v2966 = vadd.f32 %v2890, %v2957
        %v2967 = vadd.f32 %v2890, %v2961
        %v2968 = vadd.f32 %v2894, %v2957
        %v2969 = vadd.f32 %v2894, %v2961
        %v2970 = vadd.f32 %v2898, %v2957
        %v2971 = vadd.f32 %v2898, %v2961
        %v2972 = vadd.f32 %v2902, %v2957
        %v2973 = vadd.f32 %v2902, %v2961
        %v2974 = vadd.f32 %v2906, %v2957
        %v2975 = vadd.f32 %v2906, %v2961
        %v2976 = vadd.f32 %v2910, %v2957
        %v2977 = vadd.f32 %v2910, %v2961
        %v2978 = vadd.f32 %v2914, %v2957
        %v2979 = vadd.f32 %v2914, %v2961
        %v2980 = vadd.f32 %v2918, %v2957
        %v2981 = vadd.f32 %v2918, %v2961
        %v2982 = vadd.f32 %v2922, %v2957
        %v2983 = vadd.f32 %v2922, %v2961
        %v2984 = vadd.f32 %v2926, %v2957
        %v2985 = vadd.f32 %v2926, %v2961
        %v2986 = vadd.f32 %v2930, %v2957
        %v2987 = vadd.f32 %v2930, %v2961
        %v2988 = vadd.f32 %v2934, %v2957
        %v2989 = vadd.f32 %v2934, %v2961
        %v2990 = vadd.f32 %v2938, %v2957
        %v2991 = vadd.f32 %v2938, %v2961
        %v2992 = vadd.f32 %v2942, %v2957
        %v2993 = vadd.f32 %v2942, %v2961
        %v2994 = vmul.f32 %v2962, 0.2
        %v2995 = vmul.f32 %v2963, 0.2
        %v2996 = vmul.f32 %v2964, 0.2
        %v2997 = vmul.f32 %v2965, 0.2
        %v2998 = vmul.f32 %v2966, 0.2
        %v2999 = vmul.f32 %v2967, 0.2
        %v3000 = vmul.f32 %v2968, 0.2
        %v3001 = vmul.f32 %v2969, 0.2
        %v3002 = vmul.f32 %v2970, 0.2
        %v3003 = vmul.f32 %v2971, 0.2
        %v3004 = vmul.f32 %v2972, 0.2
        %v3005 = vmul.f32 %v2973, 0.2
        %v3006 = vmul.f32 %v2974, 0.2
        %v3007 = vmul.f32 %v2975, 0.2
        %v3008 = vmul.f32 %v2976, 0.2
        %v3009 = vmul.f32 %v2977, 0.2
        %v3010 = vmul.f32 %v2978, 0.2
        %v3011 = vmul.f32 %v2979, 0.2
        %v3012 = vmul.f32 %v2980, 0.2
        %v3013 = vmul.f32 %v2981, 0.2
        %v3014 = vmul.f32 %v2982, 0.2
        %v3015 = vmul.f32 %v2983, 0.2
        %v3016 = vmul.f32 %v2984, 0.2
        %v3017 = vmul.f32 %v2985, 0.2
        %v3018 = vmul.f32 %v2986, 0.2
        %v3019 = vmul.f32 %v2987, 0.2
        %v3020 = vmul.f32 %v2988, 0.2
        %v3021 = vmul.f32 %v2989, 0.2
        %v3022 = vmul.f32 %v2990, 0.2
        %v3023 = vmul.f32 %v2991, 0.2
        %v3024 = vmul.f32 %v2992, 0.2
        %v3025 = vmul.f32 %v2993, 0.2
        %v3026 = vmax.f32 %v2962, %v2994
        %v3027 = vmax.f32 %v2963, %v2995
        %v3028 = vmax.f32 %v2964, %v2996
        %v3029 = vmax.f32 %v2965, %v2997
        %v3030 = vmax.f32 %v2966, %v2998
        %v3031 = vmax.f32 %v2967, %v2999
        %v3032 = vmax.f32 %v2968, %v3000
        %v3033 = vmax.f32 %v2969, %v3001
        %v3034 = vmax.f32 %v2970, %v3002
        %v3035 = vmax.f32 %v2971, %v3003
        %v3036 = vmax.f32 %v2972, %v3004
        %v3037 = vmax.f32 %v2973, %v3005
        %v3038 = vmax.f32 %v2974, %v3006
        %v3039 = vmax.f32 %v2975, %v3007
        %v3040 = vmax.f32 %v2976, %v3008
        %v3041 = vmax.f32 %v2977, %v3009
        %v3042 = vmax.f32 %v2978, %v3010
        %v3043 = vmax.f32 %v2979, %v3011
        %v3044 = vmax.f32 %v2980, %v3012
        %v3045 = vmax.f32 %v2981, %v3013
        %v3046 = vmax.f32 %v2982, %v3014
        %v3047 = vmax.f32 %v2983, %v3015
        %v3048 = vmax.f32 %v2984, %v3016
        %v3049 = vmax.f32 %v2985, %v3017
        %v3050 = vmax.f32 %v2986, %v3018
        %v3051 = vmax.f32 %v2987, %v3019
        %v3052 = vmax.f32 %v2988, %v3020
        %v3053 = vmax.f32 %v2989, %v3021
        %v3054 = vmax.f32 %v2990, %v3022
        %v3055 = vmax.f32 %v2991, %v3023
        %v3056 = vmax.f32 %v2992, %v3024
        %v3057 = vmax.f32 %v2993, %v3025
        %v3058 = vsel %vm777, %v3026, -1e+30
        %v3059 = vsel %vm778, %v3027, -1e+30
        %v3060 = vsel %vm779, %v3028, -1e+30
        %v3061 = vsel %vm780, %v3029, -1e+30
        %v3062 = vsel %vm781, %v3030, -1e+30
        %v3063 = vsel %vm782, %v3031, -1e+30
        %v3064 = vsel %vm783, %v3032, -1e+30
        %v3065 = vsel %vm784, %v3033, -1e+30
        %v3066 = vsel %vm785, %v3034, -1e+30
        %v3067 = vsel %vm786, %v3035, -1e+30
        %v3068 = vsel %vm787, %v3036, -1e+30
        %v3069 = vsel %vm788, %v3037, -1e+30
        %v3070 = vsel %vm789, %v3038, -1e+30
        %v3071 = vsel %vm790, %v3039, -1e+30
        %v3072 = vsel %vm791, %v3040, -1e+30
        %v3073 = vsel %vm792, %v3041, -1e+30
        %v3074 = vsel %vm793, %v3042, -1e+30
        %v3075 = vsel %vm794, %v3043, -1e+30
        %v3076 = vsel %vm795, %v3044, -1e+30
        %v3077 = vsel %vm796, %v3045, -1e+30
        %v3078 = vsel %vm797, %v3046, -1e+30
        %v3079 = vsel %vm798, %v3047, -1e+30
        %v3080 = vsel %vm799, %v3048, -1e+30
        %v3081 = vsel %vm800, %v3049, -1e+30
        %v3082 = vsel %vm801, %v3050, -1e+30
        %v3083 = vsel %vm802, %v3051, -1e+30
        %v3084 = vsel %vm803, %v3052, -1e+30
        %v3085 = vsel %vm804, %v3053, -1e+30
        %v3086 = vsel %vm805, %v3054, -1e+30
        %v3087 = vsel %vm806, %v3055, -1e+30
        %v3088 = vsel %vm807, %v3056, -1e+30
        %v3089 = vsel %vm808, %v3057, -1e+30
        %v3090 = vmax.f32 %v3058, %v3059
        %3091 = vmax.xlane.f32.xlu0 %v3090
        %v3092 = vpop.xlane.xlu0 %3091
        %v3093 = vmax.f32 %v3060, %v3061
        %3094 = vmax.xlane.f32.xlu0 %v3093
        %v3095 = vpop.xlane.xlu0 %3094
        %v3096 = vmax.f32 %v3062, %v3063
        %3097 = vmax.xlane.f32.xlu0 %v3096
        %v3098 = vpop.xlane.xlu0 %3097
        %v3099 = vmax.f32 %v3064, %v3065
        %3100 = vmax.xlane.f32.xlu0 %v3099
        %v3101 = vpop.xlane.xlu0 %3100
        %v3102 = vmax.f32 %v3066, %v3067
        %3103 = vmax.xlane.f32.xlu0 %v3102
        %v3104 = vpop.xlane.xlu0 %3103
        %v3105 = vmax.f32 %v3068, %v3069
        %3106 = vmax.xlane.f32.xlu0 %v3105
        %v3107 = vpop.xlane.xlu0 %3106
        %v3108 = vmax.f32 %v3070, %v3071
        %3109 = vmax.xlane.f32.xlu0 %v3108
        %v3110 = vpop.xlane.xlu0 %3109
        %v3111 = vmax.f32 %v3072, %v3073
        %3112 = vmax.xlane.f32.xlu0 %v3111
        %v3113 = vpop.xlane.xlu0 %3112
        %v3114 = vmax.f32 %v3074, %v3075
        %3115 = vmax.xlane.f32.xlu0 %v3114
        %v3116 = vpop.xlane.xlu0 %3115
        %v3117 = vmax.f32 %v3076, %v3077
        %3118 = vmax.xlane.f32.xlu0 %v3117
        %v3119 = vpop.xlane.xlu0 %3118
        %v3120 = vmax.f32 %v3078, %v3079
        %3121 = vmax.xlane.f32.xlu0 %v3120
        %v3122 = vpop.xlane.xlu0 %3121
        %v3123 = vmax.f32 %v3080, %v3081
        %3124 = vmax.xlane.f32.xlu0 %v3123
        %v3125 = vpop.xlane.xlu0 %3124
        %v3126 = vmax.f32 %v3082, %v3083
        %3127 = vmax.xlane.f32.xlu0 %v3126
        %v3128 = vpop.xlane.xlu0 %3127
        %v3129 = vmax.f32 %v3084, %v3085
        %3130 = vmax.xlane.f32.xlu0 %v3129
        %v3131 = vpop.xlane.xlu0 %3130
        %v3132 = vmax.f32 %v3086, %v3087
        %3133 = vmax.xlane.f32.xlu0 %v3132
        %v3134 = vpop.xlane.xlu0 %3133
        %v3135 = vmax.f32 %v3088, %v3089
        %3136 = vmax.xlane.f32.xlu0 %v3135
        %v3137 = vpop.xlane.xlu0 %3136
        %v3138 = vmax.f32 %v430, %v3092
        %v3139 = vmax.f32 %v431, %v3095
        %v3140 = vmax.f32 %v432, %v3098
        %v3141 = vmax.f32 %v433, %v3101
        %v3142 = vmax.f32 %v434, %v3104
        %v3143 = vmax.f32 %v435, %v3107
        %v3144 = vmax.f32 %v436, %v3110
        %v3145 = vmax.f32 %v437, %v3113
        %v3146 = vmax.f32 %v438, %v3116
        %v3147 = vmax.f32 %v439, %v3119
        %v3148 = vmax.f32 %v440, %v3122
        %v3149 = vmax.f32 %v441, %v3125
        %v3150 = vmax.f32 %v442, %v3128
        %v3151 = vmax.f32 %v443, %v3131
        %v3152 = vmax.f32 %v444, %v3134
        %v3153 = vmax.f32 %v445, %v3137
        %3155 = vset.pattern.permute.xlu0 96
        %3156 = vperm.xlu0 %3155, %v3138
        %v3157 = vpop.permute.xlu0 %3156
        %3160 = vset.pattern.permute.xlu0 96
        %3161 = vperm.xlu0 %3160, %v3139
        %v3162 = vpop.permute.xlu0 %3161
        %3165 = vset.pattern.permute.xlu0 96
        %3166 = vperm.xlu0 %3165, %v3140
        %v3167 = vpop.permute.xlu0 %3166
        %3170 = vset.pattern.permute.xlu0 96
        %3171 = vperm.xlu0 %3170, %v3141
        %v3172 = vpop.permute.xlu0 %3171
        %3175 = vset.pattern.permute.xlu0 96
        %3176 = vperm.xlu0 %3175, %v3142
        %v3177 = vpop.permute.xlu0 %3176
        %3180 = vset.pattern.permute.xlu0 96
        %3181 = vperm.xlu0 %3180, %v3143
        %v3182 = vpop.permute.xlu0 %3181
        %3185 = vset.pattern.permute.xlu0 96
        %3186 = vperm.xlu0 %3185, %v3144
        %v3187 = vpop.permute.xlu0 %3186
        %3190 = vset.pattern.permute.xlu0 96
        %3191 = vperm.xlu0 %3190, %v3145
        %v3192 = vpop.permute.xlu0 %3191
        %3195 = vset.pattern.permute.xlu0 96
        %3196 = vperm.xlu0 %3195, %v3146
        %v3197 = vpop.permute.xlu0 %3196
        %3200 = vset.pattern.permute.xlu0 96
        %3201 = vperm.xlu0 %3200, %v3147
        %v3202 = vpop.permute.xlu0 %3201
        %3205 = vset.pattern.permute.xlu0 96
        %3206 = vperm.xlu0 %3205, %v3148
        %v3207 = vpop.permute.xlu0 %3206
        %3210 = vset.pattern.permute.xlu0 96
        %3211 = vperm.xlu0 %3210, %v3149
        %v3212 = vpop.permute.xlu0 %3211
        %3215 = vset.pattern.permute.xlu0 96
        %3216 = vperm.xlu0 %3215, %v3150
        %v3217 = vpop.permute.xlu0 %3216
        %3220 = vset.pattern.permute.xlu0 96
        %3221 = vperm.xlu0 %3220, %v3151
        %v3222 = vpop.permute.xlu0 %3221
        %3225 = vset.pattern.permute.xlu0 96
        %3226 = vperm.xlu0 %3225, %v3152
        %v3227 = vpop.permute.xlu0 %3226
        %3230 = vset.pattern.permute.xlu0 96
        %3231 = vperm.xlu0 %3230, %v3153
        %v3232 = vpop.permute.xlu0 %3231
        %v3234 = vsub.f32 %v3058, %v3157
        %v3235 = vsub.f32 %v3059, %v3157
        %v3236 = vsub.f32 %v3060, %v3162
        %v3237 = vsub.f32 %v3061, %v3162
        %v3238 = vsub.f32 %v3062, %v3167
        %v3239 = vsub.f32 %v3063, %v3167
        %v3240 = vsub.f32 %v3064, %v3172
        %v3241 = vsub.f32 %v3065, %v3172
        %v3242 = vsub.f32 %v3066, %v3177
        %v3243 = vsub.f32 %v3067, %v3177
        %v3244 = vsub.f32 %v3068, %v3182
        %v3245 = vsub.f32 %v3069, %v3182
        %v3246 = vsub.f32 %v3070, %v3187
        %v3247 = vsub.f32 %v3071, %v3187
        %v3248 = vsub.f32 %v3072, %v3192
        %v3249 = vsub.f32 %v3073, %v3192
        %v3250 = vsub.f32 %v3074, %v3197
        %v3251 = vsub.f32 %v3075, %v3197
        %v3252 = vsub.f32 %v3076, %v3202
        %v3253 = vsub.f32 %v3077, %v3202
        %v3254 = vsub.f32 %v3078, %v3207
        %v3255 = vsub.f32 %v3079, %v3207
        %v3256 = vsub.f32 %v3080, %v3212
        %v3257 = vsub.f32 %v3081, %v3212
        %v3258 = vsub.f32 %v3082, %v3217
        %v3259 = vsub.f32 %v3083, %v3217
        %v3260 = vsub.f32 %v3084, %v3222
        %v3261 = vsub.f32 %v3085, %v3222
        %v3262 = vsub.f32 %v3086, %v3227
        %v3263 = vsub.f32 %v3087, %v3227
        %v3264 = vsub.f32 %v3088, %v3232
        %v3265 = vsub.f32 %v3089, %v3232
        %v3266 = vmul.f32 %v3234, 1.442695
        %v3267 = vpow.pop %v3266
        %v3268 = vmul.f32 %v3235, 1.442695
        %v3269 = vpow.pop %v3268
        %v3270 = vmul.f32 %v3236, 1.442695
        %v3271 = vpow.pop %v3270
        %v3272 = vmul.f32 %v3237, 1.442695
        %v3273 = vpow.pop %v3272
        %v3274 = vmul.f32 %v3238, 1.442695
        %v3275 = vpow.pop %v3274
        %v3276 = vmul.f32 %v3239, 1.442695
        %v3277 = vpow.pop %v3276
        %v3278 = vmul.f32 %v3240, 1.442695
        %v3279 = vpow.pop %v3278
        %v3280 = vmul.f32 %v3241, 1.442695
        %v3281 = vpow.pop %v3280
        %v3282 = vmul.f32 %v3242, 1.442695
        %v3283 = vpow.pop %v3282
        %v3284 = vmul.f32 %v3243, 1.442695
        %v3285 = vpow.pop %v3284
        %v3286 = vmul.f32 %v3244, 1.442695
        %v3287 = vpow.pop %v3286
        %v3288 = vmul.f32 %v3245, 1.442695
        %v3289 = vpow.pop %v3288
        %v3290 = vmul.f32 %v3246, 1.442695
        %v3291 = vpow.pop %v3290
        %v3292 = vmul.f32 %v3247, 1.442695
        %v3293 = vpow.pop %v3292
        %v3294 = vmul.f32 %v3248, 1.442695
        %v3295 = vpow.pop %v3294
        %v3296 = vmul.f32 %v3249, 1.442695
        %v3297 = vpow.pop %v3296
        %v3298 = vmul.f32 %v3250, 1.442695
        %v3299 = vpow.pop %v3298
        %v3300 = vmul.f32 %v3251, 1.442695
        %v3301 = vpow.pop %v3300
        %v3302 = vmul.f32 %v3252, 1.442695
        %v3303 = vpow.pop %v3302
        %v3304 = vmul.f32 %v3253, 1.442695
        %v3305 = vpow.pop %v3304
        %v3306 = vmul.f32 %v3254, 1.442695
        %v3307 = vpow.pop %v3306
        %v3308 = vmul.f32 %v3255, 1.442695
        %v3309 = vpow.pop %v3308
        %v3310 = vmul.f32 %v3256, 1.442695
        %v3311 = vpow.pop %v3310
        %v3312 = vmul.f32 %v3257, 1.442695
        %v3313 = vpow.pop %v3312
        %v3314 = vmul.f32 %v3258, 1.442695
        %v3315 = vpow.pop %v3314
        %v3316 = vmul.f32 %v3259, 1.442695
        %v3317 = vpow.pop %v3316
        %v3318 = vmul.f32 %v3260, 1.442695
        %v3319 = vpow.pop %v3318
        %v3320 = vmul.f32 %v3261, 1.442695
        %v3321 = vpow.pop %v3320
        %v3322 = vmul.f32 %v3262, 1.442695
        %v3323 = vpow.pop %v3322
        %v3324 = vmul.f32 %v3263, 1.442695
        %v3325 = vpow.pop %v3324
        %v3326 = vmul.f32 %v3264, 1.442695
        %v3327 = vpow.pop %v3326
        %v3328 = vmul.f32 %v3265, 1.442695
        %v3329 = vpow.pop %v3328
        %v3330 = vsel %vm777, %v3267, 0.0
        %v3331 = vsel %vm778, %v3269, 0.0
        %v3332 = vsel %vm779, %v3271, 0.0
        %v3333 = vsel %vm780, %v3273, 0.0
        %v3334 = vsel %vm781, %v3275, 0.0
        %v3335 = vsel %vm782, %v3277, 0.0
        %v3336 = vsel %vm783, %v3279, 0.0
        %v3337 = vsel %vm784, %v3281, 0.0
        %v3338 = vsel %vm785, %v3283, 0.0
        %v3339 = vsel %vm786, %v3285, 0.0
        %v3340 = vsel %vm787, %v3287, 0.0
        %v3341 = vsel %vm788, %v3289, 0.0
        %v3342 = vsel %vm789, %v3291, 0.0
        %v3343 = vsel %vm790, %v3293, 0.0
        %v3344 = vsel %vm791, %v3295, 0.0
        %v3345 = vsel %vm792, %v3297, 0.0
        %v3346 = vsel %vm793, %v3299, 0.0
        %v3347 = vsel %vm794, %v3301, 0.0
        %v3348 = vsel %vm795, %v3303, 0.0
        %v3349 = vsel %vm796, %v3305, 0.0
        %v3350 = vsel %vm797, %v3307, 0.0
        %v3351 = vsel %vm798, %v3309, 0.0
        %v3352 = vsel %vm799, %v3311, 0.0
        %v3353 = vsel %vm800, %v3313, 0.0
        %v3354 = vsel %vm801, %v3315, 0.0
        %v3355 = vsel %vm802, %v3317, 0.0
        %v3356 = vsel %vm803, %v3319, 0.0
        %v3357 = vsel %vm804, %v3321, 0.0
        %v3358 = vsel %vm805, %v3323, 0.0
        %v3359 = vsel %vm806, %v3325, 0.0
        %v3360 = vsel %vm807, %v3327, 0.0
        %v3361 = vsel %vm808, %v3329, 0.0
        %v3362 = vadd.f32 %v3330, %v3331
        %3363 = vadd.xlane.f32.xlu0 %v3362
        %v3364 = vpop.xlane.xlu0 %3363
        %v3365 = vadd.f32 %v3332, %v3333
        %3366 = vadd.xlane.f32.xlu0 %v3365
        %v3367 = vpop.xlane.xlu0 %3366
        %v3368 = vadd.f32 %v3334, %v3335
        %3369 = vadd.xlane.f32.xlu0 %v3368
        %v3370 = vpop.xlane.xlu0 %3369
        %v3371 = vadd.f32 %v3336, %v3337
        %3372 = vadd.xlane.f32.xlu0 %v3371
        %v3373 = vpop.xlane.xlu0 %3372
        %v3374 = vadd.f32 %v3338, %v3339
        %3375 = vadd.xlane.f32.xlu0 %v3374
        %v3376 = vpop.xlane.xlu0 %3375
        %v3377 = vadd.f32 %v3340, %v3341
        %3378 = vadd.xlane.f32.xlu0 %v3377
        %v3379 = vpop.xlane.xlu0 %3378
        %v3380 = vadd.f32 %v3342, %v3343
        %3381 = vadd.xlane.f32.xlu0 %v3380
        %v3382 = vpop.xlane.xlu0 %3381
        %v3383 = vadd.f32 %v3344, %v3345
        %3384 = vadd.xlane.f32.xlu0 %v3383
        %v3385 = vpop.xlane.xlu0 %3384
        %v3386 = vadd.f32 %v3346, %v3347
        %3387 = vadd.xlane.f32.xlu0 %v3386
        %v3388 = vpop.xlane.xlu0 %3387
        %v3389 = vadd.f32 %v3348, %v3349
        %3390 = vadd.xlane.f32.xlu0 %v3389
        %v3391 = vpop.xlane.xlu0 %3390
        %v3392 = vadd.f32 %v3350, %v3351
        %3393 = vadd.xlane.f32.xlu0 %v3392
        %v3394 = vpop.xlane.xlu0 %3393
        %v3395 = vadd.f32 %v3352, %v3353
        %3396 = vadd.xlane.f32.xlu0 %v3395
        %v3397 = vpop.xlane.xlu0 %3396
        %v3398 = vadd.f32 %v3354, %v3355
        %3399 = vadd.xlane.f32.xlu0 %v3398
        %v3400 = vpop.xlane.xlu0 %3399
        %v3401 = vadd.f32 %v3356, %v3357
        %3402 = vadd.xlane.f32.xlu0 %v3401
        %v3403 = vpop.xlane.xlu0 %3402
        %v3404 = vadd.f32 %v3358, %v3359
        %3405 = vadd.xlane.f32.xlu0 %v3404
        %v3406 = vpop.xlane.xlu0 %3405
        %v3407 = vadd.f32 %v3360, %v3361
        %3408 = vadd.xlane.f32.xlu0 %v3407
        %v3409 = vpop.xlane.xlu0 %3408
        %3410 = vrot.lane.b32.xlu0 %v381, 32
        %v3411 = vpop.permute.xlu0 %3410
        %3412 = vrot.lane.b32.xlu0 %v382, 32
        %v3413 = vpop.permute.xlu0 %3412
        %3414 = vrot.lane.b32.xlu0 %v383, 32
        %v3415 = vpop.permute.xlu0 %3414
        %3416 = vrot.lane.b32.xlu0 %v384, 32
        %v3417 = vpop.permute.xlu0 %3416
        %3418 = vrot.lane.b32.xlu0 %v385, 32
        %v3419 = vpop.permute.xlu0 %3418
        %3420 = vrot.lane.b32.xlu0 %v386, 32
        %v3421 = vpop.permute.xlu0 %3420
        %3422 = vrot.lane.b32.xlu0 %v387, 32
        %v3423 = vpop.permute.xlu0 %3422
        %3424 = vrot.lane.b32.xlu0 %v388, 32
        %v3425 = vpop.permute.xlu0 %3424
        %3426 = vrot.lane.b32.xlu0 %v389, 32
        %v3427 = vpop.permute.xlu0 %3426
        %3428 = vrot.lane.b32.xlu0 %v390, 32
        %v3429 = vpop.permute.xlu0 %3428
        %3430 = vrot.lane.b32.xlu0 %v391, 32
        %v3431 = vpop.permute.xlu0 %3430
        %3432 = vrot.lane.b32.xlu0 %v392, 32
        %v3433 = vpop.permute.xlu0 %3432
        %3434 = vrot.lane.b32.xlu0 %v393, 32
        %v3435 = vpop.permute.xlu0 %3434
        %3436 = vrot.lane.b32.xlu0 %v394, 32
        %v3437 = vpop.permute.xlu0 %3436
        %3438 = vrot.lane.b32.xlu0 %v395, 32
        %v3439 = vpop.permute.xlu0 %3438
        %3440 = vrot.lane.b32.xlu0 %v396, 32
        %v3441 = vpop.permute.xlu0 %3440
        %3442 = vrot.lane.b32.xlu0 %v397, 32
        %v3443 = vpop.permute.xlu0 %3442
        %3444 = vrot.lane.b32.xlu0 %v398, 32
        %v3445 = vpop.permute.xlu0 %3444
        %3446 = vrot.lane.b32.xlu0 %v399, 32
        %v3447 = vpop.permute.xlu0 %3446
        %3448 = vrot.lane.b32.xlu0 %v400, 32
        %v3449 = vpop.permute.xlu0 %3448
        %3450 = vrot.lane.b32.xlu0 %v401, 32
        %v3451 = vpop.permute.xlu0 %3450
        %3452 = vrot.lane.b32.xlu0 %v402, 32
        %v3453 = vpop.permute.xlu0 %3452
        %3454 = vrot.lane.b32.xlu0 %v403, 32
        %v3455 = vpop.permute.xlu0 %3454
        %3456 = vrot.lane.b32.xlu0 %v404, 32
        %v3457 = vpop.permute.xlu0 %3456
        %3458 = vrot.lane.b32.xlu0 %v405, 32
        %v3459 = vpop.permute.xlu0 %3458
        %3460 = vrot.lane.b32.xlu0 %v406, 32
        %v3461 = vpop.permute.xlu0 %3460
        %3462 = vrot.lane.b32.xlu0 %v407, 32
        %v3463 = vpop.permute.xlu0 %3462
        %3464 = vrot.lane.b32.xlu0 %v408, 32
        %v3465 = vpop.permute.xlu0 %3464
        %3466 = vrot.lane.b32.xlu0 %v409, 32
        %v3467 = vpop.permute.xlu0 %3466
        %3468 = vrot.lane.b32.xlu0 %v410, 32
        %v3469 = vpop.permute.xlu0 %3468
        %3470 = vrot.lane.b32.xlu0 %v411, 32
        %v3471 = vpop.permute.xlu0 %3470
        %3472 = vrot.lane.b32.xlu0 %v412, 32
        %v3473 = vpop.permute.xlu0 %3472
        %3506 = vmatprep.subr.mxu0 0.0
        %3507 = vmatpush1.msra.mxu0 %v3411
        %3508 = vmatprep.subr.mxu0 0.0
        %3509 = vmatpush1.msra.mxu0 %v3413
        %3510 = vmatprep.subr.mxu0 0.0
        %3511 = vmatpush1.msra.mxu0 %v3415
        %3512 = vmatprep.subr.mxu0 0.0
        %3513 = vmatpush1.msra.mxu0 %v3417
        %3514 = vmatprep.subr.mxu0 0.0
        %3515 = vmatpush1.msra.mxu0 %v3419
        %3516 = vmatprep.subr.mxu0 0.0
        %3517 = vmatpush1.msra.mxu0 %v3421
        %3518 = vmatprep.subr.mxu0 0.0
        %3519 = vmatpush1.msra.mxu0 %v3423
        %3520 = vmatprep.subr.mxu0 0.0
        %3521 = vmatpush1.msra.mxu0 %v3425
        %3522 = vmatprep.subr.mxu0 0.0
        %3523 = vmatpush1.msra.mxu0 %v3427
        %3524 = vmatprep.subr.mxu0 0.0
        %3525 = vmatpush1.msra.mxu0 %v3429
        %3526 = vmatprep.subr.mxu0 0.0
        %3527 = vmatpush1.msra.mxu0 %v3431
        %3528 = vmatprep.subr.mxu0 0.0
        %3529 = vmatpush1.msra.mxu0 %v3433
        %3530 = vmatprep.subr.mxu0 0.0
        %3531 = vmatpush1.msra.mxu0 %v3435
        %3532 = vmatprep.subr.mxu0 0.0
        %3533 = vmatpush1.msra.mxu0 %v3437
        %3534 = vmatprep.subr.mxu0 0.0
        %3535 = vmatpush1.msra.mxu0 %v3439
        %3536 = vmatprep.subr.mxu0 0.0
        %3537 = vmatpush1.msra.mxu0 %v3441
        %3538 = vmatprep.subr.mxu0 0.0
        %3539 = vmatpush1.msra.mxu0 %v3443
        %3540 = vmatprep.subr.mxu0 0.0
        %3541 = vmatpush1.msra.mxu0 %v3445
        %3542 = vmatprep.subr.mxu0 0.0
        %3543 = vmatpush1.msra.mxu0 %v3447
        %3544 = vmatprep.subr.mxu0 0.0
        %3545 = vmatpush1.msra.mxu0 %v3449
        %3546 = vmatprep.subr.mxu0 0.0
        %3547 = vmatpush1.msra.mxu0 %v3451
        %3548 = vmatprep.subr.mxu0 0.0
        %3549 = vmatpush1.msra.mxu0 %v3453
        %3550 = vmatprep.subr.mxu0 0.0
        %3551 = vmatpush1.msra.mxu0 %v3455
        %3552 = vmatprep.subr.mxu0 0.0
        %3553 = vmatpush1.msra.mxu0 %v3457
        %3554 = vmatprep.subr.mxu0 0.0
        %3555 = vmatpush1.msra.mxu0 %v3459
        %3556 = vmatprep.subr.mxu0 0.0
        %3557 = vmatpush1.msra.mxu0 %v3461
        %3558 = vmatprep.subr.mxu0 0.0
        %3559 = vmatpush1.msra.mxu0 %v3463
        %3560 = vmatprep.subr.mxu0 0.0
        %3561 = vmatpush1.msra.mxu0 %v3465
        %3562 = vmatprep.subr.mxu0 0.0
        %3563 = vmatpush1.msra.mxu0 %v3467
        %3564 = vmatprep.subr.mxu0 0.0
        %3565 = vmatpush1.msra.mxu0 %v3469
        %3566 = vmatprep.subr.mxu0 0.0
        %3567 = vmatpush1.msra.mxu0 %v3471
        %3568 = vmatprep.subr.mxu0 0.0
        %3569 = vmatpush1.msra.mxu0 %v3473
        %3570 = vmatprep.mubr.f32.mxu0 %v3331
        %3571 = vmatmul.mubr.f32.gmra.mrb[0].mxu0 %v3330
        %v3572 = vpop.f32.mrb[0].mxu0
        %v3573 = vadd.f32 0.0, %v3572
        %v3574 = vpop.f32.mrb[0].mxu0
        %3575 = vmatprep.mubr.f32.mxu0 %v3333
        %3576 = vmatmul.mubr.f32.gmra.mrb[0].mxu0 %v3332
        %v3577 = vpop.f32.mrb[0].mxu0
        %v3578 = vadd.f32 0.0, %v3577
        %v3579 = vpop.f32.mrb[0].mxu0
        %3580 = vmatprep.mubr.f32.mxu0 %v3335
        %3581 = vmatmul.mubr.f32.gmra.mrb[0].mxu0 %v3334
        %v3582 = vpop.f32.mrb[0].mxu0
        %v3583 = vadd.f32 0.0, %v3582
        %v3584 = vpop.f32.mrb[0].mxu0
        %3585 = vmatprep.mubr.f32.mxu0 %v3337
        %3586 = vmatmul.mubr.f32.gmra.mrb[0].mxu0 %v3336
        %v3587 = vpop.f32.mrb[0].mxu0
        %v3588 = vadd.f32 0.0, %v3587
        %v3589 = vpop.f32.mrb[0].mxu0
        %3590 = vmatprep.mubr.f32.mxu0 %v3339
        %3591 = vmatmul.mubr.f32.gmra.mrb[0].mxu0 %v3338
        %v3592 = vpop.f32.mrb[0].mxu0
        %v3593 = vadd.f32 0.0, %v3592
        %v3594 = vpop.f32.mrb[0].mxu0
        %3595 = vmatprep.mubr.f32.mxu0 %v3341
        %3596 = vmatmul.mubr.f32.gmra.mrb[0].mxu0 %v3340
        %v3597 = vpop.f32.mrb[0].mxu0
        %v3598 = vadd.f32 0.0, %v3597
        %v3599 = vpop.f32.mrb[0].mxu0
        %3600 = vmatprep.mubr.f32.mxu0 %v3343
        %3601 = vmatmul.mubr.f32.gmra.mrb[0].mxu0 %v3342
        %v3602 = vpop.f32.mrb[0].mxu0
        %v3603 = vadd.f32 0.0, %v3602
        %v3604 = vpop.f32.mrb[0].mxu0
        %3605 = vmatprep.mubr.f32.mxu0 %v3345
        %3606 = vmatmul.mubr.f32.gmra.mrb[0].mxu0 %v3344
        %v3607 = vpop.f32.mrb[0].mxu0
        %v3608 = vadd.f32 0.0, %v3607
        %v3609 = vpop.f32.mrb[0].mxu0
        %3610 = vmatprep.mubr.f32.mxu0 %v3347
        %3611 = vmatmul.mubr.f32.gmra.mrb[0].mxu0 %v3346
        %v3612 = vpop.f32.mrb[0].mxu0
        %v3613 = vadd.f32 0.0, %v3612
        %v3614 = vpop.f32.mrb[0].mxu0
        %3615 = vmatprep.mubr.f32.mxu0 %v3349
        %3616 = vmatmul.mubr.f32.gmra.mrb[0].mxu0 %v3348
        %v3617 = vpop.f32.mrb[0].mxu0
        %v3618 = vadd.f32 0.0, %v3617
        %v3619 = vpop.f32.mrb[0].mxu0
        %3620 = vmatprep.mubr.f32.mxu0 %v3351
        %3621 = vmatmul.mubr.f32.gmra.mrb[0].mxu0 %v3350
        %v3622 = vpop.f32.mrb[0].mxu0
        %v3623 = vadd.f32 0.0, %v3622
        %v3624 = vpop.f32.mrb[0].mxu0
        %3625 = vmatprep.mubr.f32.mxu0 %v3353
        %3626 = vmatmul.mubr.f32.gmra.mrb[0].mxu0 %v3352
        %v3627 = vpop.f32.mrb[0].mxu0
        %v3628 = vadd.f32 0.0, %v3627
        %v3629 = vpop.f32.mrb[0].mxu0
        %3630 = vmatprep.mubr.f32.mxu0 %v3355
        %3631 = vmatmul.mubr.f32.gmra.mrb[0].mxu0 %v3354
        %v3632 = vpop.f32.mrb[0].mxu0
        %v3633 = vadd.f32 0.0, %v3632
        %v3634 = vpop.f32.mrb[0].mxu0
        %3635 = vmatprep.mubr.f32.mxu0 %v3357
        %3636 = vmatmul.mubr.f32.gmra.mrb[0].mxu0 %v3356
        %v3637 = vpop.f32.mrb[0].mxu0
        %v3638 = vadd.f32 0.0, %v3637
        %v3639 = vpop.f32.mrb[0].mxu0
        %3640 = vmatprep.mubr.f32.mxu0 %v3359
        %3641 = vmatmul.mubr.f32.gmra.mrb[0].mxu0 %v3358
        %v3642 = vpop.f32.mrb[0].mxu0
        %v3643 = vadd.f32 0.0, %v3642
        %v3644 = vpop.f32.mrb[0].mxu0
        %3645 = vmatprep.mubr.f32.mxu0 %v3361
        %3646 = vmatmul.mubr.f32.gmra.mrb[0].mxu0 %v3360
        %v3647 = vpop.f32.mrb[0].mxu0
        %v3648 = vadd.f32 0.0, %v3647
        %v3649 = vpop.f32.mrb[0].mxu0
        %3650 = vdwg.mxu0
        %vm3651 = vcmask 261120
        %v3652 = vsel %vm3651, %v908, %v1583
        %v3653 = vsel %vm3651, %v913, %v1588
        %v3654 = vsel %vm3651, %v918, %v1593
        %v3655 = vsel %vm3651, %v923, %v1598
        %v3656 = vsel %vm3651, %v928, %v1603
        %v3657 = vsel %vm3651, %v933, %v1608
        %v3658 = vsel %vm3651, %v938, %v1613
        %v3659 = vsel %vm3651, %v943, %v1618
        %v3660 = vsel %vm3651, %v948, %v1623
        %v3661 = vsel %vm3651, %v953, %v1628
        %v3662 = vsel %vm3651, %v958, %v1633
        %v3663 = vsel %vm3651, %v963, %v1638
        %v3664 = vsel %vm3651, %v968, %v1643
        %v3665 = vsel %vm3651, %v973, %v1648
        %v3666 = vsel %vm3651, %v978, %v1653
        %v3667 = vsel %vm3651, %v983, %v1658
        %vm3668 = vcmask 523264
        %v3669 = vsel %vm3668, %v3652, %v2386
        %v3670 = vsel %vm3668, %v3653, %v2391
        %v3671 = vsel %vm3668, %v3654, %v2396
        %v3672 = vsel %vm3668, %v3655, %v2401
        %v3673 = vsel %vm3668, %v3656, %v2406
        %v3674 = vsel %vm3668, %v3657, %v2411
        %v3675 = vsel %vm3668, %v3658, %v2416
        %v3676 = vsel %vm3668, %v3659, %v2421
        %v3677 = vsel %vm3668, %v3660, %v2426
        %v3678 = vsel %vm3668, %v3661, %v2431
        %v3679 = vsel %vm3668, %v3662, %v2436
        %v3680 = vsel %vm3668, %v3663, %v2441
        %v3681 = vsel %vm3668, %v3664, %v2446
        %v3682 = vsel %vm3668, %v3665, %v2451
        %v3683 = vsel %vm3668, %v3666, %v2456
        %v3684 = vsel %vm3668, %v3667, %v2461
        %vm3685 = vcmask 785408
        %v3686 = vsel %vm3685, %v3669, %v3157
        %v3687 = vsel %vm3685, %v3670, %v3162
        %v3688 = vsel %vm3685, %v3671, %v3167
        %v3689 = vsel %vm3685, %v3672, %v3172
        %v3690 = vsel %vm3685, %v3673, %v3177
        %v3691 = vsel %vm3685, %v3674, %v3182
        %v3692 = vsel %vm3685, %v3675, %v3187
        %v3693 = vsel %vm3685, %v3676, %v3192
        %v3694 = vsel %vm3685, %v3677, %v3197
        %v3695 = vsel %vm3685, %v3678, %v3202
        %v3696 = vsel %vm3685, %v3679, %v3207
        %v3697 = vsel %vm3685, %v3680, %v3212
        %v3698 = vsel %vm3685, %v3681, %v3217
        %v3699 = vsel %vm3685, %v3682, %v3222
        %v3700 = vsel %vm3685, %v3683, %v3227
        %v3701 = vsel %vm3685, %v3684, %v3232
        %v3702 = vsel %vm3651, %v1115, %v1790
        %v3703 = vsel %vm3651, %v1118, %v1793
        %v3704 = vsel %vm3651, %v1121, %v1796
        %v3705 = vsel %vm3651, %v1124, %v1799
        %v3706 = vsel %vm3651, %v1127, %v1802
        %v3707 = vsel %vm3651, %v1130, %v1805
        %v3708 = vsel %vm3651, %v1133, %v1808
        %v3709 = vsel %vm3651, %v1136, %v1811
        %v3710 = vsel %vm3651, %v1139, %v1814
        %v3711 = vsel %vm3651, %v1142, %v1817
        %v3712 = vsel %vm3651, %v1145, %v1820
        %v3713 = vsel %vm3651, %v1148, %v1823
        %v3714 = vsel %vm3651, %v1151, %v1826
        %v3715 = vsel %vm3651, %v1154, %v1829
        %v3716 = vsel %vm3651, %v1157, %v1832
        %v3717 = vsel %vm3651, %v1160, %v1835
        %v3718 = vsel %vm3668, %v3702, %v2593
        %v3719 = vsel %vm3668, %v3703, %v2596
        %v3720 = vsel %vm3668, %v3704, %v2599
        %v3721 = vsel %vm3668, %v3705, %v2602
        %v3722 = vsel %vm3668, %v3706, %v2605
        %v3723 = vsel %vm3668, %v3707, %v2608
        %v3724 = vsel %vm3668, %v3708, %v2611
        %v3725 = vsel %vm3668, %v3709, %v2614
        %v3726 = vsel %vm3668, %v3710, %v2617
        %v3727 = vsel %vm3668, %v3711, %v2620
        %v3728 = vsel %vm3668, %v3712, %v2623
        %v3729 = vsel %vm3668, %v3713, %v2626
        %v3730 = vsel %vm3668, %v3714, %v2629
        %v3731 = vsel %vm3668, %v3715, %v2632
        %v3732 = vsel %vm3668, %v3716, %v2635
        %v3733 = vsel %vm3668, %v3717, %v2638
        %v3734 = vsel %vm3685, %v3718, %v3364
        %v3735 = vsel %vm3685, %v3719, %v3367
        %v3736 = vsel %vm3685, %v3720, %v3370
        %v3737 = vsel %vm3685, %v3721, %v3373
        %v3738 = vsel %vm3685, %v3722, %v3376
        %v3739 = vsel %vm3685, %v3723, %v3379
        %v3740 = vsel %vm3685, %v3724, %v3382
        %v3741 = vsel %vm3685, %v3725, %v3385
        %v3742 = vsel %vm3685, %v3726, %v3388
        %v3743 = vsel %vm3685, %v3727, %v3391
        %v3744 = vsel %vm3685, %v3728, %v3394
        %v3745 = vsel %vm3685, %v3729, %v3397
        %v3746 = vsel %vm3685, %v3730, %v3400
        %v3747 = vsel %vm3685, %v3731, %v3403
        %v3748 = vsel %vm3685, %v3732, %v3406
        %v3749 = vsel %vm3685, %v3733, %v3409
        %3766 = vrot.lane.b32.xlu0 %v2031, 32
        %v3767 = vpop.permute.xlu0 %3766
        %3768 = vrot.lane.b32.xlu0 %v2036, 32
        %v3769 = vpop.permute.xlu0 %3768
        %3770 = vrot.lane.b32.xlu0 %v2041, 32
        %v3771 = vpop.permute.xlu0 %3770
        %3772 = vrot.lane.b32.xlu0 %v2046, 32
        %v3773 = vpop.permute.xlu0 %3772
        %3774 = vrot.lane.b32.xlu0 %v2051, 32
        %v3775 = vpop.permute.xlu0 %3774
        %3776 = vrot.lane.b32.xlu0 %v2056, 32
        %v3777 = vpop.permute.xlu0 %3776
        %3778 = vrot.lane.b32.xlu0 %v2061, 32
        %v3779 = vpop.permute.xlu0 %3778
        %3780 = vrot.lane.b32.xlu0 %v2066, 32
        %v3781 = vpop.permute.xlu0 %3780
        %3782 = vrot.lane.b32.xlu0 %v2071, 32
        %v3783 = vpop.permute.xlu0 %3782
        %3784 = vrot.lane.b32.xlu0 %v2076, 32
        %v3785 = vpop.permute.xlu0 %3784
        %3786 = vrot.lane.b32.xlu0 %v2081, 32
        %v3787 = vpop.permute.xlu0 %3786
        %3788 = vrot.lane.b32.xlu0 %v2086, 32
        %v3789 = vpop.permute.xlu0 %3788
        %3790 = vrot.lane.b32.xlu0 %v2091, 32
        %v3791 = vpop.permute.xlu0 %3790
        %3792 = vrot.lane.b32.xlu0 %v2096, 32
        %v3793 = vpop.permute.xlu0 %3792
        %3794 = vrot.lane.b32.xlu0 %v2101, 32
        %v3795 = vpop.permute.xlu0 %3794
        %3796 = vrot.lane.b32.xlu0 %v2106, 32
        %v3797 = vpop.permute.xlu0 %3796
        %3830 = vrot.lane.b32.xlu0 %v2802, 64
        %v3831 = vpop.permute.xlu0 %3830
        %3832 = vrot.lane.b32.xlu0 %v2807, 64
        %v3833 = vpop.permute.xlu0 %3832
        %3834 = vrot.lane.b32.xlu0 %v2812, 64
        %v3835 = vpop.permute.xlu0 %3834
        %3836 = vrot.lane.b32.xlu0 %v2817, 64
        %v3837 = vpop.permute.xlu0 %3836
        %3838 = vrot.lane.b32.xlu0 %v2822, 64
        %v3839 = vpop.permute.xlu0 %3838
        %3840 = vrot.lane.b32.xlu0 %v2827, 64
        %v3841 = vpop.permute.xlu0 %3840
        %3842 = vrot.lane.b32.xlu0 %v2832, 64
        %v3843 = vpop.permute.xlu0 %3842
        %3844 = vrot.lane.b32.xlu0 %v2837, 64
        %v3845 = vpop.permute.xlu0 %3844
        %3846 = vrot.lane.b32.xlu0 %v2842, 64
        %v3847 = vpop.permute.xlu0 %3846
        %3848 = vrot.lane.b32.xlu0 %v2847, 64
        %v3849 = vpop.permute.xlu0 %3848
        %3850 = vrot.lane.b32.xlu0 %v2852, 64
        %v3851 = vpop.permute.xlu0 %3850
        %3852 = vrot.lane.b32.xlu0 %v2857, 64
        %v3853 = vpop.permute.xlu0 %3852
        %3854 = vrot.lane.b32.xlu0 %v2862, 64
        %v3855 = vpop.permute.xlu0 %3854
        %3856 = vrot.lane.b32.xlu0 %v2867, 64
        %v3857 = vpop.permute.xlu0 %3856
        %3858 = vrot.lane.b32.xlu0 %v2872, 64
        %v3859 = vpop.permute.xlu0 %3858
        %3860 = vrot.lane.b32.xlu0 %v2877, 64
        %v3861 = vpop.permute.xlu0 %3860
        %3894 = vrot.lane.b32.xlu0 %v3573, 96
        %v3895 = vpop.permute.xlu0 %3894
        %3896 = vrot.lane.b32.xlu0 %v3578, 96
        %v3897 = vpop.permute.xlu0 %3896
        %3898 = vrot.lane.b32.xlu0 %v3583, 96
        %v3899 = vpop.permute.xlu0 %3898
        %3900 = vrot.lane.b32.xlu0 %v3588, 96
        %v3901 = vpop.permute.xlu0 %3900
        %3902 = vrot.lane.b32.xlu0 %v3593, 96
        %v3903 = vpop.permute.xlu0 %3902
        %3904 = vrot.lane.b32.xlu0 %v3598, 96
        %v3905 = vpop.permute.xlu0 %3904
        %3906 = vrot.lane.b32.xlu0 %v3603, 96
        %v3907 = vpop.permute.xlu0 %3906
        %3908 = vrot.lane.b32.xlu0 %v3608, 96
        %v3909 = vpop.permute.xlu0 %3908
        %3910 = vrot.lane.b32.xlu0 %v3613, 96
        %v3911 = vpop.permute.xlu0 %3910
        %3912 = vrot.lane.b32.xlu0 %v3618, 96
        %v3913 = vpop.permute.xlu0 %3912
        %3914 = vrot.lane.b32.xlu0 %v3623, 96
        %v3915 = vpop.permute.xlu0 %3914
        %3916 = vrot.lane.b32.xlu0 %v3628, 96
        %v3917 = vpop.permute.xlu0 %3916
        %3918 = vrot.lane.b32.xlu0 %v3633, 96
        %v3919 = vpop.permute.xlu0 %3918
        %3920 = vrot.lane.b32.xlu0 %v3638, 96
        %v3921 = vpop.permute.xlu0 %3920
        %3922 = vrot.lane.b32.xlu0 %v3643, 96
        %v3923 = vpop.permute.xlu0 %3922
        %3924 = vrot.lane.b32.xlu0 %v3648, 96
        %v3925 = vpop.permute.xlu0 %3924
        %v3942 = vsel %vm3651, %v1228, %v3767
        %v3943 = vsel %vm3651, %v1233, %v3769
        %v3944 = vsel %vm3651, %v1238, %v3771
        %v3945 = vsel %vm3651, %v1243, %v3773
        %v3946 = vsel %vm3651, %v1248, %v3775
        %v3947 = vsel %vm3651, %v1253, %v3777
        %v3948 = vsel %vm3651, %v1258, %v3779
        %v3949 = vsel %vm3651, %v1263, %v3781
        %v3950 = vsel %vm3651, %v1268, %v3783
        %v3951 = vsel %vm3651, %v1273, %v3785
        %v3952 = vsel %vm3651, %v1278, %v3787
        %v3953 = vsel %vm3651, %v1283, %v3789
        %v3954 = vsel %vm3651, %v1288, %v3791
        %v3955 = vsel %vm3651, %v1293, %v3793
        %v3956 = vsel %vm3651, %v1298, %v3795
        %v3957 = vsel %vm3651, %v1303, %v3797
        %v3958 = vsel %vm3668, %v3942, %v3831
        %v3959 = vsel %vm3668, %v3943, %v3833
        %v3960 = vsel %vm3668, %v3944, %v3835
        %v3961 = vsel %vm3668, %v3945, %v3837
        %v3962 = vsel %vm3668, %v3946, %v3839
        %v3963 = vsel %vm3668, %v3947, %v3841
        %v3964 = vsel %vm3668, %v3948, %v3843
        %v3965 = vsel %vm3668, %v3949, %v3845
        %v3966 = vsel %vm3668, %v3950, %v3847
        %v3967 = vsel %vm3668, %v3951, %v3849
        %v3968 = vsel %vm3668, %v3952, %v3851
        %v3969 = vsel %vm3668, %v3953, %v3853
        %v3970 = vsel %vm3668, %v3954, %v3855
        %v3971 = vsel %vm3668, %v3955, %v3857
        %v3972 = vsel %vm3668, %v3956, %v3859
        %v3973 = vsel %vm3668, %v3957, %v3861
        %v3974 = vsel %vm3685, %v3958, %v3895
        %v3975 = vsel %vm3685, %v3959, %v3897
        %v3976 = vsel %vm3685, %v3960, %v3899
        %v3977 = vsel %vm3685, %v3961, %v3901
        %v3978 = vsel %vm3685, %v3962, %v3903
        %v3979 = vsel %vm3685, %v3963, %v3905
        %v3980 = vsel %vm3685, %v3964, %v3907
        %v3981 = vsel %vm3685, %v3965, %v3909
        %v3982 = vsel %vm3685, %v3966, %v3911
        %v3983 = vsel %vm3685, %v3967, %v3913
        %v3984 = vsel %vm3685, %v3968, %v3915
        %v3985 = vsel %vm3685, %v3969, %v3917
        %v3986 = vsel %vm3685, %v3970, %v3919
        %v3987 = vsel %vm3685, %v3971, %v3921
        %v3988 = vsel %vm3685, %v3972, %v3923
        %v3989 = vsel %vm3685, %v3973, %v3925
        %v3990 = vsub.f32 %v430, %v3686
        %v3991 = vsub.f32 %v431, %v3687
        %v3992 = vsub.f32 %v432, %v3688
        %v3993 = vsub.f32 %v433, %v3689
        %v3994 = vsub.f32 %v434, %v3690
        %v3995 = vsub.f32 %v435, %v3691
        %v3996 = vsub.f32 %v436, %v3692
        %v3997 = vsub.f32 %v437, %v3693
        %v3998 = vsub.f32 %v438, %v3694
        %v3999 = vsub.f32 %v439, %v3695
        %v4000 = vsub.f32 %v440, %v3696
        %v4001 = vsub.f32 %v441, %v3697
        %v4002 = vsub.f32 %v442, %v3698
        %v4003 = vsub.f32 %v443, %v3699
        %v4004 = vsub.f32 %v444, %v3700
        %v4005 = vsub.f32 %v445, %v3701
        %v4006 = vmul.f32 %v3990, 1.442695
        %v4007 = vpow.pop %v4006
        %v4008 = vmul.f32 %v3991, 1.442695
        %v4009 = vpow.pop %v4008
        %v4010 = vmul.f32 %v3992, 1.442695
        %v4011 = vpow.pop %v4010
        %v4012 = vmul.f32 %v3993, 1.442695
        %v4013 = vpow.pop %v4012
        %v4014 = vmul.f32 %v3994, 1.442695
        %v4015 = vpow.pop %v4014
        %v4016 = vmul.f32 %v3995, 1.442695
        %v4017 = vpow.pop %v4016
        %v4018 = vmul.f32 %v3996, 1.442695
        %v4019 = vpow.pop %v4018
        %v4020 = vmul.f32 %v3997, 1.442695
        %v4021 = vpow.pop %v4020
        %v4022 = vmul.f32 %v3998, 1.442695
        %v4023 = vpow.pop %v4022
        %v4024 = vmul.f32 %v3999, 1.442695
        %v4025 = vpow.pop %v4024
        %v4026 = vmul.f32 %v4000, 1.442695
        %v4027 = vpow.pop %v4026
        %v4028 = vmul.f32 %v4001, 1.442695
        %v4029 = vpow.pop %v4028
        %v4030 = vmul.f32 %v4002, 1.442695
        %v4031 = vpow.pop %v4030
        %v4032 = vmul.f32 %v4003, 1.442695
        %v4033 = vpow.pop %v4032
        %v4034 = vmul.f32 %v4004, 1.442695
        %v4035 = vpow.pop %v4034
        %v4036 = vmul.f32 %v4005, 1.442695
        %v4037 = vpow.pop %v4036
        %v4038 = vld [vmem:[#allocation3] sm:$0xff]
        %v4039 = vld [vmem:[#allocation3 + $0x8] sm:$0xff]
        %v4040 = vld [vmem:[#allocation3 + $0x10] sm:$0xff]
        %v4041 = vld [vmem:[#allocation3 + $0x18] sm:$0xff]
        %v4042 = vld [vmem:[#allocation3 + $0x20] sm:$0xff]
        %v4043 = vld [vmem:[#allocation3 + $0x28] sm:$0xff]
        %v4044 = vld [vmem:[#allocation3 + $0x30] sm:$0xff]
        %v4045 = vld [vmem:[#allocation3 + $0x38] sm:$0xff]
        %v4046 = vld [vmem:[#allocation3 + $0x40] sm:$0xff]
        %v4047 = vld [vmem:[#allocation3 + $0x48] sm:$0xff]
        %v4048 = vld [vmem:[#allocation3 + $0x50] sm:$0xff]
        %v4049 = vld [vmem:[#allocation3 + $0x58] sm:$0xff]
        %v4050 = vld [vmem:[#allocation3 + $0x60] sm:$0xff]
        %v4051 = vld [vmem:[#allocation3 + $0x68] sm:$0xff]
        %v4052 = vld [vmem:[#allocation3 + $0x70] sm:$0xff]
        %v4053 = vld [vmem:[#allocation3 + $0x78] sm:$0xff]
        %v4054 = vmul.f32 %v4007, %v4038
        %v4055 = vmul.f32 %v4009, %v4039
        %v4056 = vmul.f32 %v4011, %v4040
        %v4057 = vmul.f32 %v4013, %v4041
        %v4058 = vmul.f32 %v4015, %v4042
        %v4059 = vmul.f32 %v4017, %v4043
        %v4060 = vmul.f32 %v4019, %v4044
        %v4061 = vmul.f32 %v4021, %v4045
        %v4062 = vmul.f32 %v4023, %v4046
        %v4063 = vmul.f32 %v4025, %v4047
        %v4064 = vmul.f32 %v4027, %v4048
        %v4065 = vmul.f32 %v4029, %v4049
        %v4066 = vmul.f32 %v4031, %v4050
        %v4067 = vmul.f32 %v4033, %v4051
        %v4068 = vmul.f32 %v4035, %v4052
        %v4069 = vmul.f32 %v4037, %v4053
        %v4070 = vadd.f32 %v4054, %v3734
        %v4071 = vadd.f32 %v4055, %v3735
        %v4072 = vadd.f32 %v4056, %v3736
        %v4073 = vadd.f32 %v4057, %v3737
        %v4074 = vadd.f32 %v4058, %v3738
        %v4075 = vadd.f32 %v4059, %v3739
        %v4076 = vadd.f32 %v4060, %v3740
        %v4077 = vadd.f32 %v4061, %v3741
        %v4078 = vadd.f32 %v4062, %v3742
        %v4079 = vadd.f32 %v4063, %v3743
        %v4080 = vadd.f32 %v4064, %v3744
        %v4081 = vadd.f32 %v4065, %v3745
        %v4082 = vadd.f32 %v4066, %v3746
        %v4083 = vadd.f32 %v4067, %v3747
        %v4084 = vadd.f32 %v4068, %v3748
        %v4085 = vadd.f32 %v4069, %v3749
        %4086 = vst [vmem:[#allocation3] sm:$0xff] %v4070
        %4087 = vst [vmem:[#allocation3 + $0x8] sm:$0xff] %v4071
        %4088 = vst [vmem:[#allocation3 + $0x10] sm:$0xff] %v4072
        %4089 = vst [vmem:[#allocation3 + $0x18] sm:$0xff] %v4073
        %4090 = vst [vmem:[#allocation3 + $0x20] sm:$0xff] %v4074
        %4091 = vst [vmem:[#allocation3 + $0x28] sm:$0xff] %v4075
        %4092 = vst [vmem:[#allocation3 + $0x30] sm:$0xff] %v4076
        %4093 = vst [vmem:[#allocation3 + $0x38] sm:$0xff] %v4077
        %4094 = vst [vmem:[#allocation3 + $0x40] sm:$0xff] %v4078
        %4095 = vst [vmem:[#allocation3 + $0x48] sm:$0xff] %v4079
        %4096 = vst [vmem:[#allocation3 + $0x50] sm:$0xff] %v4080
        %4097 = vst [vmem:[#allocation3 + $0x58] sm:$0xff] %v4081
        %4098 = vst [vmem:[#allocation3 + $0x60] sm:$0xff] %v4082
        %4099 = vst [vmem:[#allocation3 + $0x68] sm:$0xff] %v4083
        %4100 = vst [vmem:[#allocation3 + $0x70] sm:$0xff] %v4084
        %4101 = vst [vmem:[#allocation3 + $0x78] sm:$0xff] %v4085
        %v4102 = vld [vmem:[#allocation4] sm:$0xff]
        %v4103 = vld [vmem:[#allocation4 + $0x8] sm:$0xff]
        %v4104 = vld [vmem:[#allocation4 + $0x10] sm:$0xff]
        %v4105 = vld [vmem:[#allocation4 + $0x18] sm:$0xff]
        %v4106 = vld [vmem:[#allocation4 + $0x20] sm:$0xff]
        %v4107 = vld [vmem:[#allocation4 + $0x28] sm:$0xff]
        %v4108 = vld [vmem:[#allocation4 + $0x30] sm:$0xff]
        %v4109 = vld [vmem:[#allocation4 + $0x38] sm:$0xff]
        %v4110 = vld [vmem:[#allocation4 + $0x40] sm:$0xff]
        %v4111 = vld [vmem:[#allocation4 + $0x48] sm:$0xff]
        %v4112 = vld [vmem:[#allocation4 + $0x50] sm:$0xff]
        %v4113 = vld [vmem:[#allocation4 + $0x58] sm:$0xff]
        %v4114 = vld [vmem:[#allocation4 + $0x60] sm:$0xff]
        %v4115 = vld [vmem:[#allocation4 + $0x68] sm:$0xff]
        %v4116 = vld [vmem:[#allocation4 + $0x70] sm:$0xff]
        %v4117 = vld [vmem:[#allocation4 + $0x78] sm:$0xff]
        %v4118 = vmul.f32 %v4007, %v4102
        %v4119 = vmul.f32 %v4009, %v4103
        %v4120 = vmul.f32 %v4011, %v4104
        %v4121 = vmul.f32 %v4013, %v4105
        %v4122 = vmul.f32 %v4015, %v4106
        %v4123 = vmul.f32 %v4017, %v4107
        %v4124 = vmul.f32 %v4019, %v4108
        %v4125 = vmul.f32 %v4021, %v4109
        %v4126 = vmul.f32 %v4023, %v4110
        %v4127 = vmul.f32 %v4025, %v4111
        %v4128 = vmul.f32 %v4027, %v4112
        %v4129 = vmul.f32 %v4029, %v4113
        %v4130 = vmul.f32 %v4031, %v4114
        %v4131 = vmul.f32 %v4033, %v4115
        %v4132 = vmul.f32 %v4035, %v4116
        %v4133 = vmul.f32 %v4037, %v4117
        %v4134 = vadd.f32 %v4118, %v3974
        %v4135 = vadd.f32 %v4119, %v3975
        %v4136 = vadd.f32 %v4120, %v3976
        %v4137 = vadd.f32 %v4121, %v3977
        %v4138 = vadd.f32 %v4122, %v3978
        %v4139 = vadd.f32 %v4123, %v3979
        %v4140 = vadd.f32 %v4124, %v3980
        %v4141 = vadd.f32 %v4125, %v3981
        %v4142 = vadd.f32 %v4126, %v3982
        %v4143 = vadd.f32 %v4127, %v3983
        %v4144 = vadd.f32 %v4128, %v3984
        %v4145 = vadd.f32 %v4129, %v3985
        %v4146 = vadd.f32 %v4130, %v3986
        %v4147 = vadd.f32 %v4131, %v3987
        %v4148 = vadd.f32 %v4132, %v3988
        %v4149 = vadd.f32 %v4133, %v3989
        %4150 = vst [vmem:[#allocation4] sm:$0xff] %v4134
        %4151 = vst [vmem:[#allocation4 + $0x8] sm:$0xff] %v4135
        %4152 = vst [vmem:[#allocation4 + $0x10] sm:$0xff] %v4136
        %4153 = vst [vmem:[#allocation4 + $0x18] sm:$0xff] %v4137
        %4154 = vst [vmem:[#allocation4 + $0x20] sm:$0xff] %v4138
        %4155 = vst [vmem:[#allocation4 + $0x28] sm:$0xff] %v4139
        %4156 = vst [vmem:[#allocation4 + $0x30] sm:$0xff] %v4140
        %4157 = vst [vmem:[#allocation4 + $0x38] sm:$0xff] %v4141
        %4158 = vst [vmem:[#allocation4 + $0x40] sm:$0xff] %v4142
        %4159 = vst [vmem:[#allocation4 + $0x48] sm:$0xff] %v4143
        %4160 = vst [vmem:[#allocation4 + $0x50] sm:$0xff] %v4144
        %4161 = vst [vmem:[#allocation4 + $0x58] sm:$0xff] %v4145
        %4162 = vst [vmem:[#allocation4 + $0x60] sm:$0xff] %v4146
        %4163 = vst [vmem:[#allocation4 + $0x68] sm:$0xff] %v4147
        %4164 = vst [vmem:[#allocation4 + $0x70] sm:$0xff] %v4148
        %4165 = vst [vmem:[#allocation4 + $0x78] sm:$0xff] %v4149
        %4166 = vst [vmem:[#allocation2] sm:$0xff] %v3686
        %4167 = vst [vmem:[#allocation2 + $0x8] sm:$0xff] %v3687
        %4168 = vst [vmem:[#allocation2 + $0x10] sm:$0xff] %v3688
        %4169 = vst [vmem:[#allocation2 + $0x18] sm:$0xff] %v3689
        %4170 = vst [vmem:[#allocation2 + $0x20] sm:$0xff] %v3690
        %4171 = vst [vmem:[#allocation2 + $0x28] sm:$0xff] %v3691
        %4172 = vst [vmem:[#allocation2 + $0x30] sm:$0xff] %v3692
        %4173 = vst [vmem:[#allocation2 + $0x38] sm:$0xff] %v3693
        %4174 = vst [vmem:[#allocation2 + $0x40] sm:$0xff] %v3694
        %4175 = vst [vmem:[#allocation2 + $0x48] sm:$0xff] %v3695
        %4176 = vst [vmem:[#allocation2 + $0x50] sm:$0xff] %v3696
        %4177 = vst [vmem:[#allocation2 + $0x58] sm:$0xff] %v3697
        %4178 = vst [vmem:[#allocation2 + $0x60] sm:$0xff] %v3698
        %4179 = vst [vmem:[#allocation2 + $0x68] sm:$0xff] %v3699
        %4180 = vst [vmem:[#allocation2 + $0x70] sm:$0xff] %v3700
        %4181 = vst [vmem:[#allocation2 + $0x78] sm:$0xff] %v3701
      $region44: #{gat_forward.7} parent=35 // pred_fallthru
        _
      // Predicated region
      $region45: #{gat_forward.7} parent=35 // pred_check
        %p4182 = pneg %p307
      $region46: #{gat_forward.7} parent=35 // pred_check_branch
        %4184 = sbr.rel (%p4182) target = $region48
      $region47: #{gat_forward.7} parent=35 // pred_region
        %v4185 = vld [vmem:[#allocation3] sm:$0xff]
        %v4186 = vld [vmem:[#allocation3 + $0x8] sm:$0xff]
        %v4187 = vld [vmem:[#allocation3 + $0x10] sm:$0xff]
        %v4188 = vld [vmem:[#allocation3 + $0x18] sm:$0xff]
        %v4189 = vld [vmem:[#allocation3 + $0x20] sm:$0xff]
        %v4190 = vld [vmem:[#allocation3 + $0x28] sm:$0xff]
        %v4191 = vld [vmem:[#allocation3 + $0x30] sm:$0xff]
        %v4192 = vld [vmem:[#allocation3 + $0x38] sm:$0xff]
        %v4193 = vld [vmem:[#allocation3 + $0x40] sm:$0xff]
        %v4194 = vld [vmem:[#allocation3 + $0x48] sm:$0xff]
        %v4195 = vld [vmem:[#allocation3 + $0x50] sm:$0xff]
        %v4196 = vld [vmem:[#allocation3 + $0x58] sm:$0xff]
        %v4197 = vld [vmem:[#allocation3 + $0x60] sm:$0xff]
        %v4198 = vld [vmem:[#allocation3 + $0x68] sm:$0xff]
        %v4199 = vld [vmem:[#allocation3 + $0x70] sm:$0xff]
        %v4200 = vld [vmem:[#allocation3 + $0x78] sm:$0xff]
        %vm4201 = vcmp.gt.f32.partialorder %v4185, 0.0
        %vm4202 = vcmp.gt.f32.partialorder %v4186, 0.0
        %vm4203 = vcmp.gt.f32.partialorder %v4187, 0.0
        %vm4204 = vcmp.gt.f32.partialorder %v4188, 0.0
        %vm4205 = vcmp.gt.f32.partialorder %v4189, 0.0
        %vm4206 = vcmp.gt.f32.partialorder %v4190, 0.0
        %vm4207 = vcmp.gt.f32.partialorder %v4191, 0.0
        %vm4208 = vcmp.gt.f32.partialorder %v4192, 0.0
        %vm4209 = vcmp.gt.f32.partialorder %v4193, 0.0
        %vm4210 = vcmp.gt.f32.partialorder %v4194, 0.0
        %vm4211 = vcmp.gt.f32.partialorder %v4195, 0.0
        %vm4212 = vcmp.gt.f32.partialorder %v4196, 0.0
        %vm4213 = vcmp.gt.f32.partialorder %v4197, 0.0
        %vm4214 = vcmp.gt.f32.partialorder %v4198, 0.0
        %vm4215 = vcmp.gt.f32.partialorder %v4199, 0.0
        %vm4216 = vcmp.gt.f32.partialorder %v4200, 0.0
        %v4217 = vsel %vm4201, %v4185, 1.0
        %v4218 = vsel %vm4202, %v4186, 1.0
        %v4219 = vsel %vm4203, %v4187, 1.0
        %v4220 = vsel %vm4204, %v4188, 1.0
        %v4221 = vsel %vm4205, %v4189, 1.0
        %v4222 = vsel %vm4206, %v4190, 1.0
        %v4223 = vsel %vm4207, %v4191, 1.0
        %v4224 = vsel %vm4208, %v4192, 1.0
        %v4225 = vsel %vm4209, %v4193, 1.0
        %v4226 = vsel %vm4210, %v4194, 1.0
        %v4227 = vsel %vm4211, %v4195, 1.0
        %v4228 = vsel %vm4212, %v4196, 1.0
        %v4229 = vsel %vm4213, %v4197, 1.0
        %v4230 = vsel %vm4214, %v4198, 1.0
        %v4231 = vsel %vm4215, %v4199, 1.0
        %v4232 = vsel %vm4216, %v4200, 1.0
        %v4233 = vld [vmem:[#allocation4] sm:$0xff]
        %v4234 = vld [vmem:[#allocation4 + $0x8] sm:$0xff]
        %v4235 = vld [vmem:[#allocation4 + $0x10] sm:$0xff]
        %v4236 = vld [vmem:[#allocation4 + $0x18] sm:$0xff]
        %v4237 = vld [vmem:[#allocation4 + $0x20] sm:$0xff]
        %v4238 = vld [vmem:[#allocation4 + $0x28] sm:$0xff]
        %v4239 = vld [vmem:[#allocation4 + $0x30] sm:$0xff]
        %v4240 = vld [vmem:[#allocation4 + $0x38] sm:$0xff]
        %v4241 = vld [vmem:[#allocation4 + $0x40] sm:$0xff]
        %v4242 = vld [vmem:[#allocation4 + $0x48] sm:$0xff]
        %v4243 = vld [vmem:[#allocation4 + $0x50] sm:$0xff]
        %v4244 = vld [vmem:[#allocation4 + $0x58] sm:$0xff]
        %v4245 = vld [vmem:[#allocation4 + $0x60] sm:$0xff]
        %v4246 = vld [vmem:[#allocation4 + $0x68] sm:$0xff]
        %v4247 = vld [vmem:[#allocation4 + $0x70] sm:$0xff]
        %v4248 = vld [vmem:[#allocation4 + $0x78] sm:$0xff]
        %v4249 = vrcp.pop %v4217
        %v4250 = vrcp.pop %v4218
        %v4251 = vrcp.pop %v4219
        %v4252 = vrcp.pop %v4220
        %v4253 = vrcp.pop %v4221
        %v4254 = vrcp.pop %v4222
        %v4255 = vrcp.pop %v4223
        %v4256 = vrcp.pop %v4224
        %v4257 = vrcp.pop %v4225
        %v4258 = vrcp.pop %v4226
        %v4259 = vrcp.pop %v4227
        %v4260 = vrcp.pop %v4228
        %v4261 = vrcp.pop %v4229
        %v4262 = vrcp.pop %v4230
        %v4263 = vrcp.pop %v4231
        %v4264 = vrcp.pop %v4232
        %v4265 = vmul.f32 %v4233, %v4249
        %v4266 = vmul.f32 %v4234, %v4250
        %v4267 = vmul.f32 %v4235, %v4251
        %v4268 = vmul.f32 %v4236, %v4252
        %v4269 = vmul.f32 %v4237, %v4253
        %v4270 = vmul.f32 %v4238, %v4254
        %v4271 = vmul.f32 %v4239, %v4255
        %v4272 = vmul.f32 %v4240, %v4256
        %v4273 = vmul.f32 %v4241, %v4257
        %v4274 = vmul.f32 %v4242, %v4258
        %v4275 = vmul.f32 %v4243, %v4259
        %v4276 = vmul.f32 %v4244, %v4260
        %v4277 = vmul.f32 %v4245, %v4261
        %v4278 = vmul.f32 %v4246, %v4262
        %v4279 = vmul.f32 %v4247, %v4263
        %v4280 = vmul.f32 %v4248, %v4264
        %vm4281 = vcmp.gt.f32.partialorder %v4265, 0.0
        %vm4282 = vcmp.gt.f32.partialorder %v4266, 0.0
        %vm4283 = vcmp.gt.f32.partialorder %v4267, 0.0
        %vm4284 = vcmp.gt.f32.partialorder %v4268, 0.0
        %vm4285 = vcmp.gt.f32.partialorder %v4269, 0.0
        %vm4286 = vcmp.gt.f32.partialorder %v4270, 0.0
        %vm4287 = vcmp.gt.f32.partialorder %v4271, 0.0
        %vm4288 = vcmp.gt.f32.partialorder %v4272, 0.0
        %vm4289 = vcmp.gt.f32.partialorder %v4273, 0.0
        %vm4290 = vcmp.gt.f32.partialorder %v4274, 0.0
        %vm4291 = vcmp.gt.f32.partialorder %v4275, 0.0
        %vm4292 = vcmp.gt.f32.partialorder %v4276, 0.0
        %vm4293 = vcmp.gt.f32.partialorder %v4277, 0.0
        %vm4294 = vcmp.gt.f32.partialorder %v4278, 0.0
        %vm4295 = vcmp.gt.f32.partialorder %v4279, 0.0
        %vm4296 = vcmp.gt.f32.partialorder %v4280, 0.0
        %v4297 = vmul.f32 %v4265, 1.442695
        %v4298 = vpow.pop %v4297
        %v4299 = vmul.f32 %v4266, 1.442695
        %v4300 = vpow.pop %v4299
        %v4301 = vmul.f32 %v4267, 1.442695
        %v4302 = vpow.pop %v4301
        %v4303 = vmul.f32 %v4268, 1.442695
        %v4304 = vpow.pop %v4303
        %v4305 = vmul.f32 %v4269, 1.442695
        %v4306 = vpow.pop %v4305
        %v4307 = vmul.f32 %v4270, 1.442695
        %v4308 = vpow.pop %v4307
        %v4309 = vmul.f32 %v4271, 1.442695
        %v4310 = vpow.pop %v4309
        %v4311 = vmul.f32 %v4272, 1.442695
        %v4312 = vpow.pop %v4311
        %v4313 = vmul.f32 %v4273, 1.442695
        %v4314 = vpow.pop %v4313
        %v4315 = vmul.f32 %v4274, 1.442695
        %v4316 = vpow.pop %v4315
        %v4317 = vmul.f32 %v4275, 1.442695
        %v4318 = vpow.pop %v4317
        %v4319 = vmul.f32 %v4276, 1.442695
        %v4320 = vpow.pop %v4319
        %v4321 = vmul.f32 %v4277, 1.442695
        %v4322 = vpow.pop %v4321
        %v4323 = vmul.f32 %v4278, 1.442695
        %v4324 = vpow.pop %v4323
        %v4325 = vmul.f32 %v4279, 1.442695
        %v4326 = vpow.pop %v4325
        %v4327 = vmul.f32 %v4280, 1.442695
        %v4328 = vpow.pop %v4327
        %v4329 = vsub.f32 %v4298, 1.0
        %v4330 = vsub.f32 %v4300, 1.0
        %v4331 = vsub.f32 %v4302, 1.0
        %v4332 = vsub.f32 %v4304, 1.0
        %v4333 = vsub.f32 %v4306, 1.0
        %v4334 = vsub.f32 %v4308, 1.0
        %v4335 = vsub.f32 %v4310, 1.0
        %v4336 = vsub.f32 %v4312, 1.0
        %v4337 = vsub.f32 %v4314, 1.0
        %v4338 = vsub.f32 %v4316, 1.0
        %v4339 = vsub.f32 %v4318, 1.0
        %v4340 = vsub.f32 %v4320, 1.0
        %v4341 = vsub.f32 %v4322, 1.0
        %v4342 = vsub.f32 %v4324, 1.0
        %v4343 = vsub.f32 %v4326, 1.0
        %v4344 = vsub.f32 %v4328, 1.0
        %v4345 = vsel %vm4281, %v4265, %v4329
        %v4346 = vsel %vm4282, %v4266, %v4330
        %v4347 = vsel %vm4283, %v4267, %v4331
        %v4348 = vsel %vm4284, %v4268, %v4332
        %v4349 = vsel %vm4285, %v4269, %v4333
        %v4350 = vsel %vm4286, %v4270, %v4334
        %v4351 = vsel %vm4287, %v4271, %v4335
        %v4352 = vsel %vm4288, %v4272, %v4336
        %v4353 = vsel %vm4289, %v4273, %v4337
        %v4354 = vsel %vm4290, %v4274, %v4338
        %v4355 = vsel %vm4291, %v4275, %v4339
        %v4356 = vsel %vm4292, %v4276, %v4340
        %v4357 = vsel %vm4293, %v4277, %v4341
        %v4358 = vsel %vm4294, %v4278, %v4342
        %v4359 = vsel %vm4295, %v4279, %v4343
        %v4360 = vsel %vm4296, %v4280, %v4344
        %4361 = vst [vmem:[%s303] sm:$0xff] %v4345
        %4362 = vst [vmem:[%s303 + $0x8] sm:$0xff] %v4346
        %4363 = vst [vmem:[%s303 + $0x10] sm:$0xff] %v4347
        %4364 = vst [vmem:[%s303 + $0x18] sm:$0xff] %v4348
        %4365 = vst [vmem:[%s303 + $0x20] sm:$0xff] %v4349
        %4366 = vst [vmem:[%s303 + $0x28] sm:$0xff] %v4350
        %4367 = vst [vmem:[%s303 + $0x30] sm:$0xff] %v4351
        %4368 = vst [vmem:[%s303 + $0x38] sm:$0xff] %v4352
        %4369 = vst [vmem:[%s303 + $0x40] sm:$0xff] %v4353
        %4370 = vst [vmem:[%s303 + $0x48] sm:$0xff] %v4354
        %4371 = vst [vmem:[%s303 + $0x50] sm:$0xff] %v4355
        %4372 = vst [vmem:[%s303 + $0x58] sm:$0xff] %v4356
        %4373 = vst [vmem:[%s303 + $0x60] sm:$0xff] %v4357
        %4374 = vst [vmem:[%s303 + $0x68] sm:$0xff] %v4358
        %4375 = vst [vmem:[%s303 + $0x70] sm:$0xff] %v4359
        %4376 = vst [vmem:[%s303 + $0x78] sm:$0xff] %v4360
      $region48: #{gat_forward.7} parent=35 // pred_fallthru
        _
      %s4377 = smul.u32 16, %s26
      %p4378 = scmp.lt.s32.totalorder %s4377, 31
      %s4379 = scalar_select %p4378, %s4377, 31
      %s4380 = smul.addr %s4379, 8
      %s4381 = scalar_lea.vmem %s5, %s4380
      // Predicated region
      $region49: #{gat_forward.7} parent=35 // pred_check
        %p4382 = pneg %p158
      $region50: #{gat_forward.7} parent=35 // pred_check_branch
        %4384 = sbr.rel (%p4382) target = $region52
      $region51: #{gat_forward.7} parent=35 // pred_region
        %s4385 = smul.u32 16, %s26
      $region52: #{gat_forward.7} parent=35 // pred_fallthru
        _
    $region36: #{gat_forward.7} parent=5 // pred_fallthru
      _
    %p4386 = scmp.le.s32.totalorder 2, %s17
    // Predicated region
    $region53: #{gat_forward.7} parent=5 // pred_check
      %p4387 = pneg %p4386
    $region54: #{gat_forward.7} parent=5 // pred_check_branch
      %4389 = sbr.rel (%p4387) target = $region56
    $region55: #{gat_forward.7} parent=5 // pred_region
      %s4390 = ssub.s32 %s17, 2
      // Predicated region
      $region57: #{gat_forward.7} parent=55 // pred_check
        %p4391 = pneg %p164
      $region58: #{gat_forward.7} parent=55 // pred_check_branch
        %4393 = sbr.rel (%p4391) target = $region60
      $region59: #{gat_forward.7} parent=55 // pred_region
        %s4394 = smul.u32 16, %s28
        %p4395 = scmp.lt.s32.totalorder %s4394, 31
        %s4396 = scalar_select %p4395, %s4394, 31
        %s4397 = smul.addr %s4396, 8
        %s4398 = scalar_lea.vmem %s5, %s4397
      $region60: #{gat_forward.7} parent=55 // pred_fallthru
        _
    $region56: #{gat_forward.7} parent=5 // pred_fallthru
      _
  $region6: #{gat_forward.7} parent=0 // loop_footer
    %s21 = sadd.s32 1, %s17
  $region7: #{gat_forward.7} parent=0 // loop_footer_branch
    %16 = sbr.rel target = $region3
  $region8: #{gat_forward.7} parent=0 // loop_exit
    _

</llo_original>
